<compile_context>
chip_gen: v6e
topology: v6e:2x2x1
jax: 0.10.0
libtpu: 0.0.40
codegen_flags: <defaults>
</compile_context>

<pallas_src>
import functools

import jax
import jax.numpy as jnp
from jax import lax
from jax.experimental import pallas as pl
from jax.experimental.pallas import tpu as pltpu


# ----------------------------------------------------------------------------
# Pallas kernel: fused multi-layer bidirectional LSTM stack.
#   refs = (x0, mask, [wih, bias, whh_fwd, whh_rev] * n_layers,
#           out_fwd, out_rev, gx_scratch)
#   x0       : [T*Bp, E]   bf16   embedded input (time-major, batch padded)
#   mask     : [T*Bp, 1]   f32    1.0 = valid token, 0.0 = padding
#   wih      : [D_l, 8H]   bf16   input->gate weights, fwd gates | rev gates
#   bias     : [1, 8H]     f32    b_ih + b_hh, fwd | rev
#   whh_*    : [H, 4H]     bf16   recurrent weights (PyTorch gate order i,f,g,o)
#   out_fwd  : [T*Bp, H]   f32    forward-direction outputs (0 at padding)
#   out_rev  : [T*Bp, H]   f32    reverse-direction outputs (0 at padding)
#   gx       : [T*Bp, 8H]  f32    VMEM scratch: hoisted x-projection (per layer)
# ----------------------------------------------------------------------------
def _lstm_stack_kernel(*refs, n_layers, batch_pad):
    x0_ref, m_ref = refs[0], refs[1]
    w_refs = refs[2:2 + 4 * n_layers]
    of_ref, orv_ref, gx_ref = refs[2 + 4 * n_layers:]

    TB = x0_ref.shape[0]
    Bp = batch_pad
    T = TB // Bp
    H = w_refs[2].shape[0]
    G = 4 * H
    mxu_dtype = w_refs[0].dtype

    for layer in range(n_layers):
        wih_ref = w_refs[4 * layer + 0]
        bias = w_refs[4 * layer + 1][...]          # [1, 8H] f32
        w_f = w_refs[4 * layer + 2][...]           # [H, 4H] bf16 (VMEM/vreg resident)
        w_r = w_refs[4 * layer + 3][...]

        # ---- hoisted, time-independent input projection (big MXU matmuls) ----
        if layer == 0:
            gx = jnp.dot(x0_ref[...], wih_ref[...],
                         preferred_element_type=jnp.float32)
        else:
            # previous layer's outputs live in the output buffers (VMEM)
            xf = of_ref[...].astype(mxu_dtype)     # [T*Bp, H]
            xr = orv_ref[...].astype(mxu_dtype)
            gx = (jnp.dot(xf, wih_ref[pl.ds(0, H), :],
                          preferred_element_type=jnp.float32)
                  + jnp.dot(xr, wih_ref[pl.ds(H, H), :],
                            preferred_element_type=jnp.float32))
        gx_ref[...] = gx + bias                    # [T*Bp, 8H] f32 gate slab

        # ---- sequential recurrence; fwd + rev fused in one loop over T ----
        def cell(gx_t, m_t, h, c, w):
            gates = gx_t + jnp.dot(h.astype(w.dtype), w,
                                   preferred_element_type=jnp.float32)
            i_g = jax.nn.sigmoid(gates[:, 0 * H:1 * H])
            f_g = jax.nn.sigmoid(gates[:, 1 * H:2 * H])
            g_g = jnp.tanh(gates[:, 2 * H:3 * H])
            o_g = jax.nn.sigmoid(gates[:, 3 * H:4 * H])
            c_new = f_g * c + i_g * g_g
            h_new = o_g * jnp.tanh(c_new)
            valid = m_t > 0.0
            # padded steps: carry state unchanged, emit exact zeros
            return (jnp.where(valid, h_new, h),
                    jnp.where(valid, c_new, c),
                    jnp.where(valid, h_new, jnp.zeros_like(h_new)))

        def step(t, carry):
            h_f, c_f, h_r, c_r = carry
            i_f = pl.multiple_of(t * Bp, 8)
            i_r = pl.multiple_of((T - 1 - t) * Bp, 8)

            gx_f = gx_ref[pl.ds(i_f, Bp), :]                       # [Bp, 8H]
            h_f, c_f, out_f = cell(gx_f[:, :G], m_ref[pl.ds(i_f, Bp), :],
                                   h_f, c_f, w_f)
            of_ref[pl.ds(i_f, Bp), :] = out_f

            gx_r = gx_ref[pl.ds(i_r, Bp), :]
            h_r, c_r, out_r = cell(gx_r[:, G:], m_ref[pl.ds(i_r, Bp), :],
                                   h_r, c_r, w_r)
            orv_ref[pl.ds(i_r, Bp), :] = out_r
            return h_f, c_f, h_r, c_r

        z = jnp.zeros((Bp, H), jnp.float32)
        lax.fori_loop(0, T, step, (z, z, z, z), unroll=(T <= 16))


# ----------------------------------------------------------------------------
# Parameter init (deterministic, shapes per the torch module's __init__)
# ----------------------------------------------------------------------------
def init_params(key, n_words, n_embed, n_hidden, n_layers, bidirectional=True):
    params = {}
    key, k_e = jax.random.split(key)
    # nn.Embedding default init: N(0, 1); rows = n_words + 1 (pad row appended)
    params["embed"] = jax.random.normal(k_e, (n_words + 1, n_embed), jnp.float32)

    dirs = 2 if bidirectional else 1
    bound = 1.0 / float(n_hidden) ** 0.5
    layers = []
    in_size = n_embed
    for _ in range(n_layers):
        layer = []
        for _d in range(dirs):
            key, k1, k2, k3, k4 = jax.random.split(key, 5)
            w_ih = jax.random.uniform(k1, (in_size, 4 * n_hidden), jnp.float32, -bound, bound)
            w_hh = jax.random.uniform(k2, (n_hidden, 4 * n_hidden), jnp.float32, -bound, bound)
            b_ih = jax.random.uniform(k3, (4 * n_hidden,), jnp.float32, -bound, bound)
            b_hh = jax.random.uniform(k4, (4 * n_hidden,), jnp.float32, -bound, bound)
            layer.append((w_ih, w_hh, b_ih + b_hh))
        layers.append(layer)
        in_size = n_hidden * dirs
    params["lstm"] = layers
    return params


# ----------------------------------------------------------------------------
# Full LstmEncoder forward
# ----------------------------------------------------------------------------
def lstm_encoder_forward(params, words, *, n_words, char_pad_idx=-1,
                         mxu_dtype=jnp.bfloat16):
    """words: [B, T] int32 (char_pad_idx marks padding). Returns [B, T, 2H] f32."""
    pad_map_index = n_words
    words = jnp.where(words == char_pad_idx, pad_map_index, words)     # masked_fill_
    mask = words != pad_map_index                                      # [B, T] bool

    # Embedding lookup is glue (gather); the LSTM stack is the hot path.
    embed = jnp.take(params["embed"], words, axis=0)                   # [B, T, E]

    B, T = words.shape
    Bp = ((B + 7) // 8) * 8                     # pad batch to a sublane multiple
    H = params["lstm"][0][0][1].shape[0]
    n_layers = len(params["lstm"])

    x = jnp.transpose(embed, (1, 0, 2)).astype(jnp.float32)            # [T, B, E]
    m = jnp.transpose(mask, (1, 0)).astype(jnp.float32)[:, :, None]    # [T, B, 1]
    if Bp != B:
        x = jnp.pad(x, ((0, 0), (0, Bp - B), (0, 0)))
        m = jnp.pad(m, ((0, 0), (0, Bp - B), (0, 0)))
    x2 = x.reshape(T * Bp, -1).astype(mxu_dtype)                       # [T*Bp, E] bf16
    m2 = m.reshape(T * Bp, 1)                                          # [T*Bp, 1] f32

    args = [x2, m2]
    in_specs = [pl.BlockSpec(x2.shape, lambda i: (0, 0)),
                pl.BlockSpec(m2.shape, lambda i: (0, 0))]
    for (w_ih_f, w_hh_f, b_f), (w_ih_r, w_hh_r, b_r) in params["lstm"]:
        # fwd/rev input->gate weights fused into one [D, 8H] matrix
        wih = jnp.concatenate([w_ih_f, w_ih_r], axis=1).astype(mxu_dtype)
        bias = jnp.concatenate([b_f, b_r], axis=-1)[None, :]           # [1, 8H]
        for a in (wih, bias, w_hh_f.astype(mxu_dtype), w_hh_r.astype(mxu_dtype)):
            args.append(a)
            in_specs.append(pl.BlockSpec(a.shape, lambda i: (0, 0)))

    out_f, out_r = pl.pallas_call(
        functools.partial(_lstm_stack_kernel, n_layers=n_layers, batch_pad=Bp),
        out_shape=(jax.ShapeDtypeStruct((T * Bp, H), jnp.float32),
                   jax.ShapeDtypeStruct((T * Bp, H), jnp.float32)),
        grid_spec=pltpu.PrefetchScalarGridSpec(
            num_scalar_prefetch=0,
            grid=(1,),
            in_specs=in_specs,
            out_specs=[pl.BlockSpec((T * Bp, H), lambda i: (0, 0)),
                       pl.BlockSpec((T * Bp, H), lambda i: (0, 0))],
            scratch_shapes=[pltpu.VMEM((T * Bp, 8 * H), jnp.float32)]),
        compiler_params=pltpu.CompilerParams(
            dimension_semantics=("arbitrary",)),
    )(*args)

    out = jnp.concatenate([out_f, out_r], axis=-1)                     # [T*Bp, 2H]
    out = out.reshape(T, Bp, 2 * H)[:, :B]                             # [T, B, 2H]
    # SharedDropout -> identity (eval mode)
    return jnp.transpose(out, (1, 0, 2))                               # [B, T, 2H]


# ----------------------------------------------------------------------------
# Pure-JAX reference (same math / same MXU dtype) for a correctness check
# ----------------------------------------------------------------------------
def _ref_direction(gx, m, w_hh, reverse):
    T, B, G = gx.shape
    H = G // 4
    h = jnp.zeros((B, H), jnp.float32)
    c = jnp.zeros((B, H), jnp.float32)
    outs = [None] * T
    order = range(T - 1, -1, -1) if reverse else range(T)
    for t in order:
        gates = gx[t] + jnp.dot(h.astype(w_hh.dtype), w_hh,
                                preferred_element_type=jnp.float32)
        i_g = jax.nn.sigmoid(gates[:, 0 * H:1 * H])
        f_g = jax.nn.sigmoid(gates[:, 1 * H:2 * H])
        g_g = jnp.tanh(gates[:, 2 * H:3 * H])
        o_g = jax.nn.sigmoid(gates[:, 3 * H:4 * H])
        c_new = f_g * c + i_g * g_g
        h_new = o_g * jnp.tanh(c_new)
        valid = m[t] > 0.0
        h = jnp.where(valid, h_new, h)
        c = jnp.where(valid, c_new, c)
        outs[t] = jnp.where(valid, h_new, 0.0)
    return jnp.stack(outs)


def _ref_forward(params, words, *, n_words, char_pad_idx=-1, mxu_dtype=jnp.bfloat16):
    pad_map_index = n_words
    words = jnp.where(words == char_pad_idx, pad_map_index, words)
    mask = words != pad_map_index
    embed = jnp.take(params["embed"], words, axis=0)
    x = jnp.transpose(embed, (1, 0, 2)).astype(jnp.float32)
    m = jnp.transpose(mask, (1, 0)).astype(jnp.float32)[:, :, None]
    for layer in params["lstm"]:
        T, B, D = x.shape
        outs = []
        for d, (w_ih, w_hh, b) in enumerate(layer):
            gx = jnp.dot(x.reshape(T * B, D).astype(mxu_dtype), w_ih.astype(mxu_dtype),
                         preferred_element_type=jnp.float32).reshape(T, B, -1) + b
            outs.append(_ref_direction(gx, m, w_hh.astype(mxu_dtype), reverse=(d == 1)))
        x = jnp.concatenate(outs, axis=-1)
    return jnp.transpose(x, (1, 0, 2))


# ----------------------------------------------------------------------------
if __name__ == "__main__":
    # Small, module-consistent shapes.
    N_WORDS = 20          # vocab (pad row added inside -> 21 embeddings)
    N_EMBED = 32
    N_HIDDEN = 32
    N_LAYERS = 3
    B, T = 2, 8
    CHAR_PAD = -1

    key = jax.random.PRNGKey(0)
    key, k_w = jax.random.split(key)
    params = init_params(key, N_WORDS, N_EMBED, N_HIDDEN, N_LAYERS, bidirectional=True)

    words = jax.random.randint(k_w, (B, T), 0, N_WORDS, dtype=jnp.int32)
    # right-pad second sequence (length 5)
    words = words.at[1, 5:].set(CHAR_PAD)

    fwd = jax.jit(functools.partial(lstm_encoder_forward,
                                    n_words=N_WORDS, char_pad_idx=CHAR_PAD))
    out = jax.block_until_ready(fwd(params, words))

    assert out.shape == (B, T, 2 * N_HIDDEN), out.shape
    assert out.dtype == jnp.float32

    ref = jax.block_until_ready(
        _ref_forward(params, words, n_words=N_WORDS, char_pad_idx=CHAR_PAD))

    # padded positions must be exactly zero (pad_packed_sequence semantics)
    assert float(jnp.max(jnp.abs(out[1, 5:]))) == 0.0
    err = float(jnp.max(jnp.abs(out - ref)))
    assert jnp.allclose(out, ref, atol=1e-2, rtol=1e-2), err

    print("KERNEL_OK")
</pallas_src>

<mosaic_0001>
module attributes {stable_mosaic.version = 11 : i64} {
  func.func @_lstm_stack_kernel(%arg0: i32, %arg1: memref<64x32xbf16, #tpu.memory_space<vmem>>, %arg2: memref<64x1xf32, #tpu.memory_space<vmem>>, %arg3: memref<32x256xbf16, #tpu.memory_space<vmem>>, %arg4: memref<1x256xf32, #tpu.memory_space<vmem>>, %arg5: memref<32x128xbf16, #tpu.memory_space<vmem>>, %arg6: memref<32x128xbf16, #tpu.memory_space<vmem>>, %arg7: memref<64x256xbf16, #tpu.memory_space<vmem>>, %arg8: memref<1x256xf32, #tpu.memory_space<vmem>>, %arg9: memref<32x128xbf16, #tpu.memory_space<vmem>>, %arg10: memref<32x128xbf16, #tpu.memory_space<vmem>>, %arg11: memref<64x256xbf16, #tpu.memory_space<vmem>>, %arg12: memref<1x256xf32, #tpu.memory_space<vmem>>, %arg13: memref<32x128xbf16, #tpu.memory_space<vmem>>, %arg14: memref<32x128xbf16, #tpu.memory_space<vmem>>, %arg15: memref<64x32xf32, #tpu.memory_space<vmem>>, %arg16: memref<64x32xf32, #tpu.memory_space<vmem>>, %arg17: memref<64x256xf32, #tpu.memory_space<vmem>>) attributes {dimension_semantics = [#tpu.dimension_semantics<arbitrary>], iteration_bounds = array<i64: 1>, scalar_prefetch = 0 : i64, scratch_operands = 1 : i64, tpu.core_type = #tpu.core_type<tc>, window_params = [{pipeline_mode = #tpu.pipeline_mode<synchronous>, transform_indices = @transform_0, window_bounds = array<i64: 64, 32>}, {pipeline_mode = #tpu.pipeline_mode<synchronous>, transform_indices = @transform_1, window_bounds = array<i64: 64, 1>}, {pipeline_mode = #tpu.pipeline_mode<synchronous>, transform_indices = @transform_2, window_bounds = array<i64: 32, 256>}, {pipeline_mode = #tpu.pipeline_mode<synchronous>, transform_indices = @transform_3, window_bounds = array<i64: 1, 256>}, {pipeline_mode = #tpu.pipeline_mode<synchronous>, transform_indices = @transform_4, window_bounds = array<i64: 32, 128>}, {pipeline_mode = #tpu.pipeline_mode<synchronous>, transform_indices = @transform_5, window_bounds = array<i64: 32, 128>}, {pipeline_mode = #tpu.pipeline_mode<synchronous>, transform_indices = @transform_6, window_bounds = array<i64: 64, 256>}, {pipeline_mode = #tpu.pipeline_mode<synchronous>, transform_indices = @transform_7, window_bounds = array<i64: 1, 256>}, {pipeline_mode = #tpu.pipeline_mode<synchronous>, transform_indices = @transform_8, window_bounds = array<i64: 32, 128>}, {pipeline_mode = #tpu.pipeline_mode<synchronous>, transform_indices = @transform_9, window_bounds = array<i64: 32, 128>}, {pipeline_mode = #tpu.pipeline_mode<synchronous>, transform_indices = @transform_10, window_bounds = array<i64: 64, 256>}, {pipeline_mode = #tpu.pipeline_mode<synchronous>, transform_indices = @transform_11, window_bounds = array<i64: 1, 256>}, {pipeline_mode = #tpu.pipeline_mode<synchronous>, transform_indices = @transform_12, window_bounds = array<i64: 32, 128>}, {pipeline_mode = #tpu.pipeline_mode<synchronous>, transform_indices = @transform_13, window_bounds = array<i64: 32, 128>}, {pipeline_mode = #tpu.pipeline_mode<synchronous>, transform_indices = @transform_14, window_bounds = array<i64: 64, 32>}, {pipeline_mode = #tpu.pipeline_mode<synchronous>, transform_indices = @transform_15, window_bounds = array<i64: 64, 32>}]} {
    %c0 = arith.constant 0 : index
    %c0_0 = arith.constant 0 : index
    %0 = vector.load %arg4[%c0, %c0_0] : memref<1x256xf32, #tpu.memory_space<vmem>>, vector<1x256xf32>
    %c0_1 = arith.constant 0 : index
    %c0_2 = arith.constant 0 : index
    %1 = vector.load %arg5[%c0_1, %c0_2] : memref<32x128xbf16, #tpu.memory_space<vmem>>, vector<32x128xbf16>
    %c0_3 = arith.constant 0 : index
    %c0_4 = arith.constant 0 : index
    %2 = vector.load %arg6[%c0_3, %c0_4] : memref<32x128xbf16, #tpu.memory_space<vmem>>, vector<32x128xbf16>
    %c0_5 = arith.constant 0 : index
    %c0_6 = arith.constant 0 : index
    %3 = vector.load %arg1[%c0_5, %c0_6] : memref<64x32xbf16, #tpu.memory_space<vmem>>, vector<64x32xbf16>
    %c0_7 = arith.constant 0 : index
    %c0_8 = arith.constant 0 : index
    %4 = vector.load %arg3[%c0_7, %c0_8] : memref<32x256xbf16, #tpu.memory_space<vmem>>, vector<32x256xbf16>
    %cst = arith.constant dense<0.000000e+00> : vector<64x256xf32>
    %5 = tpu.matmul %3, %4, %cst {dimension_numbers = #tpu.dot_dimension_numbers<[1], [0], [0], [1], [0, 0, 1, 1], [], []>} : vector<64x32xbf16>, vector<32x256xbf16>, vector<64x256xf32> -> vector<64x256xf32>
    %6 = vector.broadcast %0 : vector<1x256xf32> to vector<64x256xf32>
    %7 = arith.addf %5, %6 : vector<64x256xf32>
    %c0_9 = arith.constant 0 : index
    %c0_10 = arith.constant 0 : index
    %8 = vector.load %arg17[%c0_9, %c0_10] : memref<64x256xf32, #tpu.memory_space<vmem>>, vector<64x256xf32>
    tpu.vector_store %arg17[%c0_9, %c0_10], %7 {strides = array<i32>} : memref<64x256xf32, #tpu.memory_space<vmem>>, vector<64x256xf32>,
    %cst_11 = arith.constant 0.000000e+00 : f32
    %9 = vector.broadcast %cst_11 : f32 to vector<8x32xf32>
    %c0_i32 = arith.constant 0 : i32
    %c8_i32 = arith.constant 8 : i32
    %10 = arith.muli %c0_i32, %c8_i32 : i32
    %11 = tpu.assume_multiple %10, 8 : i32
    %c7_i32 = arith.constant 7 : i32
    %12 = arith.subi %c7_i32, %c0_i32 : i32
    %c8_i32_12 = arith.constant 8 : i32
    %13 = arith.muli %12, %c8_i32_12 : i32
    %14 = tpu.assume_multiple %13, 8 : i32
    %15 = arith.index_cast %11 : i32 to index
    %c0_13 = arith.constant 0 : index
    %16 = vector.load %arg17[%15, %c0_13] : memref<64x256xf32, #tpu.memory_space<vmem>>, vector<8x256xf32>
    %17 = vector.extract_strided_slice %16 {offsets = [0, 0], sizes = [8, 128], strides = [1, 1]} : vector<8x256xf32> to vector<8x128xf32>
    %18 = arith.index_cast %11 : i32 to index
    %c0_14 = arith.constant 0 : index
    %19 = vector.load %arg2[%18, %c0_14] : memref<64x1xf32, #tpu.memory_space<vmem>>, vector<8x1xf32>
    %20 = arith.truncf %9 : vector<8x32xf32> to vector<8x32xbf16>
    %cst_15 = arith.constant dense<0.000000e+00> : vector<8x128xf32>
    %21 = tpu.matmul %20, %1, %cst_15 {dimension_numbers = #tpu.dot_dimension_numbers<[1], [0], [0], [1], [0, 0, 1, 1], [], []>} : vector<8x32xbf16>, vector<32x128xbf16>, vector<8x128xf32> -> vector<8x128xf32>
    %22 = arith.addf %17, %21 : vector<8x128xf32>
    %23 = vector.extract_strided_slice %22 {offsets = [0, 0], sizes = [8, 32], strides = [1, 1]} : vector<8x128xf32> to vector<8x32xf32>
    %24 = arith.negf %23 : vector<8x32xf32>
    %25 = math.exp %24 : vector<8x32xf32>
    %cst_16 = arith.constant 1.000000e+00 : f32
    %26 = vector.broadcast %cst_16 : f32 to vector<8x32xf32>
    %27 = arith.addf %26, %25 : vector<8x32xf32>
    %28 = arith.divf %26, %27 : vector<8x32xf32>
    %29 = vector.extract_strided_slice %22 {offsets = [0, 32], sizes = [8, 32], strides = [1, 1]} : vector<8x128xf32> to vector<8x32xf32>
    %30 = arith.negf %29 : vector<8x32xf32>
    %31 = math.exp %30 : vector<8x32xf32>
    %cst_17 = arith.constant 1.000000e+00 : f32
    %32 = vector.broadcast %cst_17 : f32 to vector<8x32xf32>
    %33 = arith.addf %32, %31 : vector<8x32xf32>
    %34 = arith.divf %32, %33 : vector<8x32xf32>
    %35 = vector.extract_strided_slice %22 {offsets = [0, 64], sizes = [8, 32], strides = [1, 1]} : vector<8x128xf32> to vector<8x32xf32>
    %36 = math.tanh %35 : vector<8x32xf32>
    %37 = vector.extract_strided_slice %22 {offsets = [0, 96], sizes = [8, 32], strides = [1, 1]} : vector<8x128xf32> to vector<8x32xf32>
    %38 = arith.negf %37 : vector<8x32xf32>
    %39 = math.exp %38 : vector<8x32xf32>
    %cst_18 = arith.constant 1.000000e+00 : f32
    %40 = vector.broadcast %cst_18 : f32 to vector<8x32xf32>
    %41 = arith.addf %40, %39 : vector<8x32xf32>
    %42 = arith.divf %40, %41 : vector<8x32xf32>
    %43 = arith.mulf %34, %9 : vector<8x32xf32>
    %44 = arith.mulf %28, %36 : vector<8x32xf32>
    %45 = arith.addf %43, %44 : vector<8x32xf32>
    %46 = math.tanh %45 : vector<8x32xf32>
    %47 = arith.mulf %42, %46 : vector<8x32xf32>
    %cst_19 = arith.constant 0.000000e+00 : f32
    %48 = vector.broadcast %cst_19 : f32 to vector<8x1xf32>
    %49 = arith.cmpf ogt, %19, %48 : vector<8x1xf32>
    %50 = vector.shape_cast %49 : vector<8x1xi1> to vector<8x1xi1>
    %51 = vector.broadcast %50 : vector<8x1xi1> to vector<8x32xi1>
    %52 = arith.select %51, %47, %9 : vector<8x32xi1>, vector<8x32xf32>
    %53 = vector.shape_cast %49 : vector<8x1xi1> to vector<8x1xi1>
    %54 = vector.broadcast %53 : vector<8x1xi1> to vector<8x32xi1>
    %55 = arith.select %54, %45, %9 : vector<8x32xi1>, vector<8x32xf32>
    %cst_20 = arith.constant 0.000000e+00 : f32
    %56 = vector.broadcast %cst_20 : f32 to vector<8x32xf32>
    %57 = vector.shape_cast %49 : vector<8x1xi1> to vector<8x1xi1>
    %58 = vector.broadcast %57 : vector<8x1xi1> to vector<8x32xi1>
    %59 = arith.select %58, %47, %56 : vector<8x32xi1>, vector<8x32xf32>
    %60 = arith.index_cast %11 : i32 to index
    %c0_21 = arith.constant 0 : index
    %61 = vector.load %arg15[%60, %c0_21] : memref<64x32xf32, #tpu.memory_space<vmem>>, vector<8x32xf32>
    tpu.vector_store %arg15[%60, %c0_21], %59 {strides = array<i32>} : memref<64x32xf32, #tpu.memory_space<vmem>>, vector<8x32xf32>,
    %62 = arith.index_cast %14 : i32 to index
    %c0_22 = arith.constant 0 : index
    %63 = vector.load %arg17[%62, %c0_22] : memref<64x256xf32, #tpu.memory_space<vmem>>, vector<8x256xf32>
    %64 = vector.extract_strided_slice %63 {offsets = [0, 128], sizes = [8, 128], strides = [1, 1]} : vector<8x256xf32> to vector<8x128xf32>
    %65 = arith.index_cast %14 : i32 to index
    %c0_23 = arith.constant 0 : index
    %66 = vector.load %arg2[%65, %c0_23] : memref<64x1xf32, #tpu.memory_space<vmem>>, vector<8x1xf32>
    %67 = arith.truncf %9 : vector<8x32xf32> to vector<8x32xbf16>
    %cst_24 = arith.constant dense<0.000000e+00> : vector<8x128xf32>
    %68 = tpu.matmul %67, %2, %cst_24 {dimension_numbers = #tpu.dot_dimension_numbers<[1], [0], [0], [1], [0, 0, 1, 1], [], []>} : vector<8x32xbf16>, vector<32x128xbf16>, vector<8x128xf32> -> vector<8x128xf32>
    %69 = arith.addf %64, %68 : vector<8x128xf32>
    %70 = vector.extract_strided_slice %69 {offsets = [0, 0], sizes = [8, 32], strides = [1, 1]} : vector<8x128xf32> to vector<8x32xf32>
    %71 = arith.negf %70 : vector<8x32xf32>
    %72 = math.exp %71 : vector<8x32xf32>
    %cst_25 = arith.constant 1.000000e+00 : f32
    %73 = vector.broadcast %cst_25 : f32 to vector<8x32xf32>
    %74 = arith.addf %73, %72 : vector<8x32xf32>
    %75 = arith.divf %73, %74 : vector<8x32xf32>
    %76 = vector.extract_strided_slice %69 {offsets = [0, 32], sizes = [8, 32], strides = [1, 1]} : vector<8x128xf32> to vector<8x32xf32>
    %77 = arith.negf %76 : vector<8x32xf32>
    %78 = math.exp %77 : vector<8x32xf32>
    %cst_26 = arith.constant 1.000000e+00 : f32
    %79 = vector.broadcast %cst_26 : f32 to vector<8x32xf32>
    %80 = arith.addf %79, %78 : vector<8x32xf32>
    %81 = arith.divf %79, %80 : vector<8x32xf32>
    %82 = vector.extract_strided_slice %69 {offsets = [0, 64], sizes = [8, 32], strides = [1, 1]} : vector<8x128xf32> to vector<8x32xf32>
    %83 = math.tanh %82 : vector<8x32xf32>
    %84 = vector.extract_strided_slice %69 {offsets = [0, 96], sizes = [8, 32], strides = [1, 1]} : vector<8x128xf32> to vector<8x32xf32>
    %85 = arith.negf %84 : vector<8x32xf32>
    %86 = math.exp %85 : vector<8x32xf32>
    %cst_27 = arith.constant 1.000000e+00 : f32
    %87 = vector.broadcast %cst_27 : f32 to vector<8x32xf32>
    %88 = arith.addf %87, %86 : vector<8x32xf32>
    %89 = arith.divf %87, %88 : vector<8x32xf32>
    %90 = arith.mulf %81, %9 : vector<8x32xf32>
    %91 = arith.mulf %75, %83 : vector<8x32xf32>
    %92 = arith.addf %90, %91 : vector<8x32xf32>
    %93 = math.tanh %92 : vector<8x32xf32>
    %94 = arith.mulf %89, %93 : vector<8x32xf32>
    %cst_28 = arith.constant 0.000000e+00 : f32
    %95 = vector.broadcast %cst_28 : f32 to vector<8x1xf32>
    %96 = arith.cmpf ogt, %66, %95 : vector<8x1xf32>
    %97 = vector.shape_cast %96 : vector<8x1xi1> to vector<8x1xi1>
    %98 = vector.broadcast %97 : vector<8x1xi1> to vector<8x32xi1>
    %99 = arith.select %98, %94, %9 : vector<8x32xi1>, vector<8x32xf32>
    %100 = vector.shape_cast %96 : vector<8x1xi1> to vector<8x1xi1>
    %101 = vector.broadcast %100 : vector<8x1xi1> to vector<8x32xi1>
    %102 = arith.select %101, %92, %9 : vector<8x32xi1>, vector<8x32xf32>
    %cst_29 = arith.constant 0.000000e+00 : f32
    %103 = vector.broadcast %cst_29 : f32 to vector<8x32xf32>
    %104 = vector.shape_cast %96 : vector<8x1xi1> to vector<8x1xi1>
    %105 = vector.broadcast %104 : vector<8x1xi1> to vector<8x32xi1>
    %106 = arith.select %105, %94, %103 : vector<8x32xi1>, vector<8x32xf32>
    %107 = arith.index_cast %14 : i32 to index
    %c0_30 = arith.constant 0 : index
    %108 = vector.load %arg16[%107, %c0_30] : memref<64x32xf32, #tpu.memory_space<vmem>>, vector<8x32xf32>
    tpu.vector_store %arg16[%107, %c0_30], %106 {strides = array<i32>} : memref<64x32xf32, #tpu.memory_space<vmem>>, vector<8x32xf32>,
    %c1_i32 = arith.constant 1 : i32
    %c8_i32_31 = arith.constant 8 : i32
    %109 = arith.muli %c1_i32, %c8_i32_31 : i32
    %110 = tpu.assume_multiple %109, 8 : i32
    %c7_i32_32 = arith.constant 7 : i32
    %111 = arith.subi %c7_i32_32, %c1_i32 : i32
    %c8_i32_33 = arith.constant 8 : i32
    %112 = arith.muli %111, %c8_i32_33 : i32
    %113 = tpu.assume_multiple %112, 8 : i32
    %114 = arith.index_cast %110 : i32 to index
    %c0_34 = arith.constant 0 : index
    %115 = vector.load %arg17[%114, %c0_34] : memref<64x256xf32, #tpu.memory_space<vmem>>, vector<8x256xf32>
    %116 = vector.extract_strided_slice %115 {offsets = [0, 0], sizes = [8, 128], strides = [1, 1]} : vector<8x256xf32> to vector<8x128xf32>
    %117 = arith.index_cast %110 : i32 to index
    %c0_35 = arith.constant 0 : index
    %118 = vector.load %arg2[%117, %c0_35] : memref<64x1xf32, #tpu.memory_space<vmem>>, vector<8x1xf32>
    %119 = arith.truncf %52 : vector<8x32xf32> to vector<8x32xbf16>
    %cst_36 = arith.constant dense<0.000000e+00> : vector<8x128xf32>
    %120 = tpu.matmul %119, %1, %cst_36 {dimension_numbers = #tpu.dot_dimension_numbers<[1], [0], [0], [1], [0, 0, 1, 1], [], []>} : vector<8x32xbf16>, vector<32x128xbf16>, vector<8x128xf32> -> vector<8x128xf32>
    %121 = arith.addf %116, %120 : vector<8x128xf32>
    %122 = vector.extract_strided_slice %121 {offsets = [0, 0], sizes = [8, 32], strides = [1, 1]} : vector<8x128xf32> to vector<8x32xf32>
    %123 = arith.negf %122 : vector<8x32xf32>
    %124 = math.exp %123 : vector<8x32xf32>
    %cst_37 = arith.constant 1.000000e+00 : f32
    %125 = vector.broadcast %cst_37 : f32 to vector<8x32xf32>
    %126 = arith.addf %125, %124 : vector<8x32xf32>
    %127 = arith.divf %125, %126 : vector<8x32xf32>
    %128 = vector.extract_strided_slice %121 {offsets = [0, 32], sizes = [8, 32], strides = [1, 1]} : vector<8x128xf32> to vector<8x32xf32>
    %129 = arith.negf %128 : vector<8x32xf32>
    %130 = math.exp %129 : vector<8x32xf32>
    %cst_38 = arith.constant 1.000000e+00 : f32
    %131 = vector.broadcast %cst_38 : f32 to vector<8x32xf32>
    %132 = arith.addf %131, %130 : vector<8x32xf32>
    %133 = arith.divf %131, %132 : vector<8x32xf32>
    %134 = vector.extract_strided_slice %121 {offsets = [0, 64], sizes = [8, 32], strides = [1, 1]} : vector<8x128xf32> to vector<8x32xf32>
    %135 = math.tanh %134 : vector<8x32xf32>
    %136 = vector.extract_strided_slice %121 {offsets = [0, 96], sizes = [8, 32], strides = [1, 1]} : vector<8x128xf32> to vector<8x32xf32>
    %137 = arith.negf %136 : vector<8x32xf32>
    %138 = math.exp %137 : vector<8x32xf32>
    %cst_39 = arith.constant 1.000000e+00 : f32
    %139 = vector.broadcast %cst_39 : f32 to vector<8x32xf32>
    %140 = arith.addf %139, %138 : vector<8x32xf32>
    %141 = arith.divf %139, %140 : vector<8x32xf32>
    %142 = arith.mulf %133, %55 : vector<8x32xf32>
    %143 = arith.mulf %127, %135 : vector<8x32xf32>
    %144 = arith.addf %142, %143 : vector<8x32xf32>
    %145 = math.tanh %144 : vector<8x32xf32>
    %146 = arith.mulf %141, %145 : vector<8x32xf32>
    %cst_40 = arith.constant 0.000000e+00 : f32
    %147 = vector.broadcast %cst_40 : f32 to vector<8x1xf32>
    %148 = arith.cmpf ogt, %118, %147 : vector<8x1xf32>
    %149 = vector.shape_cast %148 : vector<8x1xi1> to vector<8x1xi1>
    %150 = vector.broadcast %149 : vector<8x1xi1> to vector<8x32xi1>
    %151 = arith.select %150, %146, %52 : vector<8x32xi1>, vector<8x32xf32>
    %152 = vector.shape_cast %148 : vector<8x1xi1> to vector<8x1xi1>
    %153 = vector.broadcast %152 : vector<8x1xi1> to vector<8x32xi1>
    %154 = arith.select %153, %144, %55 : vector<8x32xi1>, vector<8x32xf32>
    %cst_41 = arith.constant 0.000000e+00 : f32
    %155 = vector.broadcast %cst_41 : f32 to vector<8x32xf32>
    %156 = vector.shape_cast %148 : vector<8x1xi1> to vector<8x1xi1>
    %157 = vector.broadcast %156 : vector<8x1xi1> to vector<8x32xi1>
    %158 = arith.select %157, %146, %155 : vector<8x32xi1>, vector<8x32xf32>
    %159 = arith.index_cast %110 : i32 to index
    %c0_42 = arith.constant 0 : index
    %160 = vector.load %arg15[%159, %c0_42] : memref<64x32xf32, #tpu.memory_space<vmem>>, vector<8x32xf32>
    tpu.vector_store %arg15[%159, %c0_42], %158 {strides = array<i32>} : memref<64x32xf32, #tpu.memory_space<vmem>>, vector<8x32xf32>,
    %161 = arith.index_cast %113 : i32 to index
    %c0_43 = arith.constant 0 : index
    %162 = vector.load %arg17[%161, %c0_43] : memref<64x256xf32, #tpu.memory_space<vmem>>, vector<8x256xf32>
    %163 = vector.extract_strided_slice %162 {offsets = [0, 128], sizes = [8, 128], strides = [1, 1]} : vector<8x256xf32> to vector<8x128xf32>
    %164 = arith.index_cast %113 : i32 to index
    %c0_44 = arith.constant 0 : index
    %165 = vector.load %arg2[%164, %c0_44] : memref<64x1xf32, #tpu.memory_space<vmem>>, vector<8x1xf32>
    %166 = arith.truncf %99 : vector<8x32xf32> to vector<8x32xbf16>
    %cst_45 = arith.constant dense<0.000000e+00> : vector<8x128xf32>
    %167 = tpu.matmul %166, %2, %cst_45 {dimension_numbers = #tpu.dot_dimension_numbers<[1], [0], [0], [1], [0, 0, 1, 1], [], []>} : vector<8x32xbf16>, vector<32x128xbf16>, vector<8x128xf32> -> vector<8x128xf32>
    %168 = arith.addf %163, %167 : vector<8x128xf32>
    %169 = vector.extract_strided_slice %168 {offsets = [0, 0], sizes = [8, 32], strides = [1, 1]} : vector<8x128xf32> to vector<8x32xf32>
    %170 = arith.negf %169 : vector<8x32xf32>
    %171 = math.exp %170 : vector<8x32xf32>
    %cst_46 = arith.constant 1.000000e+00 : f32
    %172 = vector.broadcast %cst_46 : f32 to vector<8x32xf32>
    %173 = arith.addf %172, %171 : vector<8x32xf32>
    %174 = arith.divf %172, %173 : vector<8x32xf32>
    %175 = vector.extract_strided_slice %168 {offsets = [0, 32], sizes = [8, 32], strides = [1, 1]} : vector<8x128xf32> to vector<8x32xf32>
    %176 = arith.negf %175 : vector<8x32xf32>
    %177 = math.exp %176 : vector<8x32xf32>
    %cst_47 = arith.constant 1.000000e+00 : f32
    %178 = vector.broadcast %cst_47 : f32 to vector<8x32xf32>
    %179 = arith.addf %178, %177 : vector<8x32xf32>
    %180 = arith.divf %178, %179 : vector<8x32xf32>
    %181 = vector.extract_strided_slice %168 {offsets = [0, 64], sizes = [8, 32], strides = [1, 1]} : vector<8x128xf32> to vector<8x32xf32>
    %182 = math.tanh %181 : vector<8x32xf32>
    %183 = vector.extract_strided_slice %168 {offsets = [0, 96], sizes = [8, 32], strides = [1, 1]} : vector<8x128xf32> to vector<8x32xf32>
    %184 = arith.negf %183 : vector<8x32xf32>
    %185 = math.exp %184 : vector<8x32xf32>
    %cst_48 = arith.constant 1.000000e+00 : f32
    %186 = vector.broadcast %cst_48 : f32 to vector<8x32xf32>
    %187 = arith.addf %186, %185 : vector<8x32xf32>
    %188 = arith.divf %186, %187 : vector<8x32xf32>
    %189 = arith.mulf %180, %102 : vector<8x32xf32>
    %190 = arith.mulf %174, %182 : vector<8x32xf32>
    %191 = arith.addf %189, %190 : vector<8x32xf32>
    %192 = math.tanh %191 : vector<8x32xf32>
    %193 = arith.mulf %188, %192 : vector<8x32xf32>
    %cst_49 = arith.constant 0.000000e+00 : f32
    %194 = vector.broadcast %cst_49 : f32 to vector<8x1xf32>
    %195 = arith.cmpf ogt, %165, %194 : vector<8x1xf32>
    %196 = vector.shape_cast %195 : vector<8x1xi1> to vector<8x1xi1>
    %197 = vector.broadcast %196 : vector<8x1xi1> to vector<8x32xi1>
    %198 = arith.select %197, %193, %99 : vector<8x32xi1>, vector<8x32xf32>
    %199 = vector.shape_cast %195 : vector<8x1xi1> to vector<8x1xi1>
    %200 = vector.broadcast %199 : vector<8x1xi1> to vector<8x32xi1>
    %201 = arith.select %200, %191, %102 : vector<8x32xi1>, vector<8x32xf32>
    %cst_50 = arith.constant 0.000000e+00 : f32
    %202 = vector.broadcast %cst_50 : f32 to vector<8x32xf32>
    %203 = vector.shape_cast %195 : vector<8x1xi1> to vector<8x1xi1>
    %204 = vector.broadcast %203 : vector<8x1xi1> to vector<8x32xi1>
    %205 = arith.select %204, %193, %202 : vector<8x32xi1>, vector<8x32xf32>
    %206 = arith.index_cast %113 : i32 to index
    %c0_51 = arith.constant 0 : index
    %207 = vector.load %arg16[%206, %c0_51] : memref<64x32xf32, #tpu.memory_space<vmem>>, vector<8x32xf32>
    tpu.vector_store %arg16[%206, %c0_51], %205 {strides = array<i32>} : memref<64x32xf32, #tpu.memory_space<vmem>>, vector<8x32xf32>,
    %c2_i32 = arith.constant 2 : i32
    %c8_i32_52 = arith.constant 8 : i32
    %208 = arith.muli %c2_i32, %c8_i32_52 : i32
    %209 = tpu.assume_multiple %208, 8 : i32
    %c7_i32_53 = arith.constant 7 : i32
    %210 = arith.subi %c7_i32_53, %c2_i32 : i32
    %c8_i32_54 = arith.constant 8 : i32
    %211 = arith.muli %210, %c8_i32_54 : i32
    %212 = tpu.assume_multiple %211, 8 : i32
    %213 = arith.index_cast %209 : i32 to index
    %c0_55 = arith.constant 0 : index
    %214 = vector.load %arg17[%213, %c0_55] : memref<64x256xf32, #tpu.memory_space<vmem>>, vector<8x256xf32>
    %215 = vector.extract_strided_slice %214 {offsets = [0, 0], sizes = [8, 128], strides = [1, 1]} : vector<8x256xf32> to vector<8x128xf32>
    %216 = arith.index_cast %209 : i32 to index
    %c0_56 = arith.constant 0 : index
    %217 = vector.load %arg2[%216, %c0_56] : memref<64x1xf32, #tpu.memory_space<vmem>>, vector<8x1xf32>
    %218 = arith.truncf %151 : vector<8x32xf32> to vector<8x32xbf16>
    %cst_57 = arith.constant dense<0.000000e+00> : vector<8x128xf32>
    %219 = tpu.matmul %218, %1, %cst_57 {dimension_numbers = #tpu.dot_dimension_numbers<[1], [0], [0], [1], [0, 0, 1, 1], [], []>} : vector<8x32xbf16>, vector<32x128xbf16>, vector<8x128xf32> -> vector<8x128xf32>
    %220 = arith.addf %215, %219 : vector<8x128xf32>
    %221 = vector.extract_strided_slice %220 {offsets = [0, 0], sizes = [8, 32], strides = [1, 1]} : vector<8x128xf32> to vector<8x32xf32>
    %222 = arith.negf %221 : vector<8x32xf32>
    %223 = math.exp %222 : vector<8x32xf32>
    %cst_58 = arith.constant 1.000000e+00 : f32
    %224 = vector.broadcast %cst_58 : f32 to vector<8x32xf32>
    %225 = arith.addf %224, %223 : vector<8x32xf32>
    %226 = arith.divf %224, %225 : vector<8x32xf32>
    %227 = vector.extract_strided_slice %220 {offsets = [0, 32], sizes = [8, 32], strides = [1, 1]} : vector<8x128xf32> to vector<8x32xf32>
    %228 = arith.negf %227 : vector<8x32xf32>
    %229 = math.exp %228 : vector<8x32xf32>
    %cst_59 = arith.constant 1.000000e+00 : f32
    %230 = vector.broadcast %cst_59 : f32 to vector<8x32xf32>
    %231 = arith.addf %230, %229 : vector<8x32xf32>
    %232 = arith.divf %230, %231 : vector<8x32xf32>
    %233 = vector.extract_strided_slice %220 {offsets = [0, 64], sizes = [8, 32], strides = [1, 1]} : vector<8x128xf32> to vector<8x32xf32>
    %234 = math.tanh %233 : vector<8x32xf32>
    %235 = vector.extract_strided_slice %220 {offsets = [0, 96], sizes = [8, 32], strides = [1, 1]} : vector<8x128xf32> to vector<8x32xf32>
    %236 = arith.negf %235 : vector<8x32xf32>
    %237 = math.exp %236 : vector<8x32xf32>
    %cst_60 = arith.constant 1.000000e+00 : f32
    %238 = vector.broadcast %cst_60 : f32 to vector<8x32xf32>
    %239 = arith.addf %238, %237 : vector<8x32xf32>
    %240 = arith.divf %238, %239 : vector<8x32xf32>
    %241 = arith.mulf %232, %154 : vector<8x32xf32>
    %242 = arith.mulf %226, %234 : vector<8x32xf32>
    %243 = arith.addf %241, %242 : vector<8x32xf32>
    %244 = math.tanh %243 : vector<8x32xf32>
    %245 = arith.mulf %240, %244 : vector<8x32xf32>
    %cst_61 = arith.constant 0.000000e+00 : f32
    %246 = vector.broadcast %cst_61 : f32 to vector<8x1xf32>
    %247 = arith.cmpf ogt, %217, %246 : vector<8x1xf32>
    %248 = vector.shape_cast %247 : vector<8x1xi1> to vector<8x1xi1>
    %249 = vector.broadcast %248 : vector<8x1xi1> to vector<8x32xi1>
    %250 = arith.select %249, %245, %151 : vector<8x32xi1>, vector<8x32xf32>
    %251 = vector.shape_cast %247 : vector<8x1xi1> to vector<8x1xi1>
    %252 = vector.broadcast %251 : vector<8x1xi1> to vector<8x32xi1>
    %253 = arith.select %252, %243, %154 : vector<8x32xi1>, vector<8x32xf32>
    %cst_62 = arith.constant 0.000000e+00 : f32
    %254 = vector.broadcast %cst_62 : f32 to vector<8x32xf32>
    %255 = vector.shape_cast %247 : vector<8x1xi1> to vector<8x1xi1>
    %256 = vector.broadcast %255 : vector<8x1xi1> to vector<8x32xi1>
    %257 = arith.select %256, %245, %254 : vector<8x32xi1>, vector<8x32xf32>
    %258 = arith.index_cast %209 : i32 to index
    %c0_63 = arith.constant 0 : index
    %259 = vector.load %arg15[%258, %c0_63] : memref<64x32xf32, #tpu.memory_space<vmem>>, vector<8x32xf32>
    tpu.vector_store %arg15[%258, %c0_63], %257 {strides = array<i32>} : memref<64x32xf32, #tpu.memory_space<vmem>>, vector<8x32xf32>,
    %260 = arith.index_cast %212 : i32 to index
    %c0_64 = arith.constant 0 : index
    %261 = vector.load %arg17[%260, %c0_64] : memref<64x256xf32, #tpu.memory_space<vmem>>, vector<8x256xf32>
    %262 = vector.extract_strided_slice %261 {offsets = [0, 128], sizes = [8, 128], strides = [1, 1]} : vector<8x256xf32> to vector<8x128xf32>
    %263 = arith.index_cast %212 : i32 to index
    %c0_65 = arith.constant 0 : index
    %264 = vector.load %arg2[%263, %c0_65] : memref<64x1xf32, #tpu.memory_space<vmem>>, vector<8x1xf32>
    %265 = arith.truncf %198 : vector<8x32xf32> to vector<8x32xbf16>
    %cst_66 = arith.constant dense<0.000000e+00> : vector<8x128xf32>
    %266 = tpu.matmul %265, %2, %cst_66 {dimension_numbers = #tpu.dot_dimension_numbers<[1], [0], [0], [1], [0, 0, 1, 1], [], []>} : vector<8x32xbf16>, vector<32x128xbf16>, vector<8x128xf32> -> vector<8x128xf32>
    %267 = arith.addf %262, %266 : vector<8x128xf32>
    %268 = vector.extract_strided_slice %267 {offsets = [0, 0], sizes = [8, 32], strides = [1, 1]} : vector<8x128xf32> to vector<8x32xf32>
    %269 = arith.negf %268 : vector<8x32xf32>
    %270 = math.exp %269 : vector<8x32xf32>
    %cst_67 = arith.constant 1.000000e+00 : f32
    %271 = vector.broadcast %cst_67 : f32 to vector<8x32xf32>
    %272 = arith.addf %271, %270 : vector<8x32xf32>
    %273 = arith.divf %271, %272 : vector<8x32xf32>
    %274 = vector.extract_strided_slice %267 {offsets = [0, 32], sizes = [8, 32], strides = [1, 1]} : vector<8x128xf32> to vector<8x32xf32>
    %275 = arith.negf %274 : vector<8x32xf32>
    %276 = math.exp %275 : vector<8x32xf32>
    %cst_68 = arith.constant 1.000000e+00 : f32
    %277 = vector.broadcast %cst_68 : f32 to vector<8x32xf32>
    %278 = arith.addf %277, %276 : vector<8x32xf32>
    %279 = arith.divf %277, %278 : vector<8x32xf32>
    %280 = vector.extract_strided_slice %267 {offsets = [0, 64], sizes = [8, 32], strides = [1, 1]} : vector<8x128xf32> to vector<8x32xf32>
    %281 = math.tanh %280 : vector<8x32xf32>
    %282 = vector.extract_strided_slice %267 {offsets = [0, 96], sizes = [8, 32], strides = [1, 1]} : vector<8x128xf32> to vector<8x32xf32>
    %283 = arith.negf %282 : vector<8x32xf32>
    %284 = math.exp %283 : vector<8x32xf32>
    %cst_69 = arith.constant 1.000000e+00 : f32
    %285 = vector.broadcast %cst_69 : f32 to vector<8x32xf32>
    %286 = arith.addf %285, %284 : vector<8x32xf32>
    %287 = arith.divf %285, %286 : vector<8x32xf32>
    %288 = arith.mulf %279, %201 : vector<8x32xf32>
    %289 = arith.mulf %273, %281 : vector<8x32xf32>
    %290 = arith.addf %288, %289 : vector<8x32xf32>
    %291 = math.tanh %290 : vector<8x32xf32>
    %292 = arith.mulf %287, %291 : vector<8x32xf32>
    %cst_70 = arith.constant 0.000000e+00 : f32
    %293 = vector.broadcast %cst_70 : f32 to vector<8x1xf32>
    %294 = arith.cmpf ogt, %264, %293 : vector<8x1xf32>
    %295 = vector.shape_cast %294 : vector<8x1xi1> to vector<8x1xi1>
    %296 = vector.broadcast %295 : vector<8x1xi1> to vector<8x32xi1>
    %297 = arith.select %296, %292, %198 : vector<8x32xi1>, vector<8x32xf32>
    %298 = vector.shape_cast %294 : vector<8x1xi1> to vector<8x1xi1>
    %299 = vector.broadcast %298 : vector<8x1xi1> to vector<8x32xi1>
    %300 = arith.select %299, %290, %201 : vector<8x32xi1>, vector<8x32xf32>
    %cst_71 = arith.constant 0.000000e+00 : f32
    %301 = vector.broadcast %cst_71 : f32 to vector<8x32xf32>
    %302 = vector.shape_cast %294 : vector<8x1xi1> to vector<8x1xi1>
    %303 = vector.broadcast %302 : vector<8x1xi1> to vector<8x32xi1>
    %304 = arith.select %303, %292, %301 : vector<8x32xi1>, vector<8x32xf32>
    %305 = arith.index_cast %212 : i32 to index
    %c0_72 = arith.constant 0 : index
    %306 = vector.load %arg16[%305, %c0_72] : memref<64x32xf32, #tpu.memory_space<vmem>>, vector<8x32xf32>
    tpu.vector_store %arg16[%305, %c0_72], %304 {strides = array<i32>} : memref<64x32xf32, #tpu.memory_space<vmem>>, vector<8x32xf32>,
    %c3_i32 = arith.constant 3 : i32
    %c8_i32_73 = arith.constant 8 : i32
    %307 = arith.muli %c3_i32, %c8_i32_73 : i32
    %308 = tpu.assume_multiple %307, 8 : i32
    %c7_i32_74 = arith.constant 7 : i32
    %309 = arith.subi %c7_i32_74, %c3_i32 : i32
    %c8_i32_75 = arith.constant 8 : i32
    %310 = arith.muli %309, %c8_i32_75 : i32
    %311 = tpu.assume_multiple %310, 8 : i32
    %312 = arith.index_cast %308 : i32 to index
    %c0_76 = arith.constant 0 : index
    %313 = vector.load %arg17[%312, %c0_76] : memref<64x256xf32, #tpu.memory_space<vmem>>, vector<8x256xf32>
    %314 = vector.extract_strided_slice %313 {offsets = [0, 0], sizes = [8, 128], strides = [1, 1]} : vector<8x256xf32> to vector<8x128xf32>
    %315 = arith.index_cast %308 : i32 to index
    %c0_77 = arith.constant 0 : index
    %316 = vector.load %arg2[%315, %c0_77] : memref<64x1xf32, #tpu.memory_space<vmem>>, vector<8x1xf32>
    %317 = arith.truncf %250 : vector<8x32xf32> to vector<8x32xbf16>
    %cst_78 = arith.constant dense<0.000000e+00> : vector<8x128xf32>
    %318 = tpu.matmul %317, %1, %cst_78 {dimension_numbers = #tpu.dot_dimension_numbers<[1], [0], [0], [1], [0, 0, 1, 1], [], []>} : vector<8x32xbf16>, vector<32x128xbf16>, vector<8x128xf32> -> vector<8x128xf32>
    %319 = arith.addf %314, %318 : vector<8x128xf32>
    %320 = vector.extract_strided_slice %319 {offsets = [0, 0], sizes = [8, 32], strides = [1, 1]} : vector<8x128xf32> to vector<8x32xf32>
    %321 = arith.negf %320 : vector<8x32xf32>
    %322 = math.exp %321 : vector<8x32xf32>
    %cst_79 = arith.constant 1.000000e+00 : f32
    %323 = vector.broadcast %cst_79 : f32 to vector<8x32xf32>
    %324 = arith.addf %323, %322 : vector<8x32xf32>
    %325 = arith.divf %323, %324 : vector<8x32xf32>
    %326 = vector.extract_strided_slice %319 {offsets = [0, 32], sizes = [8, 32], strides = [1, 1]} : vector<8x128xf32> to vector<8x32xf32>
    %327 = arith.negf %326 : vector<8x32xf32>
    %328 = math.exp %327 : vector<8x32xf32>
    %cst_80 = arith.constant 1.000000e+00 : f32
    %329 = vector.broadcast %cst_80 : f32 to vector<8x32xf32>
    %330 = arith.addf %329, %328 : vector<8x32xf32>
    %331 = arith.divf %329, %330 : vector<8x32xf32>
    %332 = vector.extract_strided_slice %319 {offsets = [0, 64], sizes = [8, 32], strides = [1, 1]} : vector<8x128xf32> to vector<8x32xf32>
    %333 = math.tanh %332 : vector<8x32xf32>
    %334 = vector.extract_strided_slice %319 {offsets = [0, 96], sizes = [8, 32], strides = [1, 1]} : vector<8x128xf32> to vector<8x32xf32>
    %335 = arith.negf %334 : vector<8x32xf32>
    %336 = math.exp %335 : vector<8x32xf32>
    %cst_81 = arith.constant 1.000000e+00 : f32
    %337 = vector.broadcast %cst_81 : f32 to vector<8x32xf32>
    %338 = arith.addf %337, %336 : vector<8x32xf32>
    %339 = arith.divf %337, %338 : vector<8x32xf32>
    %340 = arith.mulf %331, %253 : vector<8x32xf32>
    %341 = arith.mulf %325, %333 : vector<8x32xf32>
    %342 = arith.addf %340, %341 : vector<8x32xf32>
    %343 = math.tanh %342 : vector<8x32xf32>
    %344 = arith.mulf %339, %343 : vector<8x32xf32>
    %cst_82 = arith.constant 0.000000e+00 : f32
    %345 = vector.broadcast %cst_82 : f32 to vector<8x1xf32>
    %346 = arith.cmpf ogt, %316, %345 : vector<8x1xf32>
    %347 = vector.shape_cast %346 : vector<8x1xi1> to vector<8x1xi1>
    %348 = vector.broadcast %347 : vector<8x1xi1> to vector<8x32xi1>
    %349 = arith.select %348, %344, %250 : vector<8x32xi1>, vector<8x32xf32>
    %350 = vector.shape_cast %346 : vector<8x1xi1> to vector<8x1xi1>
    %351 = vector.broadcast %350 : vector<8x1xi1> to vector<8x32xi1>
    %352 = arith.select %351, %342, %253 : vector<8x32xi1>, vector<8x32xf32>
    %cst_83 = arith.constant 0.000000e+00 : f32
    %353 = vector.broadcast %cst_83 : f32 to vector<8x32xf32>
    %354 = vector.shape_cast %346 : vector<8x1xi1> to vector<8x1xi1>
    %355 = vector.broadcast %354 : vector<8x1xi1> to vector<8x32xi1>
    %356 = arith.select %355, %344, %353 : vector<8x32xi1>, vector<8x32xf32>
    %357 = arith.index_cast %308 : i32 to index
    %c0_84 = arith.constant 0 : index
    %358 = vector.load %arg15[%357, %c0_84] : memref<64x32xf32, #tpu.memory_space<vmem>>, vector<8x32xf32>
    tpu.vector_store %arg15[%357, %c0_84], %356 {strides = array<i32>} : memref<64x32xf32, #tpu.memory_space<vmem>>, vector<8x32xf32>,
    %359 = arith.index_cast %311 : i32 to index
    %c0_85 = arith.constant 0 : index
    %360 = vector.load %arg17[%359, %c0_85] : memref<64x256xf32, #tpu.memory_space<vmem>>, vector<8x256xf32>
    %361 = vector.extract_strided_slice %360 {offsets = [0, 128], sizes = [8, 128], strides = [1, 1]} : vector<8x256xf32> to vector<8x128xf32>
    %362 = arith.index_cast %311 : i32 to index
    %c0_86 = arith.constant 0 : index
    %363 = vector.load %arg2[%362, %c0_86] : memref<64x1xf32, #tpu.memory_space<vmem>>, vector<8x1xf32>
    %364 = arith.truncf %297 : vector<8x32xf32> to vector<8x32xbf16>
    %cst_87 = arith.constant dense<0.000000e+00> : vector<8x128xf32>
    %365 = tpu.matmul %364, %2, %cst_87 {dimension_numbers = #tpu.dot_dimension_numbers<[1], [0], [0], [1], [0, 0, 1, 1], [], []>} : vector<8x32xbf16>, vector<32x128xbf16>, vector<8x128xf32> -> vector<8x128xf32>
    %366 = arith.addf %361, %365 : vector<8x128xf32>
    %367 = vector.extract_strided_slice %366 {offsets = [0, 0], sizes = [8, 32], strides = [1, 1]} : vector<8x128xf32> to vector<8x32xf32>
    %368 = arith.negf %367 : vector<8x32xf32>
    %369 = math.exp %368 : vector<8x32xf32>
    %cst_88 = arith.constant 1.000000e+00 : f32
    %370 = vector.broadcast %cst_88 : f32 to vector<8x32xf32>
    %371 = arith.addf %370, %369 : vector<8x32xf32>
    %372 = arith.divf %370, %371 : vector<8x32xf32>
    %373 = vector.extract_strided_slice %366 {offsets = [0, 32], sizes = [8, 32], strides = [1, 1]} : vector<8x128xf32> to vector<8x32xf32>
    %374 = arith.negf %373 : vector<8x32xf32>
    %375 = math.exp %374 : vector<8x32xf32>
    %cst_89 = arith.constant 1.000000e+00 : f32
    %376 = vector.broadcast %cst_89 : f32 to vector<8x32xf32>
    %377 = arith.addf %376, %375 : vector<8x32xf32>
    %378 = arith.divf %376, %377 : vector<8x32xf32>
    %379 = vector.extract_strided_slice %366 {offsets = [0, 64], sizes = [8, 32], strides = [1, 1]} : vector<8x128xf32> to vector<8x32xf32>
    %380 = math.tanh %379 : vector<8x32xf32>
    %381 = vector.extract_strided_slice %366 {offsets = [0, 96], sizes = [8, 32], strides = [1, 1]} : vector<8x128xf32> to vector<8x32xf32>
    %382 = arith.negf %381 : vector<8x32xf32>
    %383 = math.exp %382 : vector<8x32xf32>
    %cst_90 = arith.constant 1.000000e+00 : f32
    %384 = vector.broadcast %cst_90 : f32 to vector<8x32xf32>
    %385 = arith.addf %384, %383 : vector<8x32xf32>
    %386 = arith.divf %384, %385 : vector<8x32xf32>
    %387 = arith.mulf %378, %300 : vector<8x32xf32>
    %388 = arith.mulf %372, %380 : vector<8x32xf32>
    %389 = arith.addf %387, %388 : vector<8x32xf32>
    %390 = math.tanh %389 : vector<8x32xf32>
    %391 = arith.mulf %386, %390 : vector<8x32xf32>
    %cst_91 = arith.constant 0.000000e+00 : f32
    %392 = vector.broadcast %cst_91 : f32 to vector<8x1xf32>
    %393 = arith.cmpf ogt, %363, %392 : vector<8x1xf32>
    %394 = vector.shape_cast %393 : vector<8x1xi1> to vector<8x1xi1>
    %395 = vector.broadcast %394 : vector<8x1xi1> to vector<8x32xi1>
    %396 = arith.select %395, %391, %297 : vector<8x32xi1>, vector<8x32xf32>
    %397 = vector.shape_cast %393 : vector<8x1xi1> to vector<8x1xi1>
    %398 = vector.broadcast %397 : vector<8x1xi1> to vector<8x32xi1>
    %399 = arith.select %398, %389, %300 : vector<8x32xi1>, vector<8x32xf32>
    %cst_92 = arith.constant 0.000000e+00 : f32
    %400 = vector.broadcast %cst_92 : f32 to vector<8x32xf32>
    %401 = vector.shape_cast %393 : vector<8x1xi1> to vector<8x1xi1>
    %402 = vector.broadcast %401 : vector<8x1xi1> to vector<8x32xi1>
    %403 = arith.select %402, %391, %400 : vector<8x32xi1>, vector<8x32xf32>
    %404 = arith.index_cast %311 : i32 to index
    %c0_93 = arith.constant 0 : index
    %405 = vector.load %arg16[%404, %c0_93] : memref<64x32xf32, #tpu.memory_space<vmem>>, vector<8x32xf32>
    tpu.vector_store %arg16[%404, %c0_93], %403 {strides = array<i32>} : memref<64x32xf32, #tpu.memory_space<vmem>>, vector<8x32xf32>,
    %c4_i32 = arith.constant 4 : i32
    %c8_i32_94 = arith.constant 8 : i32
    %406 = arith.muli %c4_i32, %c8_i32_94 : i32
    %407 = tpu.assume_multiple %406, 8 : i32
    %c7_i32_95 = arith.constant 7 : i32
    %408 = arith.subi %c7_i32_95, %c4_i32 : i32
    %c8_i32_96 = arith.constant 8 : i32
    %409 = arith.muli %408, %c8_i32_96 : i32
    %410 = tpu.assume_multiple %409, 8 : i32
    %411 = arith.index_cast %407 : i32 to index
    %c0_97 = arith.constant 0 : index
    %412 = vector.load %arg17[%411, %c0_97] : memref<64x256xf32, #tpu.memory_space<vmem>>, vector<8x256xf32>
    %413 = vector.extract_strided_slice %412 {offsets = [0, 0], sizes = [8, 128], strides = [1, 1]} : vector<8x256xf32> to vector<8x128xf32>
    %414 = arith.index_cast %407 : i32 to index
    %c0_98 = arith.constant 0 : index
    %415 = vector.load %arg2[%414, %c0_98] : memref<64x1xf32, #tpu.memory_space<vmem>>, vector<8x1xf32>
    %416 = arith.truncf %349 : vector<8x32xf32> to vector<8x32xbf16>
    %cst_99 = arith.constant dense<0.000000e+00> : vector<8x128xf32>
    %417 = tpu.matmul %416, %1, %cst_99 {dimension_numbers = #tpu.dot_dimension_numbers<[1], [0], [0], [1], [0, 0, 1, 1], [], []>} : vector<8x32xbf16>, vector<32x128xbf16>, vector<8x128xf32> -> vector<8x128xf32>
    %418 = arith.addf %413, %417 : vector<8x128xf32>
    %419 = vector.extract_strided_slice %418 {offsets = [0, 0], sizes = [8, 32], strides = [1, 1]} : vector<8x128xf32> to vector<8x32xf32>
    %420 = arith.negf %419 : vector<8x32xf32>
    %421 = math.exp %420 : vector<8x32xf32>
    %cst_100 = arith.constant 1.000000e+00 : f32
    %422 = vector.broadcast %cst_100 : f32 to vector<8x32xf32>
    %423 = arith.addf %422, %421 : vector<8x32xf32>
    %424 = arith.divf %422, %423 : vector<8x32xf32>
    %425 = vector.extract_strided_slice %418 {offsets = [0, 32], sizes = [8, 32], strides = [1, 1]} : vector<8x128xf32> to vector<8x32xf32>
    %426 = arith.negf %425 : vector<8x32xf32>
    %427 = math.exp %426 : vector<8x32xf32>
    %cst_101 = arith.constant 1.000000e+00 : f32
    %428 = vector.broadcast %cst_101 : f32 to vector<8x32xf32>
    %429 = arith.addf %428, %427 : vector<8x32xf32>
    %430 = arith.divf %428, %429 : vector<8x32xf32>
    %431 = vector.extract_strided_slice %418 {offsets = [0, 64], sizes = [8, 32], strides = [1, 1]} : vector<8x128xf32> to vector<8x32xf32>
    %432 = math.tanh %431 : vector<8x32xf32>
    %433 = vector.extract_strided_slice %418 {offsets = [0, 96], sizes = [8, 32], strides = [1, 1]} : vector<8x128xf32> to vector<8x32xf32>
    %434 = arith.negf %433 : vector<8x32xf32>
    %435 = math.exp %434 : vector<8x32xf32>
    %cst_102 = arith.constant 1.000000e+00 : f32
    %436 = vector.broadcast %cst_102 : f32 to vector<8x32xf32>
    %437 = arith.addf %436, %435 : vector<8x32xf32>
    %438 = arith.divf %436, %437 : vector<8x32xf32>
    %439 = arith.mulf %430, %352 : vector<8x32xf32>
    %440 = arith.mulf %424, %432 : vector<8x32xf32>
    %441 = arith.addf %439, %440 : vector<8x32xf32>
    %442 = math.tanh %441 : vector<8x32xf32>
    %443 = arith.mulf %438, %442 : vector<8x32xf32>
    %cst_103 = arith.constant 0.000000e+00 : f32
    %444 = vector.broadcast %cst_103 : f32 to vector<8x1xf32>
    %445 = arith.cmpf ogt, %415, %444 : vector<8x1xf32>
    %446 = vector.shape_cast %445 : vector<8x1xi1> to vector<8x1xi1>
    %447 = vector.broadcast %446 : vector<8x1xi1> to vector<8x32xi1>
    %448 = arith.select %447, %443, %349 : vector<8x32xi1>, vector<8x32xf32>
    %449 = vector.shape_cast %445 : vector<8x1xi1> to vector<8x1xi1>
    %450 = vector.broadcast %449 : vector<8x1xi1> to vector<8x32xi1>
    %451 = arith.select %450, %441, %352 : vector<8x32xi1>, vector<8x32xf32>
    %cst_104 = arith.constant 0.000000e+00 : f32
    %452 = vector.broadcast %cst_104 : f32 to vector<8x32xf32>
    %453 = vector.shape_cast %445 : vector<8x1xi1> to vector<8x1xi1>
    %454 = vector.broadcast %453 : vector<8x1xi1> to vector<8x32xi1>
    %455 = arith.select %454, %443, %452 : vector<8x32xi1>, vector<8x32xf32>
    %456 = arith.index_cast %407 : i32 to index
    %c0_105 = arith.constant 0 : index
    %457 = vector.load %arg15[%456, %c0_105] : memref<64x32xf32, #tpu.memory_space<vmem>>, vector<8x32xf32>
    tpu.vector_store %arg15[%456, %c0_105], %455 {strides = array<i32>} : memref<64x32xf32, #tpu.memory_space<vmem>>, vector<8x32xf32>,
    %458 = arith.index_cast %410 : i32 to index
    %c0_106 = arith.constant 0 : index
    %459 = vector.load %arg17[%458, %c0_106] : memref<64x256xf32, #tpu.memory_space<vmem>>, vector<8x256xf32>
    %460 = vector.extract_strided_slice %459 {offsets = [0, 128], sizes = [8, 128], strides = [1, 1]} : vector<8x256xf32> to vector<8x128xf32>
    %461 = arith.index_cast %410 : i32 to index
    %c0_107 = arith.constant 0 : index
    %462 = vector.load %arg2[%461, %c0_107] : memref<64x1xf32, #tpu.memory_space<vmem>>, vector<8x1xf32>
    %463 = arith.truncf %396 : vector<8x32xf32> to vector<8x32xbf16>
    %cst_108 = arith.constant dense<0.000000e+00> : vector<8x128xf32>
    %464 = tpu.matmul %463, %2, %cst_108 {dimension_numbers = #tpu.dot_dimension_numbers<[1], [0], [0], [1], [0, 0, 1, 1], [], []>} : vector<8x32xbf16>, vector<32x128xbf16>, vector<8x128xf32> -> vector<8x128xf32>
    %465 = arith.addf %460, %464 : vector<8x128xf32>
    %466 = vector.extract_strided_slice %465 {offsets = [0, 0], sizes = [8, 32], strides = [1, 1]} : vector<8x128xf32> to vector<8x32xf32>
    %467 = arith.negf %466 : vector<8x32xf32>
    %468 = math.exp %467 : vector<8x32xf32>
    %cst_109 = arith.constant 1.000000e+00 : f32
    %469 = vector.broadcast %cst_109 : f32 to vector<8x32xf32>
    %470 = arith.addf %469, %468 : vector<8x32xf32>
    %471 = arith.divf %469, %470 : vector<8x32xf32>
    %472 = vector.extract_strided_slice %465 {offsets = [0, 32], sizes = [8, 32], strides = [1, 1]} : vector<8x128xf32> to vector<8x32xf32>
    %473 = arith.negf %472 : vector<8x32xf32>
    %474 = math.exp %473 : vector<8x32xf32>
    %cst_110 = arith.constant 1.000000e+00 : f32
    %475 = vector.broadcast %cst_110 : f32 to vector<8x32xf32>
    %476 = arith.addf %475, %474 : vector<8x32xf32>
    %477 = arith.divf %475, %476 : vector<8x32xf32>
    %478 = vector.extract_strided_slice %465 {offsets = [0, 64], sizes = [8, 32], strides = [1, 1]} : vector<8x128xf32> to vector<8x32xf32>
    %479 = math.tanh %478 : vector<8x32xf32>
    %480 = vector.extract_strided_slice %465 {offsets = [0, 96], sizes = [8, 32], strides = [1, 1]} : vector<8x128xf32> to vector<8x32xf32>
    %481 = arith.negf %480 : vector<8x32xf32>
    %482 = math.exp %481 : vector<8x32xf32>
    %cst_111 = arith.constant 1.000000e+00 : f32
    %483 = vector.broadcast %cst_111 : f32 to vector<8x32xf32>
    %484 = arith.addf %483, %482 : vector<8x32xf32>
    %485 = arith.divf %483, %484 : vector<8x32xf32>
    %486 = arith.mulf %477, %399 : vector<8x32xf32>
    %487 = arith.mulf %471, %479 : vector<8x32xf32>
    %488 = arith.addf %486, %487 : vector<8x32xf32>
    %489 = math.tanh %488 : vector<8x32xf32>
    %490 = arith.mulf %485, %489 : vector<8x32xf32>
    %cst_112 = arith.constant 0.000000e+00 : f32
    %491 = vector.broadcast %cst_112 : f32 to vector<8x1xf32>
    %492 = arith.cmpf ogt, %462, %491 : vector<8x1xf32>
    %493 = vector.shape_cast %492 : vector<8x1xi1> to vector<8x1xi1>
    %494 = vector.broadcast %493 : vector<8x1xi1> to vector<8x32xi1>
    %495 = arith.select %494, %490, %396 : vector<8x32xi1>, vector<8x32xf32>
    %496 = vector.shape_cast %492 : vector<8x1xi1> to vector<8x1xi1>
    %497 = vector.broadcast %496 : vector<8x1xi1> to vector<8x32xi1>
    %498 = arith.select %497, %488, %399 : vector<8x32xi1>, vector<8x32xf32>
    %cst_113 = arith.constant 0.000000e+00 : f32
    %499 = vector.broadcast %cst_113 : f32 to vector<8x32xf32>
    %500 = vector.shape_cast %492 : vector<8x1xi1> to vector<8x1xi1>
    %501 = vector.broadcast %500 : vector<8x1xi1> to vector<8x32xi1>
    %502 = arith.select %501, %490, %499 : vector<8x32xi1>, vector<8x32xf32>
    %503 = arith.index_cast %410 : i32 to index
    %c0_114 = arith.constant 0 : index
    %504 = vector.load %arg16[%503, %c0_114] : memref<64x32xf32, #tpu.memory_space<vmem>>, vector<8x32xf32>
    tpu.vector_store %arg16[%503, %c0_114], %502 {strides = array<i32>} : memref<64x32xf32, #tpu.memory_space<vmem>>, vector<8x32xf32>,
    %c5_i32 = arith.constant 5 : i32
    %c8_i32_115 = arith.constant 8 : i32
    %505 = arith.muli %c5_i32, %c8_i32_115 : i32
    %506 = tpu.assume_multiple %505, 8 : i32
    %c7_i32_116 = arith.constant 7 : i32
    %507 = arith.subi %c7_i32_116, %c5_i32 : i32
    %c8_i32_117 = arith.constant 8 : i32
    %508 = arith.muli %507, %c8_i32_117 : i32
    %509 = tpu.assume_multiple %508, 8 : i32
    %510 = arith.index_cast %506 : i32 to index
    %c0_118 = arith.constant 0 : index
    %511 = vector.load %arg17[%510, %c0_118] : memref<64x256xf32, #tpu.memory_space<vmem>>, vector<8x256xf32>
    %512 = vector.extract_strided_slice %511 {offsets = [0, 0], sizes = [8, 128], strides = [1, 1]} : vector<8x256xf32> to vector<8x128xf32>
    %513 = arith.index_cast %506 : i32 to index
    %c0_119 = arith.constant 0 : index
    %514 = vector.load %arg2[%513, %c0_119] : memref<64x1xf32, #tpu.memory_space<vmem>>, vector<8x1xf32>
    %515 = arith.truncf %448 : vector<8x32xf32> to vector<8x32xbf16>
    %cst_120 = arith.constant dense<0.000000e+00> : vector<8x128xf32>
    %516 = tpu.matmul %515, %1, %cst_120 {dimension_numbers = #tpu.dot_dimension_numbers<[1], [0], [0], [1], [0, 0, 1, 1], [], []>} : vector<8x32xbf16>, vector<32x128xbf16>, vector<8x128xf32> -> vector<8x128xf32>
    %517 = arith.addf %512, %516 : vector<8x128xf32>
    %518 = vector.extract_strided_slice %517 {offsets = [0, 0], sizes = [8, 32], strides = [1, 1]} : vector<8x128xf32> to vector<8x32xf32>
    %519 = arith.negf %518 : vector<8x32xf32>
    %520 = math.exp %519 : vector<8x32xf32>
    %cst_121 = arith.constant 1.000000e+00 : f32
    %521 = vector.broadcast %cst_121 : f32 to vector<8x32xf32>
    %522 = arith.addf %521, %520 : vector<8x32xf32>
    %523 = arith.divf %521, %522 : vector<8x32xf32>
    %524 = vector.extract_strided_slice %517 {offsets = [0, 32], sizes = [8, 32], strides = [1, 1]} : vector<8x128xf32> to vector<8x32xf32>
    %525 = arith.negf %524 : vector<8x32xf32>
    %526 = math.exp %525 : vector<8x32xf32>
    %cst_122 = arith.constant 1.000000e+00 : f32
    %527 = vector.broadcast %cst_122 : f32 to vector<8x32xf32>
    %528 = arith.addf %527, %526 : vector<8x32xf32>
    %529 = arith.divf %527, %528 : vector<8x32xf32>
    %530 = vector.extract_strided_slice %517 {offsets = [0, 64], sizes = [8, 32], strides = [1, 1]} : vector<8x128xf32> to vector<8x32xf32>
    %531 = math.tanh %530 : vector<8x32xf32>
    %532 = vector.extract_strided_slice %517 {offsets = [0, 96], sizes = [8, 32], strides = [1, 1]} : vector<8x128xf32> to vector<8x32xf32>
    %533 = arith.negf %532 : vector<8x32xf32>
    %534 = math.exp %533 : vector<8x32xf32>
    %cst_123 = arith.constant 1.000000e+00 : f32
    %535 = vector.broadcast %cst_123 : f32 to vector<8x32xf32>
    %536 = arith.addf %535, %534 : vector<8x32xf32>
    %537 = arith.divf %535, %536 : vector<8x32xf32>
    %538 = arith.mulf %529, %451 : vector<8x32xf32>
    %539 = arith.mulf %523, %531 : vector<8x32xf32>
    %540 = arith.addf %538, %539 : vector<8x32xf32>
    %541 = math.tanh %540 : vector<8x32xf32>
    %542 = arith.mulf %537, %541 : vector<8x32xf32>
    %cst_124 = arith.constant 0.000000e+00 : f32
    %543 = vector.broadcast %cst_124 : f32 to vector<8x1xf32>
    %544 = arith.cmpf ogt, %514, %543 : vector<8x1xf32>
    %545 = vector.shape_cast %544 : vector<8x1xi1> to vector<8x1xi1>
    %546 = vector.broadcast %545 : vector<8x1xi1> to vector<8x32xi1>
    %547 = arith.select %546, %542, %448 : vector<8x32xi1>, vector<8x32xf32>
    %548 = vector.shape_cast %544 : vector<8x1xi1> to vector<8x1xi1>
    %549 = vector.broadcast %548 : vector<8x1xi1> to vector<8x32xi1>
    %550 = arith.select %549, %540, %451 : vector<8x32xi1>, vector<8x32xf32>
    %cst_125 = arith.constant 0.000000e+00 : f32
    %551 = vector.broadcast %cst_125 : f32 to vector<8x32xf32>
    %552 = vector.shape_cast %544 : vector<8x1xi1> to vector<8x1xi1>
    %553 = vector.broadcast %552 : vector<8x1xi1> to vector<8x32xi1>
    %554 = arith.select %553, %542, %551 : vector<8x32xi1>, vector<8x32xf32>
    %555 = arith.index_cast %506 : i32 to index
    %c0_126 = arith.constant 0 : index
    %556 = vector.load %arg15[%555, %c0_126] : memref<64x32xf32, #tpu.memory_space<vmem>>, vector<8x32xf32>
    tpu.vector_store %arg15[%555, %c0_126], %554 {strides = array<i32>} : memref<64x32xf32, #tpu.memory_space<vmem>>, vector<8x32xf32>,
    %557 = arith.index_cast %509 : i32 to index
    %c0_127 = arith.constant 0 : index
    %558 = vector.load %arg17[%557, %c0_127] : memref<64x256xf32, #tpu.memory_space<vmem>>, vector<8x256xf32>
    %559 = vector.extract_strided_slice %558 {offsets = [0, 128], sizes = [8, 128], strides = [1, 1]} : vector<8x256xf32> to vector<8x128xf32>
    %560 = arith.index_cast %509 : i32 to index
    %c0_128 = arith.constant 0 : index
    %561 = vector.load %arg2[%560, %c0_128] : memref<64x1xf32, #tpu.memory_space<vmem>>, vector<8x1xf32>
    %562 = arith.truncf %495 : vector<8x32xf32> to vector<8x32xbf16>
    %cst_129 = arith.constant dense<0.000000e+00> : vector<8x128xf32>
    %563 = tpu.matmul %562, %2, %cst_129 {dimension_numbers = #tpu.dot_dimension_numbers<[1], [0], [0], [1], [0, 0, 1, 1], [], []>} : vector<8x32xbf16>, vector<32x128xbf16>, vector<8x128xf32> -> vector<8x128xf32>
    %564 = arith.addf %559, %563 : vector<8x128xf32>
    %565 = vector.extract_strided_slice %564 {offsets = [0, 0], sizes = [8, 32], strides = [1, 1]} : vector<8x128xf32> to vector<8x32xf32>
    %566 = arith.negf %565 : vector<8x32xf32>
    %567 = math.exp %566 : vector<8x32xf32>
    %cst_130 = arith.constant 1.000000e+00 : f32
    %568 = vector.broadcast %cst_130 : f32 to vector<8x32xf32>
    %569 = arith.addf %568, %567 : vector<8x32xf32>
    %570 = arith.divf %568, %569 : vector<8x32xf32>
    %571 = vector.extract_strided_slice %564 {offsets = [0, 32], sizes = [8, 32], strides = [1, 1]} : vector<8x128xf32> to vector<8x32xf32>
    %572 = arith.negf %571 : vector<8x32xf32>
    %573 = math.exp %572 : vector<8x32xf32>
    %cst_131 = arith.constant 1.000000e+00 : f32
    %574 = vector.broadcast %cst_131 : f32 to vector<8x32xf32>
    %575 = arith.addf %574, %573 : vector<8x32xf32>
    %576 = arith.divf %574, %575 : vector<8x32xf32>
    %577 = vector.extract_strided_slice %564 {offsets = [0, 64], sizes = [8, 32], strides = [1, 1]} : vector<8x128xf32> to vector<8x32xf32>
    %578 = math.tanh %577 : vector<8x32xf32>
    %579 = vector.extract_strided_slice %564 {offsets = [0, 96], sizes = [8, 32], strides = [1, 1]} : vector<8x128xf32> to vector<8x32xf32>
    %580 = arith.negf %579 : vector<8x32xf32>
    %581 = math.exp %580 : vector<8x32xf32>
    %cst_132 = arith.constant 1.000000e+00 : f32
    %582 = vector.broadcast %cst_132 : f32 to vector<8x32xf32>
    %583 = arith.addf %582, %581 : vector<8x32xf32>
    %584 = arith.divf %582, %583 : vector<8x32xf32>
    %585 = arith.mulf %576, %498 : vector<8x32xf32>
    %586 = arith.mulf %570, %578 : vector<8x32xf32>
    %587 = arith.addf %585, %586 : vector<8x32xf32>
    %588 = math.tanh %587 : vector<8x32xf32>
    %589 = arith.mulf %584, %588 : vector<8x32xf32>
    %cst_133 = arith.constant 0.000000e+00 : f32
    %590 = vector.broadcast %cst_133 : f32 to vector<8x1xf32>
    %591 = arith.cmpf ogt, %561, %590 : vector<8x1xf32>
    %592 = vector.shape_cast %591 : vector<8x1xi1> to vector<8x1xi1>
    %593 = vector.broadcast %592 : vector<8x1xi1> to vector<8x32xi1>
    %594 = arith.select %593, %589, %495 : vector<8x32xi1>, vector<8x32xf32>
    %595 = vector.shape_cast %591 : vector<8x1xi1> to vector<8x1xi1>
    %596 = vector.broadcast %595 : vector<8x1xi1> to vector<8x32xi1>
    %597 = arith.select %596, %587, %498 : vector<8x32xi1>, vector<8x32xf32>
    %cst_134 = arith.constant 0.000000e+00 : f32
    %598 = vector.broadcast %cst_134 : f32 to vector<8x32xf32>
    %599 = vector.shape_cast %591 : vector<8x1xi1> to vector<8x1xi1>
    %600 = vector.broadcast %599 : vector<8x1xi1> to vector<8x32xi1>
    %601 = arith.select %600, %589, %598 : vector<8x32xi1>, vector<8x32xf32>
    %602 = arith.index_cast %509 : i32 to index
    %c0_135 = arith.constant 0 : index
    %603 = vector.load %arg16[%602, %c0_135] : memref<64x32xf32, #tpu.memory_space<vmem>>, vector<8x32xf32>
    tpu.vector_store %arg16[%602, %c0_135], %601 {strides = array<i32>} : memref<64x32xf32, #tpu.memory_space<vmem>>, vector<8x32xf32>,
    %c6_i32 = arith.constant 6 : i32
    %c8_i32_136 = arith.constant 8 : i32
    %604 = arith.muli %c6_i32, %c8_i32_136 : i32
    %605 = tpu.assume_multiple %604, 8 : i32
    %c7_i32_137 = arith.constant 7 : i32
    %606 = arith.subi %c7_i32_137, %c6_i32 : i32
    %c8_i32_138 = arith.constant 8 : i32
    %607 = arith.muli %606, %c8_i32_138 : i32
    %608 = tpu.assume_multiple %607, 8 : i32
    %609 = arith.index_cast %605 : i32 to index
    %c0_139 = arith.constant 0 : index
    %610 = vector.load %arg17[%609, %c0_139] : memref<64x256xf32, #tpu.memory_space<vmem>>, vector<8x256xf32>
    %611 = vector.extract_strided_slice %610 {offsets = [0, 0], sizes = [8, 128], strides = [1, 1]} : vector<8x256xf32> to vector<8x128xf32>
    %612 = arith.index_cast %605 : i32 to index
    %c0_140 = arith.constant 0 : index
    %613 = vector.load %arg2[%612, %c0_140] : memref<64x1xf32, #tpu.memory_space<vmem>>, vector<8x1xf32>
    %614 = arith.truncf %547 : vector<8x32xf32> to vector<8x32xbf16>
    %cst_141 = arith.constant dense<0.000000e+00> : vector<8x128xf32>
    %615 = tpu.matmul %614, %1, %cst_141 {dimension_numbers = #tpu.dot_dimension_numbers<[1], [0], [0], [1], [0, 0, 1, 1], [], []>} : vector<8x32xbf16>, vector<32x128xbf16>, vector<8x128xf32> -> vector<8x128xf32>
    %616 = arith.addf %611, %615 : vector<8x128xf32>
    %617 = vector.extract_strided_slice %616 {offsets = [0, 0], sizes = [8, 32], strides = [1, 1]} : vector<8x128xf32> to vector<8x32xf32>
    %618 = arith.negf %617 : vector<8x32xf32>
    %619 = math.exp %618 : vector<8x32xf32>
    %cst_142 = arith.constant 1.000000e+00 : f32
    %620 = vector.broadcast %cst_142 : f32 to vector<8x32xf32>
    %621 = arith.addf %620, %619 : vector<8x32xf32>
    %622 = arith.divf %620, %621 : vector<8x32xf32>
    %623 = vector.extract_strided_slice %616 {offsets = [0, 32], sizes = [8, 32], strides = [1, 1]} : vector<8x128xf32> to vector<8x32xf32>
    %624 = arith.negf %623 : vector<8x32xf32>
    %625 = math.exp %624 : vector<8x32xf32>
    %cst_143 = arith.constant 1.000000e+00 : f32
    %626 = vector.broadcast %cst_143 : f32 to vector<8x32xf32>
    %627 = arith.addf %626, %625 : vector<8x32xf32>
    %628 = arith.divf %626, %627 : vector<8x32xf32>
    %629 = vector.extract_strided_slice %616 {offsets = [0, 64], sizes = [8, 32], strides = [1, 1]} : vector<8x128xf32> to vector<8x32xf32>
    %630 = math.tanh %629 : vector<8x32xf32>
    %631 = vector.extract_strided_slice %616 {offsets = [0, 96], sizes = [8, 32], strides = [1, 1]} : vector<8x128xf32> to vector<8x32xf32>
    %632 = arith.negf %631 : vector<8x32xf32>
    %633 = math.exp %632 : vector<8x32xf32>
    %cst_144 = arith.constant 1.000000e+00 : f32
    %634 = vector.broadcast %cst_144 : f32 to vector<8x32xf32>
    %635 = arith.addf %634, %633 : vector<8x32xf32>
    %636 = arith.divf %634, %635 : vector<8x32xf32>
    %637 = arith.mulf %628, %550 : vector<8x32xf32>
    %638 = arith.mulf %622, %630 : vector<8x32xf32>
    %639 = arith.addf %637, %638 : vector<8x32xf32>
    %640 = math.tanh %639 : vector<8x32xf32>
    %641 = arith.mulf %636, %640 : vector<8x32xf32>
    %cst_145 = arith.constant 0.000000e+00 : f32
    %642 = vector.broadcast %cst_145 : f32 to vector<8x1xf32>
    %643 = arith.cmpf ogt, %613, %642 : vector<8x1xf32>
    %644 = vector.shape_cast %643 : vector<8x1xi1> to vector<8x1xi1>
    %645 = vector.broadcast %644 : vector<8x1xi1> to vector<8x32xi1>
    %646 = arith.select %645, %641, %547 : vector<8x32xi1>, vector<8x32xf32>
    %647 = vector.shape_cast %643 : vector<8x1xi1> to vector<8x1xi1>
    %648 = vector.broadcast %647 : vector<8x1xi1> to vector<8x32xi1>
    %649 = arith.select %648, %639, %550 : vector<8x32xi1>, vector<8x32xf32>
    %cst_146 = arith.constant 0.000000e+00 : f32
    %650 = vector.broadcast %cst_146 : f32 to vector<8x32xf32>
    %651 = vector.shape_cast %643 : vector<8x1xi1> to vector<8x1xi1>
    %652 = vector.broadcast %651 : vector<8x1xi1> to vector<8x32xi1>
    %653 = arith.select %652, %641, %650 : vector<8x32xi1>, vector<8x32xf32>
    %654 = arith.index_cast %605 : i32 to index
    %c0_147 = arith.constant 0 : index
    %655 = vector.load %arg15[%654, %c0_147] : memref<64x32xf32, #tpu.memory_space<vmem>>, vector<8x32xf32>
    tpu.vector_store %arg15[%654, %c0_147], %653 {strides = array<i32>} : memref<64x32xf32, #tpu.memory_space<vmem>>, vector<8x32xf32>,
    %656 = arith.index_cast %608 : i32 to index
    %c0_148 = arith.constant 0 : index
    %657 = vector.load %arg17[%656, %c0_148] : memref<64x256xf32, #tpu.memory_space<vmem>>, vector<8x256xf32>
    %658 = vector.extract_strided_slice %657 {offsets = [0, 128], sizes = [8, 128], strides = [1, 1]} : vector<8x256xf32> to vector<8x128xf32>
    %659 = arith.index_cast %608 : i32 to index
    %c0_149 = arith.constant 0 : index
    %660 = vector.load %arg2[%659, %c0_149] : memref<64x1xf32, #tpu.memory_space<vmem>>, vector<8x1xf32>
    %661 = arith.truncf %594 : vector<8x32xf32> to vector<8x32xbf16>
    %cst_150 = arith.constant dense<0.000000e+00> : vector<8x128xf32>
    %662 = tpu.matmul %661, %2, %cst_150 {dimension_numbers = #tpu.dot_dimension_numbers<[1], [0], [0], [1], [0, 0, 1, 1], [], []>} : vector<8x32xbf16>, vector<32x128xbf16>, vector<8x128xf32> -> vector<8x128xf32>
    %663 = arith.addf %658, %662 : vector<8x128xf32>
    %664 = vector.extract_strided_slice %663 {offsets = [0, 0], sizes = [8, 32], strides = [1, 1]} : vector<8x128xf32> to vector<8x32xf32>
    %665 = arith.negf %664 : vector<8x32xf32>
    %666 = math.exp %665 : vector<8x32xf32>
    %cst_151 = arith.constant 1.000000e+00 : f32
    %667 = vector.broadcast %cst_151 : f32 to vector<8x32xf32>
    %668 = arith.addf %667, %666 : vector<8x32xf32>
    %669 = arith.divf %667, %668 : vector<8x32xf32>
    %670 = vector.extract_strided_slice %663 {offsets = [0, 32], sizes = [8, 32], strides = [1, 1]} : vector<8x128xf32> to vector<8x32xf32>
    %671 = arith.negf %670 : vector<8x32xf32>
    %672 = math.exp %671 : vector<8x32xf32>
    %cst_152 = arith.constant 1.000000e+00 : f32
    %673 = vector.broadcast %cst_152 : f32 to vector<8x32xf32>
    %674 = arith.addf %673, %672 : vector<8x32xf32>
    %675 = arith.divf %673, %674 : vector<8x32xf32>
    %676 = vector.extract_strided_slice %663 {offsets = [0, 64], sizes = [8, 32], strides = [1, 1]} : vector<8x128xf32> to vector<8x32xf32>
    %677 = math.tanh %676 : vector<8x32xf32>
    %678 = vector.extract_strided_slice %663 {offsets = [0, 96], sizes = [8, 32], strides = [1, 1]} : vector<8x128xf32> to vector<8x32xf32>
    %679 = arith.negf %678 : vector<8x32xf32>
    %680 = math.exp %679 : vector<8x32xf32>
    %cst_153 = arith.constant 1.000000e+00 : f32
    %681 = vector.broadcast %cst_153 : f32 to vector<8x32xf32>
    %682 = arith.addf %681, %680 : vector<8x32xf32>
    %683 = arith.divf %681, %682 : vector<8x32xf32>
    %684 = arith.mulf %675, %597 : vector<8x32xf32>
    %685 = arith.mulf %669, %677 : vector<8x32xf32>
    %686 = arith.addf %684, %685 : vector<8x32xf32>
    %687 = math.tanh %686 : vector<8x32xf32>
    %688 = arith.mulf %683, %687 : vector<8x32xf32>
    %cst_154 = arith.constant 0.000000e+00 : f32
    %689 = vector.broadcast %cst_154 : f32 to vector<8x1xf32>
    %690 = arith.cmpf ogt, %660, %689 : vector<8x1xf32>
    %691 = vector.shape_cast %690 : vector<8x1xi1> to vector<8x1xi1>
    %692 = vector.broadcast %691 : vector<8x1xi1> to vector<8x32xi1>
    %693 = arith.select %692, %688, %594 : vector<8x32xi1>, vector<8x32xf32>
    %694 = vector.shape_cast %690 : vector<8x1xi1> to vector<8x1xi1>
    %695 = vector.broadcast %694 : vector<8x1xi1> to vector<8x32xi1>
    %696 = arith.select %695, %686, %597 : vector<8x32xi1>, vector<8x32xf32>
    %cst_155 = arith.constant 0.000000e+00 : f32
    %697 = vector.broadcast %cst_155 : f32 to vector<8x32xf32>
    %698 = vector.shape_cast %690 : vector<8x1xi1> to vector<8x1xi1>
    %699 = vector.broadcast %698 : vector<8x1xi1> to vector<8x32xi1>
    %700 = arith.select %699, %688, %697 : vector<8x32xi1>, vector<8x32xf32>
    %701 = arith.index_cast %608 : i32 to index
    %c0_156 = arith.constant 0 : index
    %702 = vector.load %arg16[%701, %c0_156] : memref<64x32xf32, #tpu.memory_space<vmem>>, vector<8x32xf32>
    tpu.vector_store %arg16[%701, %c0_156], %700 {strides = array<i32>} : memref<64x32xf32, #tpu.memory_space<vmem>>, vector<8x32xf32>,
    %c7_i32_157 = arith.constant 7 : i32
    %c8_i32_158 = arith.constant 8 : i32
    %703 = arith.muli %c7_i32_157, %c8_i32_158 : i32
    %704 = tpu.assume_multiple %703, 8 : i32
    %c7_i32_159 = arith.constant 7 : i32
    %705 = arith.subi %c7_i32_159, %c7_i32_157 : i32
    %c8_i32_160 = arith.constant 8 : i32
    %706 = arith.muli %705, %c8_i32_160 : i32
    %707 = tpu.assume_multiple %706, 8 : i32
    %708 = arith.index_cast %704 : i32 to index
    %c0_161 = arith.constant 0 : index
    %709 = vector.load %arg17[%708, %c0_161] : memref<64x256xf32, #tpu.memory_space<vmem>>, vector<8x256xf32>
    %710 = vector.extract_strided_slice %709 {offsets = [0, 0], sizes = [8, 128], strides = [1, 1]} : vector<8x256xf32> to vector<8x128xf32>
    %711 = arith.index_cast %704 : i32 to index
    %c0_162 = arith.constant 0 : index
    %712 = vector.load %arg2[%711, %c0_162] : memref<64x1xf32, #tpu.memory_space<vmem>>, vector<8x1xf32>
    %713 = arith.truncf %646 : vector<8x32xf32> to vector<8x32xbf16>
    %cst_163 = arith.constant dense<0.000000e+00> : vector<8x128xf32>
    %714 = tpu.matmul %713, %1, %cst_163 {dimension_numbers = #tpu.dot_dimension_numbers<[1], [0], [0], [1], [0, 0, 1, 1], [], []>} : vector<8x32xbf16>, vector<32x128xbf16>, vector<8x128xf32> -> vector<8x128xf32>
    %715 = arith.addf %710, %714 : vector<8x128xf32>
    %716 = vector.extract_strided_slice %715 {offsets = [0, 0], sizes = [8, 32], strides = [1, 1]} : vector<8x128xf32> to vector<8x32xf32>
    %717 = arith.negf %716 : vector<8x32xf32>
    %718 = math.exp %717 : vector<8x32xf32>
    %cst_164 = arith.constant 1.000000e+00 : f32
    %719 = vector.broadcast %cst_164 : f32 to vector<8x32xf32>
    %720 = arith.addf %719, %718 : vector<8x32xf32>
    %721 = arith.divf %719, %720 : vector<8x32xf32>
    %722 = vector.extract_strided_slice %715 {offsets = [0, 32], sizes = [8, 32], strides = [1, 1]} : vector<8x128xf32> to vector<8x32xf32>
    %723 = arith.negf %722 : vector<8x32xf32>
    %724 = math.exp %723 : vector<8x32xf32>
    %cst_165 = arith.constant 1.000000e+00 : f32
    %725 = vector.broadcast %cst_165 : f32 to vector<8x32xf32>
    %726 = arith.addf %725, %724 : vector<8x32xf32>
    %727 = arith.divf %725, %726 : vector<8x32xf32>
    %728 = vector.extract_strided_slice %715 {offsets = [0, 64], sizes = [8, 32], strides = [1, 1]} : vector<8x128xf32> to vector<8x32xf32>
    %729 = math.tanh %728 : vector<8x32xf32>
    %730 = vector.extract_strided_slice %715 {offsets = [0, 96], sizes = [8, 32], strides = [1, 1]} : vector<8x128xf32> to vector<8x32xf32>
    %731 = arith.negf %730 : vector<8x32xf32>
    %732 = math.exp %731 : vector<8x32xf32>
    %cst_166 = arith.constant 1.000000e+00 : f32
    %733 = vector.broadcast %cst_166 : f32 to vector<8x32xf32>
    %734 = arith.addf %733, %732 : vector<8x32xf32>
    %735 = arith.divf %733, %734 : vector<8x32xf32>
    %736 = arith.mulf %727, %649 : vector<8x32xf32>
    %737 = arith.mulf %721, %729 : vector<8x32xf32>
    %738 = arith.addf %736, %737 : vector<8x32xf32>
    %739 = math.tanh %738 : vector<8x32xf32>
    %740 = arith.mulf %735, %739 : vector<8x32xf32>
    %cst_167 = arith.constant 0.000000e+00 : f32
    %741 = vector.broadcast %cst_167 : f32 to vector<8x1xf32>
    %742 = arith.cmpf ogt, %712, %741 : vector<8x1xf32>
    %743 = vector.shape_cast %742 : vector<8x1xi1> to vector<8x1xi1>
    %744 = vector.broadcast %743 : vector<8x1xi1> to vector<8x32xi1>
    %745 = arith.select %744, %740, %646 : vector<8x32xi1>, vector<8x32xf32>
    %746 = vector.shape_cast %742 : vector<8x1xi1> to vector<8x1xi1>
    %747 = vector.broadcast %746 : vector<8x1xi1> to vector<8x32xi1>
    %748 = arith.select %747, %738, %649 : vector<8x32xi1>, vector<8x32xf32>
    %cst_168 = arith.constant 0.000000e+00 : f32
    %749 = vector.broadcast %cst_168 : f32 to vector<8x32xf32>
    %750 = vector.shape_cast %742 : vector<8x1xi1> to vector<8x1xi1>
    %751 = vector.broadcast %750 : vector<8x1xi1> to vector<8x32xi1>
    %752 = arith.select %751, %740, %749 : vector<8x32xi1>, vector<8x32xf32>
    %753 = arith.index_cast %704 : i32 to index
    %c0_169 = arith.constant 0 : index
    %754 = vector.load %arg15[%753, %c0_169] : memref<64x32xf32, #tpu.memory_space<vmem>>, vector<8x32xf32>
    tpu.vector_store %arg15[%753, %c0_169], %752 {strides = array<i32>} : memref<64x32xf32, #tpu.memory_space<vmem>>, vector<8x32xf32>,
    %755 = arith.index_cast %707 : i32 to index
    %c0_170 = arith.constant 0 : index
    %756 = vector.load %arg17[%755, %c0_170] : memref<64x256xf32, #tpu.memory_space<vmem>>, vector<8x256xf32>
    %757 = vector.extract_strided_slice %756 {offsets = [0, 128], sizes = [8, 128], strides = [1, 1]} : vector<8x256xf32> to vector<8x128xf32>
    %758 = arith.index_cast %707 : i32 to index
    %c0_171 = arith.constant 0 : index
    %759 = vector.load %arg2[%758, %c0_171] : memref<64x1xf32, #tpu.memory_space<vmem>>, vector<8x1xf32>
    %760 = arith.truncf %693 : vector<8x32xf32> to vector<8x32xbf16>
    %cst_172 = arith.constant dense<0.000000e+00> : vector<8x128xf32>
    %761 = tpu.matmul %760, %2, %cst_172 {dimension_numbers = #tpu.dot_dimension_numbers<[1], [0], [0], [1], [0, 0, 1, 1], [], []>} : vector<8x32xbf16>, vector<32x128xbf16>, vector<8x128xf32> -> vector<8x128xf32>
    %762 = arith.addf %757, %761 : vector<8x128xf32>
    %763 = vector.extract_strided_slice %762 {offsets = [0, 0], sizes = [8, 32], strides = [1, 1]} : vector<8x128xf32> to vector<8x32xf32>
    %764 = arith.negf %763 : vector<8x32xf32>
    %765 = math.exp %764 : vector<8x32xf32>
    %cst_173 = arith.constant 1.000000e+00 : f32
    %766 = vector.broadcast %cst_173 : f32 to vector<8x32xf32>
    %767 = arith.addf %766, %765 : vector<8x32xf32>
    %768 = arith.divf %766, %767 : vector<8x32xf32>
    %769 = vector.extract_strided_slice %762 {offsets = [0, 32], sizes = [8, 32], strides = [1, 1]} : vector<8x128xf32> to vector<8x32xf32>
    %770 = arith.negf %769 : vector<8x32xf32>
    %771 = math.exp %770 : vector<8x32xf32>
    %cst_174 = arith.constant 1.000000e+00 : f32
    %772 = vector.broadcast %cst_174 : f32 to vector<8x32xf32>
    %773 = arith.addf %772, %771 : vector<8x32xf32>
    %774 = arith.divf %772, %773 : vector<8x32xf32>
    %775 = vector.extract_strided_slice %762 {offsets = [0, 64], sizes = [8, 32], strides = [1, 1]} : vector<8x128xf32> to vector<8x32xf32>
    %776 = math.tanh %775 : vector<8x32xf32>
    %777 = vector.extract_strided_slice %762 {offsets = [0, 96], sizes = [8, 32], strides = [1, 1]} : vector<8x128xf32> to vector<8x32xf32>
    %778 = arith.negf %777 : vector<8x32xf32>
    %779 = math.exp %778 : vector<8x32xf32>
    %cst_175 = arith.constant 1.000000e+00 : f32
    %780 = vector.broadcast %cst_175 : f32 to vector<8x32xf32>
    %781 = arith.addf %780, %779 : vector<8x32xf32>
    %782 = arith.divf %780, %781 : vector<8x32xf32>
    %783 = arith.mulf %774, %696 : vector<8x32xf32>
    %784 = arith.mulf %768, %776 : vector<8x32xf32>
    %785 = arith.addf %783, %784 : vector<8x32xf32>
    %786 = math.tanh %785 : vector<8x32xf32>
    %787 = arith.mulf %782, %786 : vector<8x32xf32>
    %cst_176 = arith.constant 0.000000e+00 : f32
    %788 = vector.broadcast %cst_176 : f32 to vector<8x1xf32>
    %789 = arith.cmpf ogt, %759, %788 : vector<8x1xf32>
    %790 = vector.shape_cast %789 : vector<8x1xi1> to vector<8x1xi1>
    %791 = vector.broadcast %790 : vector<8x1xi1> to vector<8x32xi1>
    %792 = arith.select %791, %787, %693 : vector<8x32xi1>, vector<8x32xf32>
    %793 = vector.shape_cast %789 : vector<8x1xi1> to vector<8x1xi1>
    %794 = vector.broadcast %793 : vector<8x1xi1> to vector<8x32xi1>
    %795 = arith.select %794, %785, %696 : vector<8x32xi1>, vector<8x32xf32>
    %cst_177 = arith.constant 0.000000e+00 : f32
    %796 = vector.broadcast %cst_177 : f32 to vector<8x32xf32>
    %797 = vector.shape_cast %789 : vector<8x1xi1> to vector<8x1xi1>
    %798 = vector.broadcast %797 : vector<8x1xi1> to vector<8x32xi1>
    %799 = arith.select %798, %787, %796 : vector<8x32xi1>, vector<8x32xf32>
    %800 = arith.index_cast %707 : i32 to index
    %c0_178 = arith.constant 0 : index
    %801 = vector.load %arg16[%800, %c0_178] : memref<64x32xf32, #tpu.memory_space<vmem>>, vector<8x32xf32>
    tpu.vector_store %arg16[%800, %c0_178], %799 {strides = array<i32>} : memref<64x32xf32, #tpu.memory_space<vmem>>, vector<8x32xf32>,
    %c8_i32_179 = arith.constant 8 : i32
    %c0_180 = arith.constant 0 : index
    %c0_181 = arith.constant 0 : index
    %802 = vector.load %arg8[%c0_180, %c0_181] : memref<1x256xf32, #tpu.memory_space<vmem>>, vector<1x256xf32>
    %c0_182 = arith.constant 0 : index
    %c0_183 = arith.constant 0 : index
    %803 = vector.load %arg9[%c0_182, %c0_183] : memref<32x128xbf16, #tpu.memory_space<vmem>>, vector<32x128xbf16>
    %c0_184 = arith.constant 0 : index
    %c0_185 = arith.constant 0 : index
    %804 = vector.load %arg10[%c0_184, %c0_185] : memref<32x128xbf16, #tpu.memory_space<vmem>>, vector<32x128xbf16>
    %c0_186 = arith.constant 0 : index
    %c0_187 = arith.constant 0 : index
    %805 = vector.load %arg15[%c0_186, %c0_187] : memref<64x32xf32, #tpu.memory_space<vmem>>, vector<64x32xf32>
    %806 = arith.truncf %805 : vector<64x32xf32> to vector<64x32xbf16>
    %c0_188 = arith.constant 0 : index
    %c0_189 = arith.constant 0 : index
    %807 = vector.load %arg16[%c0_188, %c0_189] : memref<64x32xf32, #tpu.memory_space<vmem>>, vector<64x32xf32>
    %808 = arith.truncf %807 : vector<64x32xf32> to vector<64x32xbf16>
    %c0_190 = arith.constant 0 : index
    %c0_191 = arith.constant 0 : index
    %809 = vector.load %arg7[%c0_190, %c0_191] : memref<64x256xbf16, #tpu.memory_space<vmem>>, vector<32x256xbf16>
    %cst_192 = arith.constant dense<0.000000e+00> : vector<64x256xf32>
    %810 = tpu.matmul %806, %809, %cst_192 {dimension_numbers = #tpu.dot_dimension_numbers<[1], [0], [0], [1], [0, 0, 1, 1], [], []>} : vector<64x32xbf16>, vector<32x256xbf16>, vector<64x256xf32> -> vector<64x256xf32>
    %c32 = arith.constant 32 : index
    %c0_193 = arith.constant 0 : index
    %811 = vector.load %arg7[%c32, %c0_193] : memref<64x256xbf16, #tpu.memory_space<vmem>>, vector<32x256xbf16>
    %cst_194 = arith.constant dense<0.000000e+00> : vector<64x256xf32>
    %812 = tpu.matmul %808, %811, %cst_194 {dimension_numbers = #tpu.dot_dimension_numbers<[1], [0], [0], [1], [0, 0, 1, 1], [], []>} : vector<64x32xbf16>, vector<32x256xbf16>, vector<64x256xf32> -> vector<64x256xf32>
    %813 = arith.addf %810, %812 : vector<64x256xf32>
    %814 = vector.broadcast %802 : vector<1x256xf32> to vector<64x256xf32>
    %815 = arith.addf %813, %814 : vector<64x256xf32>
    %c0_195 = arith.constant 0 : index
    %c0_196 = arith.constant 0 : index
    %816 = vector.load %arg17[%c0_195, %c0_196] : memref<64x256xf32, #tpu.memory_space<vmem>>, vector<64x256xf32>
    tpu.vector_store %arg17[%c0_195, %c0_196], %815 {strides = array<i32>} : memref<64x256xf32, #tpu.memory_space<vmem>>, vector<64x256xf32>,
    %cst_197 = arith.constant 0.000000e+00 : f32
    %817 = vector.broadcast %cst_197 : f32 to vector<8x32xf32>
    %c0_i32_198 = arith.constant 0 : i32
    %c8_i32_199 = arith.constant 8 : i32
    %818 = arith.muli %c0_i32_198, %c8_i32_199 : i32
    %819 = tpu.assume_multiple %818, 8 : i32
    %c7_i32_200 = arith.constant 7 : i32
    %820 = arith.subi %c7_i32_200, %c0_i32_198 : i32
    %c8_i32_201 = arith.constant 8 : i32
    %821 = arith.muli %820, %c8_i32_201 : i32
    %822 = tpu.assume_multiple %821, 8 : i32
    %823 = arith.index_cast %819 : i32 to index
    %c0_202 = arith.constant 0 : index
    %824 = vector.load %arg17[%823, %c0_202] : memref<64x256xf32, #tpu.memory_space<vmem>>, vector<8x256xf32>
    %825 = vector.extract_strided_slice %824 {offsets = [0, 0], sizes = [8, 128], strides = [1, 1]} : vector<8x256xf32> to vector<8x128xf32>
    %826 = arith.index_cast %819 : i32 to index
    %c0_203 = arith.constant 0 : index
    %827 = vector.load %arg2[%826, %c0_203] : memref<64x1xf32, #tpu.memory_space<vmem>>, vector<8x1xf32>
    %828 = arith.truncf %817 : vector<8x32xf32> to vector<8x32xbf16>
    %cst_204 = arith.constant dense<0.000000e+00> : vector<8x128xf32>
    %829 = tpu.matmul %828, %803, %cst_204 {dimension_numbers = #tpu.dot_dimension_numbers<[1], [0], [0], [1], [0, 0, 1, 1], [], []>} : vector<8x32xbf16>, vector<32x128xbf16>, vector<8x128xf32> -> vector<8x128xf32>
    %830 = arith.addf %825, %829 : vector<8x128xf32>
    %831 = vector.extract_strided_slice %830 {offsets = [0, 0], sizes = [8, 32], strides = [1, 1]} : vector<8x128xf32> to vector<8x32xf32>
    %832 = arith.negf %831 : vector<8x32xf32>
    %833 = math.exp %832 : vector<8x32xf32>
    %cst_205 = arith.constant 1.000000e+00 : f32
    %834 = vector.broadcast %cst_205 : f32 to vector<8x32xf32>
    %835 = arith.addf %834, %833 : vector<8x32xf32>
    %836 = arith.divf %834, %835 : vector<8x32xf32>
    %837 = vector.extract_strided_slice %830 {offsets = [0, 32], sizes = [8, 32], strides = [1, 1]} : vector<8x128xf32> to vector<8x32xf32>
    %838 = arith.negf %837 : vector<8x32xf32>
    %839 = math.exp %838 : vector<8x32xf32>
    %cst_206 = arith.constant 1.000000e+00 : f32
    %840 = vector.broadcast %cst_206 : f32 to vector<8x32xf32>
    %841 = arith.addf %840, %839 : vector<8x32xf32>
    %842 = arith.divf %840, %841 : vector<8x32xf32>
    %843 = vector.extract_strided_slice %830 {offsets = [0, 64], sizes = [8, 32], strides = [1, 1]} : vector<8x128xf32> to vector<8x32xf32>
    %844 = math.tanh %843 : vector<8x32xf32>
    %845 = vector.extract_strided_slice %830 {offsets = [0, 96], sizes = [8, 32], strides = [1, 1]} : vector<8x128xf32> to vector<8x32xf32>
    %846 = arith.negf %845 : vector<8x32xf32>
    %847 = math.exp %846 : vector<8x32xf32>
    %cst_207 = arith.constant 1.000000e+00 : f32
    %848 = vector.broadcast %cst_207 : f32 to vector<8x32xf32>
    %849 = arith.addf %848, %847 : vector<8x32xf32>
    %850 = arith.divf %848, %849 : vector<8x32xf32>
    %851 = arith.mulf %842, %817 : vector<8x32xf32>
    %852 = arith.mulf %836, %844 : vector<8x32xf32>
    %853 = arith.addf %851, %852 : vector<8x32xf32>
    %854 = math.tanh %853 : vector<8x32xf32>
    %855 = arith.mulf %850, %854 : vector<8x32xf32>
    %cst_208 = arith.constant 0.000000e+00 : f32
    %856 = vector.broadcast %cst_208 : f32 to vector<8x1xf32>
    %857 = arith.cmpf ogt, %827, %856 : vector<8x1xf32>
    %858 = vector.shape_cast %857 : vector<8x1xi1> to vector<8x1xi1>
    %859 = vector.broadcast %858 : vector<8x1xi1> to vector<8x32xi1>
    %860 = arith.select %859, %855, %817 : vector<8x32xi1>, vector<8x32xf32>
    %861 = vector.shape_cast %857 : vector<8x1xi1> to vector<8x1xi1>
    %862 = vector.broadcast %861 : vector<8x1xi1> to vector<8x32xi1>
    %863 = arith.select %862, %853, %817 : vector<8x32xi1>, vector<8x32xf32>
    %cst_209 = arith.constant 0.000000e+00 : f32
    %864 = vector.broadcast %cst_209 : f32 to vector<8x32xf32>
    %865 = vector.shape_cast %857 : vector<8x1xi1> to vector<8x1xi1>
    %866 = vector.broadcast %865 : vector<8x1xi1> to vector<8x32xi1>
    %867 = arith.select %866, %855, %864 : vector<8x32xi1>, vector<8x32xf32>
    %868 = arith.index_cast %819 : i32 to index
    %c0_210 = arith.constant 0 : index
    %869 = vector.load %arg15[%868, %c0_210] : memref<64x32xf32, #tpu.memory_space<vmem>>, vector<8x32xf32>
    tpu.vector_store %arg15[%868, %c0_210], %867 {strides = array<i32>} : memref<64x32xf32, #tpu.memory_space<vmem>>, vector<8x32xf32>,
    %870 = arith.index_cast %822 : i32 to index
    %c0_211 = arith.constant 0 : index
    %871 = vector.load %arg17[%870, %c0_211] : memref<64x256xf32, #tpu.memory_space<vmem>>, vector<8x256xf32>
    %872 = vector.extract_strided_slice %871 {offsets = [0, 128], sizes = [8, 128], strides = [1, 1]} : vector<8x256xf32> to vector<8x128xf32>
    %873 = arith.index_cast %822 : i32 to index
    %c0_212 = arith.constant 0 : index
    %874 = vector.load %arg2[%873, %c0_212] : memref<64x1xf32, #tpu.memory_space<vmem>>, vector<8x1xf32>
    %875 = arith.truncf %817 : vector<8x32xf32> to vector<8x32xbf16>
    %cst_213 = arith.constant dense<0.000000e+00> : vector<8x128xf32>
    %876 = tpu.matmul %875, %804, %cst_213 {dimension_numbers = #tpu.dot_dimension_numbers<[1], [0], [0], [1], [0, 0, 1, 1], [], []>} : vector<8x32xbf16>, vector<32x128xbf16>, vector<8x128xf32> -> vector<8x128xf32>
    %877 = arith.addf %872, %876 : vector<8x128xf32>
    %878 = vector.extract_strided_slice %877 {offsets = [0, 0], sizes = [8, 32], strides = [1, 1]} : vector<8x128xf32> to vector<8x32xf32>
    %879 = arith.negf %878 : vector<8x32xf32>
    %880 = math.exp %879 : vector<8x32xf32>
    %cst_214 = arith.constant 1.000000e+00 : f32
    %881 = vector.broadcast %cst_214 : f32 to vector<8x32xf32>
    %882 = arith.addf %881, %880 : vector<8x32xf32>
    %883 = arith.divf %881, %882 : vector<8x32xf32>
    %884 = vector.extract_strided_slice %877 {offsets = [0, 32], sizes = [8, 32], strides = [1, 1]} : vector<8x128xf32> to vector<8x32xf32>
    %885 = arith.negf %884 : vector<8x32xf32>
    %886 = math.exp %885 : vector<8x32xf32>
    %cst_215 = arith.constant 1.000000e+00 : f32
    %887 = vector.broadcast %cst_215 : f32 to vector<8x32xf32>
    %888 = arith.addf %887, %886 : vector<8x32xf32>
    %889 = arith.divf %887, %888 : vector<8x32xf32>
    %890 = vector.extract_strided_slice %877 {offsets = [0, 64], sizes = [8, 32], strides = [1, 1]} : vector<8x128xf32> to vector<8x32xf32>
    %891 = math.tanh %890 : vector<8x32xf32>
    %892 = vector.extract_strided_slice %877 {offsets = [0, 96], sizes = [8, 32], strides = [1, 1]} : vector<8x128xf32> to vector<8x32xf32>
    %893 = arith.negf %892 : vector<8x32xf32>
    %894 = math.exp %893 : vector<8x32xf32>
    %cst_216 = arith.constant 1.000000e+00 : f32
    %895 = vector.broadcast %cst_216 : f32 to vector<8x32xf32>
    %896 = arith.addf %895, %894 : vector<8x32xf32>
    %897 = arith.divf %895, %896 : vector<8x32xf32>
    %898 = arith.mulf %889, %817 : vector<8x32xf32>
    %899 = arith.mulf %883, %891 : vector<8x32xf32>
    %900 = arith.addf %898, %899 : vector<8x32xf32>
    %901 = math.tanh %900 : vector<8x32xf32>
    %902 = arith.mulf %897, %901 : vector<8x32xf32>
    %cst_217 = arith.constant 0.000000e+00 : f32
    %903 = vector.broadcast %cst_217 : f32 to vector<8x1xf32>
    %904 = arith.cmpf ogt, %874, %903 : vector<8x1xf32>
    %905 = vector.shape_cast %904 : vector<8x1xi1> to vector<8x1xi1>
    %906 = vector.broadcast %905 : vector<8x1xi1> to vector<8x32xi1>
    %907 = arith.select %906, %902, %817 : vector<8x32xi1>, vector<8x32xf32>
    %908 = vector.shape_cast %904 : vector<8x1xi1> to vector<8x1xi1>
    %909 = vector.broadcast %908 : vector<8x1xi1> to vector<8x32xi1>
    %910 = arith.select %909, %900, %817 : vector<8x32xi1>, vector<8x32xf32>
    %cst_218 = arith.constant 0.000000e+00 : f32
    %911 = vector.broadcast %cst_218 : f32 to vector<8x32xf32>
    %912 = vector.shape_cast %904 : vector<8x1xi1> to vector<8x1xi1>
    %913 = vector.broadcast %912 : vector<8x1xi1> to vector<8x32xi1>
    %914 = arith.select %913, %902, %911 : vector<8x32xi1>, vector<8x32xf32>
    %915 = arith.index_cast %822 : i32 to index
    %c0_219 = arith.constant 0 : index
    %916 = vector.load %arg16[%915, %c0_219] : memref<64x32xf32, #tpu.memory_space<vmem>>, vector<8x32xf32>
    tpu.vector_store %arg16[%915, %c0_219], %914 {strides = array<i32>} : memref<64x32xf32, #tpu.memory_space<vmem>>, vector<8x32xf32>,
    %c1_i32_220 = arith.constant 1 : i32
    %c8_i32_221 = arith.constant 8 : i32
    %917 = arith.muli %c1_i32_220, %c8_i32_221 : i32
    %918 = tpu.assume_multiple %917, 8 : i32
    %c7_i32_222 = arith.constant 7 : i32
    %919 = arith.subi %c7_i32_222, %c1_i32_220 : i32
    %c8_i32_223 = arith.constant 8 : i32
    %920 = arith.muli %919, %c8_i32_223 : i32
    %921 = tpu.assume_multiple %920, 8 : i32
    %922 = arith.index_cast %918 : i32 to index
    %c0_224 = arith.constant 0 : index
    %923 = vector.load %arg17[%922, %c0_224] : memref<64x256xf32, #tpu.memory_space<vmem>>, vector<8x256xf32>
    %924 = vector.extract_strided_slice %923 {offsets = [0, 0], sizes = [8, 128], strides = [1, 1]} : vector<8x256xf32> to vector<8x128xf32>
    %925 = arith.index_cast %918 : i32 to index
    %c0_225 = arith.constant 0 : index
    %926 = vector.load %arg2[%925, %c0_225] : memref<64x1xf32, #tpu.memory_space<vmem>>, vector<8x1xf32>
    %927 = arith.truncf %860 : vector<8x32xf32> to vector<8x32xbf16>
    %cst_226 = arith.constant dense<0.000000e+00> : vector<8x128xf32>
    %928 = tpu.matmul %927, %803, %cst_226 {dimension_numbers = #tpu.dot_dimension_numbers<[1], [0], [0], [1], [0, 0, 1, 1], [], []>} : vector<8x32xbf16>, vector<32x128xbf16>, vector<8x128xf32> -> vector<8x128xf32>
    %929 = arith.addf %924, %928 : vector<8x128xf32>
    %930 = vector.extract_strided_slice %929 {offsets = [0, 0], sizes = [8, 32], strides = [1, 1]} : vector<8x128xf32> to vector<8x32xf32>
    %931 = arith.negf %930 : vector<8x32xf32>
    %932 = math.exp %931 : vector<8x32xf32>
    %cst_227 = arith.constant 1.000000e+00 : f32
    %933 = vector.broadcast %cst_227 : f32 to vector<8x32xf32>
    %934 = arith.addf %933, %932 : vector<8x32xf32>
    %935 = arith.divf %933, %934 : vector<8x32xf32>
    %936 = vector.extract_strided_slice %929 {offsets = [0, 32], sizes = [8, 32], strides = [1, 1]} : vector<8x128xf32> to vector<8x32xf32>
    %937 = arith.negf %936 : vector<8x32xf32>
    %938 = math.exp %937 : vector<8x32xf32>
    %cst_228 = arith.constant 1.000000e+00 : f32
    %939 = vector.broadcast %cst_228 : f32 to vector<8x32xf32>
    %940 = arith.addf %939, %938 : vector<8x32xf32>
    %941 = arith.divf %939, %940 : vector<8x32xf32>
    %942 = vector.extract_strided_slice %929 {offsets = [0, 64], sizes = [8, 32], strides = [1, 1]} : vector<8x128xf32> to vector<8x32xf32>
    %943 = math.tanh %942 : vector<8x32xf32>
    %944 = vector.extract_strided_slice %929 {offsets = [0, 96], sizes = [8, 32], strides = [1, 1]} : vector<8x128xf32> to vector<8x32xf32>
    %945 = arith.negf %944 : vector<8x32xf32>
    %946 = math.exp %945 : vector<8x32xf32>
    %cst_229 = arith.constant 1.000000e+00 : f32
    %947 = vector.broadcast %cst_229 : f32 to vector<8x32xf32>
    %948 = arith.addf %947, %946 : vector<8x32xf32>
    %949 = arith.divf %947, %948 : vector<8x32xf32>
    %950 = arith.mulf %941, %863 : vector<8x32xf32>
    %951 = arith.mulf %935, %943 : vector<8x32xf32>
    %952 = arith.addf %950, %951 : vector<8x32xf32>
    %953 = math.tanh %952 : vector<8x32xf32>
    %954 = arith.mulf %949, %953 : vector<8x32xf32>
    %cst_230 = arith.constant 0.000000e+00 : f32
    %955 = vector.broadcast %cst_230 : f32 to vector<8x1xf32>
    %956 = arith.cmpf ogt, %926, %955 : vector<8x1xf32>
    %957 = vector.shape_cast %956 : vector<8x1xi1> to vector<8x1xi1>
    %958 = vector.broadcast %957 : vector<8x1xi1> to vector<8x32xi1>
    %959 = arith.select %958, %954, %860 : vector<8x32xi1>, vector<8x32xf32>
    %960 = vector.shape_cast %956 : vector<8x1xi1> to vector<8x1xi1>
    %961 = vector.broadcast %960 : vector<8x1xi1> to vector<8x32xi1>
    %962 = arith.select %961, %952, %863 : vector<8x32xi1>, vector<8x32xf32>
    %cst_231 = arith.constant 0.000000e+00 : f32
    %963 = vector.broadcast %cst_231 : f32 to vector<8x32xf32>
    %964 = vector.shape_cast %956 : vector<8x1xi1> to vector<8x1xi1>
    %965 = vector.broadcast %964 : vector<8x1xi1> to vector<8x32xi1>
    %966 = arith.select %965, %954, %963 : vector<8x32xi1>, vector<8x32xf32>
    %967 = arith.index_cast %918 : i32 to index
    %c0_232 = arith.constant 0 : index
    %968 = vector.load %arg15[%967, %c0_232] : memref<64x32xf32, #tpu.memory_space<vmem>>, vector<8x32xf32>
    tpu.vector_store %arg15[%967, %c0_232], %966 {strides = array<i32>} : memref<64x32xf32, #tpu.memory_space<vmem>>, vector<8x32xf32>,
    %969 = arith.index_cast %921 : i32 to index
    %c0_233 = arith.constant 0 : index
    %970 = vector.load %arg17[%969, %c0_233] : memref<64x256xf32, #tpu.memory_space<vmem>>, vector<8x256xf32>
    %971 = vector.extract_strided_slice %970 {offsets = [0, 128], sizes = [8, 128], strides = [1, 1]} : vector<8x256xf32> to vector<8x128xf32>
    %972 = arith.index_cast %921 : i32 to index
    %c0_234 = arith.constant 0 : index
    %973 = vector.load %arg2[%972, %c0_234] : memref<64x1xf32, #tpu.memory_space<vmem>>, vector<8x1xf32>
    %974 = arith.truncf %907 : vector<8x32xf32> to vector<8x32xbf16>
    %cst_235 = arith.constant dense<0.000000e+00> : vector<8x128xf32>
    %975 = tpu.matmul %974, %804, %cst_235 {dimension_numbers = #tpu.dot_dimension_numbers<[1], [0], [0], [1], [0, 0, 1, 1], [], []>} : vector<8x32xbf16>, vector<32x128xbf16>, vector<8x128xf32> -> vector<8x128xf32>
    %976 = arith.addf %971, %975 : vector<8x128xf32>
    %977 = vector.extract_strided_slice %976 {offsets = [0, 0], sizes = [8, 32], strides = [1, 1]} : vector<8x128xf32> to vector<8x32xf32>
    %978 = arith.negf %977 : vector<8x32xf32>
    %979 = math.exp %978 : vector<8x32xf32>
    %cst_236 = arith.constant 1.000000e+00 : f32
    %980 = vector.broadcast %cst_236 : f32 to vector<8x32xf32>
    %981 = arith.addf %980, %979 : vector<8x32xf32>
    %982 = arith.divf %980, %981 : vector<8x32xf32>
    %983 = vector.extract_strided_slice %976 {offsets = [0, 32], sizes = [8, 32], strides = [1, 1]} : vector<8x128xf32> to vector<8x32xf32>
    %984 = arith.negf %983 : vector<8x32xf32>
    %985 = math.exp %984 : vector<8x32xf32>
    %cst_237 = arith.constant 1.000000e+00 : f32
    %986 = vector.broadcast %cst_237 : f32 to vector<8x32xf32>
    %987 = arith.addf %986, %985 : vector<8x32xf32>
    %988 = arith.divf %986, %987 : vector<8x32xf32>
    %989 = vector.extract_strided_slice %976 {offsets = [0, 64], sizes = [8, 32], strides = [1, 1]} : vector<8x128xf32> to vector<8x32xf32>
    %990 = math.tanh %989 : vector<8x32xf32>
    %991 = vector.extract_strided_slice %976 {offsets = [0, 96], sizes = [8, 32], strides = [1, 1]} : vector<8x128xf32> to vector<8x32xf32>
    %992 = arith.negf %991 : vector<8x32xf32>
    %993 = math.exp %992 : vector<8x32xf32>
    %cst_238 = arith.constant 1.000000e+00 : f32
    %994 = vector.broadcast %cst_238 : f32 to vector<8x32xf32>
    %995 = arith.addf %994, %993 : vector<8x32xf32>
    %996 = arith.divf %994, %995 : vector<8x32xf32>
    %997 = arith.mulf %988, %910 : vector<8x32xf32>
    %998 = arith.mulf %982, %990 : vector<8x32xf32>
    %999 = arith.addf %997, %998 : vector<8x32xf32>
    %1000 = math.tanh %999 : vector<8x32xf32>
    %1001 = arith.mulf %996, %1000 : vector<8x32xf32>
    %cst_239 = arith.constant 0.000000e+00 : f32
    %1002 = vector.broadcast %cst_239 : f32 to vector<8x1xf32>
    %1003 = arith.cmpf ogt, %973, %1002 : vector<8x1xf32>
    %1004 = vector.shape_cast %1003 : vector<8x1xi1> to vector<8x1xi1>
    %1005 = vector.broadcast %1004 : vector<8x1xi1> to vector<8x32xi1>
    %1006 = arith.select %1005, %1001, %907 : vector<8x32xi1>, vector<8x32xf32>
    %1007 = vector.shape_cast %1003 : vector<8x1xi1> to vector<8x1xi1>
    %1008 = vector.broadcast %1007 : vector<8x1xi1> to vector<8x32xi1>
    %1009 = arith.select %1008, %999, %910 : vector<8x32xi1>, vector<8x32xf32>
    %cst_240 = arith.constant 0.000000e+00 : f32
    %1010 = vector.broadcast %cst_240 : f32 to vector<8x32xf32>
    %1011 = vector.shape_cast %1003 : vector<8x1xi1> to vector<8x1xi1>
    %1012 = vector.broadcast %1011 : vector<8x1xi1> to vector<8x32xi1>
    %1013 = arith.select %1012, %1001, %1010 : vector<8x32xi1>, vector<8x32xf32>
    %1014 = arith.index_cast %921 : i32 to index
    %c0_241 = arith.constant 0 : index
    %1015 = vector.load %arg16[%1014, %c0_241] : memref<64x32xf32, #tpu.memory_space<vmem>>, vector<8x32xf32>
    tpu.vector_store %arg16[%1014, %c0_241], %1013 {strides = array<i32>} : memref<64x32xf32, #tpu.memory_space<vmem>>, vector<8x32xf32>,
    %c2_i32_242 = arith.constant 2 : i32
    %c8_i32_243 = arith.constant 8 : i32
    %1016 = arith.muli %c2_i32_242, %c8_i32_243 : i32
    %1017 = tpu.assume_multiple %1016, 8 : i32
    %c7_i32_244 = arith.constant 7 : i32
    %1018 = arith.subi %c7_i32_244, %c2_i32_242 : i32
    %c8_i32_245 = arith.constant 8 : i32
    %1019 = arith.muli %1018, %c8_i32_245 : i32
    %1020 = tpu.assume_multiple %1019, 8 : i32
    %1021 = arith.index_cast %1017 : i32 to index
    %c0_246 = arith.constant 0 : index
    %1022 = vector.load %arg17[%1021, %c0_246] : memref<64x256xf32, #tpu.memory_space<vmem>>, vector<8x256xf32>
    %1023 = vector.extract_strided_slice %1022 {offsets = [0, 0], sizes = [8, 128], strides = [1, 1]} : vector<8x256xf32> to vector<8x128xf32>
    %1024 = arith.index_cast %1017 : i32 to index
    %c0_247 = arith.constant 0 : index
    %1025 = vector.load %arg2[%1024, %c0_247] : memref<64x1xf32, #tpu.memory_space<vmem>>, vector<8x1xf32>
    %1026 = arith.truncf %959 : vector<8x32xf32> to vector<8x32xbf16>
    %cst_248 = arith.constant dense<0.000000e+00> : vector<8x128xf32>
    %1027 = tpu.matmul %1026, %803, %cst_248 {dimension_numbers = #tpu.dot_dimension_numbers<[1], [0], [0], [1], [0, 0, 1, 1], [], []>} : vector<8x32xbf16>, vector<32x128xbf16>, vector<8x128xf32> -> vector<8x128xf32>
    %1028 = arith.addf %1023, %1027 : vector<8x128xf32>
    %1029 = vector.extract_strided_slice %1028 {offsets = [0, 0], sizes = [8, 32], strides = [1, 1]} : vector<8x128xf32> to vector<8x32xf32>
    %1030 = arith.negf %1029 : vector<8x32xf32>
    %1031 = math.exp %1030 : vector<8x32xf32>
    %cst_249 = arith.constant 1.000000e+00 : f32
    %1032 = vector.broadcast %cst_249 : f32 to vector<8x32xf32>
    %1033 = arith.addf %1032, %1031 : vector<8x32xf32>
    %1034 = arith.divf %1032, %1033 : vector<8x32xf32>
    %1035 = vector.extract_strided_slice %1028 {offsets = [0, 32], sizes = [8, 32], strides = [1, 1]} : vector<8x128xf32> to vector<8x32xf32>
    %1036 = arith.negf %1035 : vector<8x32xf32>
    %1037 = math.exp %1036 : vector<8x32xf32>
    %cst_250 = arith.constant 1.000000e+00 : f32
    %1038 = vector.broadcast %cst_250 : f32 to vector<8x32xf32>
    %1039 = arith.addf %1038, %1037 : vector<8x32xf32>
    %1040 = arith.divf %1038, %1039 : vector<8x32xf32>
    %1041 = vector.extract_strided_slice %1028 {offsets = [0, 64], sizes = [8, 32], strides = [1, 1]} : vector<8x128xf32> to vector<8x32xf32>
    %1042 = math.tanh %1041 : vector<8x32xf32>
    %1043 = vector.extract_strided_slice %1028 {offsets = [0, 96], sizes = [8, 32], strides = [1, 1]} : vector<8x128xf32> to vector<8x32xf32>
    %1044 = arith.negf %1043 : vector<8x32xf32>
    %1045 = math.exp %1044 : vector<8x32xf32>
    %cst_251 = arith.constant 1.000000e+00 : f32
    %1046 = vector.broadcast %cst_251 : f32 to vector<8x32xf32>
    %1047 = arith.addf %1046, %1045 : vector<8x32xf32>
    %1048 = arith.divf %1046, %1047 : vector<8x32xf32>
    %1049 = arith.mulf %1040, %962 : vector<8x32xf32>
    %1050 = arith.mulf %1034, %1042 : vector<8x32xf32>
    %1051 = arith.addf %1049, %1050 : vector<8x32xf32>
    %1052 = math.tanh %1051 : vector<8x32xf32>
    %1053 = arith.mulf %1048, %1052 : vector<8x32xf32>
    %cst_252 = arith.constant 0.000000e+00 : f32
    %1054 = vector.broadcast %cst_252 : f32 to vector<8x1xf32>
    %1055 = arith.cmpf ogt, %1025, %1054 : vector<8x1xf32>
    %1056 = vector.shape_cast %1055 : vector<8x1xi1> to vector<8x1xi1>
    %1057 = vector.broadcast %1056 : vector<8x1xi1> to vector<8x32xi1>
    %1058 = arith.select %1057, %1053, %959 : vector<8x32xi1>, vector<8x32xf32>
    %1059 = vector.shape_cast %1055 : vector<8x1xi1> to vector<8x1xi1>
    %1060 = vector.broadcast %1059 : vector<8x1xi1> to vector<8x32xi1>
    %1061 = arith.select %1060, %1051, %962 : vector<8x32xi1>, vector<8x32xf32>
    %cst_253 = arith.constant 0.000000e+00 : f32
    %1062 = vector.broadcast %cst_253 : f32 to vector<8x32xf32>
    %1063 = vector.shape_cast %1055 : vector<8x1xi1> to vector<8x1xi1>
    %1064 = vector.broadcast %1063 : vector<8x1xi1> to vector<8x32xi1>
    %1065 = arith.select %1064, %1053, %1062 : vector<8x32xi1>, vector<8x32xf32>
    %1066 = arith.index_cast %1017 : i32 to index
    %c0_254 = arith.constant 0 : index
    %1067 = vector.load %arg15[%1066, %c0_254] : memref<64x32xf32, #tpu.memory_space<vmem>>, vector<8x32xf32>
    tpu.vector_store %arg15[%1066, %c0_254], %1065 {strides = array<i32>} : memref<64x32xf32, #tpu.memory_space<vmem>>, vector<8x32xf32>,
    %1068 = arith.index_cast %1020 : i32 to index
    %c0_255 = arith.constant 0 : index
    %1069 = vector.load %arg17[%1068, %c0_255] : memref<64x256xf32, #tpu.memory_space<vmem>>, vector<8x256xf32>
    %1070 = vector.extract_strided_slice %1069 {offsets = [0, 128], sizes = [8, 128], strides = [1, 1]} : vector<8x256xf32> to vector<8x128xf32>
    %1071 = arith.index_cast %1020 : i32 to index
    %c0_256 = arith.constant 0 : index
    %1072 = vector.load %arg2[%1071, %c0_256] : memref<64x1xf32, #tpu.memory_space<vmem>>, vector<8x1xf32>
    %1073 = arith.truncf %1006 : vector<8x32xf32> to vector<8x32xbf16>
    %cst_257 = arith.constant dense<0.000000e+00> : vector<8x128xf32>
    %1074 = tpu.matmul %1073, %804, %cst_257 {dimension_numbers = #tpu.dot_dimension_numbers<[1], [0], [0], [1], [0, 0, 1, 1], [], []>} : vector<8x32xbf16>, vector<32x128xbf16>, vector<8x128xf32> -> vector<8x128xf32>
    %1075 = arith.addf %1070, %1074 : vector<8x128xf32>
    %1076 = vector.extract_strided_slice %1075 {offsets = [0, 0], sizes = [8, 32], strides = [1, 1]} : vector<8x128xf32> to vector<8x32xf32>
    %1077 = arith.negf %1076 : vector<8x32xf32>
    %1078 = math.exp %1077 : vector<8x32xf32>
    %cst_258 = arith.constant 1.000000e+00 : f32
    %1079 = vector.broadcast %cst_258 : f32 to vector<8x32xf32>
    %1080 = arith.addf %1079, %1078 : vector<8x32xf32>
    %1081 = arith.divf %1079, %1080 : vector<8x32xf32>
    %1082 = vector.extract_strided_slice %1075 {offsets = [0, 32], sizes = [8, 32], strides = [1, 1]} : vector<8x128xf32> to vector<8x32xf32>
    %1083 = arith.negf %1082 : vector<8x32xf32>
    %1084 = math.exp %1083 : vector<8x32xf32>
    %cst_259 = arith.constant 1.000000e+00 : f32
    %1085 = vector.broadcast %cst_259 : f32 to vector<8x32xf32>
    %1086 = arith.addf %1085, %1084 : vector<8x32xf32>
    %1087 = arith.divf %1085, %1086 : vector<8x32xf32>
    %1088 = vector.extract_strided_slice %1075 {offsets = [0, 64], sizes = [8, 32], strides = [1, 1]} : vector<8x128xf32> to vector<8x32xf32>
    %1089 = math.tanh %1088 : vector<8x32xf32>
    %1090 = vector.extract_strided_slice %1075 {offsets = [0, 96], sizes = [8, 32], strides = [1, 1]} : vector<8x128xf32> to vector<8x32xf32>
    %1091 = arith.negf %1090 : vector<8x32xf32>
    %1092 = math.exp %1091 : vector<8x32xf32>
    %cst_260 = arith.constant 1.000000e+00 : f32
    %1093 = vector.broadcast %cst_260 : f32 to vector<8x32xf32>
    %1094 = arith.addf %1093, %1092 : vector<8x32xf32>
    %1095 = arith.divf %1093, %1094 : vector<8x32xf32>
    %1096 = arith.mulf %1087, %1009 : vector<8x32xf32>
    %1097 = arith.mulf %1081, %1089 : vector<8x32xf32>
    %1098 = arith.addf %1096, %1097 : vector<8x32xf32>
    %1099 = math.tanh %1098 : vector<8x32xf32>
    %1100 = arith.mulf %1095, %1099 : vector<8x32xf32>
    %cst_261 = arith.constant 0.000000e+00 : f32
    %1101 = vector.broadcast %cst_261 : f32 to vector<8x1xf32>
    %1102 = arith.cmpf ogt, %1072, %1101 : vector<8x1xf32>
    %1103 = vector.shape_cast %1102 : vector<8x1xi1> to vector<8x1xi1>
    %1104 = vector.broadcast %1103 : vector<8x1xi1> to vector<8x32xi1>
    %1105 = arith.select %1104, %1100, %1006 : vector<8x32xi1>, vector<8x32xf32>
    %1106 = vector.shape_cast %1102 : vector<8x1xi1> to vector<8x1xi1>
    %1107 = vector.broadcast %1106 : vector<8x1xi1> to vector<8x32xi1>
    %1108 = arith.select %1107, %1098, %1009 : vector<8x32xi1>, vector<8x32xf32>
    %cst_262 = arith.constant 0.000000e+00 : f32
    %1109 = vector.broadcast %cst_262 : f32 to vector<8x32xf32>
    %1110 = vector.shape_cast %1102 : vector<8x1xi1> to vector<8x1xi1>
    %1111 = vector.broadcast %1110 : vector<8x1xi1> to vector<8x32xi1>
    %1112 = arith.select %1111, %1100, %1109 : vector<8x32xi1>, vector<8x32xf32>
    %1113 = arith.index_cast %1020 : i32 to index
    %c0_263 = arith.constant 0 : index
    %1114 = vector.load %arg16[%1113, %c0_263] : memref<64x32xf32, #tpu.memory_space<vmem>>, vector<8x32xf32>
    tpu.vector_store %arg16[%1113, %c0_263], %1112 {strides = array<i32>} : memref<64x32xf32, #tpu.memory_space<vmem>>, vector<8x32xf32>,
    %c3_i32_264 = arith.constant 3 : i32
    %c8_i32_265 = arith.constant 8 : i32
    %1115 = arith.muli %c3_i32_264, %c8_i32_265 : i32
    %1116 = tpu.assume_multiple %1115, 8 : i32
    %c7_i32_266 = arith.constant 7 : i32
    %1117 = arith.subi %c7_i32_266, %c3_i32_264 : i32
    %c8_i32_267 = arith.constant 8 : i32
    %1118 = arith.muli %1117, %c8_i32_267 : i32
    %1119 = tpu.assume_multiple %1118, 8 : i32
    %1120 = arith.index_cast %1116 : i32 to index
    %c0_268 = arith.constant 0 : index
    %1121 = vector.load %arg17[%1120, %c0_268] : memref<64x256xf32, #tpu.memory_space<vmem>>, vector<8x256xf32>
    %1122 = vector.extract_strided_slice %1121 {offsets = [0, 0], sizes = [8, 128], strides = [1, 1]} : vector<8x256xf32> to vector<8x128xf32>
    %1123 = arith.index_cast %1116 : i32 to index
    %c0_269 = arith.constant 0 : index
    %1124 = vector.load %arg2[%1123, %c0_269] : memref<64x1xf32, #tpu.memory_space<vmem>>, vector<8x1xf32>
    %1125 = arith.truncf %1058 : vector<8x32xf32> to vector<8x32xbf16>
    %cst_270 = arith.constant dense<0.000000e+00> : vector<8x128xf32>
    %1126 = tpu.matmul %1125, %803, %cst_270 {dimension_numbers = #tpu.dot_dimension_numbers<[1], [0], [0], [1], [0, 0, 1, 1], [], []>} : vector<8x32xbf16>, vector<32x128xbf16>, vector<8x128xf32> -> vector<8x128xf32>
    %1127 = arith.addf %1122, %1126 : vector<8x128xf32>
    %1128 = vector.extract_strided_slice %1127 {offsets = [0, 0], sizes = [8, 32], strides = [1, 1]} : vector<8x128xf32> to vector<8x32xf32>
    %1129 = arith.negf %1128 : vector<8x32xf32>
    %1130 = math.exp %1129 : vector<8x32xf32>
    %cst_271 = arith.constant 1.000000e+00 : f32
    %1131 = vector.broadcast %cst_271 : f32 to vector<8x32xf32>
    %1132 = arith.addf %1131, %1130 : vector<8x32xf32>
    %1133 = arith.divf %1131, %1132 : vector<8x32xf32>
    %1134 = vector.extract_strided_slice %1127 {offsets = [0, 32], sizes = [8, 32], strides = [1, 1]} : vector<8x128xf32> to vector<8x32xf32>
    %1135 = arith.negf %1134 : vector<8x32xf32>
    %1136 = math.exp %1135 : vector<8x32xf32>
    %cst_272 = arith.constant 1.000000e+00 : f32
    %1137 = vector.broadcast %cst_272 : f32 to vector<8x32xf32>
    %1138 = arith.addf %1137, %1136 : vector<8x32xf32>
    %1139 = arith.divf %1137, %1138 : vector<8x32xf32>
    %1140 = vector.extract_strided_slice %1127 {offsets = [0, 64], sizes = [8, 32], strides = [1, 1]} : vector<8x128xf32> to vector<8x32xf32>
    %1141 = math.tanh %1140 : vector<8x32xf32>
    %1142 = vector.extract_strided_slice %1127 {offsets = [0, 96], sizes = [8, 32], strides = [1, 1]} : vector<8x128xf32> to vector<8x32xf32>
    %1143 = arith.negf %1142 : vector<8x32xf32>
    %1144 = math.exp %1143 : vector<8x32xf32>
    %cst_273 = arith.constant 1.000000e+00 : f32
    %1145 = vector.broadcast %cst_273 : f32 to vector<8x32xf32>
    %1146 = arith.addf %1145, %1144 : vector<8x32xf32>
    %1147 = arith.divf %1145, %1146 : vector<8x32xf32>
    %1148 = arith.mulf %1139, %1061 : vector<8x32xf32>
    %1149 = arith.mulf %1133, %1141 : vector<8x32xf32>
    %1150 = arith.addf %1148, %1149 : vector<8x32xf32>
    %1151 = math.tanh %1150 : vector<8x32xf32>
    %1152 = arith.mulf %1147, %1151 : vector<8x32xf32>
    %cst_274 = arith.constant 0.000000e+00 : f32
    %1153 = vector.broadcast %cst_274 : f32 to vector<8x1xf32>
    %1154 = arith.cmpf ogt, %1124, %1153 : vector<8x1xf32>
    %1155 = vector.shape_cast %1154 : vector<8x1xi1> to vector<8x1xi1>
    %1156 = vector.broadcast %1155 : vector<8x1xi1> to vector<8x32xi1>
    %1157 = arith.select %1156, %1152, %1058 : vector<8x32xi1>, vector<8x32xf32>
    %1158 = vector.shape_cast %1154 : vector<8x1xi1> to vector<8x1xi1>
    %1159 = vector.broadcast %1158 : vector<8x1xi1> to vector<8x32xi1>
    %1160 = arith.select %1159, %1150, %1061 : vector<8x32xi1>, vector<8x32xf32>
    %cst_275 = arith.constant 0.000000e+00 : f32
    %1161 = vector.broadcast %cst_275 : f32 to vector<8x32xf32>
    %1162 = vector.shape_cast %1154 : vector<8x1xi1> to vector<8x1xi1>
    %1163 = vector.broadcast %1162 : vector<8x1xi1> to vector<8x32xi1>
    %1164 = arith.select %1163, %1152, %1161 : vector<8x32xi1>, vector<8x32xf32>
    %1165 = arith.index_cast %1116 : i32 to index
    %c0_276 = arith.constant 0 : index
    %1166 = vector.load %arg15[%1165, %c0_276] : memref<64x32xf32, #tpu.memory_space<vmem>>, vector<8x32xf32>
    tpu.vector_store %arg15[%1165, %c0_276], %1164 {strides = array<i32>} : memref<64x32xf32, #tpu.memory_space<vmem>>, vector<8x32xf32>,
    %1167 = arith.index_cast %1119 : i32 to index
    %c0_277 = arith.constant 0 : index
    %1168 = vector.load %arg17[%1167, %c0_277] : memref<64x256xf32, #tpu.memory_space<vmem>>, vector<8x256xf32>
    %1169 = vector.extract_strided_slice %1168 {offsets = [0, 128], sizes = [8, 128], strides = [1, 1]} : vector<8x256xf32> to vector<8x128xf32>
    %1170 = arith.index_cast %1119 : i32 to index
    %c0_278 = arith.constant 0 : index
    %1171 = vector.load %arg2[%1170, %c0_278] : memref<64x1xf32, #tpu.memory_space<vmem>>, vector<8x1xf32>
    %1172 = arith.truncf %1105 : vector<8x32xf32> to vector<8x32xbf16>
    %cst_279 = arith.constant dense<0.000000e+00> : vector<8x128xf32>
    %1173 = tpu.matmul %1172, %804, %cst_279 {dimension_numbers = #tpu.dot_dimension_numbers<[1], [0], [0], [1], [0, 0, 1, 1], [], []>} : vector<8x32xbf16>, vector<32x128xbf16>, vector<8x128xf32> -> vector<8x128xf32>
    %1174 = arith.addf %1169, %1173 : vector<8x128xf32>
    %1175 = vector.extract_strided_slice %1174 {offsets = [0, 0], sizes = [8, 32], strides = [1, 1]} : vector<8x128xf32> to vector<8x32xf32>
    %1176 = arith.negf %1175 : vector<8x32xf32>
    %1177 = math.exp %1176 : vector<8x32xf32>
    %cst_280 = arith.constant 1.000000e+00 : f32
    %1178 = vector.broadcast %cst_280 : f32 to vector<8x32xf32>
    %1179 = arith.addf %1178, %1177 : vector<8x32xf32>
    %1180 = arith.divf %1178, %1179 : vector<8x32xf32>
    %1181 = vector.extract_strided_slice %1174 {offsets = [0, 32], sizes = [8, 32], strides = [1, 1]} : vector<8x128xf32> to vector<8x32xf32>
    %1182 = arith.negf %1181 : vector<8x32xf32>
    %1183 = math.exp %1182 : vector<8x32xf32>
    %cst_281 = arith.constant 1.000000e+00 : f32
    %1184 = vector.broadcast %cst_281 : f32 to vector<8x32xf32>
    %1185 = arith.addf %1184, %1183 : vector<8x32xf32>
    %1186 = arith.divf %1184, %1185 : vector<8x32xf32>
    %1187 = vector.extract_strided_slice %1174 {offsets = [0, 64], sizes = [8, 32], strides = [1, 1]} : vector<8x128xf32> to vector<8x32xf32>
    %1188 = math.tanh %1187 : vector<8x32xf32>
    %1189 = vector.extract_strided_slice %1174 {offsets = [0, 96], sizes = [8, 32], strides = [1, 1]} : vector<8x128xf32> to vector<8x32xf32>
    %1190 = arith.negf %1189 : vector<8x32xf32>
    %1191 = math.exp %1190 : vector<8x32xf32>
    %cst_282 = arith.constant 1.000000e+00 : f32
    %1192 = vector.broadcast %cst_282 : f32 to vector<8x32xf32>
    %1193 = arith.addf %1192, %1191 : vector<8x32xf32>
    %1194 = arith.divf %1192, %1193 : vector<8x32xf32>
    %1195 = arith.mulf %1186, %1108 : vector<8x32xf32>
    %1196 = arith.mulf %1180, %1188 : vector<8x32xf32>
    %1197 = arith.addf %1195, %1196 : vector<8x32xf32>
    %1198 = math.tanh %1197 : vector<8x32xf32>
    %1199 = arith.mulf %1194, %1198 : vector<8x32xf32>
    %cst_283 = arith.constant 0.000000e+00 : f32
    %1200 = vector.broadcast %cst_283 : f32 to vector<8x1xf32>
    %1201 = arith.cmpf ogt, %1171, %1200 : vector<8x1xf32>
    %1202 = vector.shape_cast %1201 : vector<8x1xi1> to vector<8x1xi1>
    %1203 = vector.broadcast %1202 : vector<8x1xi1> to vector<8x32xi1>
    %1204 = arith.select %1203, %1199, %1105 : vector<8x32xi1>, vector<8x32xf32>
    %1205 = vector.shape_cast %1201 : vector<8x1xi1> to vector<8x1xi1>
    %1206 = vector.broadcast %1205 : vector<8x1xi1> to vector<8x32xi1>
    %1207 = arith.select %1206, %1197, %1108 : vector<8x32xi1>, vector<8x32xf32>
    %cst_284 = arith.constant 0.000000e+00 : f32
    %1208 = vector.broadcast %cst_284 : f32 to vector<8x32xf32>
    %1209 = vector.shape_cast %1201 : vector<8x1xi1> to vector<8x1xi1>
    %1210 = vector.broadcast %1209 : vector<8x1xi1> to vector<8x32xi1>
    %1211 = arith.select %1210, %1199, %1208 : vector<8x32xi1>, vector<8x32xf32>
    %1212 = arith.index_cast %1119 : i32 to index
    %c0_285 = arith.constant 0 : index
    %1213 = vector.load %arg16[%1212, %c0_285] : memref<64x32xf32, #tpu.memory_space<vmem>>, vector<8x32xf32>
    tpu.vector_store %arg16[%1212, %c0_285], %1211 {strides = array<i32>} : memref<64x32xf32, #tpu.memory_space<vmem>>, vector<8x32xf32>,
    %c4_i32_286 = arith.constant 4 : i32
    %c8_i32_287 = arith.constant 8 : i32
    %1214 = arith.muli %c4_i32_286, %c8_i32_287 : i32
    %1215 = tpu.assume_multiple %1214, 8 : i32
    %c7_i32_288 = arith.constant 7 : i32
    %1216 = arith.subi %c7_i32_288, %c4_i32_286 : i32
    %c8_i32_289 = arith.constant 8 : i32
    %1217 = arith.muli %1216, %c8_i32_289 : i32
    %1218 = tpu.assume_multiple %1217, 8 : i32
    %1219 = arith.index_cast %1215 : i32 to index
    %c0_290 = arith.constant 0 : index
    %1220 = vector.load %arg17[%1219, %c0_290] : memref<64x256xf32, #tpu.memory_space<vmem>>, vector<8x256xf32>
    %1221 = vector.extract_strided_slice %1220 {offsets = [0, 0], sizes = [8, 128], strides = [1, 1]} : vector<8x256xf32> to vector<8x128xf32>
    %1222 = arith.index_cast %1215 : i32 to index
    %c0_291 = arith.constant 0 : index
    %1223 = vector.load %arg2[%1222, %c0_291] : memref<64x1xf32, #tpu.memory_space<vmem>>, vector<8x1xf32>
    %1224 = arith.truncf %1157 : vector<8x32xf32> to vector<8x32xbf16>
    %cst_292 = arith.constant dense<0.000000e+00> : vector<8x128xf32>
    %1225 = tpu.matmul %1224, %803, %cst_292 {dimension_numbers = #tpu.dot_dimension_numbers<[1], [0], [0], [1], [0, 0, 1, 1], [], []>} : vector<8x32xbf16>, vector<32x128xbf16>, vector<8x128xf32> -> vector<8x128xf32>
    %1226 = arith.addf %1221, %1225 : vector<8x128xf32>
    %1227 = vector.extract_strided_slice %1226 {offsets = [0, 0], sizes = [8, 32], strides = [1, 1]} : vector<8x128xf32> to vector<8x32xf32>
    %1228 = arith.negf %1227 : vector<8x32xf32>
    %1229 = math.exp %1228 : vector<8x32xf32>
    %cst_293 = arith.constant 1.000000e+00 : f32
    %1230 = vector.broadcast %cst_293 : f32 to vector<8x32xf32>
    %1231 = arith.addf %1230, %1229 : vector<8x32xf32>
    %1232 = arith.divf %1230, %1231 : vector<8x32xf32>
    %1233 = vector.extract_strided_slice %1226 {offsets = [0, 32], sizes = [8, 32], strides = [1, 1]} : vector<8x128xf32> to vector<8x32xf32>
    %1234 = arith.negf %1233 : vector<8x32xf32>
    %1235 = math.exp %1234 : vector<8x32xf32>
    %cst_294 = arith.constant 1.000000e+00 : f32
    %1236 = vector.broadcast %cst_294 : f32 to vector<8x32xf32>
    %1237 = arith.addf %1236, %1235 : vector<8x32xf32>
    %1238 = arith.divf %1236, %1237 : vector<8x32xf32>
    %1239 = vector.extract_strided_slice %1226 {offsets = [0, 64], sizes = [8, 32], strides = [1, 1]} : vector<8x128xf32> to vector<8x32xf32>
    %1240 = math.tanh %1239 : vector<8x32xf32>
    %1241 = vector.extract_strided_slice %1226 {offsets = [0, 96], sizes = [8, 32], strides = [1, 1]} : vector<8x128xf32> to vector<8x32xf32>
    %1242 = arith.negf %1241 : vector<8x32xf32>
    %1243 = math.exp %1242 : vector<8x32xf32>
    %cst_295 = arith.constant 1.000000e+00 : f32
    %1244 = vector.broadcast %cst_295 : f32 to vector<8x32xf32>
    %1245 = arith.addf %1244, %1243 : vector<8x32xf32>
    %1246 = arith.divf %1244, %1245 : vector<8x32xf32>
    %1247 = arith.mulf %1238, %1160 : vector<8x32xf32>
    %1248 = arith.mulf %1232, %1240 : vector<8x32xf32>
    %1249 = arith.addf %1247, %1248 : vector<8x32xf32>
    %1250 = math.tanh %1249 : vector<8x32xf32>
    %1251 = arith.mulf %1246, %1250 : vector<8x32xf32>
    %cst_296 = arith.constant 0.000000e+00 : f32
    %1252 = vector.broadcast %cst_296 : f32 to vector<8x1xf32>
    %1253 = arith.cmpf ogt, %1223, %1252 : vector<8x1xf32>
    %1254 = vector.shape_cast %1253 : vector<8x1xi1> to vector<8x1xi1>
    %1255 = vector.broadcast %1254 : vector<8x1xi1> to vector<8x32xi1>
    %1256 = arith.select %1255, %1251, %1157 : vector<8x32xi1>, vector<8x32xf32>
    %1257 = vector.shape_cast %1253 : vector<8x1xi1> to vector<8x1xi1>
    %1258 = vector.broadcast %1257 : vector<8x1xi1> to vector<8x32xi1>
    %1259 = arith.select %1258, %1249, %1160 : vector<8x32xi1>, vector<8x32xf32>
    %cst_297 = arith.constant 0.000000e+00 : f32
    %1260 = vector.broadcast %cst_297 : f32 to vector<8x32xf32>
    %1261 = vector.shape_cast %1253 : vector<8x1xi1> to vector<8x1xi1>
    %1262 = vector.broadcast %1261 : vector<8x1xi1> to vector<8x32xi1>
    %1263 = arith.select %1262, %1251, %1260 : vector<8x32xi1>, vector<8x32xf32>
    %1264 = arith.index_cast %1215 : i32 to index
    %c0_298 = arith.constant 0 : index
    %1265 = vector.load %arg15[%1264, %c0_298] : memref<64x32xf32, #tpu.memory_space<vmem>>, vector<8x32xf32>
    tpu.vector_store %arg15[%1264, %c0_298], %1263 {strides = array<i32>} : memref<64x32xf32, #tpu.memory_space<vmem>>, vector<8x32xf32>,
    %1266 = arith.index_cast %1218 : i32 to index
    %c0_299 = arith.constant 0 : index
    %1267 = vector.load %arg17[%1266, %c0_299] : memref<64x256xf32, #tpu.memory_space<vmem>>, vector<8x256xf32>
    %1268 = vector.extract_strided_slice %1267 {offsets = [0, 128], sizes = [8, 128], strides = [1, 1]} : vector<8x256xf32> to vector<8x128xf32>
    %1269 = arith.index_cast %1218 : i32 to index
    %c0_300 = arith.constant 0 : index
    %1270 = vector.load %arg2[%1269, %c0_300] : memref<64x1xf32, #tpu.memory_space<vmem>>, vector<8x1xf32>
    %1271 = arith.truncf %1204 : vector<8x32xf32> to vector<8x32xbf16>
    %cst_301 = arith.constant dense<0.000000e+00> : vector<8x128xf32>
    %1272 = tpu.matmul %1271, %804, %cst_301 {dimension_numbers = #tpu.dot_dimension_numbers<[1], [0], [0], [1], [0, 0, 1, 1], [], []>} : vector<8x32xbf16>, vector<32x128xbf16>, vector<8x128xf32> -> vector<8x128xf32>
    %1273 = arith.addf %1268, %1272 : vector<8x128xf32>
    %1274 = vector.extract_strided_slice %1273 {offsets = [0, 0], sizes = [8, 32], strides = [1, 1]} : vector<8x128xf32> to vector<8x32xf32>
    %1275 = arith.negf %1274 : vector<8x32xf32>
    %1276 = math.exp %1275 : vector<8x32xf32>
    %cst_302 = arith.constant 1.000000e+00 : f32
    %1277 = vector.broadcast %cst_302 : f32 to vector<8x32xf32>
    %1278 = arith.addf %1277, %1276 : vector<8x32xf32>
    %1279 = arith.divf %1277, %1278 : vector<8x32xf32>
    %1280 = vector.extract_strided_slice %1273 {offsets = [0, 32], sizes = [8, 32], strides = [1, 1]} : vector<8x128xf32> to vector<8x32xf32>
    %1281 = arith.negf %1280 : vector<8x32xf32>
    %1282 = math.exp %1281 : vector<8x32xf32>
    %cst_303 = arith.constant 1.000000e+00 : f32
    %1283 = vector.broadcast %cst_303 : f32 to vector<8x32xf32>
    %1284 = arith.addf %1283, %1282 : vector<8x32xf32>
    %1285 = arith.divf %1283, %1284 : vector<8x32xf32>
    %1286 = vector.extract_strided_slice %1273 {offsets = [0, 64], sizes = [8, 32], strides = [1, 1]} : vector<8x128xf32> to vector<8x32xf32>
    %1287 = math.tanh %1286 : vector<8x32xf32>
    %1288 = vector.extract_strided_slice %1273 {offsets = [0, 96], sizes = [8, 32], strides = [1, 1]} : vector<8x128xf32> to vector<8x32xf32>
    %1289 = arith.negf %1288 : vector<8x32xf32>
    %1290 = math.exp %1289 : vector<8x32xf32>
    %cst_304 = arith.constant 1.000000e+00 : f32
    %1291 = vector.broadcast %cst_304 : f32 to vector<8x32xf32>
    %1292 = arith.addf %1291, %1290 : vector<8x32xf32>
    %1293 = arith.divf %1291, %1292 : vector<8x32xf32>
    %1294 = arith.mulf %1285, %1207 : vector<8x32xf32>
    %1295 = arith.mulf %1279, %1287 : vector<8x32xf32>
    %1296 = arith.addf %1294, %1295 : vector<8x32xf32>
    %1297 = math.tanh %1296 : vector<8x32xf32>
    %1298 = arith.mulf %1293, %1297 : vector<8x32xf32>
    %cst_305 = arith.constant 0.000000e+00 : f32
    %1299 = vector.broadcast %cst_305 : f32 to vector<8x1xf32>
    %1300 = arith.cmpf ogt, %1270, %1299 : vector<8x1xf32>
    %1301 = vector.shape_cast %1300 : vector<8x1xi1> to vector<8x1xi1>
    %1302 = vector.broadcast %1301 : vector<8x1xi1> to vector<8x32xi1>
    %1303 = arith.select %1302, %1298, %1204 : vector<8x32xi1>, vector<8x32xf32>
    %1304 = vector.shape_cast %1300 : vector<8x1xi1> to vector<8x1xi1>
    %1305 = vector.broadcast %1304 : vector<8x1xi1> to vector<8x32xi1>
    %1306 = arith.select %1305, %1296, %1207 : vector<8x32xi1>, vector<8x32xf32>
    %cst_306 = arith.constant 0.000000e+00 : f32
    %1307 = vector.broadcast %cst_306 : f32 to vector<8x32xf32>
    %1308 = vector.shape_cast %1300 : vector<8x1xi1> to vector<8x1xi1>
    %1309 = vector.broadcast %1308 : vector<8x1xi1> to vector<8x32xi1>
    %1310 = arith.select %1309, %1298, %1307 : vector<8x32xi1>, vector<8x32xf32>
    %1311 = arith.index_cast %1218 : i32 to index
    %c0_307 = arith.constant 0 : index
    %1312 = vector.load %arg16[%1311, %c0_307] : memref<64x32xf32, #tpu.memory_space<vmem>>, vector<8x32xf32>
    tpu.vector_store %arg16[%1311, %c0_307], %1310 {strides = array<i32>} : memref<64x32xf32, #tpu.memory_space<vmem>>, vector<8x32xf32>,
    %c5_i32_308 = arith.constant 5 : i32
    %c8_i32_309 = arith.constant 8 : i32
    %1313 = arith.muli %c5_i32_308, %c8_i32_309 : i32
    %1314 = tpu.assume_multiple %1313, 8 : i32
    %c7_i32_310 = arith.constant 7 : i32
    %1315 = arith.subi %c7_i32_310, %c5_i32_308 : i32
    %c8_i32_311 = arith.constant 8 : i32
    %1316 = arith.muli %1315, %c8_i32_311 : i32
    %1317 = tpu.assume_multiple %1316, 8 : i32
    %1318 = arith.index_cast %1314 : i32 to index
    %c0_312 = arith.constant 0 : index
    %1319 = vector.load %arg17[%1318, %c0_312] : memref<64x256xf32, #tpu.memory_space<vmem>>, vector<8x256xf32>
    %1320 = vector.extract_strided_slice %1319 {offsets = [0, 0], sizes = [8, 128], strides = [1, 1]} : vector<8x256xf32> to vector<8x128xf32>
    %1321 = arith.index_cast %1314 : i32 to index
    %c0_313 = arith.constant 0 : index
    %1322 = vector.load %arg2[%1321, %c0_313] : memref<64x1xf32, #tpu.memory_space<vmem>>, vector<8x1xf32>
    %1323 = arith.truncf %1256 : vector<8x32xf32> to vector<8x32xbf16>
    %cst_314 = arith.constant dense<0.000000e+00> : vector<8x128xf32>
    %1324 = tpu.matmul %1323, %803, %cst_314 {dimension_numbers = #tpu.dot_dimension_numbers<[1], [0], [0], [1], [0, 0, 1, 1], [], []>} : vector<8x32xbf16>, vector<32x128xbf16>, vector<8x128xf32> -> vector<8x128xf32>
    %1325 = arith.addf %1320, %1324 : vector<8x128xf32>
    %1326 = vector.extract_strided_slice %1325 {offsets = [0, 0], sizes = [8, 32], strides = [1, 1]} : vector<8x128xf32> to vector<8x32xf32>
    %1327 = arith.negf %1326 : vector<8x32xf32>
    %1328 = math.exp %1327 : vector<8x32xf32>
    %cst_315 = arith.constant 1.000000e+00 : f32
    %1329 = vector.broadcast %cst_315 : f32 to vector<8x32xf32>
    %1330 = arith.addf %1329, %1328 : vector<8x32xf32>
    %1331 = arith.divf %1329, %1330 : vector<8x32xf32>
    %1332 = vector.extract_strided_slice %1325 {offsets = [0, 32], sizes = [8, 32], strides = [1, 1]} : vector<8x128xf32> to vector<8x32xf32>
    %1333 = arith.negf %1332 : vector<8x32xf32>
    %1334 = math.exp %1333 : vector<8x32xf32>
    %cst_316 = arith.constant 1.000000e+00 : f32
    %1335 = vector.broadcast %cst_316 : f32 to vector<8x32xf32>
    %1336 = arith.addf %1335, %1334 : vector<8x32xf32>
    %1337 = arith.divf %1335, %1336 : vector<8x32xf32>
    %1338 = vector.extract_strided_slice %1325 {offsets = [0, 64], sizes = [8, 32], strides = [1, 1]} : vector<8x128xf32> to vector<8x32xf32>
    %1339 = math.tanh %1338 : vector<8x32xf32>
    %1340 = vector.extract_strided_slice %1325 {offsets = [0, 96], sizes = [8, 32], strides = [1, 1]} : vector<8x128xf32> to vector<8x32xf32>
    %1341 = arith.negf %1340 : vector<8x32xf32>
    %1342 = math.exp %1341 : vector<8x32xf32>
    %cst_317 = arith.constant 1.000000e+00 : f32
    %1343 = vector.broadcast %cst_317 : f32 to vector<8x32xf32>
    %1344 = arith.addf %1343, %1342 : vector<8x32xf32>
    %1345 = arith.divf %1343, %1344 : vector<8x32xf32>
    %1346 = arith.mulf %1337, %1259 : vector<8x32xf32>
    %1347 = arith.mulf %1331, %1339 : vector<8x32xf32>
    %1348 = arith.addf %1346, %1347 : vector<8x32xf32>
    %1349 = math.tanh %1348 : vector<8x32xf32>
    %1350 = arith.mulf %1345, %1349 : vector<8x32xf32>
    %cst_318 = arith.constant 0.000000e+00 : f32
    %1351 = vector.broadcast %cst_318 : f32 to vector<8x1xf32>
    %1352 = arith.cmpf ogt, %1322, %1351 : vector<8x1xf32>
    %1353 = vector.shape_cast %1352 : vector<8x1xi1> to vector<8x1xi1>
    %1354 = vector.broadcast %1353 : vector<8x1xi1> to vector<8x32xi1>
    %1355 = arith.select %1354, %1350, %1256 : vector<8x32xi1>, vector<8x32xf32>
    %1356 = vector.shape_cast %1352 : vector<8x1xi1> to vector<8x1xi1>
    %1357 = vector.broadcast %1356 : vector<8x1xi1> to vector<8x32xi1>
    %1358 = arith.select %1357, %1348, %1259 : vector<8x32xi1>, vector<8x32xf32>
    %cst_319 = arith.constant 0.000000e+00 : f32
    %1359 = vector.broadcast %cst_319 : f32 to vector<8x32xf32>
    %1360 = vector.shape_cast %1352 : vector<8x1xi1> to vector<8x1xi1>
    %1361 = vector.broadcast %1360 : vector<8x1xi1> to vector<8x32xi1>
    %1362 = arith.select %1361, %1350, %1359 : vector<8x32xi1>, vector<8x32xf32>
    %1363 = arith.index_cast %1314 : i32 to index
    %c0_320 = arith.constant 0 : index
    %1364 = vector.load %arg15[%1363, %c0_320] : memref<64x32xf32, #tpu.memory_space<vmem>>, vector<8x32xf32>
    tpu.vector_store %arg15[%1363, %c0_320], %1362 {strides = array<i32>} : memref<64x32xf32, #tpu.memory_space<vmem>>, vector<8x32xf32>,
    %1365 = arith.index_cast %1317 : i32 to index
    %c0_321 = arith.constant 0 : index
    %1366 = vector.load %arg17[%1365, %c0_321] : memref<64x256xf32, #tpu.memory_space<vmem>>, vector<8x256xf32>
    %1367 = vector.extract_strided_slice %1366 {offsets = [0, 128], sizes = [8, 128], strides = [1, 1]} : vector<8x256xf32> to vector<8x128xf32>
    %1368 = arith.index_cast %1317 : i32 to index
    %c0_322 = arith.constant 0 : index
    %1369 = vector.load %arg2[%1368, %c0_322] : memref<64x1xf32, #tpu.memory_space<vmem>>, vector<8x1xf32>
    %1370 = arith.truncf %1303 : vector<8x32xf32> to vector<8x32xbf16>
    %cst_323 = arith.constant dense<0.000000e+00> : vector<8x128xf32>
    %1371 = tpu.matmul %1370, %804, %cst_323 {dimension_numbers = #tpu.dot_dimension_numbers<[1], [0], [0], [1], [0, 0, 1, 1], [], []>} : vector<8x32xbf16>, vector<32x128xbf16>, vector<8x128xf32> -> vector<8x128xf32>
    %1372 = arith.addf %1367, %1371 : vector<8x128xf32>
    %1373 = vector.extract_strided_slice %1372 {offsets = [0, 0], sizes = [8, 32], strides = [1, 1]} : vector<8x128xf32> to vector<8x32xf32>
    %1374 = arith.negf %1373 : vector<8x32xf32>
    %1375 = math.exp %1374 : vector<8x32xf32>
    %cst_324 = arith.constant 1.000000e+00 : f32
    %1376 = vector.broadcast %cst_324 : f32 to vector<8x32xf32>
    %1377 = arith.addf %1376, %1375 : vector<8x32xf32>
    %1378 = arith.divf %1376, %1377 : vector<8x32xf32>
    %1379 = vector.extract_strided_slice %1372 {offsets = [0, 32], sizes = [8, 32], strides = [1, 1]} : vector<8x128xf32> to vector<8x32xf32>
    %1380 = arith.negf %1379 : vector<8x32xf32>
    %1381 = math.exp %1380 : vector<8x32xf32>
    %cst_325 = arith.constant 1.000000e+00 : f32
    %1382 = vector.broadcast %cst_325 : f32 to vector<8x32xf32>
    %1383 = arith.addf %1382, %1381 : vector<8x32xf32>
    %1384 = arith.divf %1382, %1383 : vector<8x32xf32>
    %1385 = vector.extract_strided_slice %1372 {offsets = [0, 64], sizes = [8, 32], strides = [1, 1]} : vector<8x128xf32> to vector<8x32xf32>
    %1386 = math.tanh %1385 : vector<8x32xf32>
    %1387 = vector.extract_strided_slice %1372 {offsets = [0, 96], sizes = [8, 32], strides = [1, 1]} : vector<8x128xf32> to vector<8x32xf32>
    %1388 = arith.negf %1387 : vector<8x32xf32>
    %1389 = math.exp %1388 : vector<8x32xf32>
    %cst_326 = arith.constant 1.000000e+00 : f32
    %1390 = vector.broadcast %cst_326 : f32 to vector<8x32xf32>
    %1391 = arith.addf %1390, %1389 : vector<8x32xf32>
    %1392 = arith.divf %1390, %1391 : vector<8x32xf32>
    %1393 = arith.mulf %1384, %1306 : vector<8x32xf32>
    %1394 = arith.mulf %1378, %1386 : vector<8x32xf32>
    %1395 = arith.addf %1393, %1394 : vector<8x32xf32>
    %1396 = math.tanh %1395 : vector<8x32xf32>
    %1397 = arith.mulf %1392, %1396 : vector<8x32xf32>
    %cst_327 = arith.constant 0.000000e+00 : f32
    %1398 = vector.broadcast %cst_327 : f32 to vector<8x1xf32>
    %1399 = arith.cmpf ogt, %1369, %1398 : vector<8x1xf32>
    %1400 = vector.shape_cast %1399 : vector<8x1xi1> to vector<8x1xi1>
    %1401 = vector.broadcast %1400 : vector<8x1xi1> to vector<8x32xi1>
    %1402 = arith.select %1401, %1397, %1303 : vector<8x32xi1>, vector<8x32xf32>
    %1403 = vector.shape_cast %1399 : vector<8x1xi1> to vector<8x1xi1>
    %1404 = vector.broadcast %1403 : vector<8x1xi1> to vector<8x32xi1>
    %1405 = arith.select %1404, %1395, %1306 : vector<8x32xi1>, vector<8x32xf32>
    %cst_328 = arith.constant 0.000000e+00 : f32
    %1406 = vector.broadcast %cst_328 : f32 to vector<8x32xf32>
    %1407 = vector.shape_cast %1399 : vector<8x1xi1> to vector<8x1xi1>
    %1408 = vector.broadcast %1407 : vector<8x1xi1> to vector<8x32xi1>
    %1409 = arith.select %1408, %1397, %1406 : vector<8x32xi1>, vector<8x32xf32>
    %1410 = arith.index_cast %1317 : i32 to index
    %c0_329 = arith.constant 0 : index
    %1411 = vector.load %arg16[%1410, %c0_329] : memref<64x32xf32, #tpu.memory_space<vmem>>, vector<8x32xf32>
    tpu.vector_store %arg16[%1410, %c0_329], %1409 {strides = array<i32>} : memref<64x32xf32, #tpu.memory_space<vmem>>, vector<8x32xf32>,
    %c6_i32_330 = arith.constant 6 : i32
    %c8_i32_331 = arith.constant 8 : i32
    %1412 = arith.muli %c6_i32_330, %c8_i32_331 : i32
    %1413 = tpu.assume_multiple %1412, 8 : i32
    %c7_i32_332 = arith.constant 7 : i32
    %1414 = arith.subi %c7_i32_332, %c6_i32_330 : i32
    %c8_i32_333 = arith.constant 8 : i32
    %1415 = arith.muli %1414, %c8_i32_333 : i32
    %1416 = tpu.assume_multiple %1415, 8 : i32
    %1417 = arith.index_cast %1413 : i32 to index
    %c0_334 = arith.constant 0 : index
    %1418 = vector.load %arg17[%1417, %c0_334] : memref<64x256xf32, #tpu.memory_space<vmem>>, vector<8x256xf32>
    %1419 = vector.extract_strided_slice %1418 {offsets = [0, 0], sizes = [8, 128], strides = [1, 1]} : vector<8x256xf32> to vector<8x128xf32>
    %1420 = arith.index_cast %1413 : i32 to index
    %c0_335 = arith.constant 0 : index
    %1421 = vector.load %arg2[%1420, %c0_335] : memref<64x1xf32, #tpu.memory_space<vmem>>, vector<8x1xf32>
    %1422 = arith.truncf %1355 : vector<8x32xf32> to vector<8x32xbf16>
    %cst_336 = arith.constant dense<0.000000e+00> : vector<8x128xf32>
    %1423 = tpu.matmul %1422, %803, %cst_336 {dimension_numbers = #tpu.dot_dimension_numbers<[1], [0], [0], [1], [0, 0, 1, 1], [], []>} : vector<8x32xbf16>, vector<32x128xbf16>, vector<8x128xf32> -> vector<8x128xf32>
    %1424 = arith.addf %1419, %1423 : vector<8x128xf32>
    %1425 = vector.extract_strided_slice %1424 {offsets = [0, 0], sizes = [8, 32], strides = [1, 1]} : vector<8x128xf32> to vector<8x32xf32>
    %1426 = arith.negf %1425 : vector<8x32xf32>
    %1427 = math.exp %1426 : vector<8x32xf32>
    %cst_337 = arith.constant 1.000000e+00 : f32
    %1428 = vector.broadcast %cst_337 : f32 to vector<8x32xf32>
    %1429 = arith.addf %1428, %1427 : vector<8x32xf32>
    %1430 = arith.divf %1428, %1429 : vector<8x32xf32>
    %1431 = vector.extract_strided_slice %1424 {offsets = [0, 32], sizes = [8, 32], strides = [1, 1]} : vector<8x128xf32> to vector<8x32xf32>
    %1432 = arith.negf %1431 : vector<8x32xf32>
    %1433 = math.exp %1432 : vector<8x32xf32>
    %cst_338 = arith.constant 1.000000e+00 : f32
    %1434 = vector.broadcast %cst_338 : f32 to vector<8x32xf32>
    %1435 = arith.addf %1434, %1433 : vector<8x32xf32>
    %1436 = arith.divf %1434, %1435 : vector<8x32xf32>
    %1437 = vector.extract_strided_slice %1424 {offsets = [0, 64], sizes = [8, 32], strides = [1, 1]} : vector<8x128xf32> to vector<8x32xf32>
    %1438 = math.tanh %1437 : vector<8x32xf32>
    %1439 = vector.extract_strided_slice %1424 {offsets = [0, 96], sizes = [8, 32], strides = [1, 1]} : vector<8x128xf32> to vector<8x32xf32>
    %1440 = arith.negf %1439 : vector<8x32xf32>
    %1441 = math.exp %1440 : vector<8x32xf32>
    %cst_339 = arith.constant 1.000000e+00 : f32
    %1442 = vector.broadcast %cst_339 : f32 to vector<8x32xf32>
    %1443 = arith.addf %1442, %1441 : vector<8x32xf32>
    %1444 = arith.divf %1442, %1443 : vector<8x32xf32>
    %1445 = arith.mulf %1436, %1358 : vector<8x32xf32>
    %1446 = arith.mulf %1430, %1438 : vector<8x32xf32>
    %1447 = arith.addf %1445, %1446 : vector<8x32xf32>
    %1448 = math.tanh %1447 : vector<8x32xf32>
    %1449 = arith.mulf %1444, %1448 : vector<8x32xf32>
    %cst_340 = arith.constant 0.000000e+00 : f32
    %1450 = vector.broadcast %cst_340 : f32 to vector<8x1xf32>
    %1451 = arith.cmpf ogt, %1421, %1450 : vector<8x1xf32>
    %1452 = vector.shape_cast %1451 : vector<8x1xi1> to vector<8x1xi1>
    %1453 = vector.broadcast %1452 : vector<8x1xi1> to vector<8x32xi1>
    %1454 = arith.select %1453, %1449, %1355 : vector<8x32xi1>, vector<8x32xf32>
    %1455 = vector.shape_cast %1451 : vector<8x1xi1> to vector<8x1xi1>
    %1456 = vector.broadcast %1455 : vector<8x1xi1> to vector<8x32xi1>
    %1457 = arith.select %1456, %1447, %1358 : vector<8x32xi1>, vector<8x32xf32>
    %cst_341 = arith.constant 0.000000e+00 : f32
    %1458 = vector.broadcast %cst_341 : f32 to vector<8x32xf32>
    %1459 = vector.shape_cast %1451 : vector<8x1xi1> to vector<8x1xi1>
    %1460 = vector.broadcast %1459 : vector<8x1xi1> to vector<8x32xi1>
    %1461 = arith.select %1460, %1449, %1458 : vector<8x32xi1>, vector<8x32xf32>
    %1462 = arith.index_cast %1413 : i32 to index
    %c0_342 = arith.constant 0 : index
    %1463 = vector.load %arg15[%1462, %c0_342] : memref<64x32xf32, #tpu.memory_space<vmem>>, vector<8x32xf32>
    tpu.vector_store %arg15[%1462, %c0_342], %1461 {strides = array<i32>} : memref<64x32xf32, #tpu.memory_space<vmem>>, vector<8x32xf32>,
    %1464 = arith.index_cast %1416 : i32 to index
    %c0_343 = arith.constant 0 : index
    %1465 = vector.load %arg17[%1464, %c0_343] : memref<64x256xf32, #tpu.memory_space<vmem>>, vector<8x256xf32>
    %1466 = vector.extract_strided_slice %1465 {offsets = [0, 128], sizes = [8, 128], strides = [1, 1]} : vector<8x256xf32> to vector<8x128xf32>
    %1467 = arith.index_cast %1416 : i32 to index
    %c0_344 = arith.constant 0 : index
    %1468 = vector.load %arg2[%1467, %c0_344] : memref<64x1xf32, #tpu.memory_space<vmem>>, vector<8x1xf32>
    %1469 = arith.truncf %1402 : vector<8x32xf32> to vector<8x32xbf16>
    %cst_345 = arith.constant dense<0.000000e+00> : vector<8x128xf32>
    %1470 = tpu.matmul %1469, %804, %cst_345 {dimension_numbers = #tpu.dot_dimension_numbers<[1], [0], [0], [1], [0, 0, 1, 1], [], []>} : vector<8x32xbf16>, vector<32x128xbf16>, vector<8x128xf32> -> vector<8x128xf32>
    %1471 = arith.addf %1466, %1470 : vector<8x128xf32>
    %1472 = vector.extract_strided_slice %1471 {offsets = [0, 0], sizes = [8, 32], strides = [1, 1]} : vector<8x128xf32> to vector<8x32xf32>
    %1473 = arith.negf %1472 : vector<8x32xf32>
    %1474 = math.exp %1473 : vector<8x32xf32>
    %cst_346 = arith.constant 1.000000e+00 : f32
    %1475 = vector.broadcast %cst_346 : f32 to vector<8x32xf32>
    %1476 = arith.addf %1475, %1474 : vector<8x32xf32>
    %1477 = arith.divf %1475, %1476 : vector<8x32xf32>
    %1478 = vector.extract_strided_slice %1471 {offsets = [0, 32], sizes = [8, 32], strides = [1, 1]} : vector<8x128xf32> to vector<8x32xf32>
    %1479 = arith.negf %1478 : vector<8x32xf32>
    %1480 = math.exp %1479 : vector<8x32xf32>
    %cst_347 = arith.constant 1.000000e+00 : f32
    %1481 = vector.broadcast %cst_347 : f32 to vector<8x32xf32>
    %1482 = arith.addf %1481, %1480 : vector<8x32xf32>
    %1483 = arith.divf %1481, %1482 : vector<8x32xf32>
    %1484 = vector.extract_strided_slice %1471 {offsets = [0, 64], sizes = [8, 32], strides = [1, 1]} : vector<8x128xf32> to vector<8x32xf32>
    %1485 = math.tanh %1484 : vector<8x32xf32>
    %1486 = vector.extract_strided_slice %1471 {offsets = [0, 96], sizes = [8, 32], strides = [1, 1]} : vector<8x128xf32> to vector<8x32xf32>
    %1487 = arith.negf %1486 : vector<8x32xf32>
    %1488 = math.exp %1487 : vector<8x32xf32>
    %cst_348 = arith.constant 1.000000e+00 : f32
    %1489 = vector.broadcast %cst_348 : f32 to vector<8x32xf32>
    %1490 = arith.addf %1489, %1488 : vector<8x32xf32>
    %1491 = arith.divf %1489, %1490 : vector<8x32xf32>
    %1492 = arith.mulf %1483, %1405 : vector<8x32xf32>
    %1493 = arith.mulf %1477, %1485 : vector<8x32xf32>
    %1494 = arith.addf %1492, %1493 : vector<8x32xf32>
    %1495 = math.tanh %1494 : vector<8x32xf32>
    %1496 = arith.mulf %1491, %1495 : vector<8x32xf32>
    %cst_349 = arith.constant 0.000000e+00 : f32
    %1497 = vector.broadcast %cst_349 : f32 to vector<8x1xf32>
    %1498 = arith.cmpf ogt, %1468, %1497 : vector<8x1xf32>
    %1499 = vector.shape_cast %1498 : vector<8x1xi1> to vector<8x1xi1>
    %1500 = vector.broadcast %1499 : vector<8x1xi1> to vector<8x32xi1>
    %1501 = arith.select %1500, %1496, %1402 : vector<8x32xi1>, vector<8x32xf32>
    %1502 = vector.shape_cast %1498 : vector<8x1xi1> to vector<8x1xi1>
    %1503 = vector.broadcast %1502 : vector<8x1xi1> to vector<8x32xi1>
    %1504 = arith.select %1503, %1494, %1405 : vector<8x32xi1>, vector<8x32xf32>
    %cst_350 = arith.constant 0.000000e+00 : f32
    %1505 = vector.broadcast %cst_350 : f32 to vector<8x32xf32>
    %1506 = vector.shape_cast %1498 : vector<8x1xi1> to vector<8x1xi1>
    %1507 = vector.broadcast %1506 : vector<8x1xi1> to vector<8x32xi1>
    %1508 = arith.select %1507, %1496, %1505 : vector<8x32xi1>, vector<8x32xf32>
    %1509 = arith.index_cast %1416 : i32 to index
    %c0_351 = arith.constant 0 : index
    %1510 = vector.load %arg16[%1509, %c0_351] : memref<64x32xf32, #tpu.memory_space<vmem>>, vector<8x32xf32>
    tpu.vector_store %arg16[%1509, %c0_351], %1508 {strides = array<i32>} : memref<64x32xf32, #tpu.memory_space<vmem>>, vector<8x32xf32>,
    %c7_i32_352 = arith.constant 7 : i32
    %c8_i32_353 = arith.constant 8 : i32
    %1511 = arith.muli %c7_i32_352, %c8_i32_353 : i32
    %1512 = tpu.assume_multiple %1511, 8 : i32
    %c7_i32_354 = arith.constant 7 : i32
    %1513 = arith.subi %c7_i32_354, %c7_i32_352 : i32
    %c8_i32_355 = arith.constant 8 : i32
    %1514 = arith.muli %1513, %c8_i32_355 : i32
    %1515 = tpu.assume_multiple %1514, 8 : i32
    %1516 = arith.index_cast %1512 : i32 to index
    %c0_356 = arith.constant 0 : index
    %1517 = vector.load %arg17[%1516, %c0_356] : memref<64x256xf32, #tpu.memory_space<vmem>>, vector<8x256xf32>
    %1518 = vector.extract_strided_slice %1517 {offsets = [0, 0], sizes = [8, 128], strides = [1, 1]} : vector<8x256xf32> to vector<8x128xf32>
    %1519 = arith.index_cast %1512 : i32 to index
    %c0_357 = arith.constant 0 : index
    %1520 = vector.load %arg2[%1519, %c0_357] : memref<64x1xf32, #tpu.memory_space<vmem>>, vector<8x1xf32>
    %1521 = arith.truncf %1454 : vector<8x32xf32> to vector<8x32xbf16>
    %cst_358 = arith.constant dense<0.000000e+00> : vector<8x128xf32>
    %1522 = tpu.matmul %1521, %803, %cst_358 {dimension_numbers = #tpu.dot_dimension_numbers<[1], [0], [0], [1], [0, 0, 1, 1], [], []>} : vector<8x32xbf16>, vector<32x128xbf16>, vector<8x128xf32> -> vector<8x128xf32>
    %1523 = arith.addf %1518, %1522 : vector<8x128xf32>
    %1524 = vector.extract_strided_slice %1523 {offsets = [0, 0], sizes = [8, 32], strides = [1, 1]} : vector<8x128xf32> to vector<8x32xf32>
    %1525 = arith.negf %1524 : vector<8x32xf32>
    %1526 = math.exp %1525 : vector<8x32xf32>
    %cst_359 = arith.constant 1.000000e+00 : f32
    %1527 = vector.broadcast %cst_359 : f32 to vector<8x32xf32>
    %1528 = arith.addf %1527, %1526 : vector<8x32xf32>
    %1529 = arith.divf %1527, %1528 : vector<8x32xf32>
    %1530 = vector.extract_strided_slice %1523 {offsets = [0, 32], sizes = [8, 32], strides = [1, 1]} : vector<8x128xf32> to vector<8x32xf32>
    %1531 = arith.negf %1530 : vector<8x32xf32>
    %1532 = math.exp %1531 : vector<8x32xf32>
    %cst_360 = arith.constant 1.000000e+00 : f32
    %1533 = vector.broadcast %cst_360 : f32 to vector<8x32xf32>
    %1534 = arith.addf %1533, %1532 : vector<8x32xf32>
    %1535 = arith.divf %1533, %1534 : vector<8x32xf32>
    %1536 = vector.extract_strided_slice %1523 {offsets = [0, 64], sizes = [8, 32], strides = [1, 1]} : vector<8x128xf32> to vector<8x32xf32>
    %1537 = math.tanh %1536 : vector<8x32xf32>
    %1538 = vector.extract_strided_slice %1523 {offsets = [0, 96], sizes = [8, 32], strides = [1, 1]} : vector<8x128xf32> to vector<8x32xf32>
    %1539 = arith.negf %1538 : vector<8x32xf32>
    %1540 = math.exp %1539 : vector<8x32xf32>
    %cst_361 = arith.constant 1.000000e+00 : f32
    %1541 = vector.broadcast %cst_361 : f32 to vector<8x32xf32>
    %1542 = arith.addf %1541, %1540 : vector<8x32xf32>
    %1543 = arith.divf %1541, %1542 : vector<8x32xf32>
    %1544 = arith.mulf %1535, %1457 : vector<8x32xf32>
    %1545 = arith.mulf %1529, %1537 : vector<8x32xf32>
    %1546 = arith.addf %1544, %1545 : vector<8x32xf32>
    %1547 = math.tanh %1546 : vector<8x32xf32>
    %1548 = arith.mulf %1543, %1547 : vector<8x32xf32>
    %cst_362 = arith.constant 0.000000e+00 : f32
    %1549 = vector.broadcast %cst_362 : f32 to vector<8x1xf32>
    %1550 = arith.cmpf ogt, %1520, %1549 : vector<8x1xf32>
    %1551 = vector.shape_cast %1550 : vector<8x1xi1> to vector<8x1xi1>
    %1552 = vector.broadcast %1551 : vector<8x1xi1> to vector<8x32xi1>
    %1553 = arith.select %1552, %1548, %1454 : vector<8x32xi1>, vector<8x32xf32>
    %1554 = vector.shape_cast %1550 : vector<8x1xi1> to vector<8x1xi1>
    %1555 = vector.broadcast %1554 : vector<8x1xi1> to vector<8x32xi1>
    %1556 = arith.select %1555, %1546, %1457 : vector<8x32xi1>, vector<8x32xf32>
    %cst_363 = arith.constant 0.000000e+00 : f32
    %1557 = vector.broadcast %cst_363 : f32 to vector<8x32xf32>
    %1558 = vector.shape_cast %1550 : vector<8x1xi1> to vector<8x1xi1>
    %1559 = vector.broadcast %1558 : vector<8x1xi1> to vector<8x32xi1>
    %1560 = arith.select %1559, %1548, %1557 : vector<8x32xi1>, vector<8x32xf32>
    %1561 = arith.index_cast %1512 : i32 to index
    %c0_364 = arith.constant 0 : index
    %1562 = vector.load %arg15[%1561, %c0_364] : memref<64x32xf32, #tpu.memory_space<vmem>>, vector<8x32xf32>
    tpu.vector_store %arg15[%1561, %c0_364], %1560 {strides = array<i32>} : memref<64x32xf32, #tpu.memory_space<vmem>>, vector<8x32xf32>,
    %1563 = arith.index_cast %1515 : i32 to index
    %c0_365 = arith.constant 0 : index
    %1564 = vector.load %arg17[%1563, %c0_365] : memref<64x256xf32, #tpu.memory_space<vmem>>, vector<8x256xf32>
    %1565 = vector.extract_strided_slice %1564 {offsets = [0, 128], sizes = [8, 128], strides = [1, 1]} : vector<8x256xf32> to vector<8x128xf32>
    %1566 = arith.index_cast %1515 : i32 to index
    %c0_366 = arith.constant 0 : index
    %1567 = vector.load %arg2[%1566, %c0_366] : memref<64x1xf32, #tpu.memory_space<vmem>>, vector<8x1xf32>
    %1568 = arith.truncf %1501 : vector<8x32xf32> to vector<8x32xbf16>
    %cst_367 = arith.constant dense<0.000000e+00> : vector<8x128xf32>
    %1569 = tpu.matmul %1568, %804, %cst_367 {dimension_numbers = #tpu.dot_dimension_numbers<[1], [0], [0], [1], [0, 0, 1, 1], [], []>} : vector<8x32xbf16>, vector<32x128xbf16>, vector<8x128xf32> -> vector<8x128xf32>
    %1570 = arith.addf %1565, %1569 : vector<8x128xf32>
    %1571 = vector.extract_strided_slice %1570 {offsets = [0, 0], sizes = [8, 32], strides = [1, 1]} : vector<8x128xf32> to vector<8x32xf32>
    %1572 = arith.negf %1571 : vector<8x32xf32>
    %1573 = math.exp %1572 : vector<8x32xf32>
    %cst_368 = arith.constant 1.000000e+00 : f32
    %1574 = vector.broadcast %cst_368 : f32 to vector<8x32xf32>
    %1575 = arith.addf %1574, %1573 : vector<8x32xf32>
    %1576 = arith.divf %1574, %1575 : vector<8x32xf32>
    %1577 = vector.extract_strided_slice %1570 {offsets = [0, 32], sizes = [8, 32], strides = [1, 1]} : vector<8x128xf32> to vector<8x32xf32>
    %1578 = arith.negf %1577 : vector<8x32xf32>
    %1579 = math.exp %1578 : vector<8x32xf32>
    %cst_369 = arith.constant 1.000000e+00 : f32
    %1580 = vector.broadcast %cst_369 : f32 to vector<8x32xf32>
    %1581 = arith.addf %1580, %1579 : vector<8x32xf32>
    %1582 = arith.divf %1580, %1581 : vector<8x32xf32>
    %1583 = vector.extract_strided_slice %1570 {offsets = [0, 64], sizes = [8, 32], strides = [1, 1]} : vector<8x128xf32> to vector<8x32xf32>
    %1584 = math.tanh %1583 : vector<8x32xf32>
    %1585 = vector.extract_strided_slice %1570 {offsets = [0, 96], sizes = [8, 32], strides = [1, 1]} : vector<8x128xf32> to vector<8x32xf32>
    %1586 = arith.negf %1585 : vector<8x32xf32>
    %1587 = math.exp %1586 : vector<8x32xf32>
    %cst_370 = arith.constant 1.000000e+00 : f32
    %1588 = vector.broadcast %cst_370 : f32 to vector<8x32xf32>
    %1589 = arith.addf %1588, %1587 : vector<8x32xf32>
    %1590 = arith.divf %1588, %1589 : vector<8x32xf32>
    %1591 = arith.mulf %1582, %1504 : vector<8x32xf32>
    %1592 = arith.mulf %1576, %1584 : vector<8x32xf32>
    %1593 = arith.addf %1591, %1592 : vector<8x32xf32>
    %1594 = math.tanh %1593 : vector<8x32xf32>
    %1595 = arith.mulf %1590, %1594 : vector<8x32xf32>
    %cst_371 = arith.constant 0.000000e+00 : f32
    %1596 = vector.broadcast %cst_371 : f32 to vector<8x1xf32>
    %1597 = arith.cmpf ogt, %1567, %1596 : vector<8x1xf32>
    %1598 = vector.shape_cast %1597 : vector<8x1xi1> to vector<8x1xi1>
    %1599 = vector.broadcast %1598 : vector<8x1xi1> to vector<8x32xi1>
    %1600 = arith.select %1599, %1595, %1501 : vector<8x32xi1>, vector<8x32xf32>
    %1601 = vector.shape_cast %1597 : vector<8x1xi1> to vector<8x1xi1>
    %1602 = vector.broadcast %1601 : vector<8x1xi1> to vector<8x32xi1>
    %1603 = arith.select %1602, %1593, %1504 : vector<8x32xi1>, vector<8x32xf32>
    %cst_372 = arith.constant 0.000000e+00 : f32
    %1604 = vector.broadcast %cst_372 : f32 to vector<8x32xf32>
    %1605 = vector.shape_cast %1597 : vector<8x1xi1> to vector<8x1xi1>
    %1606 = vector.broadcast %1605 : vector<8x1xi1> to vector<8x32xi1>
    %1607 = arith.select %1606, %1595, %1604 : vector<8x32xi1>, vector<8x32xf32>
    %1608 = arith.index_cast %1515 : i32 to index
    %c0_373 = arith.constant 0 : index
    %1609 = vector.load %arg16[%1608, %c0_373] : memref<64x32xf32, #tpu.memory_space<vmem>>, vector<8x32xf32>
    tpu.vector_store %arg16[%1608, %c0_373], %1607 {strides = array<i32>} : memref<64x32xf32, #tpu.memory_space<vmem>>, vector<8x32xf32>,
    %c8_i32_374 = arith.constant 8 : i32
    %c0_375 = arith.constant 0 : index
    %c0_376 = arith.constant 0 : index
    %1610 = vector.load %arg12[%c0_375, %c0_376] : memref<1x256xf32, #tpu.memory_space<vmem>>, vector<1x256xf32>
    %c0_377 = arith.constant 0 : index
    %c0_378 = arith.constant 0 : index
    %1611 = vector.load %arg13[%c0_377, %c0_378] : memref<32x128xbf16, #tpu.memory_space<vmem>>, vector<32x128xbf16>
    %c0_379 = arith.constant 0 : index
    %c0_380 = arith.constant 0 : index
    %1612 = vector.load %arg14[%c0_379, %c0_380] : memref<32x128xbf16, #tpu.memory_space<vmem>>, vector<32x128xbf16>
    %c0_381 = arith.constant 0 : index
    %c0_382 = arith.constant 0 : index
    %1613 = vector.load %arg15[%c0_381, %c0_382] : memref<64x32xf32, #tpu.memory_space<vmem>>, vector<64x32xf32>
    %1614 = arith.truncf %1613 : vector<64x32xf32> to vector<64x32xbf16>
    %c0_383 = arith.constant 0 : index
    %c0_384 = arith.constant 0 : index
    %1615 = vector.load %arg16[%c0_383, %c0_384] : memref<64x32xf32, #tpu.memory_space<vmem>>, vector<64x32xf32>
    %1616 = arith.truncf %1615 : vector<64x32xf32> to vector<64x32xbf16>
    %c0_385 = arith.constant 0 : index
    %c0_386 = arith.constant 0 : index
    %1617 = vector.load %arg11[%c0_385, %c0_386] : memref<64x256xbf16, #tpu.memory_space<vmem>>, vector<32x256xbf16>
    %cst_387 = arith.constant dense<0.000000e+00> : vector<64x256xf32>
    %1618 = tpu.matmul %1614, %1617, %cst_387 {dimension_numbers = #tpu.dot_dimension_numbers<[1], [0], [0], [1], [0, 0, 1, 1], [], []>} : vector<64x32xbf16>, vector<32x256xbf16>, vector<64x256xf32> -> vector<64x256xf32>
    %c32_388 = arith.constant 32 : index
    %c0_389 = arith.constant 0 : index
    %1619 = vector.load %arg11[%c32_388, %c0_389] : memref<64x256xbf16, #tpu.memory_space<vmem>>, vector<32x256xbf16>
    %cst_390 = arith.constant dense<0.000000e+00> : vector<64x256xf32>
    %1620 = tpu.matmul %1616, %1619, %cst_390 {dimension_numbers = #tpu.dot_dimension_numbers<[1], [0], [0], [1], [0, 0, 1, 1], [], []>} : vector<64x32xbf16>, vector<32x256xbf16>, vector<64x256xf32> -> vector<64x256xf32>
    %1621 = arith.addf %1618, %1620 : vector<64x256xf32>
    %1622 = vector.broadcast %1610 : vector<1x256xf32> to vector<64x256xf32>
    %1623 = arith.addf %1621, %1622 : vector<64x256xf32>
    %c0_391 = arith.constant 0 : index
    %c0_392 = arith.constant 0 : index
    %1624 = vector.load %arg17[%c0_391, %c0_392] : memref<64x256xf32, #tpu.memory_space<vmem>>, vector<64x256xf32>
    tpu.vector_store %arg17[%c0_391, %c0_392], %1623 {strides = array<i32>} : memref<64x256xf32, #tpu.memory_space<vmem>>, vector<64x256xf32>,
    %cst_393 = arith.constant 0.000000e+00 : f32
    %1625 = vector.broadcast %cst_393 : f32 to vector<8x32xf32>
    %c0_i32_394 = arith.constant 0 : i32
    %c8_i32_395 = arith.constant 8 : i32
    %1626 = arith.muli %c0_i32_394, %c8_i32_395 : i32
    %1627 = tpu.assume_multiple %1626, 8 : i32
    %c7_i32_396 = arith.constant 7 : i32
    %1628 = arith.subi %c7_i32_396, %c0_i32_394 : i32
    %c8_i32_397 = arith.constant 8 : i32
    %1629 = arith.muli %1628, %c8_i32_397 : i32
    %1630 = tpu.assume_multiple %1629, 8 : i32
    %1631 = arith.index_cast %1627 : i32 to index
    %c0_398 = arith.constant 0 : index
    %1632 = vector.load %arg17[%1631, %c0_398] : memref<64x256xf32, #tpu.memory_space<vmem>>, vector<8x256xf32>
    %1633 = vector.extract_strided_slice %1632 {offsets = [0, 0], sizes = [8, 128], strides = [1, 1]} : vector<8x256xf32> to vector<8x128xf32>
    %1634 = arith.index_cast %1627 : i32 to index
    %c0_399 = arith.constant 0 : index
    %1635 = vector.load %arg2[%1634, %c0_399] : memref<64x1xf32, #tpu.memory_space<vmem>>, vector<8x1xf32>
    %1636 = arith.truncf %1625 : vector<8x32xf32> to vector<8x32xbf16>
    %cst_400 = arith.constant dense<0.000000e+00> : vector<8x128xf32>
    %1637 = tpu.matmul %1636, %1611, %cst_400 {dimension_numbers = #tpu.dot_dimension_numbers<[1], [0], [0], [1], [0, 0, 1, 1], [], []>} : vector<8x32xbf16>, vector<32x128xbf16>, vector<8x128xf32> -> vector<8x128xf32>
    %1638 = arith.addf %1633, %1637 : vector<8x128xf32>
    %1639 = vector.extract_strided_slice %1638 {offsets = [0, 0], sizes = [8, 32], strides = [1, 1]} : vector<8x128xf32> to vector<8x32xf32>
    %1640 = arith.negf %1639 : vector<8x32xf32>
    %1641 = math.exp %1640 : vector<8x32xf32>
    %cst_401 = arith.constant 1.000000e+00 : f32
    %1642 = vector.broadcast %cst_401 : f32 to vector<8x32xf32>
    %1643 = arith.addf %1642, %1641 : vector<8x32xf32>
    %1644 = arith.divf %1642, %1643 : vector<8x32xf32>
    %1645 = vector.extract_strided_slice %1638 {offsets = [0, 32], sizes = [8, 32], strides = [1, 1]} : vector<8x128xf32> to vector<8x32xf32>
    %1646 = arith.negf %1645 : vector<8x32xf32>
    %1647 = math.exp %1646 : vector<8x32xf32>
    %cst_402 = arith.constant 1.000000e+00 : f32
    %1648 = vector.broadcast %cst_402 : f32 to vector<8x32xf32>
    %1649 = arith.addf %1648, %1647 : vector<8x32xf32>
    %1650 = arith.divf %1648, %1649 : vector<8x32xf32>
    %1651 = vector.extract_strided_slice %1638 {offsets = [0, 64], sizes = [8, 32], strides = [1, 1]} : vector<8x128xf32> to vector<8x32xf32>
    %1652 = math.tanh %1651 : vector<8x32xf32>
    %1653 = vector.extract_strided_slice %1638 {offsets = [0, 96], sizes = [8, 32], strides = [1, 1]} : vector<8x128xf32> to vector<8x32xf32>
    %1654 = arith.negf %1653 : vector<8x32xf32>
    %1655 = math.exp %1654 : vector<8x32xf32>
    %cst_403 = arith.constant 1.000000e+00 : f32
    %1656 = vector.broadcast %cst_403 : f32 to vector<8x32xf32>
    %1657 = arith.addf %1656, %1655 : vector<8x32xf32>
    %1658 = arith.divf %1656, %1657 : vector<8x32xf32>
    %1659 = arith.mulf %1650, %1625 : vector<8x32xf32>
    %1660 = arith.mulf %1644, %1652 : vector<8x32xf32>
    %1661 = arith.addf %1659, %1660 : vector<8x32xf32>
    %1662 = math.tanh %1661 : vector<8x32xf32>
    %1663 = arith.mulf %1658, %1662 : vector<8x32xf32>
    %cst_404 = arith.constant 0.000000e+00 : f32
    %1664 = vector.broadcast %cst_404 : f32 to vector<8x1xf32>
    %1665 = arith.cmpf ogt, %1635, %1664 : vector<8x1xf32>
    %1666 = vector.shape_cast %1665 : vector<8x1xi1> to vector<8x1xi1>
    %1667 = vector.broadcast %1666 : vector<8x1xi1> to vector<8x32xi1>
    %1668 = arith.select %1667, %1663, %1625 : vector<8x32xi1>, vector<8x32xf32>
    %1669 = vector.shape_cast %1665 : vector<8x1xi1> to vector<8x1xi1>
    %1670 = vector.broadcast %1669 : vector<8x1xi1> to vector<8x32xi1>
    %1671 = arith.select %1670, %1661, %1625 : vector<8x32xi1>, vector<8x32xf32>
    %cst_405 = arith.constant 0.000000e+00 : f32
    %1672 = vector.broadcast %cst_405 : f32 to vector<8x32xf32>
    %1673 = vector.shape_cast %1665 : vector<8x1xi1> to vector<8x1xi1>
    %1674 = vector.broadcast %1673 : vector<8x1xi1> to vector<8x32xi1>
    %1675 = arith.select %1674, %1663, %1672 : vector<8x32xi1>, vector<8x32xf32>
    %1676 = arith.index_cast %1627 : i32 to index
    %c0_406 = arith.constant 0 : index
    %1677 = vector.load %arg15[%1676, %c0_406] : memref<64x32xf32, #tpu.memory_space<vmem>>, vector<8x32xf32>
    tpu.vector_store %arg15[%1676, %c0_406], %1675 {strides = array<i32>} : memref<64x32xf32, #tpu.memory_space<vmem>>, vector<8x32xf32>,
    %1678 = arith.index_cast %1630 : i32 to index
    %c0_407 = arith.constant 0 : index
    %1679 = vector.load %arg17[%1678, %c0_407] : memref<64x256xf32, #tpu.memory_space<vmem>>, vector<8x256xf32>
    %1680 = vector.extract_strided_slice %1679 {offsets = [0, 128], sizes = [8, 128], strides = [1, 1]} : vector<8x256xf32> to vector<8x128xf32>
    %1681 = arith.index_cast %1630 : i32 to index
    %c0_408 = arith.constant 0 : index
    %1682 = vector.load %arg2[%1681, %c0_408] : memref<64x1xf32, #tpu.memory_space<vmem>>, vector<8x1xf32>
    %1683 = arith.truncf %1625 : vector<8x32xf32> to vector<8x32xbf16>
    %cst_409 = arith.constant dense<0.000000e+00> : vector<8x128xf32>
    %1684 = tpu.matmul %1683, %1612, %cst_409 {dimension_numbers = #tpu.dot_dimension_numbers<[1], [0], [0], [1], [0, 0, 1, 1], [], []>} : vector<8x32xbf16>, vector<32x128xbf16>, vector<8x128xf32> -> vector<8x128xf32>
    %1685 = arith.addf %1680, %1684 : vector<8x128xf32>
    %1686 = vector.extract_strided_slice %1685 {offsets = [0, 0], sizes = [8, 32], strides = [1, 1]} : vector<8x128xf32> to vector<8x32xf32>
    %1687 = arith.negf %1686 : vector<8x32xf32>
    %1688 = math.exp %1687 : vector<8x32xf32>
    %cst_410 = arith.constant 1.000000e+00 : f32
    %1689 = vector.broadcast %cst_410 : f32 to vector<8x32xf32>
    %1690 = arith.addf %1689, %1688 : vector<8x32xf32>
    %1691 = arith.divf %1689, %1690 : vector<8x32xf32>
    %1692 = vector.extract_strided_slice %1685 {offsets = [0, 32], sizes = [8, 32], strides = [1, 1]} : vector<8x128xf32> to vector<8x32xf32>
    %1693 = arith.negf %1692 : vector<8x32xf32>
    %1694 = math.exp %1693 : vector<8x32xf32>
    %cst_411 = arith.constant 1.000000e+00 : f32
    %1695 = vector.broadcast %cst_411 : f32 to vector<8x32xf32>
    %1696 = arith.addf %1695, %1694 : vector<8x32xf32>
    %1697 = arith.divf %1695, %1696 : vector<8x32xf32>
    %1698 = vector.extract_strided_slice %1685 {offsets = [0, 64], sizes = [8, 32], strides = [1, 1]} : vector<8x128xf32> to vector<8x32xf32>
    %1699 = math.tanh %1698 : vector<8x32xf32>
    %1700 = vector.extract_strided_slice %1685 {offsets = [0, 96], sizes = [8, 32], strides = [1, 1]} : vector<8x128xf32> to vector<8x32xf32>
    %1701 = arith.negf %1700 : vector<8x32xf32>
    %1702 = math.exp %1701 : vector<8x32xf32>
    %cst_412 = arith.constant 1.000000e+00 : f32
    %1703 = vector.broadcast %cst_412 : f32 to vector<8x32xf32>
    %1704 = arith.addf %1703, %1702 : vector<8x32xf32>
    %1705 = arith.divf %1703, %1704 : vector<8x32xf32>
    %1706 = arith.mulf %1697, %1625 : vector<8x32xf32>
    %1707 = arith.mulf %1691, %1699 : vector<8x32xf32>
    %1708 = arith.addf %1706, %1707 : vector<8x32xf32>
    %1709 = math.tanh %1708 : vector<8x32xf32>
    %1710 = arith.mulf %1705, %1709 : vector<8x32xf32>
    %cst_413 = arith.constant 0.000000e+00 : f32
    %1711 = vector.broadcast %cst_413 : f32 to vector<8x1xf32>
    %1712 = arith.cmpf ogt, %1682, %1711 : vector<8x1xf32>
    %1713 = vector.shape_cast %1712 : vector<8x1xi1> to vector<8x1xi1>
    %1714 = vector.broadcast %1713 : vector<8x1xi1> to vector<8x32xi1>
    %1715 = arith.select %1714, %1710, %1625 : vector<8x32xi1>, vector<8x32xf32>
    %1716 = vector.shape_cast %1712 : vector<8x1xi1> to vector<8x1xi1>
    %1717 = vector.broadcast %1716 : vector<8x1xi1> to vector<8x32xi1>
    %1718 = arith.select %1717, %1708, %1625 : vector<8x32xi1>, vector<8x32xf32>
    %cst_414 = arith.constant 0.000000e+00 : f32
    %1719 = vector.broadcast %cst_414 : f32 to vector<8x32xf32>
    %1720 = vector.shape_cast %1712 : vector<8x1xi1> to vector<8x1xi1>
    %1721 = vector.broadcast %1720 : vector<8x1xi1> to vector<8x32xi1>
    %1722 = arith.select %1721, %1710, %1719 : vector<8x32xi1>, vector<8x32xf32>
    %1723 = arith.index_cast %1630 : i32 to index
    %c0_415 = arith.constant 0 : index
    %1724 = vector.load %arg16[%1723, %c0_415] : memref<64x32xf32, #tpu.memory_space<vmem>>, vector<8x32xf32>
    tpu.vector_store %arg16[%1723, %c0_415], %1722 {strides = array<i32>} : memref<64x32xf32, #tpu.memory_space<vmem>>, vector<8x32xf32>,
    %c1_i32_416 = arith.constant 1 : i32
    %c8_i32_417 = arith.constant 8 : i32
    %1725 = arith.muli %c1_i32_416, %c8_i32_417 : i32
    %1726 = tpu.assume_multiple %1725, 8 : i32
    %c7_i32_418 = arith.constant 7 : i32
    %1727 = arith.subi %c7_i32_418, %c1_i32_416 : i32
    %c8_i32_419 = arith.constant 8 : i32
    %1728 = arith.muli %1727, %c8_i32_419 : i32
    %1729 = tpu.assume_multiple %1728, 8 : i32
    %1730 = arith.index_cast %1726 : i32 to index
    %c0_420 = arith.constant 0 : index
    %1731 = vector.load %arg17[%1730, %c0_420] : memref<64x256xf32, #tpu.memory_space<vmem>>, vector<8x256xf32>
    %1732 = vector.extract_strided_slice %1731 {offsets = [0, 0], sizes = [8, 128], strides = [1, 1]} : vector<8x256xf32> to vector<8x128xf32>
    %1733 = arith.index_cast %1726 : i32 to index
    %c0_421 = arith.constant 0 : index
    %1734 = vector.load %arg2[%1733, %c0_421] : memref<64x1xf32, #tpu.memory_space<vmem>>, vector<8x1xf32>
    %1735 = arith.truncf %1668 : vector<8x32xf32> to vector<8x32xbf16>
    %cst_422 = arith.constant dense<0.000000e+00> : vector<8x128xf32>
    %1736 = tpu.matmul %1735, %1611, %cst_422 {dimension_numbers = #tpu.dot_dimension_numbers<[1], [0], [0], [1], [0, 0, 1, 1], [], []>} : vector<8x32xbf16>, vector<32x128xbf16>, vector<8x128xf32> -> vector<8x128xf32>
    %1737 = arith.addf %1732, %1736 : vector<8x128xf32>
    %1738 = vector.extract_strided_slice %1737 {offsets = [0, 0], sizes = [8, 32], strides = [1, 1]} : vector<8x128xf32> to vector<8x32xf32>
    %1739 = arith.negf %1738 : vector<8x32xf32>
    %1740 = math.exp %1739 : vector<8x32xf32>
    %cst_423 = arith.constant 1.000000e+00 : f32
    %1741 = vector.broadcast %cst_423 : f32 to vector<8x32xf32>
    %1742 = arith.addf %1741, %1740 : vector<8x32xf32>
    %1743 = arith.divf %1741, %1742 : vector<8x32xf32>
    %1744 = vector.extract_strided_slice %1737 {offsets = [0, 32], sizes = [8, 32], strides = [1, 1]} : vector<8x128xf32> to vector<8x32xf32>
    %1745 = arith.negf %1744 : vector<8x32xf32>
    %1746 = math.exp %1745 : vector<8x32xf32>
    %cst_424 = arith.constant 1.000000e+00 : f32
    %1747 = vector.broadcast %cst_424 : f32 to vector<8x32xf32>
    %1748 = arith.addf %1747, %1746 : vector<8x32xf32>
    %1749 = arith.divf %1747, %1748 : vector<8x32xf32>
    %1750 = vector.extract_strided_slice %1737 {offsets = [0, 64], sizes = [8, 32], strides = [1, 1]} : vector<8x128xf32> to vector<8x32xf32>
    %1751 = math.tanh %1750 : vector<8x32xf32>
    %1752 = vector.extract_strided_slice %1737 {offsets = [0, 96], sizes = [8, 32], strides = [1, 1]} : vector<8x128xf32> to vector<8x32xf32>
    %1753 = arith.negf %1752 : vector<8x32xf32>
    %1754 = math.exp %1753 : vector<8x32xf32>
    %cst_425 = arith.constant 1.000000e+00 : f32
    %1755 = vector.broadcast %cst_425 : f32 to vector<8x32xf32>
    %1756 = arith.addf %1755, %1754 : vector<8x32xf32>
    %1757 = arith.divf %1755, %1756 : vector<8x32xf32>
    %1758 = arith.mulf %1749, %1671 : vector<8x32xf32>
    %1759 = arith.mulf %1743, %1751 : vector<8x32xf32>
    %1760 = arith.addf %1758, %1759 : vector<8x32xf32>
    %1761 = math.tanh %1760 : vector<8x32xf32>
    %1762 = arith.mulf %1757, %1761 : vector<8x32xf32>
    %cst_426 = arith.constant 0.000000e+00 : f32
    %1763 = vector.broadcast %cst_426 : f32 to vector<8x1xf32>
    %1764 = arith.cmpf ogt, %1734, %1763 : vector<8x1xf32>
    %1765 = vector.shape_cast %1764 : vector<8x1xi1> to vector<8x1xi1>
    %1766 = vector.broadcast %1765 : vector<8x1xi1> to vector<8x32xi1>
    %1767 = arith.select %1766, %1762, %1668 : vector<8x32xi1>, vector<8x32xf32>
    %1768 = vector.shape_cast %1764 : vector<8x1xi1> to vector<8x1xi1>
    %1769 = vector.broadcast %1768 : vector<8x1xi1> to vector<8x32xi1>
    %1770 = arith.select %1769, %1760, %1671 : vector<8x32xi1>, vector<8x32xf32>
    %cst_427 = arith.constant 0.000000e+00 : f32
    %1771 = vector.broadcast %cst_427 : f32 to vector<8x32xf32>
    %1772 = vector.shape_cast %1764 : vector<8x1xi1> to vector<8x1xi1>
    %1773 = vector.broadcast %1772 : vector<8x1xi1> to vector<8x32xi1>
    %1774 = arith.select %1773, %1762, %1771 : vector<8x32xi1>, vector<8x32xf32>
    %1775 = arith.index_cast %1726 : i32 to index
    %c0_428 = arith.constant 0 : index
    %1776 = vector.load %arg15[%1775, %c0_428] : memref<64x32xf32, #tpu.memory_space<vmem>>, vector<8x32xf32>
    tpu.vector_store %arg15[%1775, %c0_428], %1774 {strides = array<i32>} : memref<64x32xf32, #tpu.memory_space<vmem>>, vector<8x32xf32>,
    %1777 = arith.index_cast %1729 : i32 to index
    %c0_429 = arith.constant 0 : index
    %1778 = vector.load %arg17[%1777, %c0_429] : memref<64x256xf32, #tpu.memory_space<vmem>>, vector<8x256xf32>
    %1779 = vector.extract_strided_slice %1778 {offsets = [0, 128], sizes = [8, 128], strides = [1, 1]} : vector<8x256xf32> to vector<8x128xf32>
    %1780 = arith.index_cast %1729 : i32 to index
    %c0_430 = arith.constant 0 : index
    %1781 = vector.load %arg2[%1780, %c0_430] : memref<64x1xf32, #tpu.memory_space<vmem>>, vector<8x1xf32>
    %1782 = arith.truncf %1715 : vector<8x32xf32> to vector<8x32xbf16>
    %cst_431 = arith.constant dense<0.000000e+00> : vector<8x128xf32>
    %1783 = tpu.matmul %1782, %1612, %cst_431 {dimension_numbers = #tpu.dot_dimension_numbers<[1], [0], [0], [1], [0, 0, 1, 1], [], []>} : vector<8x32xbf16>, vector<32x128xbf16>, vector<8x128xf32> -> vector<8x128xf32>
    %1784 = arith.addf %1779, %1783 : vector<8x128xf32>
    %1785 = vector.extract_strided_slice %1784 {offsets = [0, 0], sizes = [8, 32], strides = [1, 1]} : vector<8x128xf32> to vector<8x32xf32>
    %1786 = arith.negf %1785 : vector<8x32xf32>
    %1787 = math.exp %1786 : vector<8x32xf32>
    %cst_432 = arith.constant 1.000000e+00 : f32
    %1788 = vector.broadcast %cst_432 : f32 to vector<8x32xf32>
    %1789 = arith.addf %1788, %1787 : vector<8x32xf32>
    %1790 = arith.divf %1788, %1789 : vector<8x32xf32>
    %1791 = vector.extract_strided_slice %1784 {offsets = [0, 32], sizes = [8, 32], strides = [1, 1]} : vector<8x128xf32> to vector<8x32xf32>
    %1792 = arith.negf %1791 : vector<8x32xf32>
    %1793 = math.exp %1792 : vector<8x32xf32>
    %cst_433 = arith.constant 1.000000e+00 : f32
    %1794 = vector.broadcast %cst_433 : f32 to vector<8x32xf32>
    %1795 = arith.addf %1794, %1793 : vector<8x32xf32>
    %1796 = arith.divf %1794, %1795 : vector<8x32xf32>
    %1797 = vector.extract_strided_slice %1784 {offsets = [0, 64], sizes = [8, 32], strides = [1, 1]} : vector<8x128xf32> to vector<8x32xf32>
    %1798 = math.tanh %1797 : vector<8x32xf32>
    %1799 = vector.extract_strided_slice %1784 {offsets = [0, 96], sizes = [8, 32], strides = [1, 1]} : vector<8x128xf32> to vector<8x32xf32>
    %1800 = arith.negf %1799 : vector<8x32xf32>
    %1801 = math.exp %1800 : vector<8x32xf32>
    %cst_434 = arith.constant 1.000000e+00 : f32
    %1802 = vector.broadcast %cst_434 : f32 to vector<8x32xf32>
    %1803 = arith.addf %1802, %1801 : vector<8x32xf32>
    %1804 = arith.divf %1802, %1803 : vector<8x32xf32>
    %1805 = arith.mulf %1796, %1718 : vector<8x32xf32>
    %1806 = arith.mulf %1790, %1798 : vector<8x32xf32>
    %1807 = arith.addf %1805, %1806 : vector<8x32xf32>
    %1808 = math.tanh %1807 : vector<8x32xf32>
    %1809 = arith.mulf %1804, %1808 : vector<8x32xf32>
    %cst_435 = arith.constant 0.000000e+00 : f32
    %1810 = vector.broadcast %cst_435 : f32 to vector<8x1xf32>
    %1811 = arith.cmpf ogt, %1781, %1810 : vector<8x1xf32>
    %1812 = vector.shape_cast %1811 : vector<8x1xi1> to vector<8x1xi1>
    %1813 = vector.broadcast %1812 : vector<8x1xi1> to vector<8x32xi1>
    %1814 = arith.select %1813, %1809, %1715 : vector<8x32xi1>, vector<8x32xf32>
    %1815 = vector.shape_cast %1811 : vector<8x1xi1> to vector<8x1xi1>
    %1816 = vector.broadcast %1815 : vector<8x1xi1> to vector<8x32xi1>
    %1817 = arith.select %1816, %1807, %1718 : vector<8x32xi1>, vector<8x32xf32>
    %cst_436 = arith.constant 0.000000e+00 : f32
    %1818 = vector.broadcast %cst_436 : f32 to vector<8x32xf32>
    %1819 = vector.shape_cast %1811 : vector<8x1xi1> to vector<8x1xi1>
    %1820 = vector.broadcast %1819 : vector<8x1xi1> to vector<8x32xi1>
    %1821 = arith.select %1820, %1809, %1818 : vector<8x32xi1>, vector<8x32xf32>
    %1822 = arith.index_cast %1729 : i32 to index
    %c0_437 = arith.constant 0 : index
    %1823 = vector.load %arg16[%1822, %c0_437] : memref<64x32xf32, #tpu.memory_space<vmem>>, vector<8x32xf32>
    tpu.vector_store %arg16[%1822, %c0_437], %1821 {strides = array<i32>} : memref<64x32xf32, #tpu.memory_space<vmem>>, vector<8x32xf32>,
    %c2_i32_438 = arith.constant 2 : i32
    %c8_i32_439 = arith.constant 8 : i32
    %1824 = arith.muli %c2_i32_438, %c8_i32_439 : i32
    %1825 = tpu.assume_multiple %1824, 8 : i32
    %c7_i32_440 = arith.constant 7 : i32
    %1826 = arith.subi %c7_i32_440, %c2_i32_438 : i32
    %c8_i32_441 = arith.constant 8 : i32
    %1827 = arith.muli %1826, %c8_i32_441 : i32
    %1828 = tpu.assume_multiple %1827, 8 : i32
    %1829 = arith.index_cast %1825 : i32 to index
    %c0_442 = arith.constant 0 : index
    %1830 = vector.load %arg17[%1829, %c0_442] : memref<64x256xf32, #tpu.memory_space<vmem>>, vector<8x256xf32>
    %1831 = vector.extract_strided_slice %1830 {offsets = [0, 0], sizes = [8, 128], strides = [1, 1]} : vector<8x256xf32> to vector<8x128xf32>
    %1832 = arith.index_cast %1825 : i32 to index
    %c0_443 = arith.constant 0 : index
    %1833 = vector.load %arg2[%1832, %c0_443] : memref<64x1xf32, #tpu.memory_space<vmem>>, vector<8x1xf32>
    %1834 = arith.truncf %1767 : vector<8x32xf32> to vector<8x32xbf16>
    %cst_444 = arith.constant dense<0.000000e+00> : vector<8x128xf32>
    %1835 = tpu.matmul %1834, %1611, %cst_444 {dimension_numbers = #tpu.dot_dimension_numbers<[1], [0], [0], [1], [0, 0, 1, 1], [], []>} : vector<8x32xbf16>, vector<32x128xbf16>, vector<8x128xf32> -> vector<8x128xf32>
    %1836 = arith.addf %1831, %1835 : vector<8x128xf32>
    %1837 = vector.extract_strided_slice %1836 {offsets = [0, 0], sizes = [8, 32], strides = [1, 1]} : vector<8x128xf32> to vector<8x32xf32>
    %1838 = arith.negf %1837 : vector<8x32xf32>
    %1839 = math.exp %1838 : vector<8x32xf32>
    %cst_445 = arith.constant 1.000000e+00 : f32
    %1840 = vector.broadcast %cst_445 : f32 to vector<8x32xf32>
    %1841 = arith.addf %1840, %1839 : vector<8x32xf32>
    %1842 = arith.divf %1840, %1841 : vector<8x32xf32>
    %1843 = vector.extract_strided_slice %1836 {offsets = [0, 32], sizes = [8, 32], strides = [1, 1]} : vector<8x128xf32> to vector<8x32xf32>
    %1844 = arith.negf %1843 : vector<8x32xf32>
    %1845 = math.exp %1844 : vector<8x32xf32>
    %cst_446 = arith.constant 1.000000e+00 : f32
    %1846 = vector.broadcast %cst_446 : f32 to vector<8x32xf32>
    %1847 = arith.addf %1846, %1845 : vector<8x32xf32>
    %1848 = arith.divf %1846, %1847 : vector<8x32xf32>
    %1849 = vector.extract_strided_slice %1836 {offsets = [0, 64], sizes = [8, 32], strides = [1, 1]} : vector<8x128xf32> to vector<8x32xf32>
    %1850 = math.tanh %1849 : vector<8x32xf32>
    %1851 = vector.extract_strided_slice %1836 {offsets = [0, 96], sizes = [8, 32], strides = [1, 1]} : vector<8x128xf32> to vector<8x32xf32>
    %1852 = arith.negf %1851 : vector<8x32xf32>
    %1853 = math.exp %1852 : vector<8x32xf32>
    %cst_447 = arith.constant 1.000000e+00 : f32
    %1854 = vector.broadcast %cst_447 : f32 to vector<8x32xf32>
    %1855 = arith.addf %1854, %1853 : vector<8x32xf32>
    %1856 = arith.divf %1854, %1855 : vector<8x32xf32>
    %1857 = arith.mulf %1848, %1770 : vector<8x32xf32>
    %1858 = arith.mulf %1842, %1850 : vector<8x32xf32>
    %1859 = arith.addf %1857, %1858 : vector<8x32xf32>
    %1860 = math.tanh %1859 : vector<8x32xf32>
    %1861 = arith.mulf %1856, %1860 : vector<8x32xf32>
    %cst_448 = arith.constant 0.000000e+00 : f32
    %1862 = vector.broadcast %cst_448 : f32 to vector<8x1xf32>
    %1863 = arith.cmpf ogt, %1833, %1862 : vector<8x1xf32>
    %1864 = vector.shape_cast %1863 : vector<8x1xi1> to vector<8x1xi1>
    %1865 = vector.broadcast %1864 : vector<8x1xi1> to vector<8x32xi1>
    %1866 = arith.select %1865, %1861, %1767 : vector<8x32xi1>, vector<8x32xf32>
    %1867 = vector.shape_cast %1863 : vector<8x1xi1> to vector<8x1xi1>
    %1868 = vector.broadcast %1867 : vector<8x1xi1> to vector<8x32xi1>
    %1869 = arith.select %1868, %1859, %1770 : vector<8x32xi1>, vector<8x32xf32>
    %cst_449 = arith.constant 0.000000e+00 : f32
    %1870 = vector.broadcast %cst_449 : f32 to vector<8x32xf32>
    %1871 = vector.shape_cast %1863 : vector<8x1xi1> to vector<8x1xi1>
    %1872 = vector.broadcast %1871 : vector<8x1xi1> to vector<8x32xi1>
    %1873 = arith.select %1872, %1861, %1870 : vector<8x32xi1>, vector<8x32xf32>
    %1874 = arith.index_cast %1825 : i32 to index
    %c0_450 = arith.constant 0 : index
    %1875 = vector.load %arg15[%1874, %c0_450] : memref<64x32xf32, #tpu.memory_space<vmem>>, vector<8x32xf32>
    tpu.vector_store %arg15[%1874, %c0_450], %1873 {strides = array<i32>} : memref<64x32xf32, #tpu.memory_space<vmem>>, vector<8x32xf32>,
    %1876 = arith.index_cast %1828 : i32 to index
    %c0_451 = arith.constant 0 : index
    %1877 = vector.load %arg17[%1876, %c0_451] : memref<64x256xf32, #tpu.memory_space<vmem>>, vector<8x256xf32>
    %1878 = vector.extract_strided_slice %1877 {offsets = [0, 128], sizes = [8, 128], strides = [1, 1]} : vector<8x256xf32> to vector<8x128xf32>
    %1879 = arith.index_cast %1828 : i32 to index
    %c0_452 = arith.constant 0 : index
    %1880 = vector.load %arg2[%1879, %c0_452] : memref<64x1xf32, #tpu.memory_space<vmem>>, vector<8x1xf32>
    %1881 = arith.truncf %1814 : vector<8x32xf32> to vector<8x32xbf16>
    %cst_453 = arith.constant dense<0.000000e+00> : vector<8x128xf32>
    %1882 = tpu.matmul %1881, %1612, %cst_453 {dimension_numbers = #tpu.dot_dimension_numbers<[1], [0], [0], [1], [0, 0, 1, 1], [], []>} : vector<8x32xbf16>, vector<32x128xbf16>, vector<8x128xf32> -> vector<8x128xf32>
    %1883 = arith.addf %1878, %1882 : vector<8x128xf32>
    %1884 = vector.extract_strided_slice %1883 {offsets = [0, 0], sizes = [8, 32], strides = [1, 1]} : vector<8x128xf32> to vector<8x32xf32>
    %1885 = arith.negf %1884 : vector<8x32xf32>
    %1886 = math.exp %1885 : vector<8x32xf32>
    %cst_454 = arith.constant 1.000000e+00 : f32
    %1887 = vector.broadcast %cst_454 : f32 to vector<8x32xf32>
    %1888 = arith.addf %1887, %1886 : vector<8x32xf32>
    %1889 = arith.divf %1887, %1888 : vector<8x32xf32>
    %1890 = vector.extract_strided_slice %1883 {offsets = [0, 32], sizes = [8, 32], strides = [1, 1]} : vector<8x128xf32> to vector<8x32xf32>
    %1891 = arith.negf %1890 : vector<8x32xf32>
    %1892 = math.exp %1891 : vector<8x32xf32>
    %cst_455 = arith.constant 1.000000e+00 : f32
    %1893 = vector.broadcast %cst_455 : f32 to vector<8x32xf32>
    %1894 = arith.addf %1893, %1892 : vector<8x32xf32>
    %1895 = arith.divf %1893, %1894 : vector<8x32xf32>
    %1896 = vector.extract_strided_slice %1883 {offsets = [0, 64], sizes = [8, 32], strides = [1, 1]} : vector<8x128xf32> to vector<8x32xf32>
    %1897 = math.tanh %1896 : vector<8x32xf32>
    %1898 = vector.extract_strided_slice %1883 {offsets = [0, 96], sizes = [8, 32], strides = [1, 1]} : vector<8x128xf32> to vector<8x32xf32>
    %1899 = arith.negf %1898 : vector<8x32xf32>
    %1900 = math.exp %1899 : vector<8x32xf32>
    %cst_456 = arith.constant 1.000000e+00 : f32
    %1901 = vector.broadcast %cst_456 : f32 to vector<8x32xf32>
    %1902 = arith.addf %1901, %1900 : vector<8x32xf32>
    %1903 = arith.divf %1901, %1902 : vector<8x32xf32>
    %1904 = arith.mulf %1895, %1817 : vector<8x32xf32>
    %1905 = arith.mulf %1889, %1897 : vector<8x32xf32>
    %1906 = arith.addf %1904, %1905 : vector<8x32xf32>
    %1907 = math.tanh %1906 : vector<8x32xf32>
    %1908 = arith.mulf %1903, %1907 : vector<8x32xf32>
    %cst_457 = arith.constant 0.000000e+00 : f32
    %1909 = vector.broadcast %cst_457 : f32 to vector<8x1xf32>
    %1910 = arith.cmpf ogt, %1880, %1909 : vector<8x1xf32>
    %1911 = vector.shape_cast %1910 : vector<8x1xi1> to vector<8x1xi1>
    %1912 = vector.broadcast %1911 : vector<8x1xi1> to vector<8x32xi1>
    %1913 = arith.select %1912, %1908, %1814 : vector<8x32xi1>, vector<8x32xf32>
    %1914 = vector.shape_cast %1910 : vector<8x1xi1> to vector<8x1xi1>
    %1915 = vector.broadcast %1914 : vector<8x1xi1> to vector<8x32xi1>
    %1916 = arith.select %1915, %1906, %1817 : vector<8x32xi1>, vector<8x32xf32>
    %cst_458 = arith.constant 0.000000e+00 : f32
    %1917 = vector.broadcast %cst_458 : f32 to vector<8x32xf32>
    %1918 = vector.shape_cast %1910 : vector<8x1xi1> to vector<8x1xi1>
    %1919 = vector.broadcast %1918 : vector<8x1xi1> to vector<8x32xi1>
    %1920 = arith.select %1919, %1908, %1917 : vector<8x32xi1>, vector<8x32xf32>
    %1921 = arith.index_cast %1828 : i32 to index
    %c0_459 = arith.constant 0 : index
    %1922 = vector.load %arg16[%1921, %c0_459] : memref<64x32xf32, #tpu.memory_space<vmem>>, vector<8x32xf32>
    tpu.vector_store %arg16[%1921, %c0_459], %1920 {strides = array<i32>} : memref<64x32xf32, #tpu.memory_space<vmem>>, vector<8x32xf32>,
    %c3_i32_460 = arith.constant 3 : i32
    %c8_i32_461 = arith.constant 8 : i32
    %1923 = arith.muli %c3_i32_460, %c8_i32_461 : i32
    %1924 = tpu.assume_multiple %1923, 8 : i32
    %c7_i32_462 = arith.constant 7 : i32
    %1925 = arith.subi %c7_i32_462, %c3_i32_460 : i32
    %c8_i32_463 = arith.constant 8 : i32
    %1926 = arith.muli %1925, %c8_i32_463 : i32
    %1927 = tpu.assume_multiple %1926, 8 : i32
    %1928 = arith.index_cast %1924 : i32 to index
    %c0_464 = arith.constant 0 : index
    %1929 = vector.load %arg17[%1928, %c0_464] : memref<64x256xf32, #tpu.memory_space<vmem>>, vector<8x256xf32>
    %1930 = vector.extract_strided_slice %1929 {offsets = [0, 0], sizes = [8, 128], strides = [1, 1]} : vector<8x256xf32> to vector<8x128xf32>
    %1931 = arith.index_cast %1924 : i32 to index
    %c0_465 = arith.constant 0 : index
    %1932 = vector.load %arg2[%1931, %c0_465] : memref<64x1xf32, #tpu.memory_space<vmem>>, vector<8x1xf32>
    %1933 = arith.truncf %1866 : vector<8x32xf32> to vector<8x32xbf16>
    %cst_466 = arith.constant dense<0.000000e+00> : vector<8x128xf32>
    %1934 = tpu.matmul %1933, %1611, %cst_466 {dimension_numbers = #tpu.dot_dimension_numbers<[1], [0], [0], [1], [0, 0, 1, 1], [], []>} : vector<8x32xbf16>, vector<32x128xbf16>, vector<8x128xf32> -> vector<8x128xf32>
    %1935 = arith.addf %1930, %1934 : vector<8x128xf32>
    %1936 = vector.extract_strided_slice %1935 {offsets = [0, 0], sizes = [8, 32], strides = [1, 1]} : vector<8x128xf32> to vector<8x32xf32>
    %1937 = arith.negf %1936 : vector<8x32xf32>
    %1938 = math.exp %1937 : vector<8x32xf32>
    %cst_467 = arith.constant 1.000000e+00 : f32
    %1939 = vector.broadcast %cst_467 : f32 to vector<8x32xf32>
    %1940 = arith.addf %1939, %1938 : vector<8x32xf32>
    %1941 = arith.divf %1939, %1940 : vector<8x32xf32>
    %1942 = vector.extract_strided_slice %1935 {offsets = [0, 32], sizes = [8, 32], strides = [1, 1]} : vector<8x128xf32> to vector<8x32xf32>
    %1943 = arith.negf %1942 : vector<8x32xf32>
    %1944 = math.exp %1943 : vector<8x32xf32>
    %cst_468 = arith.constant 1.000000e+00 : f32
    %1945 = vector.broadcast %cst_468 : f32 to vector<8x32xf32>
    %1946 = arith.addf %1945, %1944 : vector<8x32xf32>
    %1947 = arith.divf %1945, %1946 : vector<8x32xf32>
    %1948 = vector.extract_strided_slice %1935 {offsets = [0, 64], sizes = [8, 32], strides = [1, 1]} : vector<8x128xf32> to vector<8x32xf32>
    %1949 = math.tanh %1948 : vector<8x32xf32>
    %1950 = vector.extract_strided_slice %1935 {offsets = [0, 96], sizes = [8, 32], strides = [1, 1]} : vector<8x128xf32> to vector<8x32xf32>
    %1951 = arith.negf %1950 : vector<8x32xf32>
    %1952 = math.exp %1951 : vector<8x32xf32>
    %cst_469 = arith.constant 1.000000e+00 : f32
    %1953 = vector.broadcast %cst_469 : f32 to vector<8x32xf32>
    %1954 = arith.addf %1953, %1952 : vector<8x32xf32>
    %1955 = arith.divf %1953, %1954 : vector<8x32xf32>
    %1956 = arith.mulf %1947, %1869 : vector<8x32xf32>
    %1957 = arith.mulf %1941, %1949 : vector<8x32xf32>
    %1958 = arith.addf %1956, %1957 : vector<8x32xf32>
    %1959 = math.tanh %1958 : vector<8x32xf32>
    %1960 = arith.mulf %1955, %1959 : vector<8x32xf32>
    %cst_470 = arith.constant 0.000000e+00 : f32
    %1961 = vector.broadcast %cst_470 : f32 to vector<8x1xf32>
    %1962 = arith.cmpf ogt, %1932, %1961 : vector<8x1xf32>
    %1963 = vector.shape_cast %1962 : vector<8x1xi1> to vector<8x1xi1>
    %1964 = vector.broadcast %1963 : vector<8x1xi1> to vector<8x32xi1>
    %1965 = arith.select %1964, %1960, %1866 : vector<8x32xi1>, vector<8x32xf32>
    %1966 = vector.shape_cast %1962 : vector<8x1xi1> to vector<8x1xi1>
    %1967 = vector.broadcast %1966 : vector<8x1xi1> to vector<8x32xi1>
    %1968 = arith.select %1967, %1958, %1869 : vector<8x32xi1>, vector<8x32xf32>
    %cst_471 = arith.constant 0.000000e+00 : f32
    %1969 = vector.broadcast %cst_471 : f32 to vector<8x32xf32>
    %1970 = vector.shape_cast %1962 : vector<8x1xi1> to vector<8x1xi1>
    %1971 = vector.broadcast %1970 : vector<8x1xi1> to vector<8x32xi1>
    %1972 = arith.select %1971, %1960, %1969 : vector<8x32xi1>, vector<8x32xf32>
    %1973 = arith.index_cast %1924 : i32 to index
    %c0_472 = arith.constant 0 : index
    %1974 = vector.load %arg15[%1973, %c0_472] : memref<64x32xf32, #tpu.memory_space<vmem>>, vector<8x32xf32>
    tpu.vector_store %arg15[%1973, %c0_472], %1972 {strides = array<i32>} : memref<64x32xf32, #tpu.memory_space<vmem>>, vector<8x32xf32>,
    %1975 = arith.index_cast %1927 : i32 to index
    %c0_473 = arith.constant 0 : index
    %1976 = vector.load %arg17[%1975, %c0_473] : memref<64x256xf32, #tpu.memory_space<vmem>>, vector<8x256xf32>
    %1977 = vector.extract_strided_slice %1976 {offsets = [0, 128], sizes = [8, 128], strides = [1, 1]} : vector<8x256xf32> to vector<8x128xf32>
    %1978 = arith.index_cast %1927 : i32 to index
    %c0_474 = arith.constant 0 : index
    %1979 = vector.load %arg2[%1978, %c0_474] : memref<64x1xf32, #tpu.memory_space<vmem>>, vector<8x1xf32>
    %1980 = arith.truncf %1913 : vector<8x32xf32> to vector<8x32xbf16>
    %cst_475 = arith.constant dense<0.000000e+00> : vector<8x128xf32>
    %1981 = tpu.matmul %1980, %1612, %cst_475 {dimension_numbers = #tpu.dot_dimension_numbers<[1], [0], [0], [1], [0, 0, 1, 1], [], []>} : vector<8x32xbf16>, vector<32x128xbf16>, vector<8x128xf32> -> vector<8x128xf32>
    %1982 = arith.addf %1977, %1981 : vector<8x128xf32>
    %1983 = vector.extract_strided_slice %1982 {offsets = [0, 0], sizes = [8, 32], strides = [1, 1]} : vector<8x128xf32> to vector<8x32xf32>
    %1984 = arith.negf %1983 : vector<8x32xf32>
    %1985 = math.exp %1984 : vector<8x32xf32>
    %cst_476 = arith.constant 1.000000e+00 : f32
    %1986 = vector.broadcast %cst_476 : f32 to vector<8x32xf32>
    %1987 = arith.addf %1986, %1985 : vector<8x32xf32>
    %1988 = arith.divf %1986, %1987 : vector<8x32xf32>
    %1989 = vector.extract_strided_slice %1982 {offsets = [0, 32], sizes = [8, 32], strides = [1, 1]} : vector<8x128xf32> to vector<8x32xf32>
    %1990 = arith.negf %1989 : vector<8x32xf32>
    %1991 = math.exp %1990 : vector<8x32xf32>
    %cst_477 = arith.constant 1.000000e+00 : f32
    %1992 = vector.broadcast %cst_477 : f32 to vector<8x32xf32>
    %1993 = arith.addf %1992, %1991 : vector<8x32xf32>
    %1994 = arith.divf %1992, %1993 : vector<8x32xf32>
    %1995 = vector.extract_strided_slice %1982 {offsets = [0, 64], sizes = [8, 32], strides = [1, 1]} : vector<8x128xf32> to vector<8x32xf32>
    %1996 = math.tanh %1995 : vector<8x32xf32>
    %1997 = vector.extract_strided_slice %1982 {offsets = [0, 96], sizes = [8, 32], strides = [1, 1]} : vector<8x128xf32> to vector<8x32xf32>
    %1998 = arith.negf %1997 : vector<8x32xf32>
    %1999 = math.exp %1998 : vector<8x32xf32>
    %cst_478 = arith.constant 1.000000e+00 : f32
    %2000 = vector.broadcast %cst_478 : f32 to vector<8x32xf32>
    %2001 = arith.addf %2000, %1999 : vector<8x32xf32>
    %2002 = arith.divf %2000, %2001 : vector<8x32xf32>
    %2003 = arith.mulf %1994, %1916 : vector<8x32xf32>
    %2004 = arith.mulf %1988, %1996 : vector<8x32xf32>
    %2005 = arith.addf %2003, %2004 : vector<8x32xf32>
    %2006 = math.tanh %2005 : vector<8x32xf32>
    %2007 = arith.mulf %2002, %2006 : vector<8x32xf32>
    %cst_479 = arith.constant 0.000000e+00 : f32
    %2008 = vector.broadcast %cst_479 : f32 to vector<8x1xf32>
    %2009 = arith.cmpf ogt, %1979, %2008 : vector<8x1xf32>
    %2010 = vector.shape_cast %2009 : vector<8x1xi1> to vector<8x1xi1>
    %2011 = vector.broadcast %2010 : vector<8x1xi1> to vector<8x32xi1>
    %2012 = arith.select %2011, %2007, %1913 : vector<8x32xi1>, vector<8x32xf32>
    %2013 = vector.shape_cast %2009 : vector<8x1xi1> to vector<8x1xi1>
    %2014 = vector.broadcast %2013 : vector<8x1xi1> to vector<8x32xi1>
    %2015 = arith.select %2014, %2005, %1916 : vector<8x32xi1>, vector<8x32xf32>
    %cst_480 = arith.constant 0.000000e+00 : f32
    %2016 = vector.broadcast %cst_480 : f32 to vector<8x32xf32>
    %2017 = vector.shape_cast %2009 : vector<8x1xi1> to vector<8x1xi1>
    %2018 = vector.broadcast %2017 : vector<8x1xi1> to vector<8x32xi1>
    %2019 = arith.select %2018, %2007, %2016 : vector<8x32xi1>, vector<8x32xf32>
    %2020 = arith.index_cast %1927 : i32 to index
    %c0_481 = arith.constant 0 : index
    %2021 = vector.load %arg16[%2020, %c0_481] : memref<64x32xf32, #tpu.memory_space<vmem>>, vector<8x32xf32>
    tpu.vector_store %arg16[%2020, %c0_481], %2019 {strides = array<i32>} : memref<64x32xf32, #tpu.memory_space<vmem>>, vector<8x32xf32>,
    %c4_i32_482 = arith.constant 4 : i32
    %c8_i32_483 = arith.constant 8 : i32
    %2022 = arith.muli %c4_i32_482, %c8_i32_483 : i32
    %2023 = tpu.assume_multiple %2022, 8 : i32
    %c7_i32_484 = arith.constant 7 : i32
    %2024 = arith.subi %c7_i32_484, %c4_i32_482 : i32
    %c8_i32_485 = arith.constant 8 : i32
    %2025 = arith.muli %2024, %c8_i32_485 : i32
    %2026 = tpu.assume_multiple %2025, 8 : i32
    %2027 = arith.index_cast %2023 : i32 to index
    %c0_486 = arith.constant 0 : index
    %2028 = vector.load %arg17[%2027, %c0_486] : memref<64x256xf32, #tpu.memory_space<vmem>>, vector<8x256xf32>
    %2029 = vector.extract_strided_slice %2028 {offsets = [0, 0], sizes = [8, 128], strides = [1, 1]} : vector<8x256xf32> to vector<8x128xf32>
    %2030 = arith.index_cast %2023 : i32 to index
    %c0_487 = arith.constant 0 : index
    %2031 = vector.load %arg2[%2030, %c0_487] : memref<64x1xf32, #tpu.memory_space<vmem>>, vector<8x1xf32>
    %2032 = arith.truncf %1965 : vector<8x32xf32> to vector<8x32xbf16>
    %cst_488 = arith.constant dense<0.000000e+00> : vector<8x128xf32>
    %2033 = tpu.matmul %2032, %1611, %cst_488 {dimension_numbers = #tpu.dot_dimension_numbers<[1], [0], [0], [1], [0, 0, 1, 1], [], []>} : vector<8x32xbf16>, vector<32x128xbf16>, vector<8x128xf32> -> vector<8x128xf32>
    %2034 = arith.addf %2029, %2033 : vector<8x128xf32>
    %2035 = vector.extract_strided_slice %2034 {offsets = [0, 0], sizes = [8, 32], strides = [1, 1]} : vector<8x128xf32> to vector<8x32xf32>
    %2036 = arith.negf %2035 : vector<8x32xf32>
    %2037 = math.exp %2036 : vector<8x32xf32>
    %cst_489 = arith.constant 1.000000e+00 : f32
    %2038 = vector.broadcast %cst_489 : f32 to vector<8x32xf32>
    %2039 = arith.addf %2038, %2037 : vector<8x32xf32>
    %2040 = arith.divf %2038, %2039 : vector<8x32xf32>
    %2041 = vector.extract_strided_slice %2034 {offsets = [0, 32], sizes = [8, 32], strides = [1, 1]} : vector<8x128xf32> to vector<8x32xf32>
    %2042 = arith.negf %2041 : vector<8x32xf32>
    %2043 = math.exp %2042 : vector<8x32xf32>
    %cst_490 = arith.constant 1.000000e+00 : f32
    %2044 = vector.broadcast %cst_490 : f32 to vector<8x32xf32>
    %2045 = arith.addf %2044, %2043 : vector<8x32xf32>
    %2046 = arith.divf %2044, %2045 : vector<8x32xf32>
    %2047 = vector.extract_strided_slice %2034 {offsets = [0, 64], sizes = [8, 32], strides = [1, 1]} : vector<8x128xf32> to vector<8x32xf32>
    %2048 = math.tanh %2047 : vector<8x32xf32>
    %2049 = vector.extract_strided_slice %2034 {offsets = [0, 96], sizes = [8, 32], strides = [1, 1]} : vector<8x128xf32> to vector<8x32xf32>
    %2050 = arith.negf %2049 : vector<8x32xf32>
    %2051 = math.exp %2050 : vector<8x32xf32>
    %cst_491 = arith.constant 1.000000e+00 : f32
    %2052 = vector.broadcast %cst_491 : f32 to vector<8x32xf32>
    %2053 = arith.addf %2052, %2051 : vector<8x32xf32>
    %2054 = arith.divf %2052, %2053 : vector<8x32xf32>
    %2055 = arith.mulf %2046, %1968 : vector<8x32xf32>
    %2056 = arith.mulf %2040, %2048 : vector<8x32xf32>
    %2057 = arith.addf %2055, %2056 : vector<8x32xf32>
    %2058 = math.tanh %2057 : vector<8x32xf32>
    %2059 = arith.mulf %2054, %2058 : vector<8x32xf32>
    %cst_492 = arith.constant 0.000000e+00 : f32
    %2060 = vector.broadcast %cst_492 : f32 to vector<8x1xf32>
    %2061 = arith.cmpf ogt, %2031, %2060 : vector<8x1xf32>
    %2062 = vector.shape_cast %2061 : vector<8x1xi1> to vector<8x1xi1>
    %2063 = vector.broadcast %2062 : vector<8x1xi1> to vector<8x32xi1>
    %2064 = arith.select %2063, %2059, %1965 : vector<8x32xi1>, vector<8x32xf32>
    %2065 = vector.shape_cast %2061 : vector<8x1xi1> to vector<8x1xi1>
    %2066 = vector.broadcast %2065 : vector<8x1xi1> to vector<8x32xi1>
    %2067 = arith.select %2066, %2057, %1968 : vector<8x32xi1>, vector<8x32xf32>
    %cst_493 = arith.constant 0.000000e+00 : f32
    %2068 = vector.broadcast %cst_493 : f32 to vector<8x32xf32>
    %2069 = vector.shape_cast %2061 : vector<8x1xi1> to vector<8x1xi1>
    %2070 = vector.broadcast %2069 : vector<8x1xi1> to vector<8x32xi1>
    %2071 = arith.select %2070, %2059, %2068 : vector<8x32xi1>, vector<8x32xf32>
    %2072 = arith.index_cast %2023 : i32 to index
    %c0_494 = arith.constant 0 : index
    %2073 = vector.load %arg15[%2072, %c0_494] : memref<64x32xf32, #tpu.memory_space<vmem>>, vector<8x32xf32>
    tpu.vector_store %arg15[%2072, %c0_494], %2071 {strides = array<i32>} : memref<64x32xf32, #tpu.memory_space<vmem>>, vector<8x32xf32>,
    %2074 = arith.index_cast %2026 : i32 to index
    %c0_495 = arith.constant 0 : index
    %2075 = vector.load %arg17[%2074, %c0_495] : memref<64x256xf32, #tpu.memory_space<vmem>>, vector<8x256xf32>
    %2076 = vector.extract_strided_slice %2075 {offsets = [0, 128], sizes = [8, 128], strides = [1, 1]} : vector<8x256xf32> to vector<8x128xf32>
    %2077 = arith.index_cast %2026 : i32 to index
    %c0_496 = arith.constant 0 : index
    %2078 = vector.load %arg2[%2077, %c0_496] : memref<64x1xf32, #tpu.memory_space<vmem>>, vector<8x1xf32>
    %2079 = arith.truncf %2012 : vector<8x32xf32> to vector<8x32xbf16>
    %cst_497 = arith.constant dense<0.000000e+00> : vector<8x128xf32>
    %2080 = tpu.matmul %2079, %1612, %cst_497 {dimension_numbers = #tpu.dot_dimension_numbers<[1], [0], [0], [1], [0, 0, 1, 1], [], []>} : vector<8x32xbf16>, vector<32x128xbf16>, vector<8x128xf32> -> vector<8x128xf32>
    %2081 = arith.addf %2076, %2080 : vector<8x128xf32>
    %2082 = vector.extract_strided_slice %2081 {offsets = [0, 0], sizes = [8, 32], strides = [1, 1]} : vector<8x128xf32> to vector<8x32xf32>
    %2083 = arith.negf %2082 : vector<8x32xf32>
    %2084 = math.exp %2083 : vector<8x32xf32>
    %cst_498 = arith.constant 1.000000e+00 : f32
    %2085 = vector.broadcast %cst_498 : f32 to vector<8x32xf32>
    %2086 = arith.addf %2085, %2084 : vector<8x32xf32>
    %2087 = arith.divf %2085, %2086 : vector<8x32xf32>
    %2088 = vector.extract_strided_slice %2081 {offsets = [0, 32], sizes = [8, 32], strides = [1, 1]} : vector<8x128xf32> to vector<8x32xf32>
    %2089 = arith.negf %2088 : vector<8x32xf32>
    %2090 = math.exp %2089 : vector<8x32xf32>
    %cst_499 = arith.constant 1.000000e+00 : f32
    %2091 = vector.broadcast %cst_499 : f32 to vector<8x32xf32>
    %2092 = arith.addf %2091, %2090 : vector<8x32xf32>
    %2093 = arith.divf %2091, %2092 : vector<8x32xf32>
    %2094 = vector.extract_strided_slice %2081 {offsets = [0, 64], sizes = [8, 32], strides = [1, 1]} : vector<8x128xf32> to vector<8x32xf32>
    %2095 = math.tanh %2094 : vector<8x32xf32>
    %2096 = vector.extract_strided_slice %2081 {offsets = [0, 96], sizes = [8, 32], strides = [1, 1]} : vector<8x128xf32> to vector<8x32xf32>
    %2097 = arith.negf %2096 : vector<8x32xf32>
    %2098 = math.exp %2097 : vector<8x32xf32>
    %cst_500 = arith.constant 1.000000e+00 : f32
    %2099 = vector.broadcast %cst_500 : f32 to vector<8x32xf32>
    %2100 = arith.addf %2099, %2098 : vector<8x32xf32>
    %2101 = arith.divf %2099, %2100 : vector<8x32xf32>
    %2102 = arith.mulf %2093, %2015 : vector<8x32xf32>
    %2103 = arith.mulf %2087, %2095 : vector<8x32xf32>
    %2104 = arith.addf %2102, %2103 : vector<8x32xf32>
    %2105 = math.tanh %2104 : vector<8x32xf32>
    %2106 = arith.mulf %2101, %2105 : vector<8x32xf32>
    %cst_501 = arith.constant 0.000000e+00 : f32
    %2107 = vector.broadcast %cst_501 : f32 to vector<8x1xf32>
    %2108 = arith.cmpf ogt, %2078, %2107 : vector<8x1xf32>
    %2109 = vector.shape_cast %2108 : vector<8x1xi1> to vector<8x1xi1>
    %2110 = vector.broadcast %2109 : vector<8x1xi1> to vector<8x32xi1>
    %2111 = arith.select %2110, %2106, %2012 : vector<8x32xi1>, vector<8x32xf32>
    %2112 = vector.shape_cast %2108 : vector<8x1xi1> to vector<8x1xi1>
    %2113 = vector.broadcast %2112 : vector<8x1xi1> to vector<8x32xi1>
    %2114 = arith.select %2113, %2104, %2015 : vector<8x32xi1>, vector<8x32xf32>
    %cst_502 = arith.constant 0.000000e+00 : f32
    %2115 = vector.broadcast %cst_502 : f32 to vector<8x32xf32>
    %2116 = vector.shape_cast %2108 : vector<8x1xi1> to vector<8x1xi1>
    %2117 = vector.broadcast %2116 : vector<8x1xi1> to vector<8x32xi1>
    %2118 = arith.select %2117, %2106, %2115 : vector<8x32xi1>, vector<8x32xf32>
    %2119 = arith.index_cast %2026 : i32 to index
    %c0_503 = arith.constant 0 : index
    %2120 = vector.load %arg16[%2119, %c0_503] : memref<64x32xf32, #tpu.memory_space<vmem>>, vector<8x32xf32>
    tpu.vector_store %arg16[%2119, %c0_503], %2118 {strides = array<i32>} : memref<64x32xf32, #tpu.memory_space<vmem>>, vector<8x32xf32>,
    %c5_i32_504 = arith.constant 5 : i32
    %c8_i32_505 = arith.constant 8 : i32
    %2121 = arith.muli %c5_i32_504, %c8_i32_505 : i32
    %2122 = tpu.assume_multiple %2121, 8 : i32
    %c7_i32_506 = arith.constant 7 : i32
    %2123 = arith.subi %c7_i32_506, %c5_i32_504 : i32
    %c8_i32_507 = arith.constant 8 : i32
    %2124 = arith.muli %2123, %c8_i32_507 : i32
    %2125 = tpu.assume_multiple %2124, 8 : i32
    %2126 = arith.index_cast %2122 : i32 to index
    %c0_508 = arith.constant 0 : index
    %2127 = vector.load %arg17[%2126, %c0_508] : memref<64x256xf32, #tpu.memory_space<vmem>>, vector<8x256xf32>
    %2128 = vector.extract_strided_slice %2127 {offsets = [0, 0], sizes = [8, 128], strides = [1, 1]} : vector<8x256xf32> to vector<8x128xf32>
    %2129 = arith.index_cast %2122 : i32 to index
    %c0_509 = arith.constant 0 : index
    %2130 = vector.load %arg2[%2129, %c0_509] : memref<64x1xf32, #tpu.memory_space<vmem>>, vector<8x1xf32>
    %2131 = arith.truncf %2064 : vector<8x32xf32> to vector<8x32xbf16>
    %cst_510 = arith.constant dense<0.000000e+00> : vector<8x128xf32>
    %2132 = tpu.matmul %2131, %1611, %cst_510 {dimension_numbers = #tpu.dot_dimension_numbers<[1], [0], [0], [1], [0, 0, 1, 1], [], []>} : vector<8x32xbf16>, vector<32x128xbf16>, vector<8x128xf32> -> vector<8x128xf32>
    %2133 = arith.addf %2128, %2132 : vector<8x128xf32>
    %2134 = vector.extract_strided_slice %2133 {offsets = [0, 0], sizes = [8, 32], strides = [1, 1]} : vector<8x128xf32> to vector<8x32xf32>
    %2135 = arith.negf %2134 : vector<8x32xf32>
    %2136 = math.exp %2135 : vector<8x32xf32>
    %cst_511 = arith.constant 1.000000e+00 : f32
    %2137 = vector.broadcast %cst_511 : f32 to vector<8x32xf32>
    %2138 = arith.addf %2137, %2136 : vector<8x32xf32>
    %2139 = arith.divf %2137, %2138 : vector<8x32xf32>
    %2140 = vector.extract_strided_slice %2133 {offsets = [0, 32], sizes = [8, 32], strides = [1, 1]} : vector<8x128xf32> to vector<8x32xf32>
    %2141 = arith.negf %2140 : vector<8x32xf32>
    %2142 = math.exp %2141 : vector<8x32xf32>
    %cst_512 = arith.constant 1.000000e+00 : f32
    %2143 = vector.broadcast %cst_512 : f32 to vector<8x32xf32>
    %2144 = arith.addf %2143, %2142 : vector<8x32xf32>
    %2145 = arith.divf %2143, %2144 : vector<8x32xf32>
    %2146 = vector.extract_strided_slice %2133 {offsets = [0, 64], sizes = [8, 32], strides = [1, 1]} : vector<8x128xf32> to vector<8x32xf32>
    %2147 = math.tanh %2146 : vector<8x32xf32>
    %2148 = vector.extract_strided_slice %2133 {offsets = [0, 96], sizes = [8, 32], strides = [1, 1]} : vector<8x128xf32> to vector<8x32xf32>
    %2149 = arith.negf %2148 : vector<8x32xf32>
    %2150 = math.exp %2149 : vector<8x32xf32>
    %cst_513 = arith.constant 1.000000e+00 : f32
    %2151 = vector.broadcast %cst_513 : f32 to vector<8x32xf32>
    %2152 = arith.addf %2151, %2150 : vector<8x32xf32>
    %2153 = arith.divf %2151, %2152 : vector<8x32xf32>
    %2154 = arith.mulf %2145, %2067 : vector<8x32xf32>
    %2155 = arith.mulf %2139, %2147 : vector<8x32xf32>
    %2156 = arith.addf %2154, %2155 : vector<8x32xf32>
    %2157 = math.tanh %2156 : vector<8x32xf32>
    %2158 = arith.mulf %2153, %2157 : vector<8x32xf32>
    %cst_514 = arith.constant 0.000000e+00 : f32
    %2159 = vector.broadcast %cst_514 : f32 to vector<8x1xf32>
    %2160 = arith.cmpf ogt, %2130, %2159 : vector<8x1xf32>
    %2161 = vector.shape_cast %2160 : vector<8x1xi1> to vector<8x1xi1>
    %2162 = vector.broadcast %2161 : vector<8x1xi1> to vector<8x32xi1>
    %2163 = arith.select %2162, %2158, %2064 : vector<8x32xi1>, vector<8x32xf32>
    %2164 = vector.shape_cast %2160 : vector<8x1xi1> to vector<8x1xi1>
    %2165 = vector.broadcast %2164 : vector<8x1xi1> to vector<8x32xi1>
    %2166 = arith.select %2165, %2156, %2067 : vector<8x32xi1>, vector<8x32xf32>
    %cst_515 = arith.constant 0.000000e+00 : f32
    %2167 = vector.broadcast %cst_515 : f32 to vector<8x32xf32>
    %2168 = vector.shape_cast %2160 : vector<8x1xi1> to vector<8x1xi1>
    %2169 = vector.broadcast %2168 : vector<8x1xi1> to vector<8x32xi1>
    %2170 = arith.select %2169, %2158, %2167 : vector<8x32xi1>, vector<8x32xf32>
    %2171 = arith.index_cast %2122 : i32 to index
    %c0_516 = arith.constant 0 : index
    %2172 = vector.load %arg15[%2171, %c0_516] : memref<64x32xf32, #tpu.memory_space<vmem>>, vector<8x32xf32>
    tpu.vector_store %arg15[%2171, %c0_516], %2170 {strides = array<i32>} : memref<64x32xf32, #tpu.memory_space<vmem>>, vector<8x32xf32>,
    %2173 = arith.index_cast %2125 : i32 to index
    %c0_517 = arith.constant 0 : index
    %2174 = vector.load %arg17[%2173, %c0_517] : memref<64x256xf32, #tpu.memory_space<vmem>>, vector<8x256xf32>
    %2175 = vector.extract_strided_slice %2174 {offsets = [0, 128], sizes = [8, 128], strides = [1, 1]} : vector<8x256xf32> to vector<8x128xf32>
    %2176 = arith.index_cast %2125 : i32 to index
    %c0_518 = arith.constant 0 : index
    %2177 = vector.load %arg2[%2176, %c0_518] : memref<64x1xf32, #tpu.memory_space<vmem>>, vector<8x1xf32>
    %2178 = arith.truncf %2111 : vector<8x32xf32> to vector<8x32xbf16>
    %cst_519 = arith.constant dense<0.000000e+00> : vector<8x128xf32>
    %2179 = tpu.matmul %2178, %1612, %cst_519 {dimension_numbers = #tpu.dot_dimension_numbers<[1], [0], [0], [1], [0, 0, 1, 1], [], []>} : vector<8x32xbf16>, vector<32x128xbf16>, vector<8x128xf32> -> vector<8x128xf32>
    %2180 = arith.addf %2175, %2179 : vector<8x128xf32>
    %2181 = vector.extract_strided_slice %2180 {offsets = [0, 0], sizes = [8, 32], strides = [1, 1]} : vector<8x128xf32> to vector<8x32xf32>
    %2182 = arith.negf %2181 : vector<8x32xf32>
    %2183 = math.exp %2182 : vector<8x32xf32>
    %cst_520 = arith.constant 1.000000e+00 : f32
    %2184 = vector.broadcast %cst_520 : f32 to vector<8x32xf32>
    %2185 = arith.addf %2184, %2183 : vector<8x32xf32>
    %2186 = arith.divf %2184, %2185 : vector<8x32xf32>
    %2187 = vector.extract_strided_slice %2180 {offsets = [0, 32], sizes = [8, 32], strides = [1, 1]} : vector<8x128xf32> to vector<8x32xf32>
    %2188 = arith.negf %2187 : vector<8x32xf32>
    %2189 = math.exp %2188 : vector<8x32xf32>
    %cst_521 = arith.constant 1.000000e+00 : f32
    %2190 = vector.broadcast %cst_521 : f32 to vector<8x32xf32>
    %2191 = arith.addf %2190, %2189 : vector<8x32xf32>
    %2192 = arith.divf %2190, %2191 : vector<8x32xf32>
    %2193 = vector.extract_strided_slice %2180 {offsets = [0, 64], sizes = [8, 32], strides = [1, 1]} : vector<8x128xf32> to vector<8x32xf32>
    %2194 = math.tanh %2193 : vector<8x32xf32>
    %2195 = vector.extract_strided_slice %2180 {offsets = [0, 96], sizes = [8, 32], strides = [1, 1]} : vector<8x128xf32> to vector<8x32xf32>
    %2196 = arith.negf %2195 : vector<8x32xf32>
    %2197 = math.exp %2196 : vector<8x32xf32>
    %cst_522 = arith.constant 1.000000e+00 : f32
    %2198 = vector.broadcast %cst_522 : f32 to vector<8x32xf32>
    %2199 = arith.addf %2198, %2197 : vector<8x32xf32>
    %2200 = arith.divf %2198, %2199 : vector<8x32xf32>
    %2201 = arith.mulf %2192, %2114 : vector<8x32xf32>
    %2202 = arith.mulf %2186, %2194 : vector<8x32xf32>
    %2203 = arith.addf %2201, %2202 : vector<8x32xf32>
    %2204 = math.tanh %2203 : vector<8x32xf32>
    %2205 = arith.mulf %2200, %2204 : vector<8x32xf32>
    %cst_523 = arith.constant 0.000000e+00 : f32
    %2206 = vector.broadcast %cst_523 : f32 to vector<8x1xf32>
    %2207 = arith.cmpf ogt, %2177, %2206 : vector<8x1xf32>
    %2208 = vector.shape_cast %2207 : vector<8x1xi1> to vector<8x1xi1>
    %2209 = vector.broadcast %2208 : vector<8x1xi1> to vector<8x32xi1>
    %2210 = arith.select %2209, %2205, %2111 : vector<8x32xi1>, vector<8x32xf32>
    %2211 = vector.shape_cast %2207 : vector<8x1xi1> to vector<8x1xi1>
    %2212 = vector.broadcast %2211 : vector<8x1xi1> to vector<8x32xi1>
    %2213 = arith.select %2212, %2203, %2114 : vector<8x32xi1>, vector<8x32xf32>
    %cst_524 = arith.constant 0.000000e+00 : f32
    %2214 = vector.broadcast %cst_524 : f32 to vector<8x32xf32>
    %2215 = vector.shape_cast %2207 : vector<8x1xi1> to vector<8x1xi1>
    %2216 = vector.broadcast %2215 : vector<8x1xi1> to vector<8x32xi1>
    %2217 = arith.select %2216, %2205, %2214 : vector<8x32xi1>, vector<8x32xf32>
    %2218 = arith.index_cast %2125 : i32 to index
    %c0_525 = arith.constant 0 : index
    %2219 = vector.load %arg16[%2218, %c0_525] : memref<64x32xf32, #tpu.memory_space<vmem>>, vector<8x32xf32>
    tpu.vector_store %arg16[%2218, %c0_525], %2217 {strides = array<i32>} : memref<64x32xf32, #tpu.memory_space<vmem>>, vector<8x32xf32>,
    %c6_i32_526 = arith.constant 6 : i32
    %c8_i32_527 = arith.constant 8 : i32
    %2220 = arith.muli %c6_i32_526, %c8_i32_527 : i32
    %2221 = tpu.assume_multiple %2220, 8 : i32
    %c7_i32_528 = arith.constant 7 : i32
    %2222 = arith.subi %c7_i32_528, %c6_i32_526 : i32
    %c8_i32_529 = arith.constant 8 : i32
    %2223 = arith.muli %2222, %c8_i32_529 : i32
    %2224 = tpu.assume_multiple %2223, 8 : i32
    %2225 = arith.index_cast %2221 : i32 to index
    %c0_530 = arith.constant 0 : index
    %2226 = vector.load %arg17[%2225, %c0_530] : memref<64x256xf32, #tpu.memory_space<vmem>>, vector<8x256xf32>
    %2227 = vector.extract_strided_slice %2226 {offsets = [0, 0], sizes = [8, 128], strides = [1, 1]} : vector<8x256xf32> to vector<8x128xf32>
    %2228 = arith.index_cast %2221 : i32 to index
    %c0_531 = arith.constant 0 : index
    %2229 = vector.load %arg2[%2228, %c0_531] : memref<64x1xf32, #tpu.memory_space<vmem>>, vector<8x1xf32>
    %2230 = arith.truncf %2163 : vector<8x32xf32> to vector<8x32xbf16>
    %cst_532 = arith.constant dense<0.000000e+00> : vector<8x128xf32>
    %2231 = tpu.matmul %2230, %1611, %cst_532 {dimension_numbers = #tpu.dot_dimension_numbers<[1], [0], [0], [1], [0, 0, 1, 1], [], []>} : vector<8x32xbf16>, vector<32x128xbf16>, vector<8x128xf32> -> vector<8x128xf32>
    %2232 = arith.addf %2227, %2231 : vector<8x128xf32>
    %2233 = vector.extract_strided_slice %2232 {offsets = [0, 0], sizes = [8, 32], strides = [1, 1]} : vector<8x128xf32> to vector<8x32xf32>
    %2234 = arith.negf %2233 : vector<8x32xf32>
    %2235 = math.exp %2234 : vector<8x32xf32>
    %cst_533 = arith.constant 1.000000e+00 : f32
    %2236 = vector.broadcast %cst_533 : f32 to vector<8x32xf32>
    %2237 = arith.addf %2236, %2235 : vector<8x32xf32>
    %2238 = arith.divf %2236, %2237 : vector<8x32xf32>
    %2239 = vector.extract_strided_slice %2232 {offsets = [0, 32], sizes = [8, 32], strides = [1, 1]} : vector<8x128xf32> to vector<8x32xf32>
    %2240 = arith.negf %2239 : vector<8x32xf32>
    %2241 = math.exp %2240 : vector<8x32xf32>
    %cst_534 = arith.constant 1.000000e+00 : f32
    %2242 = vector.broadcast %cst_534 : f32 to vector<8x32xf32>
    %2243 = arith.addf %2242, %2241 : vector<8x32xf32>
    %2244 = arith.divf %2242, %2243 : vector<8x32xf32>
    %2245 = vector.extract_strided_slice %2232 {offsets = [0, 64], sizes = [8, 32], strides = [1, 1]} : vector<8x128xf32> to vector<8x32xf32>
    %2246 = math.tanh %2245 : vector<8x32xf32>
    %2247 = vector.extract_strided_slice %2232 {offsets = [0, 96], sizes = [8, 32], strides = [1, 1]} : vector<8x128xf32> to vector<8x32xf32>
    %2248 = arith.negf %2247 : vector<8x32xf32>
    %2249 = math.exp %2248 : vector<8x32xf32>
    %cst_535 = arith.constant 1.000000e+00 : f32
    %2250 = vector.broadcast %cst_535 : f32 to vector<8x32xf32>
    %2251 = arith.addf %2250, %2249 : vector<8x32xf32>
    %2252 = arith.divf %2250, %2251 : vector<8x32xf32>
    %2253 = arith.mulf %2244, %2166 : vector<8x32xf32>
    %2254 = arith.mulf %2238, %2246 : vector<8x32xf32>
    %2255 = arith.addf %2253, %2254 : vector<8x32xf32>
    %2256 = math.tanh %2255 : vector<8x32xf32>
    %2257 = arith.mulf %2252, %2256 : vector<8x32xf32>
    %cst_536 = arith.constant 0.000000e+00 : f32
    %2258 = vector.broadcast %cst_536 : f32 to vector<8x1xf32>
    %2259 = arith.cmpf ogt, %2229, %2258 : vector<8x1xf32>
    %2260 = vector.shape_cast %2259 : vector<8x1xi1> to vector<8x1xi1>
    %2261 = vector.broadcast %2260 : vector<8x1xi1> to vector<8x32xi1>
    %2262 = arith.select %2261, %2257, %2163 : vector<8x32xi1>, vector<8x32xf32>
    %2263 = vector.shape_cast %2259 : vector<8x1xi1> to vector<8x1xi1>
    %2264 = vector.broadcast %2263 : vector<8x1xi1> to vector<8x32xi1>
    %2265 = arith.select %2264, %2255, %2166 : vector<8x32xi1>, vector<8x32xf32>
    %cst_537 = arith.constant 0.000000e+00 : f32
    %2266 = vector.broadcast %cst_537 : f32 to vector<8x32xf32>
    %2267 = vector.shape_cast %2259 : vector<8x1xi1> to vector<8x1xi1>
    %2268 = vector.broadcast %2267 : vector<8x1xi1> to vector<8x32xi1>
    %2269 = arith.select %2268, %2257, %2266 : vector<8x32xi1>, vector<8x32xf32>
    %2270 = arith.index_cast %2221 : i32 to index
    %c0_538 = arith.constant 0 : index
    %2271 = vector.load %arg15[%2270, %c0_538] : memref<64x32xf32, #tpu.memory_space<vmem>>, vector<8x32xf32>
    tpu.vector_store %arg15[%2270, %c0_538], %2269 {strides = array<i32>} : memref<64x32xf32, #tpu.memory_space<vmem>>, vector<8x32xf32>,
    %2272 = arith.index_cast %2224 : i32 to index
    %c0_539 = arith.constant 0 : index
    %2273 = vector.load %arg17[%2272, %c0_539] : memref<64x256xf32, #tpu.memory_space<vmem>>, vector<8x256xf32>
    %2274 = vector.extract_strided_slice %2273 {offsets = [0, 128], sizes = [8, 128], strides = [1, 1]} : vector<8x256xf32> to vector<8x128xf32>
    %2275 = arith.index_cast %2224 : i32 to index
    %c0_540 = arith.constant 0 : index
    %2276 = vector.load %arg2[%2275, %c0_540] : memref<64x1xf32, #tpu.memory_space<vmem>>, vector<8x1xf32>
    %2277 = arith.truncf %2210 : vector<8x32xf32> to vector<8x32xbf16>
    %cst_541 = arith.constant dense<0.000000e+00> : vector<8x128xf32>
    %2278 = tpu.matmul %2277, %1612, %cst_541 {dimension_numbers = #tpu.dot_dimension_numbers<[1], [0], [0], [1], [0, 0, 1, 1], [], []>} : vector<8x32xbf16>, vector<32x128xbf16>, vector<8x128xf32> -> vector<8x128xf32>
    %2279 = arith.addf %2274, %2278 : vector<8x128xf32>
    %2280 = vector.extract_strided_slice %2279 {offsets = [0, 0], sizes = [8, 32], strides = [1, 1]} : vector<8x128xf32> to vector<8x32xf32>
    %2281 = arith.negf %2280 : vector<8x32xf32>
    %2282 = math.exp %2281 : vector<8x32xf32>
    %cst_542 = arith.constant 1.000000e+00 : f32
    %2283 = vector.broadcast %cst_542 : f32 to vector<8x32xf32>
    %2284 = arith.addf %2283, %2282 : vector<8x32xf32>
    %2285 = arith.divf %2283, %2284 : vector<8x32xf32>
    %2286 = vector.extract_strided_slice %2279 {offsets = [0, 32], sizes = [8, 32], strides = [1, 1]} : vector<8x128xf32> to vector<8x32xf32>
    %2287 = arith.negf %2286 : vector<8x32xf32>
    %2288 = math.exp %2287 : vector<8x32xf32>
    %cst_543 = arith.constant 1.000000e+00 : f32
    %2289 = vector.broadcast %cst_543 : f32 to vector<8x32xf32>
    %2290 = arith.addf %2289, %2288 : vector<8x32xf32>
    %2291 = arith.divf %2289, %2290 : vector<8x32xf32>
    %2292 = vector.extract_strided_slice %2279 {offsets = [0, 64], sizes = [8, 32], strides = [1, 1]} : vector<8x128xf32> to vector<8x32xf32>
    %2293 = math.tanh %2292 : vector<8x32xf32>
    %2294 = vector.extract_strided_slice %2279 {offsets = [0, 96], sizes = [8, 32], strides = [1, 1]} : vector<8x128xf32> to vector<8x32xf32>
    %2295 = arith.negf %2294 : vector<8x32xf32>
    %2296 = math.exp %2295 : vector<8x32xf32>
    %cst_544 = arith.constant 1.000000e+00 : f32
    %2297 = vector.broadcast %cst_544 : f32 to vector<8x32xf32>
    %2298 = arith.addf %2297, %2296 : vector<8x32xf32>
    %2299 = arith.divf %2297, %2298 : vector<8x32xf32>
    %2300 = arith.mulf %2291, %2213 : vector<8x32xf32>
    %2301 = arith.mulf %2285, %2293 : vector<8x32xf32>
    %2302 = arith.addf %2300, %2301 : vector<8x32xf32>
    %2303 = math.tanh %2302 : vector<8x32xf32>
    %2304 = arith.mulf %2299, %2303 : vector<8x32xf32>
    %cst_545 = arith.constant 0.000000e+00 : f32
    %2305 = vector.broadcast %cst_545 : f32 to vector<8x1xf32>
    %2306 = arith.cmpf ogt, %2276, %2305 : vector<8x1xf32>
    %2307 = vector.shape_cast %2306 : vector<8x1xi1> to vector<8x1xi1>
    %2308 = vector.broadcast %2307 : vector<8x1xi1> to vector<8x32xi1>
    %2309 = arith.select %2308, %2304, %2210 : vector<8x32xi1>, vector<8x32xf32>
    %2310 = vector.shape_cast %2306 : vector<8x1xi1> to vector<8x1xi1>
    %2311 = vector.broadcast %2310 : vector<8x1xi1> to vector<8x32xi1>
    %2312 = arith.select %2311, %2302, %2213 : vector<8x32xi1>, vector<8x32xf32>
    %cst_546 = arith.constant 0.000000e+00 : f32
    %2313 = vector.broadcast %cst_546 : f32 to vector<8x32xf32>
    %2314 = vector.shape_cast %2306 : vector<8x1xi1> to vector<8x1xi1>
    %2315 = vector.broadcast %2314 : vector<8x1xi1> to vector<8x32xi1>
    %2316 = arith.select %2315, %2304, %2313 : vector<8x32xi1>, vector<8x32xf32>
    %2317 = arith.index_cast %2224 : i32 to index
    %c0_547 = arith.constant 0 : index
    %2318 = vector.load %arg16[%2317, %c0_547] : memref<64x32xf32, #tpu.memory_space<vmem>>, vector<8x32xf32>
    tpu.vector_store %arg16[%2317, %c0_547], %2316 {strides = array<i32>} : memref<64x32xf32, #tpu.memory_space<vmem>>, vector<8x32xf32>,
    %c7_i32_548 = arith.constant 7 : i32
    %c8_i32_549 = arith.constant 8 : i32
    %2319 = arith.muli %c7_i32_548, %c8_i32_549 : i32
    %2320 = tpu.assume_multiple %2319, 8 : i32
    %c7_i32_550 = arith.constant 7 : i32
    %2321 = arith.subi %c7_i32_550, %c7_i32_548 : i32
    %c8_i32_551 = arith.constant 8 : i32
    %2322 = arith.muli %2321, %c8_i32_551 : i32
    %2323 = tpu.assume_multiple %2322, 8 : i32
    %2324 = arith.index_cast %2320 : i32 to index
    %c0_552 = arith.constant 0 : index
    %2325 = vector.load %arg17[%2324, %c0_552] : memref<64x256xf32, #tpu.memory_space<vmem>>, vector<8x256xf32>
    %2326 = vector.extract_strided_slice %2325 {offsets = [0, 0], sizes = [8, 128], strides = [1, 1]} : vector<8x256xf32> to vector<8x128xf32>
    %2327 = arith.index_cast %2320 : i32 to index
    %c0_553 = arith.constant 0 : index
    %2328 = vector.load %arg2[%2327, %c0_553] : memref<64x1xf32, #tpu.memory_space<vmem>>, vector<8x1xf32>
    %2329 = arith.truncf %2262 : vector<8x32xf32> to vector<8x32xbf16>
    %cst_554 = arith.constant dense<0.000000e+00> : vector<8x128xf32>
    %2330 = tpu.matmul %2329, %1611, %cst_554 {dimension_numbers = #tpu.dot_dimension_numbers<[1], [0], [0], [1], [0, 0, 1, 1], [], []>} : vector<8x32xbf16>, vector<32x128xbf16>, vector<8x128xf32> -> vector<8x128xf32>
    %2331 = arith.addf %2326, %2330 : vector<8x128xf32>
    %2332 = vector.extract_strided_slice %2331 {offsets = [0, 0], sizes = [8, 32], strides = [1, 1]} : vector<8x128xf32> to vector<8x32xf32>
    %2333 = arith.negf %2332 : vector<8x32xf32>
    %2334 = math.exp %2333 : vector<8x32xf32>
    %cst_555 = arith.constant 1.000000e+00 : f32
    %2335 = vector.broadcast %cst_555 : f32 to vector<8x32xf32>
    %2336 = arith.addf %2335, %2334 : vector<8x32xf32>
    %2337 = arith.divf %2335, %2336 : vector<8x32xf32>
    %2338 = vector.extract_strided_slice %2331 {offsets = [0, 32], sizes = [8, 32], strides = [1, 1]} : vector<8x128xf32> to vector<8x32xf32>
    %2339 = arith.negf %2338 : vector<8x32xf32>
    %2340 = math.exp %2339 : vector<8x32xf32>
    %cst_556 = arith.constant 1.000000e+00 : f32
    %2341 = vector.broadcast %cst_556 : f32 to vector<8x32xf32>
    %2342 = arith.addf %2341, %2340 : vector<8x32xf32>
    %2343 = arith.divf %2341, %2342 : vector<8x32xf32>
    %2344 = vector.extract_strided_slice %2331 {offsets = [0, 64], sizes = [8, 32], strides = [1, 1]} : vector<8x128xf32> to vector<8x32xf32>
    %2345 = math.tanh %2344 : vector<8x32xf32>
    %2346 = vector.extract_strided_slice %2331 {offsets = [0, 96], sizes = [8, 32], strides = [1, 1]} : vector<8x128xf32> to vector<8x32xf32>
    %2347 = arith.negf %2346 : vector<8x32xf32>
    %2348 = math.exp %2347 : vector<8x32xf32>
    %cst_557 = arith.constant 1.000000e+00 : f32
    %2349 = vector.broadcast %cst_557 : f32 to vector<8x32xf32>
    %2350 = arith.addf %2349, %2348 : vector<8x32xf32>
    %2351 = arith.divf %2349, %2350 : vector<8x32xf32>
    %2352 = arith.mulf %2343, %2265 : vector<8x32xf32>
    %2353 = arith.mulf %2337, %2345 : vector<8x32xf32>
    %2354 = arith.addf %2352, %2353 : vector<8x32xf32>
    %2355 = math.tanh %2354 : vector<8x32xf32>
    %2356 = arith.mulf %2351, %2355 : vector<8x32xf32>
    %cst_558 = arith.constant 0.000000e+00 : f32
    %2357 = vector.broadcast %cst_558 : f32 to vector<8x1xf32>
    %2358 = arith.cmpf ogt, %2328, %2357 : vector<8x1xf32>
    %2359 = vector.shape_cast %2358 : vector<8x1xi1> to vector<8x1xi1>
    %2360 = vector.broadcast %2359 : vector<8x1xi1> to vector<8x32xi1>
    %2361 = arith.select %2360, %2356, %2262 : vector<8x32xi1>, vector<8x32xf32>
    %2362 = vector.shape_cast %2358 : vector<8x1xi1> to vector<8x1xi1>
    %2363 = vector.broadcast %2362 : vector<8x1xi1> to vector<8x32xi1>
    %2364 = arith.select %2363, %2354, %2265 : vector<8x32xi1>, vector<8x32xf32>
    %cst_559 = arith.constant 0.000000e+00 : f32
    %2365 = vector.broadcast %cst_559 : f32 to vector<8x32xf32>
    %2366 = vector.shape_cast %2358 : vector<8x1xi1> to vector<8x1xi1>
    %2367 = vector.broadcast %2366 : vector<8x1xi1> to vector<8x32xi1>
    %2368 = arith.select %2367, %2356, %2365 : vector<8x32xi1>, vector<8x32xf32>
    %2369 = arith.index_cast %2320 : i32 to index
    %c0_560 = arith.constant 0 : index
    %2370 = vector.load %arg15[%2369, %c0_560] : memref<64x32xf32, #tpu.memory_space<vmem>>, vector<8x32xf32>
    tpu.vector_store %arg15[%2369, %c0_560], %2368 {strides = array<i32>} : memref<64x32xf32, #tpu.memory_space<vmem>>, vector<8x32xf32>,
    %2371 = arith.index_cast %2323 : i32 to index
    %c0_561 = arith.constant 0 : index
    %2372 = vector.load %arg17[%2371, %c0_561] : memref<64x256xf32, #tpu.memory_space<vmem>>, vector<8x256xf32>
    %2373 = vector.extract_strided_slice %2372 {offsets = [0, 128], sizes = [8, 128], strides = [1, 1]} : vector<8x256xf32> to vector<8x128xf32>
    %2374 = arith.index_cast %2323 : i32 to index
    %c0_562 = arith.constant 0 : index
    %2375 = vector.load %arg2[%2374, %c0_562] : memref<64x1xf32, #tpu.memory_space<vmem>>, vector<8x1xf32>
    %2376 = arith.truncf %2309 : vector<8x32xf32> to vector<8x32xbf16>
    %cst_563 = arith.constant dense<0.000000e+00> : vector<8x128xf32>
    %2377 = tpu.matmul %2376, %1612, %cst_563 {dimension_numbers = #tpu.dot_dimension_numbers<[1], [0], [0], [1], [0, 0, 1, 1], [], []>} : vector<8x32xbf16>, vector<32x128xbf16>, vector<8x128xf32> -> vector<8x128xf32>
    %2378 = arith.addf %2373, %2377 : vector<8x128xf32>
    %2379 = vector.extract_strided_slice %2378 {offsets = [0, 0], sizes = [8, 32], strides = [1, 1]} : vector<8x128xf32> to vector<8x32xf32>
    %2380 = arith.negf %2379 : vector<8x32xf32>
    %2381 = math.exp %2380 : vector<8x32xf32>
    %cst_564 = arith.constant 1.000000e+00 : f32
    %2382 = vector.broadcast %cst_564 : f32 to vector<8x32xf32>
    %2383 = arith.addf %2382, %2381 : vector<8x32xf32>
    %2384 = arith.divf %2382, %2383 : vector<8x32xf32>
    %2385 = vector.extract_strided_slice %2378 {offsets = [0, 32], sizes = [8, 32], strides = [1, 1]} : vector<8x128xf32> to vector<8x32xf32>
    %2386 = arith.negf %2385 : vector<8x32xf32>
    %2387 = math.exp %2386 : vector<8x32xf32>
    %cst_565 = arith.constant 1.000000e+00 : f32
    %2388 = vector.broadcast %cst_565 : f32 to vector<8x32xf32>
    %2389 = arith.addf %2388, %2387 : vector<8x32xf32>
    %2390 = arith.divf %2388, %2389 : vector<8x32xf32>
    %2391 = vector.extract_strided_slice %2378 {offsets = [0, 64], sizes = [8, 32], strides = [1, 1]} : vector<8x128xf32> to vector<8x32xf32>
    %2392 = math.tanh %2391 : vector<8x32xf32>
    %2393 = vector.extract_strided_slice %2378 {offsets = [0, 96], sizes = [8, 32], strides = [1, 1]} : vector<8x128xf32> to vector<8x32xf32>
    %2394 = arith.negf %2393 : vector<8x32xf32>
    %2395 = math.exp %2394 : vector<8x32xf32>
    %cst_566 = arith.constant 1.000000e+00 : f32
    %2396 = vector.broadcast %cst_566 : f32 to vector<8x32xf32>
    %2397 = arith.addf %2396, %2395 : vector<8x32xf32>
    %2398 = arith.divf %2396, %2397 : vector<8x32xf32>
    %2399 = arith.mulf %2390, %2312 : vector<8x32xf32>
    %2400 = arith.mulf %2384, %2392 : vector<8x32xf32>
    %2401 = arith.addf %2399, %2400 : vector<8x32xf32>
    %2402 = math.tanh %2401 : vector<8x32xf32>
    %2403 = arith.mulf %2398, %2402 : vector<8x32xf32>
    %cst_567 = arith.constant 0.000000e+00 : f32
    %2404 = vector.broadcast %cst_567 : f32 to vector<8x1xf32>
    %2405 = arith.cmpf ogt, %2375, %2404 : vector<8x1xf32>
    %2406 = vector.shape_cast %2405 : vector<8x1xi1> to vector<8x1xi1>
    %2407 = vector.broadcast %2406 : vector<8x1xi1> to vector<8x32xi1>
    %2408 = arith.select %2407, %2403, %2309 : vector<8x32xi1>, vector<8x32xf32>
    %2409 = vector.shape_cast %2405 : vector<8x1xi1> to vector<8x1xi1>
    %2410 = vector.broadcast %2409 : vector<8x1xi1> to vector<8x32xi1>
    %2411 = arith.select %2410, %2401, %2312 : vector<8x32xi1>, vector<8x32xf32>
    %cst_568 = arith.constant 0.000000e+00 : f32
    %2412 = vector.broadcast %cst_568 : f32 to vector<8x32xf32>
    %2413 = vector.shape_cast %2405 : vector<8x1xi1> to vector<8x1xi1>
    %2414 = vector.broadcast %2413 : vector<8x1xi1> to vector<8x32xi1>
    %2415 = arith.select %2414, %2403, %2412 : vector<8x32xi1>, vector<8x32xf32>
    %2416 = arith.index_cast %2323 : i32 to index
    %c0_569 = arith.constant 0 : index
    %2417 = vector.load %arg16[%2416, %c0_569] : memref<64x32xf32, #tpu.memory_space<vmem>>, vector<8x32xf32>
    tpu.vector_store %arg16[%2416, %c0_569], %2415 {strides = array<i32>} : memref<64x32xf32, #tpu.memory_space<vmem>>, vector<8x32xf32>,
    %c8_i32_570 = arith.constant 8 : i32
    return
  }
  func.func @transform_0(%arg0: i32) -> (i32, i32) {
    %c0_i32 = arith.constant 0 : i32
    %c0_i32_0 = arith.constant 0 : i32
    %c0_i32_1 = arith.constant 0 : i32
    return %c0_i32, %c0_i32_0 : i32, i32
  }
  func.func @transform_1(%arg0: i32) -> (i32, i32) {
    %c0_i32 = arith.constant 0 : i32
    %c0_i32_0 = arith.constant 0 : i32
    %c0_i32_1 = arith.constant 0 : i32
    return %c0_i32, %c0_i32_0 : i32, i32
  }
  func.func @transform_2(%arg0: i32) -> (i32, i32) {
    %c0_i32 = arith.constant 0 : i32
    %c0_i32_0 = arith.constant 0 : i32
    %c0_i32_1 = arith.constant 0 : i32
    return %c0_i32, %c0_i32_0 : i32, i32
  }
  func.func @transform_3(%arg0: i32) -> (i32, i32) {
    %c0_i32 = arith.constant 0 : i32
    %c0_i32_0 = arith.constant 0 : i32
    %c0_i32_1 = arith.constant 0 : i32
    return %c0_i32, %c0_i32_0 : i32, i32
  }
  func.func @transform_4(%arg0: i32) -> (i32, i32) {
    %c0_i32 = arith.constant 0 : i32
    %c0_i32_0 = arith.constant 0 : i32
    %c0_i32_1 = arith.constant 0 : i32
    return %c0_i32, %c0_i32_0 : i32, i32
  }
  func.func @transform_5(%arg0: i32) -> (i32, i32) {
    %c0_i32 = arith.constant 0 : i32
    %c0_i32_0 = arith.constant 0 : i32
    %c0_i32_1 = arith.constant 0 : i32
    return %c0_i32, %c0_i32_0 : i32, i32
  }
  func.func @transform_6(%arg0: i32) -> (i32, i32) {
    %c0_i32 = arith.constant 0 : i32
    %c0_i32_0 = arith.constant 0 : i32
    %c0_i32_1 = arith.constant 0 : i32
    return %c0_i32, %c0_i32_0 : i32, i32
  }
  func.func @transform_7(%arg0: i32) -> (i32, i32) {
    %c0_i32 = arith.constant 0 : i32
    %c0_i32_0 = arith.constant 0 : i32
    %c0_i32_1 = arith.constant 0 : i32
    return %c0_i32, %c0_i32_0 : i32, i32
  }
  func.func @transform_8(%arg0: i32) -> (i32, i32) {
    %c0_i32 = arith.constant 0 : i32
    %c0_i32_0 = arith.constant 0 : i32
    %c0_i32_1 = arith.constant 0 : i32
    return %c0_i32, %c0_i32_0 : i32, i32
  }
  func.func @transform_9(%arg0: i32) -> (i32, i32) {
    %c0_i32 = arith.constant 0 : i32
    %c0_i32_0 = arith.constant 0 : i32
    %c0_i32_1 = arith.constant 0 : i32
    return %c0_i32, %c0_i32_0 : i32, i32
  }
  func.func @transform_10(%arg0: i32) -> (i32, i32) {
    %c0_i32 = arith.constant 0 : i32
    %c0_i32_0 = arith.constant 0 : i32
    %c0_i32_1 = arith.constant 0 : i32
    return %c0_i32, %c0_i32_0 : i32, i32
  }
  func.func @transform_11(%arg0: i32) -> (i32, i32) {
    %c0_i32 = arith.constant 0 : i32
    %c0_i32_0 = arith.constant 0 : i32
    %c0_i32_1 = arith.constant 0 : i32
    return %c0_i32, %c0_i32_0 : i32, i32
  }
  func.func @transform_12(%arg0: i32) -> (i32, i32) {
    %c0_i32 = arith.constant 0 : i32
    %c0_i32_0 = arith.constant 0 : i32
    %c0_i32_1 = arith.constant 0 : i32
    return %c0_i32, %c0_i32_0 : i32, i32
  }
  func.func @transform_13(%arg0: i32) -> (i32, i32) {
    %c0_i32 = arith.constant 0 : i32
    %c0_i32_0 = arith.constant 0 : i32
    %c0_i32_1 = arith.constant 0 : i32
    return %c0_i32, %c0_i32_0 : i32, i32
  }
  func.func @transform_14(%arg0: i32) -> (i32, i32) {
    %c0_i32 = arith.constant 0 : i32
    %c0_i32_0 = arith.constant 0 : i32
    %c0_i32_1 = arith.constant 0 : i32
    return %c0_i32, %c0_i32_0 : i32, i32
  }
  func.func @transform_15(%arg0: i32) -> (i32, i32) {
    %c0_i32 = arith.constant 0 : i32
    %c0_i32_0 = arith.constant 0 : i32
    %c0_i32_1 = arith.constant 0 : i32
    return %c0_i32, %c0_i32_0 : i32, i32
  }
}

</mosaic_0001>

<llo_original>
// kernel: lstm_encoder_forward.1
$region0: #{lstm_encoder_forward.1}
  #allocation0 [shape = 'u32[]', space=smem, size = 0x4, offset = 0x4, fixed_abs, tag = 'smem constant byte address 0x4 - core index']
  #allocation1 [shape = 'u32[144,128]{1,0:T(1,128)}', space=vmem, size = 0x12000, scoped, tag = 'internal scratch']
  #allocation2 [shape = 'f32[64,256]{1,0:T(8,128)}', space=vmem, size = 0x10000, scoped, tag = 'scratch operand']
  %s0 = inlined_call_operand.vmem [shape: bf16[64,32], index: 0, kind: input, shape index: {}]
  %s1 = inlined_call_operand.vmem [shape: f32[64,1], index: 1, kind: input, shape index: {}]
  %s2 = inlined_call_operand.vmem [shape: bf16[32,256], index: 2, kind: input, shape index: {}]
  %s3 = inlined_call_operand.vmem [shape: f32[1,256], index: 3, kind: input, shape index: {}]
  %s4 = inlined_call_operand.vmem [shape: bf16[32,128], index: 4, kind: input, shape index: {}]
  %s5 = inlined_call_operand.vmem [shape: bf16[32,128], index: 5, kind: input, shape index: {}]
  %s6 = inlined_call_operand.vmem [shape: bf16[64,256], index: 6, kind: input, shape index: {}]
  %s7 = inlined_call_operand.vmem [shape: f32[1,256], index: 7, kind: input, shape index: {}]
  %s8 = inlined_call_operand.vmem [shape: bf16[32,128], index: 8, kind: input, shape index: {}]
  %s9 = inlined_call_operand.vmem [shape: bf16[32,128], index: 9, kind: input, shape index: {}]
  %s10 = inlined_call_operand.vmem [shape: bf16[64,256], index: 10, kind: input, shape index: {}]
  %s11 = inlined_call_operand.vmem [shape: f32[1,256], index: 11, kind: input, shape index: {}]
  %s12 = inlined_call_operand.vmem [shape: bf16[32,128], index: 12, kind: input, shape index: {}]
  %s13 = inlined_call_operand.vmem [shape: bf16[32,128], index: 13, kind: input, shape index: {}]
  %s14 = inlined_call_operand.vmem [shape: f32[64,32], index: 14, kind: output, shape index: {0}]
  %s15 = inlined_call_operand.vmem [shape: f32[64,32], index: 15, kind: output, shape index: {1}]
  %16 = xla_tuple %s14, %s15
  %s17 = sld [smem:[#allocation0]]
  $region74: #{lstm_encoder_forward.1} parent=0
    _
  %s19 = ssub.s32 1, %s17
  %s20 = scalar_select 0, %s19, %s17
  // Predicated region
  $region2: #{lstm_encoder_forward.1} parent=0 // pred_check
    _
  $region3: #{lstm_encoder_forward.1} parent=0 // pred_check_branch
    %22 = sbr.rel (0) target = $region5
  $region4: #{lstm_encoder_forward.1} parent=0 // pred_region
    _
  $region5: #{lstm_encoder_forward.1} parent=0 // pred_fallthru
    _
  // Predicated region
  $region6: #{lstm_encoder_forward.1} parent=0 // pred_check
    _
  $region7: #{lstm_encoder_forward.1} parent=0 // pred_check_branch
    %24 = sbr.rel (0) target = $region9
  $region8: #{lstm_encoder_forward.1} parent=0 // pred_region
    _
  $region9: #{lstm_encoder_forward.1} parent=0 // pred_fallthru
    _
  // Predicated region
  $region10: #{lstm_encoder_forward.1} parent=0 // pred_check
    _
  $region11: #{lstm_encoder_forward.1} parent=0 // pred_check_branch
    %26 = sbr.rel (0) target = $region13
  $region12: #{lstm_encoder_forward.1} parent=0 // pred_region
    _
  $region13: #{lstm_encoder_forward.1} parent=0 // pred_fallthru
    _
  // Predicated region
  $region14: #{lstm_encoder_forward.1} parent=0 // pred_check
    _
  $region15: #{lstm_encoder_forward.1} parent=0 // pred_check_branch
    %28 = sbr.rel (0) target = $region17
  $region16: #{lstm_encoder_forward.1} parent=0 // pred_region
    _
  $region17: #{lstm_encoder_forward.1} parent=0 // pred_fallthru
    _
  // Predicated region
  $region18: #{lstm_encoder_forward.1} parent=0 // pred_check
    _
  $region19: #{lstm_encoder_forward.1} parent=0 // pred_check_branch
    %30 = sbr.rel (0) target = $region21
  $region20: #{lstm_encoder_forward.1} parent=0 // pred_region
    _
  $region21: #{lstm_encoder_forward.1} parent=0 // pred_fallthru
    _
  // Predicated region
  $region22: #{lstm_encoder_forward.1} parent=0 // pred_check
    _
  $region23: #{lstm_encoder_forward.1} parent=0 // pred_check_branch
    %32 = sbr.rel (0) target = $region25
  $region24: #{lstm_encoder_forward.1} parent=0 // pred_region
    _
  $region25: #{lstm_encoder_forward.1} parent=0 // pred_fallthru
    _
  // Predicated region
  $region26: #{lstm_encoder_forward.1} parent=0 // pred_check
    _
  $region27: #{lstm_encoder_forward.1} parent=0 // pred_check_branch
    %34 = sbr.rel (0) target = $region29
  $region28: #{lstm_encoder_forward.1} parent=0 // pred_region
    _
  $region29: #{lstm_encoder_forward.1} parent=0 // pred_fallthru
    _
  // Predicated region
  $region30: #{lstm_encoder_forward.1} parent=0 // pred_check
    _
  $region31: #{lstm_encoder_forward.1} parent=0 // pred_check_branch
    %36 = sbr.rel (0) target = $region33
  $region32: #{lstm_encoder_forward.1} parent=0 // pred_region
    _
  $region33: #{lstm_encoder_forward.1} parent=0 // pred_fallthru
    _
  // Predicated region
  $region34: #{lstm_encoder_forward.1} parent=0 // pred_check
    _
  $region35: #{lstm_encoder_forward.1} parent=0 // pred_check_branch
    %38 = sbr.rel (0) target = $region37
  $region36: #{lstm_encoder_forward.1} parent=0 // pred_region
    _
  $region37: #{lstm_encoder_forward.1} parent=0 // pred_fallthru
    _
  // Predicated region
  $region38: #{lstm_encoder_forward.1} parent=0 // pred_check
    _
  $region39: #{lstm_encoder_forward.1} parent=0 // pred_check_branch
    %40 = sbr.rel (0) target = $region41
  $region40: #{lstm_encoder_forward.1} parent=0 // pred_region
    _
  $region41: #{lstm_encoder_forward.1} parent=0 // pred_fallthru
    _
  // Predicated region
  $region42: #{lstm_encoder_forward.1} parent=0 // pred_check
    _
  $region43: #{lstm_encoder_forward.1} parent=0 // pred_check_branch
    %42 = sbr.rel (0) target = $region45
  $region44: #{lstm_encoder_forward.1} parent=0 // pred_region
    _
  $region45: #{lstm_encoder_forward.1} parent=0 // pred_fallthru
    _
  // Predicated region
  $region46: #{lstm_encoder_forward.1} parent=0 // pred_check
    _
  $region47: #{lstm_encoder_forward.1} parent=0 // pred_check_branch
    %44 = sbr.rel (0) target = $region49
  $region48: #{lstm_encoder_forward.1} parent=0 // pred_region
    _
  $region49: #{lstm_encoder_forward.1} parent=0 // pred_fallthru
    _
  // Predicated region
  $region50: #{lstm_encoder_forward.1} parent=0 // pred_check
    _
  $region51: #{lstm_encoder_forward.1} parent=0 // pred_check_branch
    %46 = sbr.rel (0) target = $region53
  $region52: #{lstm_encoder_forward.1} parent=0 // pred_region
    _
  $region53: #{lstm_encoder_forward.1} parent=0 // pred_fallthru
    _
  // Predicated region
  $region54: #{lstm_encoder_forward.1} parent=0 // pred_check
    _
  $region55: #{lstm_encoder_forward.1} parent=0 // pred_check_branch
    %48 = sbr.rel (0) target = $region57
  $region56: #{lstm_encoder_forward.1} parent=0 // pred_region
    _
  $region57: #{lstm_encoder_forward.1} parent=0 // pred_fallthru
    _
  %v50 = vld [vmem:[%s3] sm:$0x3]
  %v51 = vld [vmem:[%s4] sm:$0xf]
  %v52 = vld [vmem:[%s4 + $0x4] sm:$0xf]
  %v53 = vld [vmem:[%s4 + $0x8] sm:$0xf]
  %v54 = vld [vmem:[%s4 + $0xc] sm:$0xf]
  %v55 = vld [vmem:[%s5] sm:$0xf]
  %v56 = vld [vmem:[%s5 + $0x4] sm:$0xf]
  %v57 = vld [vmem:[%s5 + $0x8] sm:$0xf]
  %v58 = vld [vmem:[%s5 + $0xc] sm:$0xf]
  %v59 = vld [vmem:[%s0] sm:$0xf]
  %v60 = vld [vmem:[%s0 + $0x4] sm:$0xf]
  %v61 = vld [vmem:[%s0 + $0x8] sm:$0xf]
  %v62 = vld [vmem:[%s0 + $0xc] sm:$0xf]
  %v63 = vld [vmem:[%s0 + $0x10] sm:$0xf]
  %v64 = vld [vmem:[%s0 + $0x14] sm:$0xf]
  %v65 = vld [vmem:[%s0 + $0x18] sm:$0xf]
  %v66 = vld [vmem:[%s0 + $0x1c] sm:$0xf]
  %v67 = vld [vmem:[%s2] sm:$0xff]
  %v68 = vld [vmem:[%s2 + $0x8] sm:$0xff]
  %v69 = vld [vmem:[%s2 + $0x10] sm:$0xff]
  %v70 = vld [vmem:[%s2 + $0x18] sm:$0xff]
  %v72 = vlaneseq
  %v73 = vshrl.u32 %v72, 7
  %v74 = vsub.s32 0, %v73
  %v75 = vrot.slane %v50, %v74
  %v76 = vlaneseq
  %v77 = vshrl.u32 %v76, 7
  %v78 = vsub.s32 1, %v77
  %v79 = vrot.slane %v50, %v78
  %v90 = vunpack.c.l.b16 %v59
  %v91 = vunpack.c.l.b16 %v60
  %v92 = vunpack.c.l.b16 %v61
  %v93 = vunpack.c.l.b16 %v62
  %v94 = vunpack.c.l.b16 %v63
  %v95 = vunpack.c.l.b16 %v64
  %v96 = vunpack.c.l.b16 %v65
  %v97 = vunpack.c.l.b16 %v66
  %v98 = vpack.c.b16 %v91, %v90
  %v99 = vpack.c.b16 %v93, %v92
  %v100 = vpack.c.b16 %v95, %v94
  %v101 = vpack.c.b16 %v97, %v96
  %v106 = vunpack.c.l.b16 %v67
  %v107 = vunpack.c.h.b16 %v67
  %v108 = vunpack.c.l.b16 %v68
  %v109 = vunpack.c.h.b16 %v68
  %v110 = vunpack.c.l.b16 %v69
  %v111 = vunpack.c.h.b16 %v69
  %v112 = vunpack.c.l.b16 %v70
  %v113 = vunpack.c.h.b16 %v70
  %v114 = vpack.c.b16 %v108, %v106
  %v115 = vpack.c.b16 %v109, %v107
  %v116 = vpack.c.b16 %v112, %v110
  %v117 = vpack.c.b16 %v113, %v111
  %vm122 = vcmask 261120
  %v124 = vsel %vm122, %v98, 0
  %v127 = vsel %vm122, %v99, 0
  %v130 = vsel %vm122, %v100, 0
  %v133 = vsel %vm122, %v101, 0
  %135 = vmatprep.subr.bf16.mxu0 0
  %136 = vmatpush1.bf16.msra.mxu0 0
  %137 = vmatprep.subr.bf16.mxu0 0
  %138 = vmatpush1.bf16.msra.mxu0 0
  %139 = vmatprep.subr.bf16.mxu0 0
  %140 = vmatpush1.bf16.msra.mxu0 0
  %141 = vmatprep.subr.bf16.mxu0 0
  %142 = vmatpush1.bf16.msra.mxu0 0
  %143 = vmatprep.subr.bf16.mxu0 0
  %144 = vmatpush1.bf16.msra.mxu0 0
  %145 = vmatprep.subr.bf16.mxu0 0
  %146 = vmatpush1.bf16.msra.mxu0 0
  %147 = vmatprep.subr.bf16.mxu0 %v117
  %148 = vmatpush1.bf16.msra.mxu0 %v116
  %149 = vmatprep.subr.bf16.mxu0 %v115
  %150 = vmatpush1.bf16.msra.mxu0 %v114
  %151 = vmatprep.subr.bf16.mxu0 0
  %152 = vmatpush2.bf16.msra.mxu0 0
  %153 = vmatprep.subr.bf16.mxu0 0
  %154 = vmatpush2.bf16.msra.mxu0 0
  %155 = vmatprep.subr.bf16.mxu0 0
  %156 = vmatpush2.bf16.msra.mxu0 0
  %157 = vmatprep.subr.bf16.mxu0 0
  %158 = vmatpush2.bf16.msra.mxu0 0
  %159 = vmatprep.subr.bf16.mxu0 0
  %160 = vmatpush2.bf16.msra.mxu0 0
  %161 = vmatprep.subr.bf16.mxu0 0
  %162 = vmatpush2.bf16.msra.mxu0 0
  %163 = vmatprep.subr.bf16.mxu0 0
  %164 = vmatpush2.bf16.msra.mxu0 0
  %165 = vmatprep.subr.bf16.mxu0 0
  %166 = vmatpush2.bf16.msra.mxu0 0
  %167 = vmatprep.mubr.bf16.mxu0 0
  %168 = vmatmul.mubr.bf16.gmra.mxu0 %v124
  %v169 = vpop.f32.mrf.mxu0
  %v170 = vadd.f32 %v75, %v169
  %v171 = vpop.f32.mrf.mxu0
  %v172 = vadd.f32 %v79, %v171
  %v173 = vpop.f32.mrf.mxu0
  %v174 = vadd.f32 %v75, %v173
  %v175 = vpop.f32.mrf.mxu0
  %v176 = vadd.f32 %v79, %v175
  %177 = vmatprep.mubr.bf16.mxu0 0
  %178 = vmatmul.mubr.bf16.gmra.mxu0 %v127
  %v179 = vpop.f32.mrf.mxu0
  %v180 = vadd.f32 %v75, %v179
  %v181 = vpop.f32.mrf.mxu0
  %v182 = vadd.f32 %v79, %v181
  %v183 = vpop.f32.mrf.mxu0
  %v184 = vadd.f32 %v75, %v183
  %v185 = vpop.f32.mrf.mxu0
  %v186 = vadd.f32 %v79, %v185
  %187 = vmatprep.mubr.bf16.mxu0 0
  %188 = vmatmul.mubr.bf16.gmra.mxu0 %v130
  %v189 = vpop.f32.mrf.mxu0
  %v190 = vadd.f32 %v75, %v189
  %v191 = vpop.f32.mrf.mxu0
  %v192 = vadd.f32 %v79, %v191
  %v193 = vpop.f32.mrf.mxu0
  %v194 = vadd.f32 %v75, %v193
  %v195 = vpop.f32.mrf.mxu0
  %v196 = vadd.f32 %v79, %v195
  %197 = vmatprep.mubr.bf16.mxu0 0
  %198 = vmatmul.mubr.bf16.gmra.mxu0 %v133
  %v199 = vpop.f32.mrf.mxu0
  %v200 = vadd.f32 %v75, %v199
  %v201 = vpop.f32.mrf.mxu0
  %v202 = vadd.f32 %v79, %v201
  %v203 = vpop.f32.mrf.mxu0
  %v204 = vadd.f32 %v75, %v203
  %v205 = vpop.f32.mrf.mxu0
  %v206 = vadd.f32 %v79, %v205
  %207 = vdwg.mxu0
  %208 = vst [vmem:[#allocation2] sm:$0xff] %v170
  %209 = vst [vmem:[#allocation2 + $0x8] sm:$0xff] %v172
  %210 = vst [vmem:[#allocation2 + $0x10] sm:$0xff] %v174
  %211 = vst [vmem:[#allocation2 + $0x18] sm:$0xff] %v176
  %212 = vst [vmem:[#allocation2 + $0x20] sm:$0xff] %v180
  %213 = vst [vmem:[#allocation2 + $0x28] sm:$0xff] %v182
  %214 = vst [vmem:[#allocation2 + $0x30] sm:$0xff] %v184
  %215 = vst [vmem:[#allocation2 + $0x38] sm:$0xff] %v186
  %216 = vst [vmem:[#allocation2 + $0x40] sm:$0xff] %v190
  %217 = vst [vmem:[#allocation2 + $0x48] sm:$0xff] %v192
  %218 = vst [vmem:[#allocation2 + $0x50] sm:$0xff] %v194
  %219 = vst [vmem:[#allocation2 + $0x58] sm:$0xff] %v196
  %220 = vst [vmem:[#allocation2 + $0x60] sm:$0xff] %v200
  %221 = vst [vmem:[#allocation2 + $0x68] sm:$0xff] %v202
  %222 = vst [vmem:[#allocation2 + $0x70] sm:$0xff] %v204
  %223 = vst [vmem:[#allocation2 + $0x78] sm:$0xff] %v206
  %s224 = smul.u32 0, 2
  %s225 = smul.addr %s224, 8
  %s226 = scalar_lea.vmem [#allocation2], %s225
  %v227 = vld [vmem:[%s226] sm:$0xff]
  %v228 = vld [vmem:[%s1] sm:$0xff]
  %v233 = vunpack.c.l.b16 %v51
  %v234 = vunpack.c.l.b16 %v52
  %v235 = vunpack.c.l.b16 %v53
  %v236 = vunpack.c.l.b16 %v54
  %v237 = vpack.c.b16 %v234, %v233
  %v238 = vpack.c.b16 %v236, %v235
  %v242 = vsel %vm122, 0, 0
  %244 = vmatprep.subr.bf16.mxu0 0
  %245 = vmatpush1.bf16.msra.mxu0 0
  %246 = vmatprep.subr.bf16.mxu0 0
  %247 = vmatpush1.bf16.msra.mxu0 0
  %248 = vmatprep.subr.bf16.mxu0 0
  %249 = vmatpush1.bf16.msra.mxu0 0
  %250 = vmatprep.subr.bf16.mxu0 0
  %251 = vmatpush1.bf16.msra.mxu0 0
  %252 = vmatprep.subr.bf16.mxu0 0
  %253 = vmatpush1.bf16.msra.mxu0 0
  %254 = vmatprep.subr.bf16.mxu0 0
  %255 = vmatpush1.bf16.msra.mxu0 0
  %256 = vmatprep.subr.bf16.mxu0 0
  %257 = vmatpush1.bf16.msra.mxu0 %v238
  %258 = vmatprep.subr.bf16.mxu0 0
  %259 = vmatpush1.bf16.msra.mxu0 %v237
  %260 = vmatprep.subr.bf16.mxu0 0
  %261 = vmatpush2.bf16.msra.mxu0 0
  %262 = vmatprep.subr.bf16.mxu0 0
  %263 = vmatpush2.bf16.msra.mxu0 0
  %264 = vmatprep.subr.bf16.mxu0 0
  %265 = vmatpush2.bf16.msra.mxu0 0
  %266 = vmatprep.subr.bf16.mxu0 0
  %267 = vmatpush2.bf16.msra.mxu0 0
  %268 = vmatprep.subr.bf16.mxu0 0
  %269 = vmatpush2.bf16.msra.mxu0 0
  %270 = vmatprep.subr.bf16.mxu0 0
  %271 = vmatpush2.bf16.msra.mxu0 0
  %272 = vmatprep.subr.bf16.mxu0 0
  %273 = vmatpush2.bf16.msra.mxu0 0
  %274 = vmatprep.subr.bf16.mxu0 0
  %275 = vmatpush2.bf16.msra.mxu0 0
  %276 = vmatprep.mubr.bf16.mxu0 0
  %277 = vmatmul.mubr.bf16.gmra.mxu0 %v242
  %v278 = vpop.f32.mrf.mxu0
  %v279 = vadd.f32 0.0, %v278
  %v280 = vpop.f32.mrf.mxu0
  %v281 = vpop.f32.mrf.mxu0
  %v282 = vpop.f32.mrf.mxu0
  %283 = vdwg.mxu0
  %v284 = vadd.f32 %v227, %v279
  %v285 = vxor.u32 %v284, 2147483648
  %v286 = vmul.f32 %v285, 1.442695
  %v287 = vpow.pop %v286
  %v288 = vadd.f32 %v287, 1.0
  %v289 = vrcp.pop %v288
  %v290 = vmul.f32 1.0, %v289
  %v291 = vtanh.pop %v284
  %v292 = vmul.f32 %v290, 0.0
  %294 = vrot.lane.b32.xlu0 %v291, 64
  %v295 = vpop.permute.xlu0 %294
  %v297 = vmul.f32 %v290, %v295
  %299 = vrot.lane.b32.xlu0 %v297, 32
  %v300 = vpop.permute.xlu0 %299
  %v302 = vadd.f32 %v292, %v300
  %v303 = vtanh.pop %v302
  %305 = vrot.lane.b32.xlu0 %v303, 64
  %v306 = vpop.permute.xlu0 %305
  %v308 = vmul.f32 %v290, %v306
  %vm309 = vcmp.gt.f32.partialorder %v228, 0.0
  %v310 = vsel %vm309, 1, 0
  %311 = vset.pattern.permute.xlu0 0
  %312 = vperm.xlu0 %311, %v310
  %v313 = vpop.permute.xlu0 %312
  %vm314 = vcmp.eq.s32.totalorder %v313, 1
  %v315 = vsel %vm314, %v308, 0.0
  %v316 = vsel %vm314, %v302, 0.0
  %318 = vrot.lane.b32.xlu0 %v315, 32
  %v319 = vpop.permute.xlu0 %318
  %321 = vst.msk [vmem:[%s14] sm:$0xff] %vm122, %v319
  %s322 = smul.u32 7, 2
  %s323 = smul.addr %s322, 8
  %s324 = scalar_lea.vmem [#allocation2], %s323
  %v325 = vld [vmem:[%s324 + $0x8] sm:$0xff]
  %s326 = scalar_lea.vmem %s1, 56
  %v327 = vld [vmem:[%s326] sm:$0xff]
  %v332 = vunpack.c.l.b16 %v55
  %v333 = vunpack.c.l.b16 %v56
  %v334 = vunpack.c.l.b16 %v57
  %v335 = vunpack.c.l.b16 %v58
  %v336 = vpack.c.b16 %v333, %v332
  %v337 = vpack.c.b16 %v335, %v334
  %340 = vmatprep.subr.bf16.mxu0 0
  %341 = vmatpush1.bf16.msra.mxu0 0
  %342 = vmatprep.subr.bf16.mxu0 0
  %343 = vmatpush1.bf16.msra.mxu0 0
  %344 = vmatprep.subr.bf16.mxu0 0
  %345 = vmatpush1.bf16.msra.mxu0 0
  %346 = vmatprep.subr.bf16.mxu0 0
  %347 = vmatpush1.bf16.msra.mxu0 0
  %348 = vmatprep.subr.bf16.mxu0 0
  %349 = vmatpush1.bf16.msra.mxu0 0
  %350 = vmatprep.subr.bf16.mxu0 0
  %351 = vmatpush1.bf16.msra.mxu0 0
  %352 = vmatprep.subr.bf16.mxu0 0
  %353 = vmatpush1.bf16.msra.mxu0 %v337
  %354 = vmatprep.subr.bf16.mxu0 0
  %355 = vmatpush1.bf16.msra.mxu0 %v336
  %356 = vmatprep.subr.bf16.mxu0 0
  %357 = vmatpush2.bf16.msra.mxu0 0
  %358 = vmatprep.subr.bf16.mxu0 0
  %359 = vmatpush2.bf16.msra.mxu0 0
  %360 = vmatprep.subr.bf16.mxu0 0
  %361 = vmatpush2.bf16.msra.mxu0 0
  %362 = vmatprep.subr.bf16.mxu0 0
  %363 = vmatpush2.bf16.msra.mxu0 0
  %364 = vmatprep.subr.bf16.mxu0 0
  %365 = vmatpush2.bf16.msra.mxu0 0
  %366 = vmatprep.subr.bf16.mxu0 0
  %367 = vmatpush2.bf16.msra.mxu0 0
  %368 = vmatprep.subr.bf16.mxu0 0
  %369 = vmatpush2.bf16.msra.mxu0 0
  %370 = vmatprep.subr.bf16.mxu0 0
  %371 = vmatpush2.bf16.msra.mxu0 0
  %372 = vmatprep.mubr.bf16.mxu0 0
  %373 = vmatmul.mubr.bf16.gmra.mxu0 %v242
  %v374 = vpop.f32.mrf.mxu0
  %v375 = vadd.f32 0.0, %v374
  %v376 = vpop.f32.mrf.mxu0
  %v377 = vpop.f32.mrf.mxu0
  %v378 = vpop.f32.mrf.mxu0
  %379 = vdwg.mxu0
  %v380 = vadd.f32 %v325, %v375
  %v381 = vxor.u32 %v380, 2147483648
  %v382 = vmul.f32 %v381, 1.442695
  %v383 = vpow.pop %v382
  %v384 = vadd.f32 %v383, 1.0
  %v385 = vrcp.pop %v384
  %v386 = vmul.f32 1.0, %v385
  %v387 = vtanh.pop %v380
  %v388 = vmul.f32 %v386, 0.0
  %390 = vrot.lane.b32.xlu0 %v387, 64
  %v391 = vpop.permute.xlu0 %390
  %v393 = vmul.f32 %v386, %v391
  %395 = vrot.lane.b32.xlu0 %v393, 32
  %v396 = vpop.permute.xlu0 %395
  %v398 = vadd.f32 %v388, %v396
  %v399 = vtanh.pop %v398
  %401 = vrot.lane.b32.xlu0 %v399, 64
  %v402 = vpop.permute.xlu0 %401
  %v404 = vmul.f32 %v386, %v402
  %vm405 = vcmp.gt.f32.partialorder %v327, 0.0
  %v406 = vsel %vm405, 1, 0
  %407 = vset.pattern.permute.xlu0 0
  %408 = vperm.xlu0 %407, %v406
  %v409 = vpop.permute.xlu0 %408
  %vm410 = vcmp.eq.s32.totalorder %v409, 1
  %v411 = vsel %vm410, %v404, 0.0
  %v412 = vsel %vm410, %v398, 0.0
  %414 = vrot.lane.b32.xlu0 %v411, 32
  %v415 = vpop.permute.xlu0 %414
  %s417 = scalar_lea.vmem %s15, 56
  %418 = vst.msk [vmem:[%s417] sm:$0xff] %vm122, %v415
  %s419 = smul.u32 1, 2
  %s420 = smul.addr %s419, 8
  %s421 = scalar_lea.vmem [#allocation2], %s420
  %v422 = vld [vmem:[%s421] sm:$0xff]
  %s423 = scalar_lea.vmem %s1, 8
  %v424 = vld [vmem:[%s423] sm:$0xff]
  %v425 = vpack.c.bf16 %v315, %v315
  %427 = vrot.lane.b32.xlu0 %v425, 32
  %v428 = vpop.permute.xlu0 %427
  %v430 = vsel %vm122, %v428, 0
  %432 = vmatprep.subr.bf16.mxu0 0
  %433 = vmatpush1.bf16.msra.mxu0 0
  %434 = vmatprep.subr.bf16.mxu0 0
  %435 = vmatpush1.bf16.msra.mxu0 0
  %436 = vmatprep.subr.bf16.mxu0 0
  %437 = vmatpush1.bf16.msra.mxu0 0
  %438 = vmatprep.subr.bf16.mxu0 0
  %439 = vmatpush1.bf16.msra.mxu0 0
  %440 = vmatprep.subr.bf16.mxu0 0
  %441 = vmatpush1.bf16.msra.mxu0 0
  %442 = vmatprep.subr.bf16.mxu0 0
  %443 = vmatpush1.bf16.msra.mxu0 0
  %444 = vmatprep.subr.bf16.mxu0 0
  %445 = vmatpush1.bf16.msra.mxu0 %v238
  %446 = vmatprep.subr.bf16.mxu0 0
  %447 = vmatpush1.bf16.msra.mxu0 %v237
  %448 = vmatprep.subr.bf16.mxu0 0
  %449 = vmatpush2.bf16.msra.mxu0 0
  %450 = vmatprep.subr.bf16.mxu0 0
  %451 = vmatpush2.bf16.msra.mxu0 0
  %452 = vmatprep.subr.bf16.mxu0 0
  %453 = vmatpush2.bf16.msra.mxu0 0
  %454 = vmatprep.subr.bf16.mxu0 0
  %455 = vmatpush2.bf16.msra.mxu0 0
  %456 = vmatprep.subr.bf16.mxu0 0
  %457 = vmatpush2.bf16.msra.mxu0 0
  %458 = vmatprep.subr.bf16.mxu0 0
  %459 = vmatpush2.bf16.msra.mxu0 0
  %460 = vmatprep.subr.bf16.mxu0 0
  %461 = vmatpush2.bf16.msra.mxu0 0
  %462 = vmatprep.subr.bf16.mxu0 0
  %463 = vmatpush2.bf16.msra.mxu0 0
  %464 = vmatprep.mubr.bf16.mxu0 0
  %465 = vmatmul.mubr.bf16.gmra.mxu0 %v430
  %v466 = vpop.f32.mrf.mxu0
  %v467 = vadd.f32 0.0, %v466
  %v468 = vpop.f32.mrf.mxu0
  %v469 = vpop.f32.mrf.mxu0
  %v470 = vpop.f32.mrf.mxu0
  %471 = vdwg.mxu0
  %v472 = vadd.f32 %v422, %v467
  %v473 = vxor.u32 %v472, 2147483648
  %v474 = vmul.f32 %v473, 1.442695
  %v475 = vpow.pop %v474
  %v476 = vadd.f32 %v475, 1.0
  %v477 = vrcp.pop %v476
  %v478 = vmul.f32 1.0, %v477
  %v479 = vtanh.pop %v472
  %v480 = vmul.f32 %v478, %v316
  %482 = vrot.lane.b32.xlu0 %v479, 64
  %v483 = vpop.permute.xlu0 %482
  %v485 = vmul.f32 %v478, %v483
  %487 = vrot.lane.b32.xlu0 %v485, 32
  %v488 = vpop.permute.xlu0 %487
  %v490 = vadd.f32 %v480, %v488
  %v491 = vtanh.pop %v490
  %493 = vrot.lane.b32.xlu0 %v491, 64
  %v494 = vpop.permute.xlu0 %493
  %v496 = vmul.f32 %v478, %v494
  %vm497 = vcmp.gt.f32.partialorder %v424, 0.0
  %v498 = vsel %vm497, 1, 0
  %499 = vset.pattern.permute.xlu0 0
  %500 = vperm.xlu0 %499, %v498
  %v501 = vpop.permute.xlu0 %500
  %vm502 = vcmp.eq.s32.totalorder %v501, 1
  %v503 = vsel %vm502, %v496, %v315
  %v504 = vsel %vm502, %v490, %v316
  %v505 = vsel %vm502, %v496, 0.0
  %507 = vrot.lane.b32.xlu0 %v505, 32
  %v508 = vpop.permute.xlu0 %507
  %s510 = scalar_lea.vmem %s14, 8
  %511 = vst.msk [vmem:[%s510] sm:$0xff] %vm122, %v508
  %s512 = smul.u32 6, 2
  %s513 = smul.addr %s512, 8
  %s514 = scalar_lea.vmem [#allocation2], %s513
  %v515 = vld [vmem:[%s514 + $0x8] sm:$0xff]
  %s516 = scalar_lea.vmem %s1, 48
  %v517 = vld [vmem:[%s516] sm:$0xff]
  %v518 = vpack.c.bf16 %v411, %v411
  %520 = vrot.lane.b32.xlu0 %v518, 32
  %v521 = vpop.permute.xlu0 %520
  %v523 = vsel %vm122, %v521, 0
  %525 = vmatprep.subr.bf16.mxu0 0
  %526 = vmatpush1.bf16.msra.mxu0 0
  %527 = vmatprep.subr.bf16.mxu0 0
  %528 = vmatpush1.bf16.msra.mxu0 0
  %529 = vmatprep.subr.bf16.mxu0 0
  %530 = vmatpush1.bf16.msra.mxu0 0
  %531 = vmatprep.subr.bf16.mxu0 0
  %532 = vmatpush1.bf16.msra.mxu0 0
  %533 = vmatprep.subr.bf16.mxu0 0
  %534 = vmatpush1.bf16.msra.mxu0 0
  %535 = vmatprep.subr.bf16.mxu0 0
  %536 = vmatpush1.bf16.msra.mxu0 0
  %537 = vmatprep.subr.bf16.mxu0 0
  %538 = vmatpush1.bf16.msra.mxu0 %v337
  %539 = vmatprep.subr.bf16.mxu0 0
  %540 = vmatpush1.bf16.msra.mxu0 %v336
  %541 = vmatprep.subr.bf16.mxu0 0
  %542 = vmatpush2.bf16.msra.mxu0 0
  %543 = vmatprep.subr.bf16.mxu0 0
  %544 = vmatpush2.bf16.msra.mxu0 0
  %545 = vmatprep.subr.bf16.mxu0 0
  %546 = vmatpush2.bf16.msra.mxu0 0
  %547 = vmatprep.subr.bf16.mxu0 0
  %548 = vmatpush2.bf16.msra.mxu0 0
  %549 = vmatprep.subr.bf16.mxu0 0
  %550 = vmatpush2.bf16.msra.mxu0 0
  %551 = vmatprep.subr.bf16.mxu0 0
  %552 = vmatpush2.bf16.msra.mxu0 0
  %553 = vmatprep.subr.bf16.mxu0 0
  %554 = vmatpush2.bf16.msra.mxu0 0
  %555 = vmatprep.subr.bf16.mxu0 0
  %556 = vmatpush2.bf16.msra.mxu0 0
  %557 = vmatprep.mubr.bf16.mxu0 0
  %558 = vmatmul.mubr.bf16.gmra.mxu0 %v523
  %v559 = vpop.f32.mrf.mxu0
  %v560 = vadd.f32 0.0, %v559
  %v561 = vpop.f32.mrf.mxu0
  %v562 = vpop.f32.mrf.mxu0
  %v563 = vpop.f32.mrf.mxu0
  %564 = vdwg.mxu0
  %v565 = vadd.f32 %v515, %v560
  %v566 = vxor.u32 %v565, 2147483648
  %v567 = vmul.f32 %v566, 1.442695
  %v568 = vpow.pop %v567
  %v569 = vadd.f32 %v568, 1.0
  %v570 = vrcp.pop %v569
  %v571 = vmul.f32 1.0, %v570
  %v572 = vtanh.pop %v565
  %v573 = vmul.f32 %v571, %v412
  %575 = vrot.lane.b32.xlu0 %v572, 64
  %v576 = vpop.permute.xlu0 %575
  %v578 = vmul.f32 %v571, %v576
  %580 = vrot.lane.b32.xlu0 %v578, 32
  %v581 = vpop.permute.xlu0 %580
  %v583 = vadd.f32 %v573, %v581
  %v584 = vtanh.pop %v583
  %586 = vrot.lane.b32.xlu0 %v584, 64
  %v587 = vpop.permute.xlu0 %586
  %v589 = vmul.f32 %v571, %v587
  %vm590 = vcmp.gt.f32.partialorder %v517, 0.0
  %v591 = vsel %vm590, 1, 0
  %592 = vset.pattern.permute.xlu0 0
  %593 = vperm.xlu0 %592, %v591
  %v594 = vpop.permute.xlu0 %593
  %vm595 = vcmp.eq.s32.totalorder %v594, 1
  %v596 = vsel %vm595, %v589, %v411
  %v597 = vsel %vm595, %v583, %v412
  %v598 = vsel %vm595, %v589, 0.0
  %600 = vrot.lane.b32.xlu0 %v598, 32
  %v601 = vpop.permute.xlu0 %600
  %s603 = scalar_lea.vmem %s15, 48
  %604 = vst.msk [vmem:[%s603] sm:$0xff] %vm122, %v601
  %s605 = smul.u32 2, 2
  %s606 = smul.addr %s605, 8
  %s607 = scalar_lea.vmem [#allocation2], %s606
  %v608 = vld [vmem:[%s607] sm:$0xff]
  %s609 = scalar_lea.vmem %s1, 16
  %v610 = vld [vmem:[%s609] sm:$0xff]
  %v611 = vpack.c.bf16 %v503, %v503
  %613 = vrot.lane.b32.xlu0 %v611, 32
  %v614 = vpop.permute.xlu0 %613
  %v616 = vsel %vm122, %v614, 0
  %618 = vmatprep.subr.bf16.mxu0 0
  %619 = vmatpush1.bf16.msra.mxu0 0
  %620 = vmatprep.subr.bf16.mxu0 0
  %621 = vmatpush1.bf16.msra.mxu0 0
  %622 = vmatprep.subr.bf16.mxu0 0
  %623 = vmatpush1.bf16.msra.mxu0 0
  %624 = vmatprep.subr.bf16.mxu0 0
  %625 = vmatpush1.bf16.msra.mxu0 0
  %626 = vmatprep.subr.bf16.mxu0 0
  %627 = vmatpush1.bf16.msra.mxu0 0
  %628 = vmatprep.subr.bf16.mxu0 0
  %629 = vmatpush1.bf16.msra.mxu0 0
  %630 = vmatprep.subr.bf16.mxu0 0
  %631 = vmatpush1.bf16.msra.mxu0 %v238
  %632 = vmatprep.subr.bf16.mxu0 0
  %633 = vmatpush1.bf16.msra.mxu0 %v237
  %634 = vmatprep.subr.bf16.mxu0 0
  %635 = vmatpush2.bf16.msra.mxu0 0
  %636 = vmatprep.subr.bf16.mxu0 0
  %637 = vmatpush2.bf16.msra.mxu0 0
  %638 = vmatprep.subr.bf16.mxu0 0
  %639 = vmatpush2.bf16.msra.mxu0 0
  %640 = vmatprep.subr.bf16.mxu0 0
  %641 = vmatpush2.bf16.msra.mxu0 0
  %642 = vmatprep.subr.bf16.mxu0 0
  %643 = vmatpush2.bf16.msra.mxu0 0
  %644 = vmatprep.subr.bf16.mxu0 0
  %645 = vmatpush2.bf16.msra.mxu0 0
  %646 = vmatprep.subr.bf16.mxu0 0
  %647 = vmatpush2.bf16.msra.mxu0 0
  %648 = vmatprep.subr.bf16.mxu0 0
  %649 = vmatpush2.bf16.msra.mxu0 0
  %650 = vmatprep.mubr.bf16.mxu0 0
  %651 = vmatmul.mubr.bf16.gmra.mxu0 %v616
  %v652 = vpop.f32.mrf.mxu0
  %v653 = vadd.f32 0.0, %v652
  %v654 = vpop.f32.mrf.mxu0
  %v655 = vpop.f32.mrf.mxu0
  %v656 = vpop.f32.mrf.mxu0
  %657 = vdwg.mxu0
  %v658 = vadd.f32 %v608, %v653
  %v659 = vxor.u32 %v658, 2147483648
  %v660 = vmul.f32 %v659, 1.442695
  %v661 = vpow.pop %v660
  %v662 = vadd.f32 %v661, 1.0
  %v663 = vrcp.pop %v662
  %v664 = vmul.f32 1.0, %v663
  %v665 = vtanh.pop %v658
  %v666 = vmul.f32 %v664, %v504
  %668 = vrot.lane.b32.xlu0 %v665, 64
  %v669 = vpop.permute.xlu0 %668
  %v671 = vmul.f32 %v664, %v669
  %673 = vrot.lane.b32.xlu0 %v671, 32
  %v674 = vpop.permute.xlu0 %673
  %v676 = vadd.f32 %v666, %v674
  %v677 = vtanh.pop %v676
  %679 = vrot.lane.b32.xlu0 %v677, 64
  %v680 = vpop.permute.xlu0 %679
  %v682 = vmul.f32 %v664, %v680
  %vm683 = vcmp.gt.f32.partialorder %v610, 0.0
  %v684 = vsel %vm683, 1, 0
  %685 = vset.pattern.permute.xlu0 0
  %686 = vperm.xlu0 %685, %v684
  %v687 = vpop.permute.xlu0 %686
  %vm688 = vcmp.eq.s32.totalorder %v687, 1
  %v689 = vsel %vm688, %v682, %v503
  %v690 = vsel %vm688, %v676, %v504
  %v691 = vsel %vm688, %v682, 0.0
  %693 = vrot.lane.b32.xlu0 %v691, 32
  %v694 = vpop.permute.xlu0 %693
  %s696 = scalar_lea.vmem %s14, 16
  %697 = vst.msk [vmem:[%s696] sm:$0xff] %vm122, %v694
  %s698 = smul.u32 5, 2
  %s699 = smul.addr %s698, 8
  %s700 = scalar_lea.vmem [#allocation2], %s699
  %v701 = vld [vmem:[%s700 + $0x8] sm:$0xff]
  %s702 = scalar_lea.vmem %s1, 40
  %v703 = vld [vmem:[%s702] sm:$0xff]
  %v704 = vpack.c.bf16 %v596, %v596
  %706 = vrot.lane.b32.xlu0 %v704, 32
  %v707 = vpop.permute.xlu0 %706
  %v709 = vsel %vm122, %v707, 0
  %711 = vmatprep.subr.bf16.mxu0 0
  %712 = vmatpush1.bf16.msra.mxu0 0
  %713 = vmatprep.subr.bf16.mxu0 0
  %714 = vmatpush1.bf16.msra.mxu0 0
  %715 = vmatprep.subr.bf16.mxu0 0
  %716 = vmatpush1.bf16.msra.mxu0 0
  %717 = vmatprep.subr.bf16.mxu0 0
  %718 = vmatpush1.bf16.msra.mxu0 0
  %719 = vmatprep.subr.bf16.mxu0 0
  %720 = vmatpush1.bf16.msra.mxu0 0
  %721 = vmatprep.subr.bf16.mxu0 0
  %722 = vmatpush1.bf16.msra.mxu0 0
  %723 = vmatprep.subr.bf16.mxu0 0
  %724 = vmatpush1.bf16.msra.mxu0 %v337
  %725 = vmatprep.subr.bf16.mxu0 0
  %726 = vmatpush1.bf16.msra.mxu0 %v336
  %727 = vmatprep.subr.bf16.mxu0 0
  %728 = vmatpush2.bf16.msra.mxu0 0
  %729 = vmatprep.subr.bf16.mxu0 0
  %730 = vmatpush2.bf16.msra.mxu0 0
  %731 = vmatprep.subr.bf16.mxu0 0
  %732 = vmatpush2.bf16.msra.mxu0 0
  %733 = vmatprep.subr.bf16.mxu0 0
  %734 = vmatpush2.bf16.msra.mxu0 0
  %735 = vmatprep.subr.bf16.mxu0 0
  %736 = vmatpush2.bf16.msra.mxu0 0
  %737 = vmatprep.subr.bf16.mxu0 0
  %738 = vmatpush2.bf16.msra.mxu0 0
  %739 = vmatprep.subr.bf16.mxu0 0
  %740 = vmatpush2.bf16.msra.mxu0 0
  %741 = vmatprep.subr.bf16.mxu0 0
  %742 = vmatpush2.bf16.msra.mxu0 0
  %743 = vmatprep.mubr.bf16.mxu0 0
  %744 = vmatmul.mubr.bf16.gmra.mxu0 %v709
  %v745 = vpop.f32.mrf.mxu0
  %v746 = vadd.f32 0.0, %v745
  %v747 = vpop.f32.mrf.mxu0
  %v748 = vpop.f32.mrf.mxu0
  %v749 = vpop.f32.mrf.mxu0
  %750 = vdwg.mxu0
  %v751 = vadd.f32 %v701, %v746
  %v752 = vxor.u32 %v751, 2147483648
  %v753 = vmul.f32 %v752, 1.442695
  %v754 = vpow.pop %v753
  %v755 = vadd.f32 %v754, 1.0
  %v756 = vrcp.pop %v755
  %v757 = vmul.f32 1.0, %v756
  %v758 = vtanh.pop %v751
  %v759 = vmul.f32 %v757, %v597
  %761 = vrot.lane.b32.xlu0 %v758, 64
  %v762 = vpop.permute.xlu0 %761
  %v764 = vmul.f32 %v757, %v762
  %766 = vrot.lane.b32.xlu0 %v764, 32
  %v767 = vpop.permute.xlu0 %766
  %v769 = vadd.f32 %v759, %v767
  %v770 = vtanh.pop %v769
  %772 = vrot.lane.b32.xlu0 %v770, 64
  %v773 = vpop.permute.xlu0 %772
  %v775 = vmul.f32 %v757, %v773
  %vm776 = vcmp.gt.f32.partialorder %v703, 0.0
  %v777 = vsel %vm776, 1, 0
  %778 = vset.pattern.permute.xlu0 0
  %779 = vperm.xlu0 %778, %v777
  %v780 = vpop.permute.xlu0 %779
  %vm781 = vcmp.eq.s32.totalorder %v780, 1
  %v782 = vsel %vm781, %v775, %v596
  %v783 = vsel %vm781, %v769, %v597
  %v784 = vsel %vm781, %v775, 0.0
  %786 = vrot.lane.b32.xlu0 %v784, 32
  %v787 = vpop.permute.xlu0 %786
  %s789 = scalar_lea.vmem %s15, 40
  %790 = vst.msk [vmem:[%s789] sm:$0xff] %vm122, %v787
  %s791 = smul.u32 3, 2
  %s792 = smul.addr %s791, 8
  %s793 = scalar_lea.vmem [#allocation2], %s792
  %v794 = vld [vmem:[%s793] sm:$0xff]
  %s795 = scalar_lea.vmem %s1, 24
  %v796 = vld [vmem:[%s795] sm:$0xff]
  %v797 = vpack.c.bf16 %v689, %v689
  %799 = vrot.lane.b32.xlu0 %v797, 32
  %v800 = vpop.permute.xlu0 %799
  %v802 = vsel %vm122, %v800, 0
  %804 = vmatprep.subr.bf16.mxu0 0
  %805 = vmatpush1.bf16.msra.mxu0 0
  %806 = vmatprep.subr.bf16.mxu0 0
  %807 = vmatpush1.bf16.msra.mxu0 0
  %808 = vmatprep.subr.bf16.mxu0 0
  %809 = vmatpush1.bf16.msra.mxu0 0
  %810 = vmatprep.subr.bf16.mxu0 0
  %811 = vmatpush1.bf16.msra.mxu0 0
  %812 = vmatprep.subr.bf16.mxu0 0
  %813 = vmatpush1.bf16.msra.mxu0 0
  %814 = vmatprep.subr.bf16.mxu0 0
  %815 = vmatpush1.bf16.msra.mxu0 0
  %816 = vmatprep.subr.bf16.mxu0 0
  %817 = vmatpush1.bf16.msra.mxu0 %v238
  %818 = vmatprep.subr.bf16.mxu0 0
  %819 = vmatpush1.bf16.msra.mxu0 %v237
  %820 = vmatprep.subr.bf16.mxu0 0
  %821 = vmatpush2.bf16.msra.mxu0 0
  %822 = vmatprep.subr.bf16.mxu0 0
  %823 = vmatpush2.bf16.msra.mxu0 0
  %824 = vmatprep.subr.bf16.mxu0 0
  %825 = vmatpush2.bf16.msra.mxu0 0
  %826 = vmatprep.subr.bf16.mxu0 0
  %827 = vmatpush2.bf16.msra.mxu0 0
  %828 = vmatprep.subr.bf16.mxu0 0
  %829 = vmatpush2.bf16.msra.mxu0 0
  %830 = vmatprep.subr.bf16.mxu0 0
  %831 = vmatpush2.bf16.msra.mxu0 0
  %832 = vmatprep.subr.bf16.mxu0 0
  %833 = vmatpush2.bf16.msra.mxu0 0
  %834 = vmatprep.subr.bf16.mxu0 0
  %835 = vmatpush2.bf16.msra.mxu0 0
  %836 = vmatprep.mubr.bf16.mxu0 0
  %837 = vmatmul.mubr.bf16.gmra.mxu0 %v802
  %v838 = vpop.f32.mrf.mxu0
  %v839 = vadd.f32 0.0, %v838
  %v840 = vpop.f32.mrf.mxu0
  %v841 = vpop.f32.mrf.mxu0
  %v842 = vpop.f32.mrf.mxu0
  %843 = vdwg.mxu0
  %v844 = vadd.f32 %v794, %v839
  %v845 = vxor.u32 %v844, 2147483648
  %v846 = vmul.f32 %v845, 1.442695
  %v847 = vpow.pop %v846
  %v848 = vadd.f32 %v847, 1.0
  %v849 = vrcp.pop %v848
  %v850 = vmul.f32 1.0, %v849
  %v851 = vtanh.pop %v844
  %v852 = vmul.f32 %v850, %v690
  %854 = vrot.lane.b32.xlu0 %v851, 64
  %v855 = vpop.permute.xlu0 %854
  %v857 = vmul.f32 %v850, %v855
  %859 = vrot.lane.b32.xlu0 %v857, 32
  %v860 = vpop.permute.xlu0 %859
  %v862 = vadd.f32 %v852, %v860
  %v863 = vtanh.pop %v862
  %865 = vrot.lane.b32.xlu0 %v863, 64
  %v866 = vpop.permute.xlu0 %865
  %v868 = vmul.f32 %v850, %v866
  %vm869 = vcmp.gt.f32.partialorder %v796, 0.0
  %v870 = vsel %vm869, 1, 0
  %871 = vset.pattern.permute.xlu0 0
  %872 = vperm.xlu0 %871, %v870
  %v873 = vpop.permute.xlu0 %872
  %vm874 = vcmp.eq.s32.totalorder %v873, 1
  %v875 = vsel %vm874, %v868, %v689
  %v876 = vsel %vm874, %v862, %v690
  %v877 = vsel %vm874, %v868, 0.0
  %879 = vrot.lane.b32.xlu0 %v877, 32
  %v880 = vpop.permute.xlu0 %879
  %s882 = scalar_lea.vmem %s14, 24
  %883 = vst.msk [vmem:[%s882] sm:$0xff] %vm122, %v880
  %s884 = smul.u32 4, 2
  %s885 = smul.addr %s884, 8
  %s886 = scalar_lea.vmem [#allocation2], %s885
  %v887 = vld [vmem:[%s886 + $0x8] sm:$0xff]
  %s888 = scalar_lea.vmem %s1, 32
  %v889 = vld [vmem:[%s888] sm:$0xff]
  %v890 = vpack.c.bf16 %v782, %v782
  %892 = vrot.lane.b32.xlu0 %v890, 32
  %v893 = vpop.permute.xlu0 %892
  %v895 = vsel %vm122, %v893, 0
  %897 = vmatprep.subr.bf16.mxu0 0
  %898 = vmatpush1.bf16.msra.mxu0 0
  %899 = vmatprep.subr.bf16.mxu0 0
  %900 = vmatpush1.bf16.msra.mxu0 0
  %901 = vmatprep.subr.bf16.mxu0 0
  %902 = vmatpush1.bf16.msra.mxu0 0
  %903 = vmatprep.subr.bf16.mxu0 0
  %904 = vmatpush1.bf16.msra.mxu0 0
  %905 = vmatprep.subr.bf16.mxu0 0
  %906 = vmatpush1.bf16.msra.mxu0 0
  %907 = vmatprep.subr.bf16.mxu0 0
  %908 = vmatpush1.bf16.msra.mxu0 0
  %909 = vmatprep.subr.bf16.mxu0 0
  %910 = vmatpush1.bf16.msra.mxu0 %v337
  %911 = vmatprep.subr.bf16.mxu0 0
  %912 = vmatpush1.bf16.msra.mxu0 %v336
  %913 = vmatprep.subr.bf16.mxu0 0
  %914 = vmatpush2.bf16.msra.mxu0 0
  %915 = vmatprep.subr.bf16.mxu0 0
  %916 = vmatpush2.bf16.msra.mxu0 0
  %917 = vmatprep.subr.bf16.mxu0 0
  %918 = vmatpush2.bf16.msra.mxu0 0
  %919 = vmatprep.subr.bf16.mxu0 0
  %920 = vmatpush2.bf16.msra.mxu0 0
  %921 = vmatprep.subr.bf16.mxu0 0
  %922 = vmatpush2.bf16.msra.mxu0 0
  %923 = vmatprep.subr.bf16.mxu0 0
  %924 = vmatpush2.bf16.msra.mxu0 0
  %925 = vmatprep.subr.bf16.mxu0 0
  %926 = vmatpush2.bf16.msra.mxu0 0
  %927 = vmatprep.subr.bf16.mxu0 0
  %928 = vmatpush2.bf16.msra.mxu0 0
  %929 = vmatprep.mubr.bf16.mxu0 0
  %930 = vmatmul.mubr.bf16.gmra.mxu0 %v895
  %v931 = vpop.f32.mrf.mxu0
  %v932 = vadd.f32 0.0, %v931
  %v933 = vpop.f32.mrf.mxu0
  %v934 = vpop.f32.mrf.mxu0
  %v935 = vpop.f32.mrf.mxu0
  %936 = vdwg.mxu0
  %v937 = vadd.f32 %v887, %v932
  %v938 = vxor.u32 %v937, 2147483648
  %v939 = vmul.f32 %v938, 1.442695
  %v940 = vpow.pop %v939
  %v941 = vadd.f32 %v940, 1.0
  %v942 = vrcp.pop %v941
  %v943 = vmul.f32 1.0, %v942
  %v944 = vtanh.pop %v937
  %v945 = vmul.f32 %v943, %v783
  %947 = vrot.lane.b32.xlu0 %v944, 64
  %v948 = vpop.permute.xlu0 %947
  %v950 = vmul.f32 %v943, %v948
  %952 = vrot.lane.b32.xlu0 %v950, 32
  %v953 = vpop.permute.xlu0 %952
  %v955 = vadd.f32 %v945, %v953
  %v956 = vtanh.pop %v955
  %958 = vrot.lane.b32.xlu0 %v956, 64
  %v959 = vpop.permute.xlu0 %958
  %v961 = vmul.f32 %v943, %v959
  %vm962 = vcmp.gt.f32.partialorder %v889, 0.0
  %v963 = vsel %vm962, 1, 0
  %964 = vset.pattern.permute.xlu0 0
  %965 = vperm.xlu0 %964, %v963
  %v966 = vpop.permute.xlu0 %965
  %vm967 = vcmp.eq.s32.totalorder %v966, 1
  %v968 = vsel %vm967, %v961, %v782
  %v969 = vsel %vm967, %v955, %v783
  %v970 = vsel %vm967, %v961, 0.0
  %972 = vrot.lane.b32.xlu0 %v970, 32
  %v973 = vpop.permute.xlu0 %972
  %s975 = scalar_lea.vmem %s15, 32
  %976 = vst.msk [vmem:[%s975] sm:$0xff] %vm122, %v973
  %v977 = vld [vmem:[%s886] sm:$0xff]
  %v978 = vld [vmem:[%s888] sm:$0xff]
  %v979 = vpack.c.bf16 %v875, %v875
  %981 = vrot.lane.b32.xlu0 %v979, 32
  %v982 = vpop.permute.xlu0 %981
  %v984 = vsel %vm122, %v982, 0
  %986 = vmatprep.subr.bf16.mxu0 0
  %987 = vmatpush1.bf16.msra.mxu0 0
  %988 = vmatprep.subr.bf16.mxu0 0
  %989 = vmatpush1.bf16.msra.mxu0 0
  %990 = vmatprep.subr.bf16.mxu0 0
  %991 = vmatpush1.bf16.msra.mxu0 0
  %992 = vmatprep.subr.bf16.mxu0 0
  %993 = vmatpush1.bf16.msra.mxu0 0
  %994 = vmatprep.subr.bf16.mxu0 0
  %995 = vmatpush1.bf16.msra.mxu0 0
  %996 = vmatprep.subr.bf16.mxu0 0
  %997 = vmatpush1.bf16.msra.mxu0 0
  %998 = vmatprep.subr.bf16.mxu0 0
  %999 = vmatpush1.bf16.msra.mxu0 %v238
  %1000 = vmatprep.subr.bf16.mxu0 0
  %1001 = vmatpush1.bf16.msra.mxu0 %v237
  %1002 = vmatprep.subr.bf16.mxu0 0
  %1003 = vmatpush2.bf16.msra.mxu0 0
  %1004 = vmatprep.subr.bf16.mxu0 0
  %1005 = vmatpush2.bf16.msra.mxu0 0
  %1006 = vmatprep.subr.bf16.mxu0 0
  %1007 = vmatpush2.bf16.msra.mxu0 0
  %1008 = vmatprep.subr.bf16.mxu0 0
  %1009 = vmatpush2.bf16.msra.mxu0 0
  %1010 = vmatprep.subr.bf16.mxu0 0
  %1011 = vmatpush2.bf16.msra.mxu0 0
  %1012 = vmatprep.subr.bf16.mxu0 0
  %1013 = vmatpush2.bf16.msra.mxu0 0
  %1014 = vmatprep.subr.bf16.mxu0 0
  %1015 = vmatpush2.bf16.msra.mxu0 0
  %1016 = vmatprep.subr.bf16.mxu0 0
  %1017 = vmatpush2.bf16.msra.mxu0 0
  %1018 = vmatprep.mubr.bf16.mxu0 0
  %1019 = vmatmul.mubr.bf16.gmra.mxu0 %v984
  %v1020 = vpop.f32.mrf.mxu0
  %v1021 = vadd.f32 0.0, %v1020
  %v1022 = vpop.f32.mrf.mxu0
  %v1023 = vpop.f32.mrf.mxu0
  %v1024 = vpop.f32.mrf.mxu0
  %1025 = vdwg.mxu0
  %v1026 = vadd.f32 %v977, %v1021
  %v1027 = vxor.u32 %v1026, 2147483648
  %v1028 = vmul.f32 %v1027, 1.442695
  %v1029 = vpow.pop %v1028
  %v1030 = vadd.f32 %v1029, 1.0
  %v1031 = vrcp.pop %v1030
  %v1032 = vmul.f32 1.0, %v1031
  %v1033 = vtanh.pop %v1026
  %v1034 = vmul.f32 %v1032, %v876
  %1036 = vrot.lane.b32.xlu0 %v1033, 64
  %v1037 = vpop.permute.xlu0 %1036
  %v1039 = vmul.f32 %v1032, %v1037
  %1041 = vrot.lane.b32.xlu0 %v1039, 32
  %v1042 = vpop.permute.xlu0 %1041
  %v1044 = vadd.f32 %v1034, %v1042
  %v1045 = vtanh.pop %v1044
  %1047 = vrot.lane.b32.xlu0 %v1045, 64
  %v1048 = vpop.permute.xlu0 %1047
  %v1050 = vmul.f32 %v1032, %v1048
  %vm1051 = vcmp.gt.f32.partialorder %v978, 0.0
  %v1052 = vsel %vm1051, 1, 0
  %1053 = vset.pattern.permute.xlu0 0
  %1054 = vperm.xlu0 %1053, %v1052
  %v1055 = vpop.permute.xlu0 %1054
  %vm1056 = vcmp.eq.s32.totalorder %v1055, 1
  %v1057 = vsel %vm1056, %v1050, %v875
  %v1058 = vsel %vm1056, %v1044, %v876
  %v1059 = vsel %vm1056, %v1050, 0.0
  %1061 = vrot.lane.b32.xlu0 %v1059, 32
  %v1062 = vpop.permute.xlu0 %1061
  %s1064 = scalar_lea.vmem %s14, 32
  %1065 = vst.msk [vmem:[%s1064] sm:$0xff] %vm122, %v1062
  %v1066 = vld [vmem:[%s793 + $0x8] sm:$0xff]
  %v1067 = vld [vmem:[%s795] sm:$0xff]
  %v1068 = vpack.c.bf16 %v968, %v968
  %1070 = vrot.lane.b32.xlu0 %v1068, 32
  %v1071 = vpop.permute.xlu0 %1070
  %v1073 = vsel %vm122, %v1071, 0
  %1075 = vmatprep.subr.bf16.mxu0 0
  %1076 = vmatpush1.bf16.msra.mxu0 0
  %1077 = vmatprep.subr.bf16.mxu0 0
  %1078 = vmatpush1.bf16.msra.mxu0 0
  %1079 = vmatprep.subr.bf16.mxu0 0
  %1080 = vmatpush1.bf16.msra.mxu0 0
  %1081 = vmatprep.subr.bf16.mxu0 0
  %1082 = vmatpush1.bf16.msra.mxu0 0
  %1083 = vmatprep.subr.bf16.mxu0 0
  %1084 = vmatpush1.bf16.msra.mxu0 0
  %1085 = vmatprep.subr.bf16.mxu0 0
  %1086 = vmatpush1.bf16.msra.mxu0 0
  %1087 = vmatprep.subr.bf16.mxu0 0
  %1088 = vmatpush1.bf16.msra.mxu0 %v337
  %1089 = vmatprep.subr.bf16.mxu0 0
  %1090 = vmatpush1.bf16.msra.mxu0 %v336
  %1091 = vmatprep.subr.bf16.mxu0 0
  %1092 = vmatpush2.bf16.msra.mxu0 0
  %1093 = vmatprep.subr.bf16.mxu0 0
  %1094 = vmatpush2.bf16.msra.mxu0 0
  %1095 = vmatprep.subr.bf16.mxu0 0
  %1096 = vmatpush2.bf16.msra.mxu0 0
  %1097 = vmatprep.subr.bf16.mxu0 0
  %1098 = vmatpush2.bf16.msra.mxu0 0
  %1099 = vmatprep.subr.bf16.mxu0 0
  %1100 = vmatpush2.bf16.msra.mxu0 0
  %1101 = vmatprep.subr.bf16.mxu0 0
  %1102 = vmatpush2.bf16.msra.mxu0 0
  %1103 = vmatprep.subr.bf16.mxu0 0
  %1104 = vmatpush2.bf16.msra.mxu0 0
  %1105 = vmatprep.subr.bf16.mxu0 0
  %1106 = vmatpush2.bf16.msra.mxu0 0
  %1107 = vmatprep.mubr.bf16.mxu0 0
  %1108 = vmatmul.mubr.bf16.gmra.mxu0 %v1073
  %v1109 = vpop.f32.mrf.mxu0
  %v1110 = vadd.f32 0.0, %v1109
  %v1111 = vpop.f32.mrf.mxu0
  %v1112 = vpop.f32.mrf.mxu0
  %v1113 = vpop.f32.mrf.mxu0
  %1114 = vdwg.mxu0
  %v1115 = vadd.f32 %v1066, %v1110
  %v1116 = vxor.u32 %v1115, 2147483648
  %v1117 = vmul.f32 %v1116, 1.442695
  %v1118 = vpow.pop %v1117
  %v1119 = vadd.f32 %v1118, 1.0
  %v1120 = vrcp.pop %v1119
  %v1121 = vmul.f32 1.0, %v1120
  %v1122 = vtanh.pop %v1115
  %v1123 = vmul.f32 %v1121, %v969
  %1125 = vrot.lane.b32.xlu0 %v1122, 64
  %v1126 = vpop.permute.xlu0 %1125
  %v1128 = vmul.f32 %v1121, %v1126
  %1130 = vrot.lane.b32.xlu0 %v1128, 32
  %v1131 = vpop.permute.xlu0 %1130
  %v1133 = vadd.f32 %v1123, %v1131
  %v1134 = vtanh.pop %v1133
  %1136 = vrot.lane.b32.xlu0 %v1134, 64
  %v1137 = vpop.permute.xlu0 %1136
  %v1139 = vmul.f32 %v1121, %v1137
  %vm1140 = vcmp.gt.f32.partialorder %v1067, 0.0
  %v1141 = vsel %vm1140, 1, 0
  %1142 = vset.pattern.permute.xlu0 0
  %1143 = vperm.xlu0 %1142, %v1141
  %v1144 = vpop.permute.xlu0 %1143
  %vm1145 = vcmp.eq.s32.totalorder %v1144, 1
  %v1146 = vsel %vm1145, %v1139, %v968
  %v1147 = vsel %vm1145, %v1133, %v969
  %v1148 = vsel %vm1145, %v1139, 0.0
  %1150 = vrot.lane.b32.xlu0 %v1148, 32
  %v1151 = vpop.permute.xlu0 %1150
  %s1153 = scalar_lea.vmem %s15, 24
  %1154 = vst.msk [vmem:[%s1153] sm:$0xff] %vm122, %v1151
  %v1155 = vld [vmem:[%s700] sm:$0xff]
  %v1156 = vld [vmem:[%s702] sm:$0xff]
  %v1157 = vpack.c.bf16 %v1057, %v1057
  %1159 = vrot.lane.b32.xlu0 %v1157, 32
  %v1160 = vpop.permute.xlu0 %1159
  %v1162 = vsel %vm122, %v1160, 0
  %1164 = vmatprep.subr.bf16.mxu0 0
  %1165 = vmatpush1.bf16.msra.mxu0 0
  %1166 = vmatprep.subr.bf16.mxu0 0
  %1167 = vmatpush1.bf16.msra.mxu0 0
  %1168 = vmatprep.subr.bf16.mxu0 0
  %1169 = vmatpush1.bf16.msra.mxu0 0
  %1170 = vmatprep.subr.bf16.mxu0 0
  %1171 = vmatpush1.bf16.msra.mxu0 0
  %1172 = vmatprep.subr.bf16.mxu0 0
  %1173 = vmatpush1.bf16.msra.mxu0 0
  %1174 = vmatprep.subr.bf16.mxu0 0
  %1175 = vmatpush1.bf16.msra.mxu0 0
  %1176 = vmatprep.subr.bf16.mxu0 0
  %1177 = vmatpush1.bf16.msra.mxu0 %v238
  %1178 = vmatprep.subr.bf16.mxu0 0
  %1179 = vmatpush1.bf16.msra.mxu0 %v237
  %1180 = vmatprep.subr.bf16.mxu0 0
  %1181 = vmatpush2.bf16.msra.mxu0 0
  %1182 = vmatprep.subr.bf16.mxu0 0
  %1183 = vmatpush2.bf16.msra.mxu0 0
  %1184 = vmatprep.subr.bf16.mxu0 0
  %1185 = vmatpush2.bf16.msra.mxu0 0
  %1186 = vmatprep.subr.bf16.mxu0 0
  %1187 = vmatpush2.bf16.msra.mxu0 0
  %1188 = vmatprep.subr.bf16.mxu0 0
  %1189 = vmatpush2.bf16.msra.mxu0 0
  %1190 = vmatprep.subr.bf16.mxu0 0
  %1191 = vmatpush2.bf16.msra.mxu0 0
  %1192 = vmatprep.subr.bf16.mxu0 0
  %1193 = vmatpush2.bf16.msra.mxu0 0
  %1194 = vmatprep.subr.bf16.mxu0 0
  %1195 = vmatpush2.bf16.msra.mxu0 0
  %1196 = vmatprep.mubr.bf16.mxu0 0
  %1197 = vmatmul.mubr.bf16.gmra.mxu0 %v1162
  %v1198 = vpop.f32.mrf.mxu0
  %v1199 = vadd.f32 0.0, %v1198
  %v1200 = vpop.f32.mrf.mxu0
  %v1201 = vpop.f32.mrf.mxu0
  %v1202 = vpop.f32.mrf.mxu0
  %1203 = vdwg.mxu0
  %v1204 = vadd.f32 %v1155, %v1199
  %v1205 = vxor.u32 %v1204, 2147483648
  %v1206 = vmul.f32 %v1205, 1.442695
  %v1207 = vpow.pop %v1206
  %v1208 = vadd.f32 %v1207, 1.0
  %v1209 = vrcp.pop %v1208
  %v1210 = vmul.f32 1.0, %v1209
  %v1211 = vtanh.pop %v1204
  %v1212 = vmul.f32 %v1210, %v1058
  %1214 = vrot.lane.b32.xlu0 %v1211, 64
  %v1215 = vpop.permute.xlu0 %1214
  %v1217 = vmul.f32 %v1210, %v1215
  %1219 = vrot.lane.b32.xlu0 %v1217, 32
  %v1220 = vpop.permute.xlu0 %1219
  %v1222 = vadd.f32 %v1212, %v1220
  %v1223 = vtanh.pop %v1222
  %1225 = vrot.lane.b32.xlu0 %v1223, 64
  %v1226 = vpop.permute.xlu0 %1225
  %v1228 = vmul.f32 %v1210, %v1226
  %vm1229 = vcmp.gt.f32.partialorder %v1156, 0.0
  %v1230 = vsel %vm1229, 1, 0
  %1231 = vset.pattern.permute.xlu0 0
  %1232 = vperm.xlu0 %1231, %v1230
  %v1233 = vpop.permute.xlu0 %1232
  %vm1234 = vcmp.eq.s32.totalorder %v1233, 1
  %v1235 = vsel %vm1234, %v1228, %v1057
  %v1236 = vsel %vm1234, %v1222, %v1058
  %v1237 = vsel %vm1234, %v1228, 0.0
  %1239 = vrot.lane.b32.xlu0 %v1237, 32
  %v1240 = vpop.permute.xlu0 %1239
  %s1242 = scalar_lea.vmem %s14, 40
  %1243 = vst.msk [vmem:[%s1242] sm:$0xff] %vm122, %v1240
  %v1244 = vld [vmem:[%s607 + $0x8] sm:$0xff]
  %v1245 = vld [vmem:[%s609] sm:$0xff]
  %v1246 = vpack.c.bf16 %v1146, %v1146
  %1248 = vrot.lane.b32.xlu0 %v1246, 32
  %v1249 = vpop.permute.xlu0 %1248
  %v1251 = vsel %vm122, %v1249, 0
  %1253 = vmatprep.subr.bf16.mxu0 0
  %1254 = vmatpush1.bf16.msra.mxu0 0
  %1255 = vmatprep.subr.bf16.mxu0 0
  %1256 = vmatpush1.bf16.msra.mxu0 0
  %1257 = vmatprep.subr.bf16.mxu0 0
  %1258 = vmatpush1.bf16.msra.mxu0 0
  %1259 = vmatprep.subr.bf16.mxu0 0
  %1260 = vmatpush1.bf16.msra.mxu0 0
  %1261 = vmatprep.subr.bf16.mxu0 0
  %1262 = vmatpush1.bf16.msra.mxu0 0
  %1263 = vmatprep.subr.bf16.mxu0 0
  %1264 = vmatpush1.bf16.msra.mxu0 0
  %1265 = vmatprep.subr.bf16.mxu0 0
  %1266 = vmatpush1.bf16.msra.mxu0 %v337
  %1267 = vmatprep.subr.bf16.mxu0 0
  %1268 = vmatpush1.bf16.msra.mxu0 %v336
  %1269 = vmatprep.subr.bf16.mxu0 0
  %1270 = vmatpush2.bf16.msra.mxu0 0
  %1271 = vmatprep.subr.bf16.mxu0 0
  %1272 = vmatpush2.bf16.msra.mxu0 0
  %1273 = vmatprep.subr.bf16.mxu0 0
  %1274 = vmatpush2.bf16.msra.mxu0 0
  %1275 = vmatprep.subr.bf16.mxu0 0
  %1276 = vmatpush2.bf16.msra.mxu0 0
  %1277 = vmatprep.subr.bf16.mxu0 0
  %1278 = vmatpush2.bf16.msra.mxu0 0
  %1279 = vmatprep.subr.bf16.mxu0 0
  %1280 = vmatpush2.bf16.msra.mxu0 0
  %1281 = vmatprep.subr.bf16.mxu0 0
  %1282 = vmatpush2.bf16.msra.mxu0 0
  %1283 = vmatprep.subr.bf16.mxu0 0
  %1284 = vmatpush2.bf16.msra.mxu0 0
  %1285 = vmatprep.mubr.bf16.mxu0 0
  %1286 = vmatmul.mubr.bf16.gmra.mxu0 %v1251
  %v1287 = vpop.f32.mrf.mxu0
  %v1288 = vadd.f32 0.0, %v1287
  %v1289 = vpop.f32.mrf.mxu0
  %v1290 = vpop.f32.mrf.mxu0
  %v1291 = vpop.f32.mrf.mxu0
  %1292 = vdwg.mxu0
  %v1293 = vadd.f32 %v1244, %v1288
  %v1294 = vxor.u32 %v1293, 2147483648
  %v1295 = vmul.f32 %v1294, 1.442695
  %v1296 = vpow.pop %v1295
  %v1297 = vadd.f32 %v1296, 1.0
  %v1298 = vrcp.pop %v1297
  %v1299 = vmul.f32 1.0, %v1298
  %v1300 = vtanh.pop %v1293
  %v1301 = vmul.f32 %v1299, %v1147
  %1303 = vrot.lane.b32.xlu0 %v1300, 64
  %v1304 = vpop.permute.xlu0 %1303
  %v1306 = vmul.f32 %v1299, %v1304
  %1308 = vrot.lane.b32.xlu0 %v1306, 32
  %v1309 = vpop.permute.xlu0 %1308
  %v1311 = vadd.f32 %v1301, %v1309
  %v1312 = vtanh.pop %v1311
  %1314 = vrot.lane.b32.xlu0 %v1312, 64
  %v1315 = vpop.permute.xlu0 %1314
  %v1317 = vmul.f32 %v1299, %v1315
  %vm1318 = vcmp.gt.f32.partialorder %v1245, 0.0
  %v1319 = vsel %vm1318, 1, 0
  %1320 = vset.pattern.permute.xlu0 0
  %1321 = vperm.xlu0 %1320, %v1319
  %v1322 = vpop.permute.xlu0 %1321
  %vm1323 = vcmp.eq.s32.totalorder %v1322, 1
  %v1324 = vsel %vm1323, %v1317, %v1146
  %v1325 = vsel %vm1323, %v1311, %v1147
  %v1326 = vsel %vm1323, %v1317, 0.0
  %1328 = vrot.lane.b32.xlu0 %v1326, 32
  %v1329 = vpop.permute.xlu0 %1328
  %s1331 = scalar_lea.vmem %s15, 16
  %1332 = vst.msk [vmem:[%s1331] sm:$0xff] %vm122, %v1329
  %v1333 = vld [vmem:[%s514] sm:$0xff]
  %v1334 = vld [vmem:[%s516] sm:$0xff]
  %v1335 = vpack.c.bf16 %v1235, %v1235
  %1337 = vrot.lane.b32.xlu0 %v1335, 32
  %v1338 = vpop.permute.xlu0 %1337
  %v1340 = vsel %vm122, %v1338, 0
  %1342 = vmatprep.subr.bf16.mxu0 0
  %1343 = vmatpush1.bf16.msra.mxu0 0
  %1344 = vmatprep.subr.bf16.mxu0 0
  %1345 = vmatpush1.bf16.msra.mxu0 0
  %1346 = vmatprep.subr.bf16.mxu0 0
  %1347 = vmatpush1.bf16.msra.mxu0 0
  %1348 = vmatprep.subr.bf16.mxu0 0
  %1349 = vmatpush1.bf16.msra.mxu0 0
  %1350 = vmatprep.subr.bf16.mxu0 0
  %1351 = vmatpush1.bf16.msra.mxu0 0
  %1352 = vmatprep.subr.bf16.mxu0 0
  %1353 = vmatpush1.bf16.msra.mxu0 0
  %1354 = vmatprep.subr.bf16.mxu0 0
  %1355 = vmatpush1.bf16.msra.mxu0 %v238
  %1356 = vmatprep.subr.bf16.mxu0 0
  %1357 = vmatpush1.bf16.msra.mxu0 %v237
  %1358 = vmatprep.subr.bf16.mxu0 0
  %1359 = vmatpush2.bf16.msra.mxu0 0
  %1360 = vmatprep.subr.bf16.mxu0 0
  %1361 = vmatpush2.bf16.msra.mxu0 0
  %1362 = vmatprep.subr.bf16.mxu0 0
  %1363 = vmatpush2.bf16.msra.mxu0 0
  %1364 = vmatprep.subr.bf16.mxu0 0
  %1365 = vmatpush2.bf16.msra.mxu0 0
  %1366 = vmatprep.subr.bf16.mxu0 0
  %1367 = vmatpush2.bf16.msra.mxu0 0
  %1368 = vmatprep.subr.bf16.mxu0 0
  %1369 = vmatpush2.bf16.msra.mxu0 0
  %1370 = vmatprep.subr.bf16.mxu0 0
  %1371 = vmatpush2.bf16.msra.mxu0 0
  %1372 = vmatprep.subr.bf16.mxu0 0
  %1373 = vmatpush2.bf16.msra.mxu0 0
  %1374 = vmatprep.mubr.bf16.mxu0 0
  %1375 = vmatmul.mubr.bf16.gmra.mxu0 %v1340
  %v1376 = vpop.f32.mrf.mxu0
  %v1377 = vadd.f32 0.0, %v1376
  %v1378 = vpop.f32.mrf.mxu0
  %v1379 = vpop.f32.mrf.mxu0
  %v1380 = vpop.f32.mrf.mxu0
  %1381 = vdwg.mxu0
  %v1382 = vadd.f32 %v1333, %v1377
  %v1383 = vxor.u32 %v1382, 2147483648
  %v1384 = vmul.f32 %v1383, 1.442695
  %v1385 = vpow.pop %v1384
  %v1386 = vadd.f32 %v1385, 1.0
  %v1387 = vrcp.pop %v1386
  %v1388 = vmul.f32 1.0, %v1387
  %v1389 = vtanh.pop %v1382
  %v1390 = vmul.f32 %v1388, %v1236
  %1392 = vrot.lane.b32.xlu0 %v1389, 64
  %v1393 = vpop.permute.xlu0 %1392
  %v1395 = vmul.f32 %v1388, %v1393
  %1397 = vrot.lane.b32.xlu0 %v1395, 32
  %v1398 = vpop.permute.xlu0 %1397
  %v1400 = vadd.f32 %v1390, %v1398
  %v1401 = vtanh.pop %v1400
  %1403 = vrot.lane.b32.xlu0 %v1401, 64
  %v1404 = vpop.permute.xlu0 %1403
  %v1406 = vmul.f32 %v1388, %v1404
  %vm1407 = vcmp.gt.f32.partialorder %v1334, 0.0
  %v1408 = vsel %vm1407, 1, 0
  %1409 = vset.pattern.permute.xlu0 0
  %1410 = vperm.xlu0 %1409, %v1408
  %v1411 = vpop.permute.xlu0 %1410
  %vm1412 = vcmp.eq.s32.totalorder %v1411, 1
  %v1413 = vsel %vm1412, %v1406, %v1235
  %v1414 = vsel %vm1412, %v1400, %v1236
  %v1415 = vsel %vm1412, %v1406, 0.0
  %1417 = vrot.lane.b32.xlu0 %v1415, 32
  %v1418 = vpop.permute.xlu0 %1417
  %s1420 = scalar_lea.vmem %s14, 48
  %1421 = vst.msk [vmem:[%s1420] sm:$0xff] %vm122, %v1418
  %v1422 = vld [vmem:[%s421 + $0x8] sm:$0xff]
  %v1423 = vld [vmem:[%s423] sm:$0xff]
  %v1424 = vpack.c.bf16 %v1324, %v1324
  %1426 = vrot.lane.b32.xlu0 %v1424, 32
  %v1427 = vpop.permute.xlu0 %1426
  %v1429 = vsel %vm122, %v1427, 0
  %1431 = vmatprep.subr.bf16.mxu0 0
  %1432 = vmatpush1.bf16.msra.mxu0 0
  %1433 = vmatprep.subr.bf16.mxu0 0
  %1434 = vmatpush1.bf16.msra.mxu0 0
  %1435 = vmatprep.subr.bf16.mxu0 0
  %1436 = vmatpush1.bf16.msra.mxu0 0
  %1437 = vmatprep.subr.bf16.mxu0 0
  %1438 = vmatpush1.bf16.msra.mxu0 0
  %1439 = vmatprep.subr.bf16.mxu0 0
  %1440 = vmatpush1.bf16.msra.mxu0 0
  %1441 = vmatprep.subr.bf16.mxu0 0
  %1442 = vmatpush1.bf16.msra.mxu0 0
  %1443 = vmatprep.subr.bf16.mxu0 0
  %1444 = vmatpush1.bf16.msra.mxu0 %v337
  %1445 = vmatprep.subr.bf16.mxu0 0
  %1446 = vmatpush1.bf16.msra.mxu0 %v336
  %1447 = vmatprep.subr.bf16.mxu0 0
  %1448 = vmatpush2.bf16.msra.mxu0 0
  %1449 = vmatprep.subr.bf16.mxu0 0
  %1450 = vmatpush2.bf16.msra.mxu0 0
  %1451 = vmatprep.subr.bf16.mxu0 0
  %1452 = vmatpush2.bf16.msra.mxu0 0
  %1453 = vmatprep.subr.bf16.mxu0 0
  %1454 = vmatpush2.bf16.msra.mxu0 0
  %1455 = vmatprep.subr.bf16.mxu0 0
  %1456 = vmatpush2.bf16.msra.mxu0 0
  %1457 = vmatprep.subr.bf16.mxu0 0
  %1458 = vmatpush2.bf16.msra.mxu0 0
  %1459 = vmatprep.subr.bf16.mxu0 0
  %1460 = vmatpush2.bf16.msra.mxu0 0
  %1461 = vmatprep.subr.bf16.mxu0 0
  %1462 = vmatpush2.bf16.msra.mxu0 0
  %1463 = vmatprep.mubr.bf16.mxu0 0
  %1464 = vmatmul.mubr.bf16.gmra.mxu0 %v1429
  %v1465 = vpop.f32.mrf.mxu0
  %v1466 = vadd.f32 0.0, %v1465
  %v1467 = vpop.f32.mrf.mxu0
  %v1468 = vpop.f32.mrf.mxu0
  %v1469 = vpop.f32.mrf.mxu0
  %1470 = vdwg.mxu0
  %v1471 = vadd.f32 %v1422, %v1466
  %v1472 = vxor.u32 %v1471, 2147483648
  %v1473 = vmul.f32 %v1472, 1.442695
  %v1474 = vpow.pop %v1473
  %v1475 = vadd.f32 %v1474, 1.0
  %v1476 = vrcp.pop %v1475
  %v1477 = vmul.f32 1.0, %v1476
  %v1478 = vtanh.pop %v1471
  %v1479 = vmul.f32 %v1477, %v1325
  %1481 = vrot.lane.b32.xlu0 %v1478, 64
  %v1482 = vpop.permute.xlu0 %1481
  %v1484 = vmul.f32 %v1477, %v1482
  %1486 = vrot.lane.b32.xlu0 %v1484, 32
  %v1487 = vpop.permute.xlu0 %1486
  %v1489 = vadd.f32 %v1479, %v1487
  %v1490 = vtanh.pop %v1489
  %1492 = vrot.lane.b32.xlu0 %v1490, 64
  %v1493 = vpop.permute.xlu0 %1492
  %v1495 = vmul.f32 %v1477, %v1493
  %vm1496 = vcmp.gt.f32.partialorder %v1423, 0.0
  %v1497 = vsel %vm1496, 1, 0
  %1498 = vset.pattern.permute.xlu0 0
  %1499 = vperm.xlu0 %1498, %v1497
  %v1500 = vpop.permute.xlu0 %1499
  %vm1501 = vcmp.eq.s32.totalorder %v1500, 1
  %v1502 = vsel %vm1501, %v1495, %v1324
  %v1503 = vsel %vm1501, %v1489, %v1325
  %v1504 = vsel %vm1501, %v1495, 0.0
  %1506 = vrot.lane.b32.xlu0 %v1504, 32
  %v1507 = vpop.permute.xlu0 %1506
  %s1509 = scalar_lea.vmem %s15, 8
  %1510 = vst.msk [vmem:[%s1509] sm:$0xff] %vm122, %v1507
  %v1511 = vld [vmem:[%s324] sm:$0xff]
  %v1512 = vld [vmem:[%s326] sm:$0xff]
  %v1513 = vpack.c.bf16 %v1413, %v1413
  %1515 = vrot.lane.b32.xlu0 %v1513, 32
  %v1516 = vpop.permute.xlu0 %1515
  %v1518 = vsel %vm122, %v1516, 0
  %1520 = vmatprep.subr.bf16.mxu0 0
  %1521 = vmatpush1.bf16.msra.mxu0 0
  %1522 = vmatprep.subr.bf16.mxu0 0
  %1523 = vmatpush1.bf16.msra.mxu0 0
  %1524 = vmatprep.subr.bf16.mxu0 0
  %1525 = vmatpush1.bf16.msra.mxu0 0
  %1526 = vmatprep.subr.bf16.mxu0 0
  %1527 = vmatpush1.bf16.msra.mxu0 0
  %1528 = vmatprep.subr.bf16.mxu0 0
  %1529 = vmatpush1.bf16.msra.mxu0 0
  %1530 = vmatprep.subr.bf16.mxu0 0
  %1531 = vmatpush1.bf16.msra.mxu0 0
  %1532 = vmatprep.subr.bf16.mxu0 0
  %1533 = vmatpush1.bf16.msra.mxu0 %v238
  %1534 = vmatprep.subr.bf16.mxu0 0
  %1535 = vmatpush1.bf16.msra.mxu0 %v237
  %1536 = vmatprep.subr.bf16.mxu0 0
  %1537 = vmatpush2.bf16.msra.mxu0 0
  %1538 = vmatprep.subr.bf16.mxu0 0
  %1539 = vmatpush2.bf16.msra.mxu0 0
  %1540 = vmatprep.subr.bf16.mxu0 0
  %1541 = vmatpush2.bf16.msra.mxu0 0
  %1542 = vmatprep.subr.bf16.mxu0 0
  %1543 = vmatpush2.bf16.msra.mxu0 0
  %1544 = vmatprep.subr.bf16.mxu0 0
  %1545 = vmatpush2.bf16.msra.mxu0 0
  %1546 = vmatprep.subr.bf16.mxu0 0
  %1547 = vmatpush2.bf16.msra.mxu0 0
  %1548 = vmatprep.subr.bf16.mxu0 0
  %1549 = vmatpush2.bf16.msra.mxu0 0
  %1550 = vmatprep.subr.bf16.mxu0 0
  %1551 = vmatpush2.bf16.msra.mxu0 0
  %1552 = vmatprep.mubr.bf16.mxu0 0
  %1553 = vmatmul.mubr.bf16.gmra.mxu0 %v1518
  %v1554 = vpop.f32.mrf.mxu0
  %v1555 = vadd.f32 0.0, %v1554
  %v1556 = vpop.f32.mrf.mxu0
  %v1557 = vpop.f32.mrf.mxu0
  %v1558 = vpop.f32.mrf.mxu0
  %1559 = vdwg.mxu0
  %v1560 = vadd.f32 %v1511, %v1555
  %v1561 = vxor.u32 %v1560, 2147483648
  %v1562 = vmul.f32 %v1561, 1.442695
  %v1563 = vpow.pop %v1562
  %v1564 = vadd.f32 %v1563, 1.0
  %v1565 = vrcp.pop %v1564
  %v1566 = vmul.f32 1.0, %v1565
  %v1567 = vtanh.pop %v1560
  %v1568 = vmul.f32 %v1566, %v1414
  %1570 = vrot.lane.b32.xlu0 %v1567, 64
  %v1571 = vpop.permute.xlu0 %1570
  %v1573 = vmul.f32 %v1566, %v1571
  %1575 = vrot.lane.b32.xlu0 %v1573, 32
  %v1576 = vpop.permute.xlu0 %1575
  %v1578 = vadd.f32 %v1568, %v1576
  %v1579 = vtanh.pop %v1578
  %1581 = vrot.lane.b32.xlu0 %v1579, 64
  %v1582 = vpop.permute.xlu0 %1581
  %v1584 = vmul.f32 %v1566, %v1582
  %vm1585 = vcmp.gt.f32.partialorder %v1512, 0.0
  %v1586 = vsel %vm1585, 1, 0
  %1587 = vset.pattern.permute.xlu0 0
  %1588 = vperm.xlu0 %1587, %v1586
  %v1589 = vpop.permute.xlu0 %1588
  %vm1590 = vcmp.eq.s32.totalorder %v1589, 1
  %v1591 = vsel %vm1590, %v1584, 0.0
  %1593 = vrot.lane.b32.xlu0 %v1591, 32
  %v1594 = vpop.permute.xlu0 %1593
  %s1596 = scalar_lea.vmem %s14, 56
  %1597 = vst.msk [vmem:[%s1596] sm:$0xff] %vm122, %v1594
  %v1598 = vld [vmem:[%s226 + $0x8] sm:$0xff]
  %v1599 = vld [vmem:[%s1] sm:$0xff]
  %v1600 = vpack.c.bf16 %v1502, %v1502
  %1602 = vrot.lane.b32.xlu0 %v1600, 32
  %v1603 = vpop.permute.xlu0 %1602
  %v1605 = vsel %vm122, %v1603, 0
  %1607 = vmatprep.subr.bf16.mxu0 0
  %1608 = vmatpush1.bf16.msra.mxu0 0
  %1609 = vmatprep.subr.bf16.mxu0 0
  %1610 = vmatpush1.bf16.msra.mxu0 0
  %1611 = vmatprep.subr.bf16.mxu0 0
  %1612 = vmatpush1.bf16.msra.mxu0 0
  %1613 = vmatprep.subr.bf16.mxu0 0
  %1614 = vmatpush1.bf16.msra.mxu0 0
  %1615 = vmatprep.subr.bf16.mxu0 0
  %1616 = vmatpush1.bf16.msra.mxu0 0
  %1617 = vmatprep.subr.bf16.mxu0 0
  %1618 = vmatpush1.bf16.msra.mxu0 0
  %1619 = vmatprep.subr.bf16.mxu0 0
  %1620 = vmatpush1.bf16.msra.mxu0 %v337
  %1621 = vmatprep.subr.bf16.mxu0 0
  %1622 = vmatpush1.bf16.msra.mxu0 %v336
  %1623 = vmatprep.subr.bf16.mxu0 0
  %1624 = vmatpush2.bf16.msra.mxu0 0
  %1625 = vmatprep.subr.bf16.mxu0 0
  %1626 = vmatpush2.bf16.msra.mxu0 0
  %1627 = vmatprep.subr.bf16.mxu0 0
  %1628 = vmatpush2.bf16.msra.mxu0 0
  %1629 = vmatprep.subr.bf16.mxu0 0
  %1630 = vmatpush2.bf16.msra.mxu0 0
  %1631 = vmatprep.subr.bf16.mxu0 0
  %1632 = vmatpush2.bf16.msra.mxu0 0
  %1633 = vmatprep.subr.bf16.mxu0 0
  %1634 = vmatpush2.bf16.msra.mxu0 0
  %1635 = vmatprep.subr.bf16.mxu0 0
  %1636 = vmatpush2.bf16.msra.mxu0 0
  %1637 = vmatprep.subr.bf16.mxu0 0
  %1638 = vmatpush2.bf16.msra.mxu0 0
  %1639 = vmatprep.mubr.bf16.mxu0 0
  %1640 = vmatmul.mubr.bf16.gmra.mxu0 %v1605
  %v1641 = vpop.f32.mrf.mxu0
  %v1642 = vadd.f32 0.0, %v1641
  %v1643 = vpop.f32.mrf.mxu0
  %v1644 = vpop.f32.mrf.mxu0
  %v1645 = vpop.f32.mrf.mxu0
  %1646 = vdwg.mxu0
  %v1647 = vadd.f32 %v1598, %v1642
  %v1648 = vxor.u32 %v1647, 2147483648
  %v1649 = vmul.f32 %v1648, 1.442695
  %v1650 = vpow.pop %v1649
  %v1651 = vadd.f32 %v1650, 1.0
  %v1652 = vrcp.pop %v1651
  %v1653 = vmul.f32 1.0, %v1652
  %v1654 = vtanh.pop %v1647
  %v1655 = vmul.f32 %v1653, %v1503
  %1657 = vrot.lane.b32.xlu0 %v1654, 64
  %v1658 = vpop.permute.xlu0 %1657
  %v1660 = vmul.f32 %v1653, %v1658
  %1662 = vrot.lane.b32.xlu0 %v1660, 32
  %v1663 = vpop.permute.xlu0 %1662
  %v1665 = vadd.f32 %v1655, %v1663
  %v1666 = vtanh.pop %v1665
  %1668 = vrot.lane.b32.xlu0 %v1666, 64
  %v1669 = vpop.permute.xlu0 %1668
  %v1671 = vmul.f32 %v1653, %v1669
  %vm1672 = vcmp.gt.f32.partialorder %v1599, 0.0
  %v1673 = vsel %vm1672, 1, 0
  %1674 = vset.pattern.permute.xlu0 0
  %1675 = vperm.xlu0 %1674, %v1673
  %v1676 = vpop.permute.xlu0 %1675
  %vm1677 = vcmp.eq.s32.totalorder %v1676, 1
  %v1678 = vsel %vm1677, %v1671, 0.0
  %1680 = vrot.lane.b32.xlu0 %v1678, 32
  %v1681 = vpop.permute.xlu0 %1680
  %1683 = vst.msk [vmem:[%s15] sm:$0xff] %vm122, %v1681
  %v1684 = vld [vmem:[%s7] sm:$0x3]
  %v1685 = vld [vmem:[%s8] sm:$0xf]
  %v1686 = vld [vmem:[%s8 + $0x4] sm:$0xf]
  %v1687 = vld [vmem:[%s8 + $0x8] sm:$0xf]
  %v1688 = vld [vmem:[%s8 + $0xc] sm:$0xf]
  %v1689 = vld [vmem:[%s9] sm:$0xf]
  %v1690 = vld [vmem:[%s9 + $0x4] sm:$0xf]
  %v1691 = vld [vmem:[%s9 + $0x8] sm:$0xf]
  %v1692 = vld [vmem:[%s9 + $0xc] sm:$0xf]
  %v1693 = vld [vmem:[%s14] sm:$0xff]
  %v1694 = vld [vmem:[%s14 + $0x8] sm:$0xff]
  %v1695 = vld [vmem:[%s14 + $0x10] sm:$0xff]
  %v1696 = vld [vmem:[%s14 + $0x18] sm:$0xff]
  %v1697 = vld [vmem:[%s14 + $0x20] sm:$0xff]
  %v1698 = vld [vmem:[%s14 + $0x28] sm:$0xff]
  %v1699 = vld [vmem:[%s14 + $0x30] sm:$0xff]
  %v1700 = vld [vmem:[%s14 + $0x38] sm:$0xff]
  %v1701 = vpack.c.bf16 %v1694, %v1693
  %v1702 = vpack.c.bf16 %v1696, %v1695
  %v1703 = vpack.c.bf16 %v1698, %v1697
  %v1704 = vpack.c.bf16 %v1700, %v1699
  %v1705 = vld [vmem:[%s15] sm:$0xff]
  %v1706 = vld [vmem:[%s15 + $0x8] sm:$0xff]
  %v1707 = vld [vmem:[%s15 + $0x10] sm:$0xff]
  %v1708 = vld [vmem:[%s15 + $0x18] sm:$0xff]
  %v1709 = vld [vmem:[%s15 + $0x20] sm:$0xff]
  %v1710 = vld [vmem:[%s15 + $0x28] sm:$0xff]
  %v1711 = vld [vmem:[%s15 + $0x30] sm:$0xff]
  %v1712 = vld [vmem:[%s15 + $0x38] sm:$0xff]
  %v1713 = vpack.c.bf16 %v1706, %v1705
  %v1714 = vpack.c.bf16 %v1708, %v1707
  %v1715 = vpack.c.bf16 %v1710, %v1709
  %v1716 = vpack.c.bf16 %v1712, %v1711
  %v1717 = vld [vmem:[%s6] sm:$0xff]
  %v1718 = vld [vmem:[%s6 + $0x8] sm:$0xff]
  %v1719 = vld [vmem:[%s6 + $0x10] sm:$0xff]
  %v1720 = vld [vmem:[%s6 + $0x18] sm:$0xff]
  %v1721 = vld [vmem:[%s6 + $0x20] sm:$0xff]
  %v1722 = vld [vmem:[%s6 + $0x28] sm:$0xff]
  %v1723 = vld [vmem:[%s6 + $0x30] sm:$0xff]
  %v1724 = vld [vmem:[%s6 + $0x38] sm:$0xff]
  %v1729 = vunpack.c.l.b16 %v1721
  %v1730 = vunpack.c.h.b16 %v1721
  %v1731 = vunpack.c.l.b16 %v1722
  %v1732 = vunpack.c.h.b16 %v1722
  %v1733 = vunpack.c.l.b16 %v1723
  %v1734 = vunpack.c.h.b16 %v1723
  %v1735 = vunpack.c.l.b16 %v1724
  %v1736 = vunpack.c.h.b16 %v1724
  %v1737 = vpack.c.b16 %v1731, %v1729
  %v1738 = vpack.c.b16 %v1732, %v1730
  %v1739 = vpack.c.b16 %v1735, %v1733
  %v1740 = vpack.c.b16 %v1736, %v1734
  %v1746 = vsel %vm122, %v1713, 0
  %v1749 = vsel %vm122, %v1714, 0
  %v1752 = vsel %vm122, %v1715, 0
  %v1755 = vsel %vm122, %v1716, 0
  %1757 = vmatprep.subr.bf16.mxu0 0
  %1758 = vmatpush1.bf16.msra.mxu0 0
  %1759 = vmatprep.subr.bf16.mxu0 0
  %1760 = vmatpush1.bf16.msra.mxu0 0
  %1761 = vmatprep.subr.bf16.mxu0 0
  %1762 = vmatpush1.bf16.msra.mxu0 0
  %1763 = vmatprep.subr.bf16.mxu0 0
  %1764 = vmatpush1.bf16.msra.mxu0 0
  %1765 = vmatprep.subr.bf16.mxu0 0
  %1766 = vmatpush1.bf16.msra.mxu0 0
  %1767 = vmatprep.subr.bf16.mxu0 0
  %1768 = vmatpush1.bf16.msra.mxu0 0
  %1769 = vmatprep.subr.bf16.mxu0 %v1740
  %1770 = vmatpush1.bf16.msra.mxu0 %v1739
  %1771 = vmatprep.subr.bf16.mxu0 %v1738
  %1772 = vmatpush1.bf16.msra.mxu0 %v1737
  %1773 = vmatprep.subr.bf16.mxu0 0
  %1774 = vmatpush2.bf16.msra.mxu0 0
  %1775 = vmatprep.subr.bf16.mxu0 0
  %1776 = vmatpush2.bf16.msra.mxu0 0
  %1777 = vmatprep.subr.bf16.mxu0 0
  %1778 = vmatpush2.bf16.msra.mxu0 0
  %1779 = vmatprep.subr.bf16.mxu0 0
  %1780 = vmatpush2.bf16.msra.mxu0 0
  %1781 = vmatprep.subr.bf16.mxu0 0
  %1782 = vmatpush2.bf16.msra.mxu0 0
  %1783 = vmatprep.subr.bf16.mxu0 0
  %1784 = vmatpush2.bf16.msra.mxu0 0
  %1785 = vmatprep.subr.bf16.mxu0 0
  %1786 = vmatpush2.bf16.msra.mxu0 0
  %1787 = vmatprep.subr.bf16.mxu0 0
  %1788 = vmatpush2.bf16.msra.mxu0 0
  %1789 = vmatprep.mubr.bf16.mxu0 0
  %1790 = vmatmul.mubr.bf16.gmra.mxu0 %v1746
  %v1791 = vpop.f32.mrf.mxu0
  %v1792 = vadd.f32 0.0, %v1791
  %v1793 = vpop.f32.mrf.mxu0
  %v1794 = vadd.f32 0.0, %v1793
  %v1795 = vpop.f32.mrf.mxu0
  %v1796 = vadd.f32 0.0, %v1795
  %v1797 = vpop.f32.mrf.mxu0
  %v1798 = vadd.f32 0.0, %v1797
  %1799 = vmatprep.mubr.bf16.mxu0 0
  %1800 = vmatmul.mubr.bf16.gmra.mxu0 %v1749
  %v1801 = vpop.f32.mrf.mxu0
  %v1802 = vadd.f32 0.0, %v1801
  %v1803 = vpop.f32.mrf.mxu0
  %v1804 = vadd.f32 0.0, %v1803
  %v1805 = vpop.f32.mrf.mxu0
  %v1806 = vadd.f32 0.0, %v1805
  %v1807 = vpop.f32.mrf.mxu0
  %v1808 = vadd.f32 0.0, %v1807
  %1809 = vmatprep.mubr.bf16.mxu0 0
  %1810 = vmatmul.mubr.bf16.gmra.mxu0 %v1752
  %v1811 = vpop.f32.mrf.mxu0
  %v1812 = vadd.f32 0.0, %v1811
  %v1813 = vpop.f32.mrf.mxu0
  %v1814 = vadd.f32 0.0, %v1813
  %v1815 = vpop.f32.mrf.mxu0
  %v1816 = vadd.f32 0.0, %v1815
  %v1817 = vpop.f32.mrf.mxu0
  %v1818 = vadd.f32 0.0, %v1817
  %1819 = vmatprep.mubr.bf16.mxu0 0
  %1820 = vmatmul.mubr.bf16.gmra.mxu0 %v1755
  %v1821 = vpop.f32.mrf.mxu0
  %v1822 = vadd.f32 0.0, %v1821
  %v1823 = vpop.f32.mrf.mxu0
  %v1824 = vadd.f32 0.0, %v1823
  %v1825 = vpop.f32.mrf.mxu0
  %v1826 = vadd.f32 0.0, %v1825
  %v1827 = vpop.f32.mrf.mxu0
  %v1828 = vadd.f32 0.0, %v1827
  %1829 = vdwg.mxu0
  %v1834 = vunpack.c.l.b16 %v1717
  %v1835 = vunpack.c.h.b16 %v1717
  %v1836 = vunpack.c.l.b16 %v1718
  %v1837 = vunpack.c.h.b16 %v1718
  %v1838 = vunpack.c.l.b16 %v1719
  %v1839 = vunpack.c.h.b16 %v1719
  %v1840 = vunpack.c.l.b16 %v1720
  %v1841 = vunpack.c.h.b16 %v1720
  %v1842 = vpack.c.b16 %v1836, %v1834
  %v1843 = vpack.c.b16 %v1837, %v1835
  %v1844 = vpack.c.b16 %v1840, %v1838
  %v1845 = vpack.c.b16 %v1841, %v1839
  %v1851 = vsel %vm122, %v1701, 0
  %v1854 = vsel %vm122, %v1702, 0
  %v1857 = vsel %vm122, %v1703, 0
  %v1860 = vsel %vm122, %v1704, 0
  %1862 = vmatprep.subr.bf16.mxu0 0
  %1863 = vmatpush1.bf16.msra.mxu0 0
  %1864 = vmatprep.subr.bf16.mxu0 0
  %1865 = vmatpush1.bf16.msra.mxu0 0
  %1866 = vmatprep.subr.bf16.mxu0 0
  %1867 = vmatpush1.bf16.msra.mxu0 0
  %1868 = vmatprep.subr.bf16.mxu0 0
  %1869 = vmatpush1.bf16.msra.mxu0 0
  %1870 = vmatprep.subr.bf16.mxu0 0
  %1871 = vmatpush1.bf16.msra.mxu0 0
  %1872 = vmatprep.subr.bf16.mxu0 0
  %1873 = vmatpush1.bf16.msra.mxu0 0
  %1874 = vmatprep.subr.bf16.mxu0 %v1845
  %1875 = vmatpush1.bf16.msra.mxu0 %v1844
  %1876 = vmatprep.subr.bf16.mxu0 %v1843
  %1877 = vmatpush1.bf16.msra.mxu0 %v1842
  %1878 = vmatprep.subr.bf16.mxu0 0
  %1879 = vmatpush2.bf16.msra.mxu0 0
  %1880 = vmatprep.subr.bf16.mxu0 0
  %1881 = vmatpush2.bf16.msra.mxu0 0
  %1882 = vmatprep.subr.bf16.mxu0 0
  %1883 = vmatpush2.bf16.msra.mxu0 0
  %1884 = vmatprep.subr.bf16.mxu0 0
  %1885 = vmatpush2.bf16.msra.mxu0 0
  %1886 = vmatprep.subr.bf16.mxu0 0
  %1887 = vmatpush2.bf16.msra.mxu0 0
  %1888 = vmatprep.subr.bf16.mxu0 0
  %1889 = vmatpush2.bf16.msra.mxu0 0
  %1890 = vmatprep.subr.bf16.mxu0 0
  %1891 = vmatpush2.bf16.msra.mxu0 0
  %1892 = vmatprep.subr.bf16.mxu0 0
  %1893 = vmatpush2.bf16.msra.mxu0 0
  %1894 = vmatprep.mubr.bf16.mxu0 0
  %1895 = vmatmul.mubr.bf16.gmra.mxu0 %v1851
  %v1896 = vpop.f32.mrf.mxu0
  %v1897 = vadd.f32 %v1792, %v1896
  %v1898 = vpop.f32.mrf.mxu0
  %v1899 = vadd.f32 %v1794, %v1898
  %v1900 = vpop.f32.mrf.mxu0
  %v1901 = vadd.f32 %v1796, %v1900
  %v1902 = vpop.f32.mrf.mxu0
  %v1903 = vadd.f32 %v1798, %v1902
  %1904 = vmatprep.mubr.bf16.mxu0 0
  %1905 = vmatmul.mubr.bf16.gmra.mxu0 %v1854
  %v1906 = vpop.f32.mrf.mxu0
  %v1907 = vadd.f32 %v1802, %v1906
  %v1908 = vpop.f32.mrf.mxu0
  %v1909 = vadd.f32 %v1804, %v1908
  %v1910 = vpop.f32.mrf.mxu0
  %v1911 = vadd.f32 %v1806, %v1910
  %v1912 = vpop.f32.mrf.mxu0
  %v1913 = vadd.f32 %v1808, %v1912
  %1914 = vmatprep.mubr.bf16.mxu0 0
  %1915 = vmatmul.mubr.bf16.gmra.mxu0 %v1857
  %v1916 = vpop.f32.mrf.mxu0
  %v1917 = vadd.f32 %v1812, %v1916
  %v1918 = vpop.f32.mrf.mxu0
  %v1919 = vadd.f32 %v1814, %v1918
  %v1920 = vpop.f32.mrf.mxu0
  %v1921 = vadd.f32 %v1816, %v1920
  %v1922 = vpop.f32.mrf.mxu0
  %v1923 = vadd.f32 %v1818, %v1922
  %1924 = vmatprep.mubr.bf16.mxu0 0
  %1925 = vmatmul.mubr.bf16.gmra.mxu0 %v1860
  %v1926 = vpop.f32.mrf.mxu0
  %v1927 = vadd.f32 %v1822, %v1926
  %v1928 = vpop.f32.mrf.mxu0
  %v1929 = vadd.f32 %v1824, %v1928
  %v1930 = vpop.f32.mrf.mxu0
  %v1931 = vadd.f32 %v1826, %v1930
  %v1932 = vpop.f32.mrf.mxu0
  %v1933 = vadd.f32 %v1828, %v1932
  %1934 = vdwg.mxu0
  %v1936 = vlaneseq
  %v1937 = vshrl.u32 %v1936, 7
  %v1938 = vsub.s32 0, %v1937
  %v1939 = vrot.slane %v1684, %v1938
  %v1940 = vlaneseq
  %v1941 = vshrl.u32 %v1940, 7
  %v1942 = vsub.s32 1, %v1941
  %v1943 = vrot.slane %v1684, %v1942
  %v1946 = vadd.f32 %v1897, %v1939
  %v1947 = vadd.f32 %v1899, %v1943
  %v1948 = vadd.f32 %v1901, %v1939
  %v1949 = vadd.f32 %v1903, %v1943
  %v1950 = vadd.f32 %v1907, %v1939
  %v1951 = vadd.f32 %v1909, %v1943
  %v1952 = vadd.f32 %v1911, %v1939
  %v1953 = vadd.f32 %v1913, %v1943
  %v1954 = vadd.f32 %v1917, %v1939
  %v1955 = vadd.f32 %v1919, %v1943
  %v1956 = vadd.f32 %v1921, %v1939
  %v1957 = vadd.f32 %v1923, %v1943
  %v1958 = vadd.f32 %v1927, %v1939
  %v1959 = vadd.f32 %v1929, %v1943
  %v1960 = vadd.f32 %v1931, %v1939
  %v1961 = vadd.f32 %v1933, %v1943
  %1962 = vst [vmem:[#allocation2] sm:$0xff] %v1946
  %1963 = vst [vmem:[#allocation2 + $0x8] sm:$0xff] %v1947
  %1964 = vst [vmem:[#allocation2 + $0x10] sm:$0xff] %v1948
  %1965 = vst [vmem:[#allocation2 + $0x18] sm:$0xff] %v1949
  %1966 = vst [vmem:[#allocation2 + $0x20] sm:$0xff] %v1950
  %1967 = vst [vmem:[#allocation2 + $0x28] sm:$0xff] %v1951
  %1968 = vst [vmem:[#allocation2 + $0x30] sm:$0xff] %v1952
  %1969 = vst [vmem:[#allocation2 + $0x38] sm:$0xff] %v1953
  %1970 = vst [vmem:[#allocation2 + $0x40] sm:$0xff] %v1954
  %1971 = vst [vmem:[#allocation2 + $0x48] sm:$0xff] %v1955
  %1972 = vst [vmem:[#allocation2 + $0x50] sm:$0xff] %v1956
  %1973 = vst [vmem:[#allocation2 + $0x58] sm:$0xff] %v1957
  %1974 = vst [vmem:[#allocation2 + $0x60] sm:$0xff] %v1958
  %1975 = vst [vmem:[#allocation2 + $0x68] sm:$0xff] %v1959
  %1976 = vst [vmem:[#allocation2 + $0x70] sm:$0xff] %v1960
  %1977 = vst [vmem:[#allocation2 + $0x78] sm:$0xff] %v1961
  %v1978 = vld [vmem:[%s226] sm:$0xff]
  %v1979 = vld [vmem:[%s1] sm:$0xff]
  %v1984 = vunpack.c.l.b16 %v1685
  %v1985 = vunpack.c.l.b16 %v1686
  %v1986 = vunpack.c.l.b16 %v1687
  %v1987 = vunpack.c.l.b16 %v1688
  %v1988 = vpack.c.b16 %v1985, %v1984
  %v1989 = vpack.c.b16 %v1987, %v1986
  %1992 = vmatprep.subr.bf16.mxu0 0
  %1993 = vmatpush1.bf16.msra.mxu0 0
  %1994 = vmatprep.subr.bf16.mxu0 0
  %1995 = vmatpush1.bf16.msra.mxu0 0
  %1996 = vmatprep.subr.bf16.mxu0 0
  %1997 = vmatpush1.bf16.msra.mxu0 0
  %1998 = vmatprep.subr.bf16.mxu0 0
  %1999 = vmatpush1.bf16.msra.mxu0 0
  %2000 = vmatprep.subr.bf16.mxu0 0
  %2001 = vmatpush1.bf16.msra.mxu0 0
  %2002 = vmatprep.subr.bf16.mxu0 0
  %2003 = vmatpush1.bf16.msra.mxu0 0
  %2004 = vmatprep.subr.bf16.mxu0 0
  %2005 = vmatpush1.bf16.msra.mxu0 %v1989
  %2006 = vmatprep.subr.bf16.mxu0 0
  %2007 = vmatpush1.bf16.msra.mxu0 %v1988
  %2008 = vmatprep.subr.bf16.mxu0 0
  %2009 = vmatpush2.bf16.msra.mxu0 0
  %2010 = vmatprep.subr.bf16.mxu0 0
  %2011 = vmatpush2.bf16.msra.mxu0 0
  %2012 = vmatprep.subr.bf16.mxu0 0
  %2013 = vmatpush2.bf16.msra.mxu0 0
  %2014 = vmatprep.subr.bf16.mxu0 0
  %2015 = vmatpush2.bf16.msra.mxu0 0
  %2016 = vmatprep.subr.bf16.mxu0 0
  %2017 = vmatpush2.bf16.msra.mxu0 0
  %2018 = vmatprep.subr.bf16.mxu0 0
  %2019 = vmatpush2.bf16.msra.mxu0 0
  %2020 = vmatprep.subr.bf16.mxu0 0
  %2021 = vmatpush2.bf16.msra.mxu0 0
  %2022 = vmatprep.subr.bf16.mxu0 0
  %2023 = vmatpush2.bf16.msra.mxu0 0
  %2024 = vmatprep.mubr.bf16.mxu0 0
  %2025 = vmatmul.mubr.bf16.gmra.mxu0 %v242
  %v2026 = vpop.f32.mrf.mxu0
  %v2027 = vadd.f32 0.0, %v2026
  %v2028 = vpop.f32.mrf.mxu0
  %v2029 = vpop.f32.mrf.mxu0
  %v2030 = vpop.f32.mrf.mxu0
  %2031 = vdwg.mxu0
  %v2032 = vadd.f32 %v1978, %v2027
  %v2033 = vxor.u32 %v2032, 2147483648
  %v2034 = vmul.f32 %v2033, 1.442695
  %v2035 = vpow.pop %v2034
  %v2036 = vadd.f32 %v2035, 1.0
  %v2037 = vrcp.pop %v2036
  %v2038 = vmul.f32 1.0, %v2037
  %v2039 = vtanh.pop %v2032
  %v2040 = vmul.f32 %v2038, 0.0
  %2042 = vrot.lane.b32.xlu0 %v2039, 64
  %v2043 = vpop.permute.xlu0 %2042
  %v2045 = vmul.f32 %v2038, %v2043
  %2047 = vrot.lane.b32.xlu0 %v2045, 32
  %v2048 = vpop.permute.xlu0 %2047
  %v2050 = vadd.f32 %v2040, %v2048
  %v2051 = vtanh.pop %v2050
  %2053 = vrot.lane.b32.xlu0 %v2051, 64
  %v2054 = vpop.permute.xlu0 %2053
  %v2056 = vmul.f32 %v2038, %v2054
  %vm2057 = vcmp.gt.f32.partialorder %v1979, 0.0
  %v2058 = vsel %vm2057, 1, 0
  %2059 = vset.pattern.permute.xlu0 0
  %2060 = vperm.xlu0 %2059, %v2058
  %v2061 = vpop.permute.xlu0 %2060
  %vm2062 = vcmp.eq.s32.totalorder %v2061, 1
  %v2063 = vsel %vm2062, %v2056, 0.0
  %v2064 = vsel %vm2062, %v2050, 0.0
  %2066 = vrot.lane.b32.xlu0 %v2063, 32
  %v2067 = vpop.permute.xlu0 %2066
  %2069 = vst.msk [vmem:[%s14] sm:$0xff] %vm122, %v2067
  %v2070 = vld [vmem:[%s324 + $0x8] sm:$0xff]
  %v2071 = vld [vmem:[%s326] sm:$0xff]
  %v2076 = vunpack.c.l.b16 %v1689
  %v2077 = vunpack.c.l.b16 %v1690
  %v2078 = vunpack.c.l.b16 %v1691
  %v2079 = vunpack.c.l.b16 %v1692
  %v2080 = vpack.c.b16 %v2077, %v2076
  %v2081 = vpack.c.b16 %v2079, %v2078
  %2084 = vmatprep.subr.bf16.mxu0 0
  %2085 = vmatpush1.bf16.msra.mxu0 0
  %2086 = vmatprep.subr.bf16.mxu0 0
  %2087 = vmatpush1.bf16.msra.mxu0 0
  %2088 = vmatprep.subr.bf16.mxu0 0
  %2089 = vmatpush1.bf16.msra.mxu0 0
  %2090 = vmatprep.subr.bf16.mxu0 0
  %2091 = vmatpush1.bf16.msra.mxu0 0
  %2092 = vmatprep.subr.bf16.mxu0 0
  %2093 = vmatpush1.bf16.msra.mxu0 0
  %2094 = vmatprep.subr.bf16.mxu0 0
  %2095 = vmatpush1.bf16.msra.mxu0 0
  %2096 = vmatprep.subr.bf16.mxu0 0
  %2097 = vmatpush1.bf16.msra.mxu0 %v2081
  %2098 = vmatprep.subr.bf16.mxu0 0
  %2099 = vmatpush1.bf16.msra.mxu0 %v2080
  %2100 = vmatprep.subr.bf16.mxu0 0
  %2101 = vmatpush2.bf16.msra.mxu0 0
  %2102 = vmatprep.subr.bf16.mxu0 0
  %2103 = vmatpush2.bf16.msra.mxu0 0
  %2104 = vmatprep.subr.bf16.mxu0 0
  %2105 = vmatpush2.bf16.msra.mxu0 0
  %2106 = vmatprep.subr.bf16.mxu0 0
  %2107 = vmatpush2.bf16.msra.mxu0 0
  %2108 = vmatprep.subr.bf16.mxu0 0
  %2109 = vmatpush2.bf16.msra.mxu0 0
  %2110 = vmatprep.subr.bf16.mxu0 0
  %2111 = vmatpush2.bf16.msra.mxu0 0
  %2112 = vmatprep.subr.bf16.mxu0 0
  %2113 = vmatpush2.bf16.msra.mxu0 0
  %2114 = vmatprep.subr.bf16.mxu0 0
  %2115 = vmatpush2.bf16.msra.mxu0 0
  %2116 = vmatprep.mubr.bf16.mxu0 0
  %2117 = vmatmul.mubr.bf16.gmra.mxu0 %v242
  %v2118 = vpop.f32.mrf.mxu0
  %v2119 = vadd.f32 0.0, %v2118
  %v2120 = vpop.f32.mrf.mxu0
  %v2121 = vpop.f32.mrf.mxu0
  %v2122 = vpop.f32.mrf.mxu0
  %2123 = vdwg.mxu0
  %v2124 = vadd.f32 %v2070, %v2119
  %v2125 = vxor.u32 %v2124, 2147483648
  %v2126 = vmul.f32 %v2125, 1.442695
  %v2127 = vpow.pop %v2126
  %v2128 = vadd.f32 %v2127, 1.0
  %v2129 = vrcp.pop %v2128
  %v2130 = vmul.f32 1.0, %v2129
  %v2131 = vtanh.pop %v2124
  %v2132 = vmul.f32 %v2130, 0.0
  %2134 = vrot.lane.b32.xlu0 %v2131, 64
  %v2135 = vpop.permute.xlu0 %2134
  %v2137 = vmul.f32 %v2130, %v2135
  %2139 = vrot.lane.b32.xlu0 %v2137, 32
  %v2140 = vpop.permute.xlu0 %2139
  %v2142 = vadd.f32 %v2132, %v2140
  %v2143 = vtanh.pop %v2142
  %2145 = vrot.lane.b32.xlu0 %v2143, 64
  %v2146 = vpop.permute.xlu0 %2145
  %v2148 = vmul.f32 %v2130, %v2146
  %vm2149 = vcmp.gt.f32.partialorder %v2071, 0.0
  %v2150 = vsel %vm2149, 1, 0
  %2151 = vset.pattern.permute.xlu0 0
  %2152 = vperm.xlu0 %2151, %v2150
  %v2153 = vpop.permute.xlu0 %2152
  %vm2154 = vcmp.eq.s32.totalorder %v2153, 1
  %v2155 = vsel %vm2154, %v2148, 0.0
  %v2156 = vsel %vm2154, %v2142, 0.0
  %2158 = vrot.lane.b32.xlu0 %v2155, 32
  %v2159 = vpop.permute.xlu0 %2158
  %2161 = vst.msk [vmem:[%s417] sm:$0xff] %vm122, %v2159
  %v2162 = vld [vmem:[%s421] sm:$0xff]
  %v2163 = vld [vmem:[%s423] sm:$0xff]
  %v2164 = vpack.c.bf16 %v2063, %v2063
  %2166 = vrot.lane.b32.xlu0 %v2164, 32
  %v2167 = vpop.permute.xlu0 %2166
  %v2169 = vsel %vm122, %v2167, 0
  %2171 = vmatprep.subr.bf16.mxu0 0
  %2172 = vmatpush1.bf16.msra.mxu0 0
  %2173 = vmatprep.subr.bf16.mxu0 0
  %2174 = vmatpush1.bf16.msra.mxu0 0
  %2175 = vmatprep.subr.bf16.mxu0 0
  %2176 = vmatpush1.bf16.msra.mxu0 0
  %2177 = vmatprep.subr.bf16.mxu0 0
  %2178 = vmatpush1.bf16.msra.mxu0 0
  %2179 = vmatprep.subr.bf16.mxu0 0
  %2180 = vmatpush1.bf16.msra.mxu0 0
  %2181 = vmatprep.subr.bf16.mxu0 0
  %2182 = vmatpush1.bf16.msra.mxu0 0
  %2183 = vmatprep.subr.bf16.mxu0 0
  %2184 = vmatpush1.bf16.msra.mxu0 %v1989
  %2185 = vmatprep.subr.bf16.mxu0 0
  %2186 = vmatpush1.bf16.msra.mxu0 %v1988
  %2187 = vmatprep.subr.bf16.mxu0 0
  %2188 = vmatpush2.bf16.msra.mxu0 0
  %2189 = vmatprep.subr.bf16.mxu0 0
  %2190 = vmatpush2.bf16.msra.mxu0 0
  %2191 = vmatprep.subr.bf16.mxu0 0
  %2192 = vmatpush2.bf16.msra.mxu0 0
  %2193 = vmatprep.subr.bf16.mxu0 0
  %2194 = vmatpush2.bf16.msra.mxu0 0
  %2195 = vmatprep.subr.bf16.mxu0 0
  %2196 = vmatpush2.bf16.msra.mxu0 0
  %2197 = vmatprep.subr.bf16.mxu0 0
  %2198 = vmatpush2.bf16.msra.mxu0 0
  %2199 = vmatprep.subr.bf16.mxu0 0
  %2200 = vmatpush2.bf16.msra.mxu0 0
  %2201 = vmatprep.subr.bf16.mxu0 0
  %2202 = vmatpush2.bf16.msra.mxu0 0
  %2203 = vmatprep.mubr.bf16.mxu0 0
  %2204 = vmatmul.mubr.bf16.gmra.mxu0 %v2169
  %v2205 = vpop.f32.mrf.mxu0
  %v2206 = vadd.f32 0.0, %v2205
  %v2207 = vpop.f32.mrf.mxu0
  %v2208 = vpop.f32.mrf.mxu0
  %v2209 = vpop.f32.mrf.mxu0
  %2210 = vdwg.mxu0
  %v2211 = vadd.f32 %v2162, %v2206
  %v2212 = vxor.u32 %v2211, 2147483648
  %v2213 = vmul.f32 %v2212, 1.442695
  %v2214 = vpow.pop %v2213
  %v2215 = vadd.f32 %v2214, 1.0
  %v2216 = vrcp.pop %v2215
  %v2217 = vmul.f32 1.0, %v2216
  %v2218 = vtanh.pop %v2211
  %v2219 = vmul.f32 %v2217, %v2064
  %2221 = vrot.lane.b32.xlu0 %v2218, 64
  %v2222 = vpop.permute.xlu0 %2221
  %v2224 = vmul.f32 %v2217, %v2222
  %2226 = vrot.lane.b32.xlu0 %v2224, 32
  %v2227 = vpop.permute.xlu0 %2226
  %v2229 = vadd.f32 %v2219, %v2227
  %v2230 = vtanh.pop %v2229
  %2232 = vrot.lane.b32.xlu0 %v2230, 64
  %v2233 = vpop.permute.xlu0 %2232
  %v2235 = vmul.f32 %v2217, %v2233
  %vm2236 = vcmp.gt.f32.partialorder %v2163, 0.0
  %v2237 = vsel %vm2236, 1, 0
  %2238 = vset.pattern.permute.xlu0 0
  %2239 = vperm.xlu0 %2238, %v2237
  %v2240 = vpop.permute.xlu0 %2239
  %vm2241 = vcmp.eq.s32.totalorder %v2240, 1
  %v2242 = vsel %vm2241, %v2235, %v2063
  %v2243 = vsel %vm2241, %v2229, %v2064
  %v2244 = vsel %vm2241, %v2235, 0.0
  %2246 = vrot.lane.b32.xlu0 %v2244, 32
  %v2247 = vpop.permute.xlu0 %2246
  %2249 = vst.msk [vmem:[%s510] sm:$0xff] %vm122, %v2247
  %v2250 = vld [vmem:[%s514 + $0x8] sm:$0xff]
  %v2251 = vld [vmem:[%s516] sm:$0xff]
  %v2252 = vpack.c.bf16 %v2155, %v2155
  %2254 = vrot.lane.b32.xlu0 %v2252, 32
  %v2255 = vpop.permute.xlu0 %2254
  %v2257 = vsel %vm122, %v2255, 0
  %2259 = vmatprep.subr.bf16.mxu0 0
  %2260 = vmatpush1.bf16.msra.mxu0 0
  %2261 = vmatprep.subr.bf16.mxu0 0
  %2262 = vmatpush1.bf16.msra.mxu0 0
  %2263 = vmatprep.subr.bf16.mxu0 0
  %2264 = vmatpush1.bf16.msra.mxu0 0
  %2265 = vmatprep.subr.bf16.mxu0 0
  %2266 = vmatpush1.bf16.msra.mxu0 0
  %2267 = vmatprep.subr.bf16.mxu0 0
  %2268 = vmatpush1.bf16.msra.mxu0 0
  %2269 = vmatprep.subr.bf16.mxu0 0
  %2270 = vmatpush1.bf16.msra.mxu0 0
  %2271 = vmatprep.subr.bf16.mxu0 0
  %2272 = vmatpush1.bf16.msra.mxu0 %v2081
  %2273 = vmatprep.subr.bf16.mxu0 0
  %2274 = vmatpush1.bf16.msra.mxu0 %v2080
  %2275 = vmatprep.subr.bf16.mxu0 0
  %2276 = vmatpush2.bf16.msra.mxu0 0
  %2277 = vmatprep.subr.bf16.mxu0 0
  %2278 = vmatpush2.bf16.msra.mxu0 0
  %2279 = vmatprep.subr.bf16.mxu0 0
  %2280 = vmatpush2.bf16.msra.mxu0 0
  %2281 = vmatprep.subr.bf16.mxu0 0
  %2282 = vmatpush2.bf16.msra.mxu0 0
  %2283 = vmatprep.subr.bf16.mxu0 0
  %2284 = vmatpush2.bf16.msra.mxu0 0
  %2285 = vmatprep.subr.bf16.mxu0 0
  %2286 = vmatpush2.bf16.msra.mxu0 0
  %2287 = vmatprep.subr.bf16.mxu0 0
  %2288 = vmatpush2.bf16.msra.mxu0 0
  %2289 = vmatprep.subr.bf16.mxu0 0
  %2290 = vmatpush2.bf16.msra.mxu0 0
  %2291 = vmatprep.mubr.bf16.mxu0 0
  %2292 = vmatmul.mubr.bf16.gmra.mxu0 %v2257
  %v2293 = vpop.f32.mrf.mxu0
  %v2294 = vadd.f32 0.0, %v2293
  %v2295 = vpop.f32.mrf.mxu0
  %v2296 = vpop.f32.mrf.mxu0
  %v2297 = vpop.f32.mrf.mxu0
  %2298 = vdwg.mxu0
  %v2299 = vadd.f32 %v2250, %v2294
  %v2300 = vxor.u32 %v2299, 2147483648
  %v2301 = vmul.f32 %v2300, 1.442695
  %v2302 = vpow.pop %v2301
  %v2303 = vadd.f32 %v2302, 1.0
  %v2304 = vrcp.pop %v2303
  %v2305 = vmul.f32 1.0, %v2304
  %v2306 = vtanh.pop %v2299
  %v2307 = vmul.f32 %v2305, %v2156
  %2309 = vrot.lane.b32.xlu0 %v2306, 64
  %v2310 = vpop.permute.xlu0 %2309
  %v2312 = vmul.f32 %v2305, %v2310
  %2314 = vrot.lane.b32.xlu0 %v2312, 32
  %v2315 = vpop.permute.xlu0 %2314
  %v2317 = vadd.f32 %v2307, %v2315
  %v2318 = vtanh.pop %v2317
  %2320 = vrot.lane.b32.xlu0 %v2318, 64
  %v2321 = vpop.permute.xlu0 %2320
  %v2323 = vmul.f32 %v2305, %v2321
  %vm2324 = vcmp.gt.f32.partialorder %v2251, 0.0
  %v2325 = vsel %vm2324, 1, 0
  %2326 = vset.pattern.permute.xlu0 0
  %2327 = vperm.xlu0 %2326, %v2325
  %v2328 = vpop.permute.xlu0 %2327
  %vm2329 = vcmp.eq.s32.totalorder %v2328, 1
  %v2330 = vsel %vm2329, %v2323, %v2155
  %v2331 = vsel %vm2329, %v2317, %v2156
  %v2332 = vsel %vm2329, %v2323, 0.0
  %2334 = vrot.lane.b32.xlu0 %v2332, 32
  %v2335 = vpop.permute.xlu0 %2334
  %2337 = vst.msk [vmem:[%s603] sm:$0xff] %vm122, %v2335
  %v2338 = vld [vmem:[%s607] sm:$0xff]
  %v2339 = vld [vmem:[%s609] sm:$0xff]
  %v2340 = vpack.c.bf16 %v2242, %v2242
  %2342 = vrot.lane.b32.xlu0 %v2340, 32
  %v2343 = vpop.permute.xlu0 %2342
  %v2345 = vsel %vm122, %v2343, 0
  %2347 = vmatprep.subr.bf16.mxu0 0
  %2348 = vmatpush1.bf16.msra.mxu0 0
  %2349 = vmatprep.subr.bf16.mxu0 0
  %2350 = vmatpush1.bf16.msra.mxu0 0
  %2351 = vmatprep.subr.bf16.mxu0 0
  %2352 = vmatpush1.bf16.msra.mxu0 0
  %2353 = vmatprep.subr.bf16.mxu0 0
  %2354 = vmatpush1.bf16.msra.mxu0 0
  %2355 = vmatprep.subr.bf16.mxu0 0
  %2356 = vmatpush1.bf16.msra.mxu0 0
  %2357 = vmatprep.subr.bf16.mxu0 0
  %2358 = vmatpush1.bf16.msra.mxu0 0
  %2359 = vmatprep.subr.bf16.mxu0 0
  %2360 = vmatpush1.bf16.msra.mxu0 %v1989
  %2361 = vmatprep.subr.bf16.mxu0 0
  %2362 = vmatpush1.bf16.msra.mxu0 %v1988
  %2363 = vmatprep.subr.bf16.mxu0 0
  %2364 = vmatpush2.bf16.msra.mxu0 0
  %2365 = vmatprep.subr.bf16.mxu0 0
  %2366 = vmatpush2.bf16.msra.mxu0 0
  %2367 = vmatprep.subr.bf16.mxu0 0
  %2368 = vmatpush2.bf16.msra.mxu0 0
  %2369 = vmatprep.subr.bf16.mxu0 0
  %2370 = vmatpush2.bf16.msra.mxu0 0
  %2371 = vmatprep.subr.bf16.mxu0 0
  %2372 = vmatpush2.bf16.msra.mxu0 0
  %2373 = vmatprep.subr.bf16.mxu0 0
  %2374 = vmatpush2.bf16.msra.mxu0 0
  %2375 = vmatprep.subr.bf16.mxu0 0
  %2376 = vmatpush2.bf16.msra.mxu0 0
  %2377 = vmatprep.subr.bf16.mxu0 0
  %2378 = vmatpush2.bf16.msra.mxu0 0
  %2379 = vmatprep.mubr.bf16.mxu0 0
  %2380 = vmatmul.mubr.bf16.gmra.mxu0 %v2345
  %v2381 = vpop.f32.mrf.mxu0
  %v2382 = vadd.f32 0.0, %v2381
  %v2383 = vpop.f32.mrf.mxu0
  %v2384 = vpop.f32.mrf.mxu0
  %v2385 = vpop.f32.mrf.mxu0
  %2386 = vdwg.mxu0
  %v2387 = vadd.f32 %v2338, %v2382
  %v2388 = vxor.u32 %v2387, 2147483648
  %v2389 = vmul.f32 %v2388, 1.442695
  %v2390 = vpow.pop %v2389
  %v2391 = vadd.f32 %v2390, 1.0
  %v2392 = vrcp.pop %v2391
  %v2393 = vmul.f32 1.0, %v2392
  %v2394 = vtanh.pop %v2387
  %v2395 = vmul.f32 %v2393, %v2243
  %2397 = vrot.lane.b32.xlu0 %v2394, 64
  %v2398 = vpop.permute.xlu0 %2397
  %v2400 = vmul.f32 %v2393, %v2398
  %2402 = vrot.lane.b32.xlu0 %v2400, 32
  %v2403 = vpop.permute.xlu0 %2402
  %v2405 = vadd.f32 %v2395, %v2403
  %v2406 = vtanh.pop %v2405
  %2408 = vrot.lane.b32.xlu0 %v2406, 64
  %v2409 = vpop.permute.xlu0 %2408
  %v2411 = vmul.f32 %v2393, %v2409
  %vm2412 = vcmp.gt.f32.partialorder %v2339, 0.0
  %v2413 = vsel %vm2412, 1, 0
  %2414 = vset.pattern.permute.xlu0 0
  %2415 = vperm.xlu0 %2414, %v2413
  %v2416 = vpop.permute.xlu0 %2415
  %vm2417 = vcmp.eq.s32.totalorder %v2416, 1
  %v2418 = vsel %vm2417, %v2411, %v2242
  %v2419 = vsel %vm2417, %v2405, %v2243
  %v2420 = vsel %vm2417, %v2411, 0.0
  %2422 = vrot.lane.b32.xlu0 %v2420, 32
  %v2423 = vpop.permute.xlu0 %2422
  %2425 = vst.msk [vmem:[%s696] sm:$0xff] %vm122, %v2423
  %v2426 = vld [vmem:[%s700 + $0x8] sm:$0xff]
  %v2427 = vld [vmem:[%s702] sm:$0xff]
  %v2428 = vpack.c.bf16 %v2330, %v2330
  %2430 = vrot.lane.b32.xlu0 %v2428, 32
  %v2431 = vpop.permute.xlu0 %2430
  %v2433 = vsel %vm122, %v2431, 0
  %2435 = vmatprep.subr.bf16.mxu0 0
  %2436 = vmatpush1.bf16.msra.mxu0 0
  %2437 = vmatprep.subr.bf16.mxu0 0
  %2438 = vmatpush1.bf16.msra.mxu0 0
  %2439 = vmatprep.subr.bf16.mxu0 0
  %2440 = vmatpush1.bf16.msra.mxu0 0
  %2441 = vmatprep.subr.bf16.mxu0 0
  %2442 = vmatpush1.bf16.msra.mxu0 0
  %2443 = vmatprep.subr.bf16.mxu0 0
  %2444 = vmatpush1.bf16.msra.mxu0 0
  %2445 = vmatprep.subr.bf16.mxu0 0
  %2446 = vmatpush1.bf16.msra.mxu0 0
  %2447 = vmatprep.subr.bf16.mxu0 0
  %2448 = vmatpush1.bf16.msra.mxu0 %v2081
  %2449 = vmatprep.subr.bf16.mxu0 0
  %2450 = vmatpush1.bf16.msra.mxu0 %v2080
  %2451 = vmatprep.subr.bf16.mxu0 0
  %2452 = vmatpush2.bf16.msra.mxu0 0
  %2453 = vmatprep.subr.bf16.mxu0 0
  %2454 = vmatpush2.bf16.msra.mxu0 0
  %2455 = vmatprep.subr.bf16.mxu0 0
  %2456 = vmatpush2.bf16.msra.mxu0 0
  %2457 = vmatprep.subr.bf16.mxu0 0
  %2458 = vmatpush2.bf16.msra.mxu0 0
  %2459 = vmatprep.subr.bf16.mxu0 0
  %2460 = vmatpush2.bf16.msra.mxu0 0
  %2461 = vmatprep.subr.bf16.mxu0 0
  %2462 = vmatpush2.bf16.msra.mxu0 0
  %2463 = vmatprep.subr.bf16.mxu0 0
  %2464 = vmatpush2.bf16.msra.mxu0 0
  %2465 = vmatprep.subr.bf16.mxu0 0
  %2466 = vmatpush2.bf16.msra.mxu0 0
  %2467 = vmatprep.mubr.bf16.mxu0 0
  %2468 = vmatmul.mubr.bf16.gmra.mxu0 %v2433
  %v2469 = vpop.f32.mrf.mxu0
  %v2470 = vadd.f32 0.0, %v2469
  %v2471 = vpop.f32.mrf.mxu0
  %v2472 = vpop.f32.mrf.mxu0
  %v2473 = vpop.f32.mrf.mxu0
  %2474 = vdwg.mxu0
  %v2475 = vadd.f32 %v2426, %v2470
  %v2476 = vxor.u32 %v2475, 2147483648
  %v2477 = vmul.f32 %v2476, 1.442695
  %v2478 = vpow.pop %v2477
  %v2479 = vadd.f32 %v2478, 1.0
  %v2480 = vrcp.pop %v2479
  %v2481 = vmul.f32 1.0, %v2480
  %v2482 = vtanh.pop %v2475
  %v2483 = vmul.f32 %v2481, %v2331
  %2485 = vrot.lane.b32.xlu0 %v2482, 64
  %v2486 = vpop.permute.xlu0 %2485
  %v2488 = vmul.f32 %v2481, %v2486
  %2490 = vrot.lane.b32.xlu0 %v2488, 32
  %v2491 = vpop.permute.xlu0 %2490
  %v2493 = vadd.f32 %v2483, %v2491
  %v2494 = vtanh.pop %v2493
  %2496 = vrot.lane.b32.xlu0 %v2494, 64
  %v2497 = vpop.permute.xlu0 %2496
  %v2499 = vmul.f32 %v2481, %v2497
  %vm2500 = vcmp.gt.f32.partialorder %v2427, 0.0
  %v2501 = vsel %vm2500, 1, 0
  %2502 = vset.pattern.permute.xlu0 0
  %2503 = vperm.xlu0 %2502, %v2501
  %v2504 = vpop.permute.xlu0 %2503
  %vm2505 = vcmp.eq.s32.totalorder %v2504, 1
  %v2506 = vsel %vm2505, %v2499, %v2330
  %v2507 = vsel %vm2505, %v2493, %v2331
  %v2508 = vsel %vm2505, %v2499, 0.0
  %2510 = vrot.lane.b32.xlu0 %v2508, 32
  %v2511 = vpop.permute.xlu0 %2510
  %2513 = vst.msk [vmem:[%s789] sm:$0xff] %vm122, %v2511
  %v2514 = vld [vmem:[%s793] sm:$0xff]
  %v2515 = vld [vmem:[%s795] sm:$0xff]
  %v2516 = vpack.c.bf16 %v2418, %v2418
  %2518 = vrot.lane.b32.xlu0 %v2516, 32
  %v2519 = vpop.permute.xlu0 %2518
  %v2521 = vsel %vm122, %v2519, 0
  %2523 = vmatprep.subr.bf16.mxu0 0
  %2524 = vmatpush1.bf16.msra.mxu0 0
  %2525 = vmatprep.subr.bf16.mxu0 0
  %2526 = vmatpush1.bf16.msra.mxu0 0
  %2527 = vmatprep.subr.bf16.mxu0 0
  %2528 = vmatpush1.bf16.msra.mxu0 0
  %2529 = vmatprep.subr.bf16.mxu0 0
  %2530 = vmatpush1.bf16.msra.mxu0 0
  %2531 = vmatprep.subr.bf16.mxu0 0
  %2532 = vmatpush1.bf16.msra.mxu0 0
  %2533 = vmatprep.subr.bf16.mxu0 0
  %2534 = vmatpush1.bf16.msra.mxu0 0
  %2535 = vmatprep.subr.bf16.mxu0 0
  %2536 = vmatpush1.bf16.msra.mxu0 %v1989
  %2537 = vmatprep.subr.bf16.mxu0 0
  %2538 = vmatpush1.bf16.msra.mxu0 %v1988
  %2539 = vmatprep.subr.bf16.mxu0 0
  %2540 = vmatpush2.bf16.msra.mxu0 0
  %2541 = vmatprep.subr.bf16.mxu0 0
  %2542 = vmatpush2.bf16.msra.mxu0 0
  %2543 = vmatprep.subr.bf16.mxu0 0
  %2544 = vmatpush2.bf16.msra.mxu0 0
  %2545 = vmatprep.subr.bf16.mxu0 0
  %2546 = vmatpush2.bf16.msra.mxu0 0
  %2547 = vmatprep.subr.bf16.mxu0 0
  %2548 = vmatpush2.bf16.msra.mxu0 0
  %2549 = vmatprep.subr.bf16.mxu0 0
  %2550 = vmatpush2.bf16.msra.mxu0 0
  %2551 = vmatprep.subr.bf16.mxu0 0
  %2552 = vmatpush2.bf16.msra.mxu0 0
  %2553 = vmatprep.subr.bf16.mxu0 0
  %2554 = vmatpush2.bf16.msra.mxu0 0
  %2555 = vmatprep.mubr.bf16.mxu0 0
  %2556 = vmatmul.mubr.bf16.gmra.mxu0 %v2521
  %v2557 = vpop.f32.mrf.mxu0
  %v2558 = vadd.f32 0.0, %v2557
  %v2559 = vpop.f32.mrf.mxu0
  %v2560 = vpop.f32.mrf.mxu0
  %v2561 = vpop.f32.mrf.mxu0
  %2562 = vdwg.mxu0
  %v2563 = vadd.f32 %v2514, %v2558
  %v2564 = vxor.u32 %v2563, 2147483648
  %v2565 = vmul.f32 %v2564, 1.442695
  %v2566 = vpow.pop %v2565
  %v2567 = vadd.f32 %v2566, 1.0
  %v2568 = vrcp.pop %v2567
  %v2569 = vmul.f32 1.0, %v2568
  %v2570 = vtanh.pop %v2563
  %v2571 = vmul.f32 %v2569, %v2419
  %2573 = vrot.lane.b32.xlu0 %v2570, 64
  %v2574 = vpop.permute.xlu0 %2573
  %v2576 = vmul.f32 %v2569, %v2574
  %2578 = vrot.lane.b32.xlu0 %v2576, 32
  %v2579 = vpop.permute.xlu0 %2578
  %v2581 = vadd.f32 %v2571, %v2579
  %v2582 = vtanh.pop %v2581
  %2584 = vrot.lane.b32.xlu0 %v2582, 64
  %v2585 = vpop.permute.xlu0 %2584
  %v2587 = vmul.f32 %v2569, %v2585
  %vm2588 = vcmp.gt.f32.partialorder %v2515, 0.0
  %v2589 = vsel %vm2588, 1, 0
  %2590 = vset.pattern.permute.xlu0 0
  %2591 = vperm.xlu0 %2590, %v2589
  %v2592 = vpop.permute.xlu0 %2591
  %vm2593 = vcmp.eq.s32.totalorder %v2592, 1
  %v2594 = vsel %vm2593, %v2587, %v2418
  %v2595 = vsel %vm2593, %v2581, %v2419
  %v2596 = vsel %vm2593, %v2587, 0.0
  %2598 = vrot.lane.b32.xlu0 %v2596, 32
  %v2599 = vpop.permute.xlu0 %2598
  %2601 = vst.msk [vmem:[%s882] sm:$0xff] %vm122, %v2599
  %v2602 = vld [vmem:[%s886 + $0x8] sm:$0xff]
  %v2603 = vld [vmem:[%s888] sm:$0xff]
  %v2604 = vpack.c.bf16 %v2506, %v2506
  %2606 = vrot.lane.b32.xlu0 %v2604, 32
  %v2607 = vpop.permute.xlu0 %2606
  %v2609 = vsel %vm122, %v2607, 0
  %2611 = vmatprep.subr.bf16.mxu0 0
  %2612 = vmatpush1.bf16.msra.mxu0 0
  %2613 = vmatprep.subr.bf16.mxu0 0
  %2614 = vmatpush1.bf16.msra.mxu0 0
  %2615 = vmatprep.subr.bf16.mxu0 0
  %2616 = vmatpush1.bf16.msra.mxu0 0
  %2617 = vmatprep.subr.bf16.mxu0 0
  %2618 = vmatpush1.bf16.msra.mxu0 0
  %2619 = vmatprep.subr.bf16.mxu0 0
  %2620 = vmatpush1.bf16.msra.mxu0 0
  %2621 = vmatprep.subr.bf16.mxu0 0
  %2622 = vmatpush1.bf16.msra.mxu0 0
  %2623 = vmatprep.subr.bf16.mxu0 0
  %2624 = vmatpush1.bf16.msra.mxu0 %v2081
  %2625 = vmatprep.subr.bf16.mxu0 0
  %2626 = vmatpush1.bf16.msra.mxu0 %v2080
  %2627 = vmatprep.subr.bf16.mxu0 0
  %2628 = vmatpush2.bf16.msra.mxu0 0
  %2629 = vmatprep.subr.bf16.mxu0 0
  %2630 = vmatpush2.bf16.msra.mxu0 0
  %2631 = vmatprep.subr.bf16.mxu0 0
  %2632 = vmatpush2.bf16.msra.mxu0 0
  %2633 = vmatprep.subr.bf16.mxu0 0
  %2634 = vmatpush2.bf16.msra.mxu0 0
  %2635 = vmatprep.subr.bf16.mxu0 0
  %2636 = vmatpush2.bf16.msra.mxu0 0
  %2637 = vmatprep.subr.bf16.mxu0 0
  %2638 = vmatpush2.bf16.msra.mxu0 0
  %2639 = vmatprep.subr.bf16.mxu0 0
  %2640 = vmatpush2.bf16.msra.mxu0 0
  %2641 = vmatprep.subr.bf16.mxu0 0
  %2642 = vmatpush2.bf16.msra.mxu0 0
  %2643 = vmatprep.mubr.bf16.mxu0 0
  %2644 = vmatmul.mubr.bf16.gmra.mxu0 %v2609
  %v2645 = vpop.f32.mrf.mxu0
  %v2646 = vadd.f32 0.0, %v2645
  %v2647 = vpop.f32.mrf.mxu0
  %v2648 = vpop.f32.mrf.mxu0
  %v2649 = vpop.f32.mrf.mxu0
  %2650 = vdwg.mxu0
  %v2651 = vadd.f32 %v2602, %v2646
  %v2652 = vxor.u32 %v2651, 2147483648
  %v2653 = vmul.f32 %v2652, 1.442695
  %v2654 = vpow.pop %v2653
  %v2655 = vadd.f32 %v2654, 1.0
  %v2656 = vrcp.pop %v2655
  %v2657 = vmul.f32 1.0, %v2656
  %v2658 = vtanh.pop %v2651
  %v2659 = vmul.f32 %v2657, %v2507
  %2661 = vrot.lane.b32.xlu0 %v2658, 64
  %v2662 = vpop.permute.xlu0 %2661
  %v2664 = vmul.f32 %v2657, %v2662
  %2666 = vrot.lane.b32.xlu0 %v2664, 32
  %v2667 = vpop.permute.xlu0 %2666
  %v2669 = vadd.f32 %v2659, %v2667
  %v2670 = vtanh.pop %v2669
  %2672 = vrot.lane.b32.xlu0 %v2670, 64
  %v2673 = vpop.permute.xlu0 %2672
  %v2675 = vmul.f32 %v2657, %v2673
  %vm2676 = vcmp.gt.f32.partialorder %v2603, 0.0
  %v2677 = vsel %vm2676, 1, 0
  %2678 = vset.pattern.permute.xlu0 0
  %2679 = vperm.xlu0 %2678, %v2677
  %v2680 = vpop.permute.xlu0 %2679
  %vm2681 = vcmp.eq.s32.totalorder %v2680, 1
  %v2682 = vsel %vm2681, %v2675, %v2506
  %v2683 = vsel %vm2681, %v2669, %v2507
  %v2684 = vsel %vm2681, %v2675, 0.0
  %2686 = vrot.lane.b32.xlu0 %v2684, 32
  %v2687 = vpop.permute.xlu0 %2686
  %2689 = vst.msk [vmem:[%s975] sm:$0xff] %vm122, %v2687
  %v2690 = vld [vmem:[%s886] sm:$0xff]
  %v2691 = vld [vmem:[%s888] sm:$0xff]
  %v2692 = vpack.c.bf16 %v2594, %v2594
  %2694 = vrot.lane.b32.xlu0 %v2692, 32
  %v2695 = vpop.permute.xlu0 %2694
  %v2697 = vsel %vm122, %v2695, 0
  %2699 = vmatprep.subr.bf16.mxu0 0
  %2700 = vmatpush1.bf16.msra.mxu0 0
  %2701 = vmatprep.subr.bf16.mxu0 0
  %2702 = vmatpush1.bf16.msra.mxu0 0
  %2703 = vmatprep.subr.bf16.mxu0 0
  %2704 = vmatpush1.bf16.msra.mxu0 0
  %2705 = vmatprep.subr.bf16.mxu0 0
  %2706 = vmatpush1.bf16.msra.mxu0 0
  %2707 = vmatprep.subr.bf16.mxu0 0
  %2708 = vmatpush1.bf16.msra.mxu0 0
  %2709 = vmatprep.subr.bf16.mxu0 0
  %2710 = vmatpush1.bf16.msra.mxu0 0
  %2711 = vmatprep.subr.bf16.mxu0 0
  %2712 = vmatpush1.bf16.msra.mxu0 %v1989
  %2713 = vmatprep.subr.bf16.mxu0 0
  %2714 = vmatpush1.bf16.msra.mxu0 %v1988
  %2715 = vmatprep.subr.bf16.mxu0 0
  %2716 = vmatpush2.bf16.msra.mxu0 0
  %2717 = vmatprep.subr.bf16.mxu0 0
  %2718 = vmatpush2.bf16.msra.mxu0 0
  %2719 = vmatprep.subr.bf16.mxu0 0
  %2720 = vmatpush2.bf16.msra.mxu0 0
  %2721 = vmatprep.subr.bf16.mxu0 0
  %2722 = vmatpush2.bf16.msra.mxu0 0
  %2723 = vmatprep.subr.bf16.mxu0 0
  %2724 = vmatpush2.bf16.msra.mxu0 0
  %2725 = vmatprep.subr.bf16.mxu0 0
  %2726 = vmatpush2.bf16.msra.mxu0 0
  %2727 = vmatprep.subr.bf16.mxu0 0
  %2728 = vmatpush2.bf16.msra.mxu0 0
  %2729 = vmatprep.subr.bf16.mxu0 0
  %2730 = vmatpush2.bf16.msra.mxu0 0
  %2731 = vmatprep.mubr.bf16.mxu0 0
  %2732 = vmatmul.mubr.bf16.gmra.mxu0 %v2697
  %v2733 = vpop.f32.mrf.mxu0
  %v2734 = vadd.f32 0.0, %v2733
  %v2735 = vpop.f32.mrf.mxu0
  %v2736 = vpop.f32.mrf.mxu0
  %v2737 = vpop.f32.mrf.mxu0
  %2738 = vdwg.mxu0
  %v2739 = vadd.f32 %v2690, %v2734
  %v2740 = vxor.u32 %v2739, 2147483648
  %v2741 = vmul.f32 %v2740, 1.442695
  %v2742 = vpow.pop %v2741
  %v2743 = vadd.f32 %v2742, 1.0
  %v2744 = vrcp.pop %v2743
  %v2745 = vmul.f32 1.0, %v2744
  %v2746 = vtanh.pop %v2739
  %v2747 = vmul.f32 %v2745, %v2595
  %2749 = vrot.lane.b32.xlu0 %v2746, 64
  %v2750 = vpop.permute.xlu0 %2749
  %v2752 = vmul.f32 %v2745, %v2750
  %2754 = vrot.lane.b32.xlu0 %v2752, 32
  %v2755 = vpop.permute.xlu0 %2754
  %v2757 = vadd.f32 %v2747, %v2755
  %v2758 = vtanh.pop %v2757
  %2760 = vrot.lane.b32.xlu0 %v2758, 64
  %v2761 = vpop.permute.xlu0 %2760
  %v2763 = vmul.f32 %v2745, %v2761
  %vm2764 = vcmp.gt.f32.partialorder %v2691, 0.0
  %v2765 = vsel %vm2764, 1, 0
  %2766 = vset.pattern.permute.xlu0 0
  %2767 = vperm.xlu0 %2766, %v2765
  %v2768 = vpop.permute.xlu0 %2767
  %vm2769 = vcmp.eq.s32.totalorder %v2768, 1
  %v2770 = vsel %vm2769, %v2763, %v2594
  %v2771 = vsel %vm2769, %v2757, %v2595
  %v2772 = vsel %vm2769, %v2763, 0.0
  %2774 = vrot.lane.b32.xlu0 %v2772, 32
  %v2775 = vpop.permute.xlu0 %2774
  %2777 = vst.msk [vmem:[%s1064] sm:$0xff] %vm122, %v2775
  %v2778 = vld [vmem:[%s793 + $0x8] sm:$0xff]
  %v2779 = vld [vmem:[%s795] sm:$0xff]
  %v2780 = vpack.c.bf16 %v2682, %v2682
  %2782 = vrot.lane.b32.xlu0 %v2780, 32
  %v2783 = vpop.permute.xlu0 %2782
  %v2785 = vsel %vm122, %v2783, 0
  %2787 = vmatprep.subr.bf16.mxu0 0
  %2788 = vmatpush1.bf16.msra.mxu0 0
  %2789 = vmatprep.subr.bf16.mxu0 0
  %2790 = vmatpush1.bf16.msra.mxu0 0
  %2791 = vmatprep.subr.bf16.mxu0 0
  %2792 = vmatpush1.bf16.msra.mxu0 0
  %2793 = vmatprep.subr.bf16.mxu0 0
  %2794 = vmatpush1.bf16.msra.mxu0 0
  %2795 = vmatprep.subr.bf16.mxu0 0
  %2796 = vmatpush1.bf16.msra.mxu0 0
  %2797 = vmatprep.subr.bf16.mxu0 0
  %2798 = vmatpush1.bf16.msra.mxu0 0
  %2799 = vmatprep.subr.bf16.mxu0 0
  %2800 = vmatpush1.bf16.msra.mxu0 %v2081
  %2801 = vmatprep.subr.bf16.mxu0 0
  %2802 = vmatpush1.bf16.msra.mxu0 %v2080
  %2803 = vmatprep.subr.bf16.mxu0 0
  %2804 = vmatpush2.bf16.msra.mxu0 0
  %2805 = vmatprep.subr.bf16.mxu0 0
  %2806 = vmatpush2.bf16.msra.mxu0 0
  %2807 = vmatprep.subr.bf16.mxu0 0
  %2808 = vmatpush2.bf16.msra.mxu0 0
  %2809 = vmatprep.subr.bf16.mxu0 0
  %2810 = vmatpush2.bf16.msra.mxu0 0
  %2811 = vmatprep.subr.bf16.mxu0 0
  %2812 = vmatpush2.bf16.msra.mxu0 0
  %2813 = vmatprep.subr.bf16.mxu0 0
  %2814 = vmatpush2.bf16.msra.mxu0 0
  %2815 = vmatprep.subr.bf16.mxu0 0
  %2816 = vmatpush2.bf16.msra.mxu0 0
  %2817 = vmatprep.subr.bf16.mxu0 0
  %2818 = vmatpush2.bf16.msra.mxu0 0
  %2819 = vmatprep.mubr.bf16.mxu0 0
  %2820 = vmatmul.mubr.bf16.gmra.mxu0 %v2785
  %v2821 = vpop.f32.mrf.mxu0
  %v2822 = vadd.f32 0.0, %v2821
  %v2823 = vpop.f32.mrf.mxu0
  %v2824 = vpop.f32.mrf.mxu0
  %v2825 = vpop.f32.mrf.mxu0
  %2826 = vdwg.mxu0
  %v2827 = vadd.f32 %v2778, %v2822
  %v2828 = vxor.u32 %v2827, 2147483648
  %v2829 = vmul.f32 %v2828, 1.442695
  %v2830 = vpow.pop %v2829
  %v2831 = vadd.f32 %v2830, 1.0
  %v2832 = vrcp.pop %v2831
  %v2833 = vmul.f32 1.0, %v2832
  %v2834 = vtanh.pop %v2827
  %v2835 = vmul.f32 %v2833, %v2683
  %2837 = vrot.lane.b32.xlu0 %v2834, 64
  %v2838 = vpop.permute.xlu0 %2837
  %v2840 = vmul.f32 %v2833, %v2838
  %2842 = vrot.lane.b32.xlu0 %v2840, 32
  %v2843 = vpop.permute.xlu0 %2842
  %v2845 = vadd.f32 %v2835, %v2843
  %v2846 = vtanh.pop %v2845
  %2848 = vrot.lane.b32.xlu0 %v2846, 64
  %v2849 = vpop.permute.xlu0 %2848
  %v2851 = vmul.f32 %v2833, %v2849
  %vm2852 = vcmp.gt.f32.partialorder %v2779, 0.0
  %v2853 = vsel %vm2852, 1, 0
  %2854 = vset.pattern.permute.xlu0 0
  %2855 = vperm.xlu0 %2854, %v2853
  %v2856 = vpop.permute.xlu0 %2855
  %vm2857 = vcmp.eq.s32.totalorder %v2856, 1
  %v2858 = vsel %vm2857, %v2851, %v2682
  %v2859 = vsel %vm2857, %v2845, %v2683
  %v2860 = vsel %vm2857, %v2851, 0.0
  %2862 = vrot.lane.b32.xlu0 %v2860, 32
  %v2863 = vpop.permute.xlu0 %2862
  %2865 = vst.msk [vmem:[%s1153] sm:$0xff] %vm122, %v2863
  %v2866 = vld [vmem:[%s700] sm:$0xff]
  %v2867 = vld [vmem:[%s702] sm:$0xff]
  %v2868 = vpack.c.bf16 %v2770, %v2770
  %2870 = vrot.lane.b32.xlu0 %v2868, 32
  %v2871 = vpop.permute.xlu0 %2870
  %v2873 = vsel %vm122, %v2871, 0
  %2875 = vmatprep.subr.bf16.mxu0 0
  %2876 = vmatpush1.bf16.msra.mxu0 0
  %2877 = vmatprep.subr.bf16.mxu0 0
  %2878 = vmatpush1.bf16.msra.mxu0 0
  %2879 = vmatprep.subr.bf16.mxu0 0
  %2880 = vmatpush1.bf16.msra.mxu0 0
  %2881 = vmatprep.subr.bf16.mxu0 0
  %2882 = vmatpush1.bf16.msra.mxu0 0
  %2883 = vmatprep.subr.bf16.mxu0 0
  %2884 = vmatpush1.bf16.msra.mxu0 0
  %2885 = vmatprep.subr.bf16.mxu0 0
  %2886 = vmatpush1.bf16.msra.mxu0 0
  %2887 = vmatprep.subr.bf16.mxu0 0
  %2888 = vmatpush1.bf16.msra.mxu0 %v1989
  %2889 = vmatprep.subr.bf16.mxu0 0
  %2890 = vmatpush1.bf16.msra.mxu0 %v1988
  %2891 = vmatprep.subr.bf16.mxu0 0
  %2892 = vmatpush2.bf16.msra.mxu0 0
  %2893 = vmatprep.subr.bf16.mxu0 0
  %2894 = vmatpush2.bf16.msra.mxu0 0
  %2895 = vmatprep.subr.bf16.mxu0 0
  %2896 = vmatpush2.bf16.msra.mxu0 0
  %2897 = vmatprep.subr.bf16.mxu0 0
  %2898 = vmatpush2.bf16.msra.mxu0 0
  %2899 = vmatprep.subr.bf16.mxu0 0
  %2900 = vmatpush2.bf16.msra.mxu0 0
  %2901 = vmatprep.subr.bf16.mxu0 0
  %2902 = vmatpush2.bf16.msra.mxu0 0
  %2903 = vmatprep.subr.bf16.mxu0 0
  %2904 = vmatpush2.bf16.msra.mxu0 0
  %2905 = vmatprep.subr.bf16.mxu0 0
  %2906 = vmatpush2.bf16.msra.mxu0 0
  %2907 = vmatprep.mubr.bf16.mxu0 0
  %2908 = vmatmul.mubr.bf16.gmra.mxu0 %v2873
  %v2909 = vpop.f32.mrf.mxu0
  %v2910 = vadd.f32 0.0, %v2909
  %v2911 = vpop.f32.mrf.mxu0
  %v2912 = vpop.f32.mrf.mxu0
  %v2913 = vpop.f32.mrf.mxu0
  %2914 = vdwg.mxu0
  %v2915 = vadd.f32 %v2866, %v2910
  %v2916 = vxor.u32 %v2915, 2147483648
  %v2917 = vmul.f32 %v2916, 1.442695
  %v2918 = vpow.pop %v2917
  %v2919 = vadd.f32 %v2918, 1.0
  %v2920 = vrcp.pop %v2919
  %v2921 = vmul.f32 1.0, %v2920
  %v2922 = vtanh.pop %v2915
  %v2923 = vmul.f32 %v2921, %v2771
  %2925 = vrot.lane.b32.xlu0 %v2922, 64
  %v2926 = vpop.permute.xlu0 %2925
  %v2928 = vmul.f32 %v2921, %v2926
  %2930 = vrot.lane.b32.xlu0 %v2928, 32
  %v2931 = vpop.permute.xlu0 %2930
  %v2933 = vadd.f32 %v2923, %v2931
  %v2934 = vtanh.pop %v2933
  %2936 = vrot.lane.b32.xlu0 %v2934, 64
  %v2937 = vpop.permute.xlu0 %2936
  %v2939 = vmul.f32 %v2921, %v2937
  %vm2940 = vcmp.gt.f32.partialorder %v2867, 0.0
  %v2941 = vsel %vm2940, 1, 0
  %2942 = vset.pattern.permute.xlu0 0
  %2943 = vperm.xlu0 %2942, %v2941
  %v2944 = vpop.permute.xlu0 %2943
  %vm2945 = vcmp.eq.s32.totalorder %v2944, 1
  %v2946 = vsel %vm2945, %v2939, %v2770
  %v2947 = vsel %vm2945, %v2933, %v2771
  %v2948 = vsel %vm2945, %v2939, 0.0
  %2950 = vrot.lane.b32.xlu0 %v2948, 32
  %v2951 = vpop.permute.xlu0 %2950
  %2953 = vst.msk [vmem:[%s1242] sm:$0xff] %vm122, %v2951
  %v2954 = vld [vmem:[%s607 + $0x8] sm:$0xff]
  %v2955 = vld [vmem:[%s609] sm:$0xff]
  %v2956 = vpack.c.bf16 %v2858, %v2858
  %2958 = vrot.lane.b32.xlu0 %v2956, 32
  %v2959 = vpop.permute.xlu0 %2958
  %v2961 = vsel %vm122, %v2959, 0
  %2963 = vmatprep.subr.bf16.mxu0 0
  %2964 = vmatpush1.bf16.msra.mxu0 0
  %2965 = vmatprep.subr.bf16.mxu0 0
  %2966 = vmatpush1.bf16.msra.mxu0 0
  %2967 = vmatprep.subr.bf16.mxu0 0
  %2968 = vmatpush1.bf16.msra.mxu0 0
  %2969 = vmatprep.subr.bf16.mxu0 0
  %2970 = vmatpush1.bf16.msra.mxu0 0
  %2971 = vmatprep.subr.bf16.mxu0 0
  %2972 = vmatpush1.bf16.msra.mxu0 0
  %2973 = vmatprep.subr.bf16.mxu0 0
  %2974 = vmatpush1.bf16.msra.mxu0 0
  %2975 = vmatprep.subr.bf16.mxu0 0
  %2976 = vmatpush1.bf16.msra.mxu0 %v2081
  %2977 = vmatprep.subr.bf16.mxu0 0
  %2978 = vmatpush1.bf16.msra.mxu0 %v2080
  %2979 = vmatprep.subr.bf16.mxu0 0
  %2980 = vmatpush2.bf16.msra.mxu0 0
  %2981 = vmatprep.subr.bf16.mxu0 0
  %2982 = vmatpush2.bf16.msra.mxu0 0
  %2983 = vmatprep.subr.bf16.mxu0 0
  %2984 = vmatpush2.bf16.msra.mxu0 0
  %2985 = vmatprep.subr.bf16.mxu0 0
  %2986 = vmatpush2.bf16.msra.mxu0 0
  %2987 = vmatprep.subr.bf16.mxu0 0
  %2988 = vmatpush2.bf16.msra.mxu0 0
  %2989 = vmatprep.subr.bf16.mxu0 0
  %2990 = vmatpush2.bf16.msra.mxu0 0
  %2991 = vmatprep.subr.bf16.mxu0 0
  %2992 = vmatpush2.bf16.msra.mxu0 0
  %2993 = vmatprep.subr.bf16.mxu0 0
  %2994 = vmatpush2.bf16.msra.mxu0 0
  %2995 = vmatprep.mubr.bf16.mxu0 0
  %2996 = vmatmul.mubr.bf16.gmra.mxu0 %v2961
  %v2997 = vpop.f32.mrf.mxu0
  %v2998 = vadd.f32 0.0, %v2997
  %v2999 = vpop.f32.mrf.mxu0
  %v3000 = vpop.f32.mrf.mxu0
  %v3001 = vpop.f32.mrf.mxu0
  %3002 = vdwg.mxu0
  %v3003 = vadd.f32 %v2954, %v2998
  %v3004 = vxor.u32 %v3003, 2147483648
  %v3005 = vmul.f32 %v3004, 1.442695
  %v3006 = vpow.pop %v3005
  %v3007 = vadd.f32 %v3006, 1.0
  %v3008 = vrcp.pop %v3007
  %v3009 = vmul.f32 1.0, %v3008
  %v3010 = vtanh.pop %v3003
  %v3011 = vmul.f32 %v3009, %v2859
  %3013 = vrot.lane.b32.xlu0 %v3010, 64
  %v3014 = vpop.permute.xlu0 %3013
  %v3016 = vmul.f32 %v3009, %v3014
  %3018 = vrot.lane.b32.xlu0 %v3016, 32
  %v3019 = vpop.permute.xlu0 %3018
  %v3021 = vadd.f32 %v3011, %v3019
  %v3022 = vtanh.pop %v3021
  %3024 = vrot.lane.b32.xlu0 %v3022, 64
  %v3025 = vpop.permute.xlu0 %3024
  %v3027 = vmul.f32 %v3009, %v3025
  %vm3028 = vcmp.gt.f32.partialorder %v2955, 0.0
  %v3029 = vsel %vm3028, 1, 0
  %3030 = vset.pattern.permute.xlu0 0
  %3031 = vperm.xlu0 %3030, %v3029
  %v3032 = vpop.permute.xlu0 %3031
  %vm3033 = vcmp.eq.s32.totalorder %v3032, 1
  %v3034 = vsel %vm3033, %v3027, %v2858
  %v3035 = vsel %vm3033, %v3021, %v2859
  %v3036 = vsel %vm3033, %v3027, 0.0
  %3038 = vrot.lane.b32.xlu0 %v3036, 32
  %v3039 = vpop.permute.xlu0 %3038
  %3041 = vst.msk [vmem:[%s1331] sm:$0xff] %vm122, %v3039
  %v3042 = vld [vmem:[%s514] sm:$0xff]
  %v3043 = vld [vmem:[%s516] sm:$0xff]
  %v3044 = vpack.c.bf16 %v2946, %v2946
  %3046 = vrot.lane.b32.xlu0 %v3044, 32
  %v3047 = vpop.permute.xlu0 %3046
  %v3049 = vsel %vm122, %v3047, 0
  %3051 = vmatprep.subr.bf16.mxu0 0
  %3052 = vmatpush1.bf16.msra.mxu0 0
  %3053 = vmatprep.subr.bf16.mxu0 0
  %3054 = vmatpush1.bf16.msra.mxu0 0
  %3055 = vmatprep.subr.bf16.mxu0 0
  %3056 = vmatpush1.bf16.msra.mxu0 0
  %3057 = vmatprep.subr.bf16.mxu0 0
  %3058 = vmatpush1.bf16.msra.mxu0 0
  %3059 = vmatprep.subr.bf16.mxu0 0
  %3060 = vmatpush1.bf16.msra.mxu0 0
  %3061 = vmatprep.subr.bf16.mxu0 0
  %3062 = vmatpush1.bf16.msra.mxu0 0
  %3063 = vmatprep.subr.bf16.mxu0 0
  %3064 = vmatpush1.bf16.msra.mxu0 %v1989
  %3065 = vmatprep.subr.bf16.mxu0 0
  %3066 = vmatpush1.bf16.msra.mxu0 %v1988
  %3067 = vmatprep.subr.bf16.mxu0 0
  %3068 = vmatpush2.bf16.msra.mxu0 0
  %3069 = vmatprep.subr.bf16.mxu0 0
  %3070 = vmatpush2.bf16.msra.mxu0 0
  %3071 = vmatprep.subr.bf16.mxu0 0
  %3072 = vmatpush2.bf16.msra.mxu0 0
  %3073 = vmatprep.subr.bf16.mxu0 0
  %3074 = vmatpush2.bf16.msra.mxu0 0
  %3075 = vmatprep.subr.bf16.mxu0 0
  %3076 = vmatpush2.bf16.msra.mxu0 0
  %3077 = vmatprep.subr.bf16.mxu0 0
  %3078 = vmatpush2.bf16.msra.mxu0 0
  %3079 = vmatprep.subr.bf16.mxu0 0
  %3080 = vmatpush2.bf16.msra.mxu0 0
  %3081 = vmatprep.subr.bf16.mxu0 0
  %3082 = vmatpush2.bf16.msra.mxu0 0
  %3083 = vmatprep.mubr.bf16.mxu0 0
  %3084 = vmatmul.mubr.bf16.gmra.mxu0 %v3049
  %v3085 = vpop.f32.mrf.mxu0
  %v3086 = vadd.f32 0.0, %v3085
  %v3087 = vpop.f32.mrf.mxu0
  %v3088 = vpop.f32.mrf.mxu0
  %v3089 = vpop.f32.mrf.mxu0
  %3090 = vdwg.mxu0
  %v3091 = vadd.f32 %v3042, %v3086
  %v3092 = vxor.u32 %v3091, 2147483648
  %v3093 = vmul.f32 %v3092, 1.442695
  %v3094 = vpow.pop %v3093
  %v3095 = vadd.f32 %v3094, 1.0
  %v3096 = vrcp.pop %v3095
  %v3097 = vmul.f32 1.0, %v3096
  %v3098 = vtanh.pop %v3091
  %v3099 = vmul.f32 %v3097, %v2947
  %3101 = vrot.lane.b32.xlu0 %v3098, 64
  %v3102 = vpop.permute.xlu0 %3101
  %v3104 = vmul.f32 %v3097, %v3102
  %3106 = vrot.lane.b32.xlu0 %v3104, 32
  %v3107 = vpop.permute.xlu0 %3106
  %v3109 = vadd.f32 %v3099, %v3107
  %v3110 = vtanh.pop %v3109
  %3112 = vrot.lane.b32.xlu0 %v3110, 64
  %v3113 = vpop.permute.xlu0 %3112
  %v3115 = vmul.f32 %v3097, %v3113
  %vm3116 = vcmp.gt.f32.partialorder %v3043, 0.0
  %v3117 = vsel %vm3116, 1, 0
  %3118 = vset.pattern.permute.xlu0 0
  %3119 = vperm.xlu0 %3118, %v3117
  %v3120 = vpop.permute.xlu0 %3119
  %vm3121 = vcmp.eq.s32.totalorder %v3120, 1
  %v3122 = vsel %vm3121, %v3115, %v2946
  %v3123 = vsel %vm3121, %v3109, %v2947
  %v3124 = vsel %vm3121, %v3115, 0.0
  %3126 = vrot.lane.b32.xlu0 %v3124, 32
  %v3127 = vpop.permute.xlu0 %3126
  %3129 = vst.msk [vmem:[%s1420] sm:$0xff] %vm122, %v3127
  %v3130 = vld [vmem:[%s421 + $0x8] sm:$0xff]
  %v3131 = vld [vmem:[%s423] sm:$0xff]
  %v3132 = vpack.c.bf16 %v3034, %v3034
  %3134 = vrot.lane.b32.xlu0 %v3132, 32
  %v3135 = vpop.permute.xlu0 %3134
  %v3137 = vsel %vm122, %v3135, 0
  %3139 = vmatprep.subr.bf16.mxu0 0
  %3140 = vmatpush1.bf16.msra.mxu0 0
  %3141 = vmatprep.subr.bf16.mxu0 0
  %3142 = vmatpush1.bf16.msra.mxu0 0
  %3143 = vmatprep.subr.bf16.mxu0 0
  %3144 = vmatpush1.bf16.msra.mxu0 0
  %3145 = vmatprep.subr.bf16.mxu0 0
  %3146 = vmatpush1.bf16.msra.mxu0 0
  %3147 = vmatprep.subr.bf16.mxu0 0
  %3148 = vmatpush1.bf16.msra.mxu0 0
  %3149 = vmatprep.subr.bf16.mxu0 0
  %3150 = vmatpush1.bf16.msra.mxu0 0
  %3151 = vmatprep.subr.bf16.mxu0 0
  %3152 = vmatpush1.bf16.msra.mxu0 %v2081
  %3153 = vmatprep.subr.bf16.mxu0 0
  %3154 = vmatpush1.bf16.msra.mxu0 %v2080
  %3155 = vmatprep.subr.bf16.mxu0 0
  %3156 = vmatpush2.bf16.msra.mxu0 0
  %3157 = vmatprep.subr.bf16.mxu0 0
  %3158 = vmatpush2.bf16.msra.mxu0 0
  %3159 = vmatprep.subr.bf16.mxu0 0
  %3160 = vmatpush2.bf16.msra.mxu0 0
  %3161 = vmatprep.subr.bf16.mxu0 0
  %3162 = vmatpush2.bf16.msra.mxu0 0
  %3163 = vmatprep.subr.bf16.mxu0 0
  %3164 = vmatpush2.bf16.msra.mxu0 0
  %3165 = vmatprep.subr.bf16.mxu0 0
  %3166 = vmatpush2.bf16.msra.mxu0 0
  %3167 = vmatprep.subr.bf16.mxu0 0
  %3168 = vmatpush2.bf16.msra.mxu0 0
  %3169 = vmatprep.subr.bf16.mxu0 0
  %3170 = vmatpush2.bf16.msra.mxu0 0
  %3171 = vmatprep.mubr.bf16.mxu0 0
  %3172 = vmatmul.mubr.bf16.gmra.mxu0 %v3137
  %v3173 = vpop.f32.mrf.mxu0
  %v3174 = vadd.f32 0.0, %v3173
  %v3175 = vpop.f32.mrf.mxu0
  %v3176 = vpop.f32.mrf.mxu0
  %v3177 = vpop.f32.mrf.mxu0
  %3178 = vdwg.mxu0
  %v3179 = vadd.f32 %v3130, %v3174
  %v3180 = vxor.u32 %v3179, 2147483648
  %v3181 = vmul.f32 %v3180, 1.442695
  %v3182 = vpow.pop %v3181
  %v3183 = vadd.f32 %v3182, 1.0
  %v3184 = vrcp.pop %v3183
  %v3185 = vmul.f32 1.0, %v3184
  %v3186 = vtanh.pop %v3179
  %v3187 = vmul.f32 %v3185, %v3035
  %3189 = vrot.lane.b32.xlu0 %v3186, 64
  %v3190 = vpop.permute.xlu0 %3189
  %v3192 = vmul.f32 %v3185, %v3190
  %3194 = vrot.lane.b32.xlu0 %v3192, 32
  %v3195 = vpop.permute.xlu0 %3194
  %v3197 = vadd.f32 %v3187, %v3195
  %v3198 = vtanh.pop %v3197
  %3200 = vrot.lane.b32.xlu0 %v3198, 64
  %v3201 = vpop.permute.xlu0 %3200
  %v3203 = vmul.f32 %v3185, %v3201
  %vm3204 = vcmp.gt.f32.partialorder %v3131, 0.0
  %v3205 = vsel %vm3204, 1, 0
  %3206 = vset.pattern.permute.xlu0 0
  %3207 = vperm.xlu0 %3206, %v3205
  %v3208 = vpop.permute.xlu0 %3207
  %vm3209 = vcmp.eq.s32.totalorder %v3208, 1
  %v3210 = vsel %vm3209, %v3203, %v3034
  %v3211 = vsel %vm3209, %v3197, %v3035
  %v3212 = vsel %vm3209, %v3203, 0.0
  %3214 = vrot.lane.b32.xlu0 %v3212, 32
  %v3215 = vpop.permute.xlu0 %3214
  %3217 = vst.msk [vmem:[%s1509] sm:$0xff] %vm122, %v3215
  %v3218 = vld [vmem:[%s324] sm:$0xff]
  %v3219 = vld [vmem:[%s326] sm:$0xff]
  %v3220 = vpack.c.bf16 %v3122, %v3122
  %3222 = vrot.lane.b32.xlu0 %v3220, 32
  %v3223 = vpop.permute.xlu0 %3222
  %v3225 = vsel %vm122, %v3223, 0
  %3227 = vmatprep.subr.bf16.mxu0 0
  %3228 = vmatpush1.bf16.msra.mxu0 0
  %3229 = vmatprep.subr.bf16.mxu0 0
  %3230 = vmatpush1.bf16.msra.mxu0 0
  %3231 = vmatprep.subr.bf16.mxu0 0
  %3232 = vmatpush1.bf16.msra.mxu0 0
  %3233 = vmatprep.subr.bf16.mxu0 0
  %3234 = vmatpush1.bf16.msra.mxu0 0
  %3235 = vmatprep.subr.bf16.mxu0 0
  %3236 = vmatpush1.bf16.msra.mxu0 0
  %3237 = vmatprep.subr.bf16.mxu0 0
  %3238 = vmatpush1.bf16.msra.mxu0 0
  %3239 = vmatprep.subr.bf16.mxu0 0
  %3240 = vmatpush1.bf16.msra.mxu0 %v1989
  %3241 = vmatprep.subr.bf16.mxu0 0
  %3242 = vmatpush1.bf16.msra.mxu0 %v1988
  %3243 = vmatprep.subr.bf16.mxu0 0
  %3244 = vmatpush2.bf16.msra.mxu0 0
  %3245 = vmatprep.subr.bf16.mxu0 0
  %3246 = vmatpush2.bf16.msra.mxu0 0
  %3247 = vmatprep.subr.bf16.mxu0 0
  %3248 = vmatpush2.bf16.msra.mxu0 0
  %3249 = vmatprep.subr.bf16.mxu0 0
  %3250 = vmatpush2.bf16.msra.mxu0 0
  %3251 = vmatprep.subr.bf16.mxu0 0
  %3252 = vmatpush2.bf16.msra.mxu0 0
  %3253 = vmatprep.subr.bf16.mxu0 0
  %3254 = vmatpush2.bf16.msra.mxu0 0
  %3255 = vmatprep.subr.bf16.mxu0 0
  %3256 = vmatpush2.bf16.msra.mxu0 0
  %3257 = vmatprep.subr.bf16.mxu0 0
  %3258 = vmatpush2.bf16.msra.mxu0 0
  %3259 = vmatprep.mubr.bf16.mxu0 0
  %3260 = vmatmul.mubr.bf16.gmra.mxu0 %v3225
  %v3261 = vpop.f32.mrf.mxu0
  %v3262 = vadd.f32 0.0, %v3261
  %v3263 = vpop.f32.mrf.mxu0
  %v3264 = vpop.f32.mrf.mxu0
  %v3265 = vpop.f32.mrf.mxu0
  %3266 = vdwg.mxu0
  %v3267 = vadd.f32 %v3218, %v3262
  %v3268 = vxor.u32 %v3267, 2147483648
  %v3269 = vmul.f32 %v3268, 1.442695
  %v3270 = vpow.pop %v3269
  %v3271 = vadd.f32 %v3270, 1.0
  %v3272 = vrcp.pop %v3271
  %v3273 = vmul.f32 1.0, %v3272
  %v3274 = vtanh.pop %v3267
  %v3275 = vmul.f32 %v3273, %v3123
  %3277 = vrot.lane.b32.xlu0 %v3274, 64
  %v3278 = vpop.permute.xlu0 %3277
  %v3280 = vmul.f32 %v3273, %v3278
  %3282 = vrot.lane.b32.xlu0 %v3280, 32
  %v3283 = vpop.permute.xlu0 %3282
  %v3285 = vadd.f32 %v3275, %v3283
  %v3286 = vtanh.pop %v3285
  %3288 = vrot.lane.b32.xlu0 %v3286, 64
  %v3289 = vpop.permute.xlu0 %3288
  %v3291 = vmul.f32 %v3273, %v3289
  %vm3292 = vcmp.gt.f32.partialorder %v3219, 0.0
  %v3293 = vsel %vm3292, 1, 0
  %3294 = vset.pattern.permute.xlu0 0
  %3295 = vperm.xlu0 %3294, %v3293
  %v3296 = vpop.permute.xlu0 %3295
  %vm3297 = vcmp.eq.s32.totalorder %v3296, 1
  %v3298 = vsel %vm3297, %v3291, 0.0
  %3300 = vrot.lane.b32.xlu0 %v3298, 32
  %v3301 = vpop.permute.xlu0 %3300
  %3303 = vst.msk [vmem:[%s1596] sm:$0xff] %vm122, %v3301
  %v3304 = vld [vmem:[%s226 + $0x8] sm:$0xff]
  %v3305 = vld [vmem:[%s1] sm:$0xff]
  %v3306 = vpack.c.bf16 %v3210, %v3210
  %3308 = vrot.lane.b32.xlu0 %v3306, 32
  %v3309 = vpop.permute.xlu0 %3308
  %v3311 = vsel %vm122, %v3309, 0
  %3313 = vmatprep.subr.bf16.mxu0 0
  %3314 = vmatpush1.bf16.msra.mxu0 0
  %3315 = vmatprep.subr.bf16.mxu0 0
  %3316 = vmatpush1.bf16.msra.mxu0 0
  %3317 = vmatprep.subr.bf16.mxu0 0
  %3318 = vmatpush1.bf16.msra.mxu0 0
  %3319 = vmatprep.subr.bf16.mxu0 0
  %3320 = vmatpush1.bf16.msra.mxu0 0
  %3321 = vmatprep.subr.bf16.mxu0 0
  %3322 = vmatpush1.bf16.msra.mxu0 0
  %3323 = vmatprep.subr.bf16.mxu0 0
  %3324 = vmatpush1.bf16.msra.mxu0 0
  %3325 = vmatprep.subr.bf16.mxu0 0
  %3326 = vmatpush1.bf16.msra.mxu0 %v2081
  %3327 = vmatprep.subr.bf16.mxu0 0
  %3328 = vmatpush1.bf16.msra.mxu0 %v2080
  %3329 = vmatprep.subr.bf16.mxu0 0
  %3330 = vmatpush2.bf16.msra.mxu0 0
  %3331 = vmatprep.subr.bf16.mxu0 0
  %3332 = vmatpush2.bf16.msra.mxu0 0
  %3333 = vmatprep.subr.bf16.mxu0 0
  %3334 = vmatpush2.bf16.msra.mxu0 0
  %3335 = vmatprep.subr.bf16.mxu0 0
  %3336 = vmatpush2.bf16.msra.mxu0 0
  %3337 = vmatprep.subr.bf16.mxu0 0
  %3338 = vmatpush2.bf16.msra.mxu0 0
  %3339 = vmatprep.subr.bf16.mxu0 0
  %3340 = vmatpush2.bf16.msra.mxu0 0
  %3341 = vmatprep.subr.bf16.mxu0 0
  %3342 = vmatpush2.bf16.msra.mxu0 0
  %3343 = vmatprep.subr.bf16.mxu0 0
  %3344 = vmatpush2.bf16.msra.mxu0 0
  %3345 = vmatprep.mubr.bf16.mxu0 0
  %3346 = vmatmul.mubr.bf16.gmra.mxu0 %v3311
  %v3347 = vpop.f32.mrf.mxu0
  %v3348 = vadd.f32 0.0, %v3347
  %v3349 = vpop.f32.mrf.mxu0
  %v3350 = vpop.f32.mrf.mxu0
  %v3351 = vpop.f32.mrf.mxu0
  %3352 = vdwg.mxu0
  %v3353 = vadd.f32 %v3304, %v3348
  %v3354 = vxor.u32 %v3353, 2147483648
  %v3355 = vmul.f32 %v3354, 1.442695
  %v3356 = vpow.pop %v3355
  %v3357 = vadd.f32 %v3356, 1.0
  %v3358 = vrcp.pop %v3357
  %v3359 = vmul.f32 1.0, %v3358
  %v3360 = vtanh.pop %v3353
  %v3361 = vmul.f32 %v3359, %v3211
  %3363 = vrot.lane.b32.xlu0 %v3360, 64
  %v3364 = vpop.permute.xlu0 %3363
  %v3366 = vmul.f32 %v3359, %v3364
  %3368 = vrot.lane.b32.xlu0 %v3366, 32
  %v3369 = vpop.permute.xlu0 %3368
  %v3371 = vadd.f32 %v3361, %v3369
  %v3372 = vtanh.pop %v3371
  %3374 = vrot.lane.b32.xlu0 %v3372, 64
  %v3375 = vpop.permute.xlu0 %3374
  %v3377 = vmul.f32 %v3359, %v3375
  %vm3378 = vcmp.gt.f32.partialorder %v3305, 0.0
  %v3379 = vsel %vm3378, 1, 0
  %3380 = vset.pattern.permute.xlu0 0
  %3381 = vperm.xlu0 %3380, %v3379
  %v3382 = vpop.permute.xlu0 %3381
  %vm3383 = vcmp.eq.s32.totalorder %v3382, 1
  %v3384 = vsel %vm3383, %v3377, 0.0
  %3386 = vrot.lane.b32.xlu0 %v3384, 32
  %v3387 = vpop.permute.xlu0 %3386
  %3389 = vst.msk [vmem:[%s15] sm:$0xff] %vm122, %v3387
  %v3390 = vld [vmem:[%s11] sm:$0x3]
  %v3391 = vld [vmem:[%s12] sm:$0xf]
  %v3392 = vld [vmem:[%s12 + $0x4] sm:$0xf]
  %v3393 = vld [vmem:[%s12 + $0x8] sm:$0xf]
  %v3394 = vld [vmem:[%s12 + $0xc] sm:$0xf]
  %v3395 = vld [vmem:[%s13] sm:$0xf]
  %v3396 = vld [vmem:[%s13 + $0x4] sm:$0xf]
  %v3397 = vld [vmem:[%s13 + $0x8] sm:$0xf]
  %v3398 = vld [vmem:[%s13 + $0xc] sm:$0xf]
  %v3399 = vld [vmem:[%s14] sm:$0xff]
  %v3400 = vld [vmem:[%s14 + $0x8] sm:$0xff]
  %v3401 = vld [vmem:[%s14 + $0x10] sm:$0xff]
  %v3402 = vld [vmem:[%s14 + $0x18] sm:$0xff]
  %v3403 = vld [vmem:[%s14 + $0x20] sm:$0xff]
  %v3404 = vld [vmem:[%s14 + $0x28] sm:$0xff]
  %v3405 = vld [vmem:[%s14 + $0x30] sm:$0xff]
  %v3406 = vld [vmem:[%s14 + $0x38] sm:$0xff]
  %v3407 = vpack.c.bf16 %v3400, %v3399
  %v3408 = vpack.c.bf16 %v3402, %v3401
  %v3409 = vpack.c.bf16 %v3404, %v3403
  %v3410 = vpack.c.bf16 %v3406, %v3405
  %v3411 = vld [vmem:[%s15] sm:$0xff]
  %v3412 = vld [vmem:[%s15 + $0x8] sm:$0xff]
  %v3413 = vld [vmem:[%s15 + $0x10] sm:$0xff]
  %v3414 = vld [vmem:[%s15 + $0x18] sm:$0xff]
  %v3415 = vld [vmem:[%s15 + $0x20] sm:$0xff]
  %v3416 = vld [vmem:[%s15 + $0x28] sm:$0xff]
  %v3417 = vld [vmem:[%s15 + $0x30] sm:$0xff]
  %v3418 = vld [vmem:[%s15 + $0x38] sm:$0xff]
  %v3419 = vpack.c.bf16 %v3412, %v3411
  %v3420 = vpack.c.bf16 %v3414, %v3413
  %v3421 = vpack.c.bf16 %v3416, %v3415
  %v3422 = vpack.c.bf16 %v3418, %v3417
  %v3423 = vld [vmem:[%s10] sm:$0xff]
  %v3424 = vld [vmem:[%s10 + $0x8] sm:$0xff]
  %v3425 = vld [vmem:[%s10 + $0x10] sm:$0xff]
  %v3426 = vld [vmem:[%s10 + $0x18] sm:$0xff]
  %v3427 = vld [vmem:[%s10 + $0x20] sm:$0xff]
  %v3428 = vld [vmem:[%s10 + $0x28] sm:$0xff]
  %v3429 = vld [vmem:[%s10 + $0x30] sm:$0xff]
  %v3430 = vld [vmem:[%s10 + $0x38] sm:$0xff]
  %v3435 = vunpack.c.l.b16 %v3427
  %v3436 = vunpack.c.h.b16 %v3427
  %v3437 = vunpack.c.l.b16 %v3428
  %v3438 = vunpack.c.h.b16 %v3428
  %v3439 = vunpack.c.l.b16 %v3429
  %v3440 = vunpack.c.h.b16 %v3429
  %v3441 = vunpack.c.l.b16 %v3430
  %v3442 = vunpack.c.h.b16 %v3430
  %v3443 = vpack.c.b16 %v3437, %v3435
  %v3444 = vpack.c.b16 %v3438, %v3436
  %v3445 = vpack.c.b16 %v3441, %v3439
  %v3446 = vpack.c.b16 %v3442, %v3440
  %v3452 = vsel %vm122, %v3419, 0
  %v3455 = vsel %vm122, %v3420, 0
  %v3458 = vsel %vm122, %v3421, 0
  %v3461 = vsel %vm122, %v3422, 0
  %3463 = vmatprep.subr.bf16.mxu0 0
  %3464 = vmatpush1.bf16.msra.mxu0 0
  %3465 = vmatprep.subr.bf16.mxu0 0
  %3466 = vmatpush1.bf16.msra.mxu0 0
  %3467 = vmatprep.subr.bf16.mxu0 0
  %3468 = vmatpush1.bf16.msra.mxu0 0
  %3469 = vmatprep.subr.bf16.mxu0 0
  %3470 = vmatpush1.bf16.msra.mxu0 0
  %3471 = vmatprep.subr.bf16.mxu0 0
  %3472 = vmatpush1.bf16.msra.mxu0 0
  %3473 = vmatprep.subr.bf16.mxu0 0
  %3474 = vmatpush1.bf16.msra.mxu0 0
  %3475 = vmatprep.subr.bf16.mxu0 %v3446
  %3476 = vmatpush1.bf16.msra.mxu0 %v3445
  %3477 = vmatprep.subr.bf16.mxu0 %v3444
  %3478 = vmatpush1.bf16.msra.mxu0 %v3443
  %3479 = vmatprep.subr.bf16.mxu0 0
  %3480 = vmatpush2.bf16.msra.mxu0 0
  %3481 = vmatprep.subr.bf16.mxu0 0
  %3482 = vmatpush2.bf16.msra.mxu0 0
  %3483 = vmatprep.subr.bf16.mxu0 0
  %3484 = vmatpush2.bf16.msra.mxu0 0
  %3485 = vmatprep.subr.bf16.mxu0 0
  %3486 = vmatpush2.bf16.msra.mxu0 0
  %3487 = vmatprep.subr.bf16.mxu0 0
  %3488 = vmatpush2.bf16.msra.mxu0 0
  %3489 = vmatprep.subr.bf16.mxu0 0
  %3490 = vmatpush2.bf16.msra.mxu0 0
  %3491 = vmatprep.subr.bf16.mxu0 0
  %3492 = vmatpush2.bf16.msra.mxu0 0
  %3493 = vmatprep.subr.bf16.mxu0 0
  %3494 = vmatpush2.bf16.msra.mxu0 0
  %3495 = vmatprep.mubr.bf16.mxu0 0
  %3496 = vmatmul.mubr.bf16.gmra.mxu0 %v3452
  %v3497 = vpop.f32.mrf.mxu0
  %v3498 = vadd.f32 0.0, %v3497
  %v3499 = vpop.f32.mrf.mxu0
  %v3500 = vadd.f32 0.0, %v3499
  %v3501 = vpop.f32.mrf.mxu0
  %v3502 = vadd.f32 0.0, %v3501
  %v3503 = vpop.f32.mrf.mxu0
  %v3504 = vadd.f32 0.0, %v3503
  %3505 = vmatprep.mubr.bf16.mxu0 0
  %3506 = vmatmul.mubr.bf16.gmra.mxu0 %v3455
  %v3507 = vpop.f32.mrf.mxu0
  %v3508 = vadd.f32 0.0, %v3507
  %v3509 = vpop.f32.mrf.mxu0
  %v3510 = vadd.f32 0.0, %v3509
  %v3511 = vpop.f32.mrf.mxu0
  %v3512 = vadd.f32 0.0, %v3511
  %v3513 = vpop.f32.mrf.mxu0
  %v3514 = vadd.f32 0.0, %v3513
  %3515 = vmatprep.mubr.bf16.mxu0 0
  %3516 = vmatmul.mubr.bf16.gmra.mxu0 %v3458
  %v3517 = vpop.f32.mrf.mxu0
  %v3518 = vadd.f32 0.0, %v3517
  %v3519 = vpop.f32.mrf.mxu0
  %v3520 = vadd.f32 0.0, %v3519
  %v3521 = vpop.f32.mrf.mxu0
  %v3522 = vadd.f32 0.0, %v3521
  %v3523 = vpop.f32.mrf.mxu0
  %v3524 = vadd.f32 0.0, %v3523
  %3525 = vmatprep.mubr.bf16.mxu0 0
  %3526 = vmatmul.mubr.bf16.gmra.mxu0 %v3461
  %v3527 = vpop.f32.mrf.mxu0
  %v3528 = vadd.f32 0.0, %v3527
  %v3529 = vpop.f32.mrf.mxu0
  %v3530 = vadd.f32 0.0, %v3529
  %v3531 = vpop.f32.mrf.mxu0
  %v3532 = vadd.f32 0.0, %v3531
  %v3533 = vpop.f32.mrf.mxu0
  %v3534 = vadd.f32 0.0, %v3533
  %3535 = vdwg.mxu0
  %v3540 = vunpack.c.l.b16 %v3423
  %v3541 = vunpack.c.h.b16 %v3423
  %v3542 = vunpack.c.l.b16 %v3424
  %v3543 = vunpack.c.h.b16 %v3424
  %v3544 = vunpack.c.l.b16 %v3425
  %v3545 = vunpack.c.h.b16 %v3425
  %v3546 = vunpack.c.l.b16 %v3426
  %v3547 = vunpack.c.h.b16 %v3426
  %v3548 = vpack.c.b16 %v3542, %v3540
  %v3549 = vpack.c.b16 %v3543, %v3541
  %v3550 = vpack.c.b16 %v3546, %v3544
  %v3551 = vpack.c.b16 %v3547, %v3545
  %v3557 = vsel %vm122, %v3407, 0
  %v3560 = vsel %vm122, %v3408, 0
  %v3563 = vsel %vm122, %v3409, 0
  %v3566 = vsel %vm122, %v3410, 0
  %3568 = vmatprep.subr.bf16.mxu0 0
  %3569 = vmatpush1.bf16.msra.mxu0 0
  %3570 = vmatprep.subr.bf16.mxu0 0
  %3571 = vmatpush1.bf16.msra.mxu0 0
  %3572 = vmatprep.subr.bf16.mxu0 0
  %3573 = vmatpush1.bf16.msra.mxu0 0
  %3574 = vmatprep.subr.bf16.mxu0 0
  %3575 = vmatpush1.bf16.msra.mxu0 0
  %3576 = vmatprep.subr.bf16.mxu0 0
  %3577 = vmatpush1.bf16.msra.mxu0 0
  %3578 = vmatprep.subr.bf16.mxu0 0
  %3579 = vmatpush1.bf16.msra.mxu0 0
  %3580 = vmatprep.subr.bf16.mxu0 %v3551
  %3581 = vmatpush1.bf16.msra.mxu0 %v3550
  %3582 = vmatprep.subr.bf16.mxu0 %v3549
  %3583 = vmatpush1.bf16.msra.mxu0 %v3548
  %3584 = vmatprep.subr.bf16.mxu0 0
  %3585 = vmatpush2.bf16.msra.mxu0 0
  %3586 = vmatprep.subr.bf16.mxu0 0
  %3587 = vmatpush2.bf16.msra.mxu0 0
  %3588 = vmatprep.subr.bf16.mxu0 0
  %3589 = vmatpush2.bf16.msra.mxu0 0
  %3590 = vmatprep.subr.bf16.mxu0 0
  %3591 = vmatpush2.bf16.msra.mxu0 0
  %3592 = vmatprep.subr.bf16.mxu0 0
  %3593 = vmatpush2.bf16.msra.mxu0 0
  %3594 = vmatprep.subr.bf16.mxu0 0
  %3595 = vmatpush2.bf16.msra.mxu0 0
  %3596 = vmatprep.subr.bf16.mxu0 0
  %3597 = vmatpush2.bf16.msra.mxu0 0
  %3598 = vmatprep.subr.bf16.mxu0 0
  %3599 = vmatpush2.bf16.msra.mxu0 0
  %3600 = vmatprep.mubr.bf16.mxu0 0
  %3601 = vmatmul.mubr.bf16.gmra.mxu0 %v3557
  %v3602 = vpop.f32.mrf.mxu0
  %v3603 = vadd.f32 %v3498, %v3602
  %v3604 = vpop.f32.mrf.mxu0
  %v3605 = vadd.f32 %v3500, %v3604
  %v3606 = vpop.f32.mrf.mxu0
  %v3607 = vadd.f32 %v3502, %v3606
  %v3608 = vpop.f32.mrf.mxu0
  %v3609 = vadd.f32 %v3504, %v3608
  %3610 = vmatprep.mubr.bf16.mxu0 0
  %3611 = vmatmul.mubr.bf16.gmra.mxu0 %v3560
  %v3612 = vpop.f32.mrf.mxu0
  %v3613 = vadd.f32 %v3508, %v3612
  %v3614 = vpop.f32.mrf.mxu0
  %v3615 = vadd.f32 %v3510, %v3614
  %v3616 = vpop.f32.mrf.mxu0
  %v3617 = vadd.f32 %v3512, %v3616
  %v3618 = vpop.f32.mrf.mxu0
  %v3619 = vadd.f32 %v3514, %v3618
  %3620 = vmatprep.mubr.bf16.mxu0 0
  %3621 = vmatmul.mubr.bf16.gmra.mxu0 %v3563
  %v3622 = vpop.f32.mrf.mxu0
  %v3623 = vadd.f32 %v3518, %v3622
  %v3624 = vpop.f32.mrf.mxu0
  %v3625 = vadd.f32 %v3520, %v3624
  %v3626 = vpop.f32.mrf.mxu0
  %v3627 = vadd.f32 %v3522, %v3626
  %v3628 = vpop.f32.mrf.mxu0
  %v3629 = vadd.f32 %v3524, %v3628
  %3630 = vmatprep.mubr.bf16.mxu0 0
  %3631 = vmatmul.mubr.bf16.gmra.mxu0 %v3566
  %v3632 = vpop.f32.mrf.mxu0
  %v3633 = vadd.f32 %v3528, %v3632
  %v3634 = vpop.f32.mrf.mxu0
  %v3635 = vadd.f32 %v3530, %v3634
  %v3636 = vpop.f32.mrf.mxu0
  %v3637 = vadd.f32 %v3532, %v3636
  %v3638 = vpop.f32.mrf.mxu0
  %v3639 = vadd.f32 %v3534, %v3638
  %3640 = vdwg.mxu0
  %v3642 = vlaneseq
  %v3643 = vshrl.u32 %v3642, 7
  %v3644 = vsub.s32 0, %v3643
  %v3645 = vrot.slane %v3390, %v3644
  %v3646 = vlaneseq
  %v3647 = vshrl.u32 %v3646, 7
  %v3648 = vsub.s32 1, %v3647
  %v3649 = vrot.slane %v3390, %v3648
  %v3652 = vadd.f32 %v3603, %v3645
  %v3653 = vadd.f32 %v3605, %v3649
  %v3654 = vadd.f32 %v3607, %v3645
  %v3655 = vadd.f32 %v3609, %v3649
  %v3656 = vadd.f32 %v3613, %v3645
  %v3657 = vadd.f32 %v3615, %v3649
  %v3658 = vadd.f32 %v3617, %v3645
  %v3659 = vadd.f32 %v3619, %v3649
  %v3660 = vadd.f32 %v3623, %v3645
  %v3661 = vadd.f32 %v3625, %v3649
  %v3662 = vadd.f32 %v3627, %v3645
  %v3663 = vadd.f32 %v3629, %v3649
  %v3664 = vadd.f32 %v3633, %v3645
  %v3665 = vadd.f32 %v3635, %v3649
  %v3666 = vadd.f32 %v3637, %v3645
  %v3667 = vadd.f32 %v3639, %v3649
  %3668 = vst [vmem:[#allocation2] sm:$0xff] %v3652
  %3669 = vst [vmem:[#allocation2 + $0x8] sm:$0xff] %v3653
  %3670 = vst [vmem:[#allocation2 + $0x10] sm:$0xff] %v3654
  %3671 = vst [vmem:[#allocation2 + $0x18] sm:$0xff] %v3655
  %3672 = vst [vmem:[#allocation2 + $0x20] sm:$0xff] %v3656
  %3673 = vst [vmem:[#allocation2 + $0x28] sm:$0xff] %v3657
  %3674 = vst [vmem:[#allocation2 + $0x30] sm:$0xff] %v3658
  %3675 = vst [vmem:[#allocation2 + $0x38] sm:$0xff] %v3659
  %3676 = vst [vmem:[#allocation2 + $0x40] sm:$0xff] %v3660
  %3677 = vst [vmem:[#allocation2 + $0x48] sm:$0xff] %v3661
  %3678 = vst [vmem:[#allocation2 + $0x50] sm:$0xff] %v3662
  %3679 = vst [vmem:[#allocation2 + $0x58] sm:$0xff] %v3663
  %3680 = vst [vmem:[#allocation2 + $0x60] sm:$0xff] %v3664
  %3681 = vst [vmem:[#allocation2 + $0x68] sm:$0xff] %v3665
  %3682 = vst [vmem:[#allocation2 + $0x70] sm:$0xff] %v3666
  %3683 = vst [vmem:[#allocation2 + $0x78] sm:$0xff] %v3667
  %v3684 = vld [vmem:[%s226] sm:$0xff]
  %v3685 = vld [vmem:[%s1] sm:$0xff]
  %v3690 = vunpack.c.l.b16 %v3391
  %v3691 = vunpack.c.l.b16 %v3392
  %v3692 = vunpack.c.l.b16 %v3393
  %v3693 = vunpack.c.l.b16 %v3394
  %v3694 = vpack.c.b16 %v3691, %v3690
  %v3695 = vpack.c.b16 %v3693, %v3692
  %3698 = vmatprep.subr.bf16.mxu0 0
  %3699 = vmatpush1.bf16.msra.mxu0 0
  %3700 = vmatprep.subr.bf16.mxu0 0
  %3701 = vmatpush1.bf16.msra.mxu0 0
  %3702 = vmatprep.subr.bf16.mxu0 0
  %3703 = vmatpush1.bf16.msra.mxu0 0
  %3704 = vmatprep.subr.bf16.mxu0 0
  %3705 = vmatpush1.bf16.msra.mxu0 0
  %3706 = vmatprep.subr.bf16.mxu0 0
  %3707 = vmatpush1.bf16.msra.mxu0 0
  %3708 = vmatprep.subr.bf16.mxu0 0
  %3709 = vmatpush1.bf16.msra.mxu0 0
  %3710 = vmatprep.subr.bf16.mxu0 0
  %3711 = vmatpush1.bf16.msra.mxu0 %v3695
  %3712 = vmatprep.subr.bf16.mxu0 0
  %3713 = vmatpush1.bf16.msra.mxu0 %v3694
  %3714 = vmatprep.subr.bf16.mxu0 0
  %3715 = vmatpush2.bf16.msra.mxu0 0
  %3716 = vmatprep.subr.bf16.mxu0 0
  %3717 = vmatpush2.bf16.msra.mxu0 0
  %3718 = vmatprep.subr.bf16.mxu0 0
  %3719 = vmatpush2.bf16.msra.mxu0 0
  %3720 = vmatprep.subr.bf16.mxu0 0
  %3721 = vmatpush2.bf16.msra.mxu0 0
  %3722 = vmatprep.subr.bf16.mxu0 0
  %3723 = vmatpush2.bf16.msra.mxu0 0
  %3724 = vmatprep.subr.bf16.mxu0 0
  %3725 = vmatpush2.bf16.msra.mxu0 0
  %3726 = vmatprep.subr.bf16.mxu0 0
  %3727 = vmatpush2.bf16.msra.mxu0 0
  %3728 = vmatprep.subr.bf16.mxu0 0
  %3729 = vmatpush2.bf16.msra.mxu0 0
  %3730 = vmatprep.mubr.bf16.mxu0 0
  %3731 = vmatmul.mubr.bf16.gmra.mxu0 %v242
  %v3732 = vpop.f32.mrf.mxu0
  %v3733 = vadd.f32 0.0, %v3732
  %v3734 = vpop.f32.mrf.mxu0
  %v3735 = vpop.f32.mrf.mxu0
  %v3736 = vpop.f32.mrf.mxu0
  %3737 = vdwg.mxu0
  %v3738 = vadd.f32 %v3684, %v3733
  %v3739 = vxor.u32 %v3738, 2147483648
  %v3740 = vmul.f32 %v3739, 1.442695
  %v3741 = vpow.pop %v3740
  %v3742 = vadd.f32 %v3741, 1.0
  %v3743 = vrcp.pop %v3742
  %v3744 = vmul.f32 1.0, %v3743
  %v3745 = vtanh.pop %v3738
  %v3746 = vmul.f32 %v3744, 0.0
  %3748 = vrot.lane.b32.xlu0 %v3745, 64
  %v3749 = vpop.permute.xlu0 %3748
  %v3751 = vmul.f32 %v3744, %v3749
  %3753 = vrot.lane.b32.xlu0 %v3751, 32
  %v3754 = vpop.permute.xlu0 %3753
  %v3756 = vadd.f32 %v3746, %v3754
  %v3757 = vtanh.pop %v3756
  %3759 = vrot.lane.b32.xlu0 %v3757, 64
  %v3760 = vpop.permute.xlu0 %3759
  %v3762 = vmul.f32 %v3744, %v3760
  %vm3763 = vcmp.gt.f32.partialorder %v3685, 0.0
  %v3764 = vsel %vm3763, 1, 0
  %3765 = vset.pattern.permute.xlu0 0
  %3766 = vperm.xlu0 %3765, %v3764
  %v3767 = vpop.permute.xlu0 %3766
  %vm3768 = vcmp.eq.s32.totalorder %v3767, 1
  %v3769 = vsel %vm3768, %v3762, 0.0
  %v3770 = vsel %vm3768, %v3756, 0.0
  %3772 = vrot.lane.b32.xlu0 %v3769, 32
  %v3773 = vpop.permute.xlu0 %3772
  %3775 = vst.msk [vmem:[%s14] sm:$0xff] %vm122, %v3773
  %v3776 = vld [vmem:[%s324 + $0x8] sm:$0xff]
  %v3777 = vld [vmem:[%s326] sm:$0xff]
  %v3782 = vunpack.c.l.b16 %v3395
  %v3783 = vunpack.c.l.b16 %v3396
  %v3784 = vunpack.c.l.b16 %v3397
  %v3785 = vunpack.c.l.b16 %v3398
  %v3786 = vpack.c.b16 %v3783, %v3782
  %v3787 = vpack.c.b16 %v3785, %v3784
  %3790 = vmatprep.subr.bf16.mxu0 0
  %3791 = vmatpush1.bf16.msra.mxu0 0
  %3792 = vmatprep.subr.bf16.mxu0 0
  %3793 = vmatpush1.bf16.msra.mxu0 0
  %3794 = vmatprep.subr.bf16.mxu0 0
  %3795 = vmatpush1.bf16.msra.mxu0 0
  %3796 = vmatprep.subr.bf16.mxu0 0
  %3797 = vmatpush1.bf16.msra.mxu0 0
  %3798 = vmatprep.subr.bf16.mxu0 0
  %3799 = vmatpush1.bf16.msra.mxu0 0
  %3800 = vmatprep.subr.bf16.mxu0 0
  %3801 = vmatpush1.bf16.msra.mxu0 0
  %3802 = vmatprep.subr.bf16.mxu0 0
  %3803 = vmatpush1.bf16.msra.mxu0 %v3787
  %3804 = vmatprep.subr.bf16.mxu0 0
  %3805 = vmatpush1.bf16.msra.mxu0 %v3786
  %3806 = vmatprep.subr.bf16.mxu0 0
  %3807 = vmatpush2.bf16.msra.mxu0 0
  %3808 = vmatprep.subr.bf16.mxu0 0
  %3809 = vmatpush2.bf16.msra.mxu0 0
  %3810 = vmatprep.subr.bf16.mxu0 0
  %3811 = vmatpush2.bf16.msra.mxu0 0
  %3812 = vmatprep.subr.bf16.mxu0 0
  %3813 = vmatpush2.bf16.msra.mxu0 0
  %3814 = vmatprep.subr.bf16.mxu0 0
  %3815 = vmatpush2.bf16.msra.mxu0 0
  %3816 = vmatprep.subr.bf16.mxu0 0
  %3817 = vmatpush2.bf16.msra.mxu0 0
  %3818 = vmatprep.subr.bf16.mxu0 0
  %3819 = vmatpush2.bf16.msra.mxu0 0
  %3820 = vmatprep.subr.bf16.mxu0 0
  %3821 = vmatpush2.bf16.msra.mxu0 0
  %3822 = vmatprep.mubr.bf16.mxu0 0
  %3823 = vmatmul.mubr.bf16.gmra.mxu0 %v242
  %v3824 = vpop.f32.mrf.mxu0
  %v3825 = vadd.f32 0.0, %v3824
  %v3826 = vpop.f32.mrf.mxu0
  %v3827 = vpop.f32.mrf.mxu0
  %v3828 = vpop.f32.mrf.mxu0
  %3829 = vdwg.mxu0
  %v3830 = vadd.f32 %v3776, %v3825
  %v3831 = vxor.u32 %v3830, 2147483648
  %v3832 = vmul.f32 %v3831, 1.442695
  %v3833 = vpow.pop %v3832
  %v3834 = vadd.f32 %v3833, 1.0
  %v3835 = vrcp.pop %v3834
  %v3836 = vmul.f32 1.0, %v3835
  %v3837 = vtanh.pop %v3830
  %v3838 = vmul.f32 %v3836, 0.0
  %3840 = vrot.lane.b32.xlu0 %v3837, 64
  %v3841 = vpop.permute.xlu0 %3840
  %v3843 = vmul.f32 %v3836, %v3841
  %3845 = vrot.lane.b32.xlu0 %v3843, 32
  %v3846 = vpop.permute.xlu0 %3845
  %v3848 = vadd.f32 %v3838, %v3846
  %v3849 = vtanh.pop %v3848
  %3851 = vrot.lane.b32.xlu0 %v3849, 64
  %v3852 = vpop.permute.xlu0 %3851
  %v3854 = vmul.f32 %v3836, %v3852
  %vm3855 = vcmp.gt.f32.partialorder %v3777, 0.0
  %v3856 = vsel %vm3855, 1, 0
  %3857 = vset.pattern.permute.xlu0 0
  %3858 = vperm.xlu0 %3857, %v3856
  %v3859 = vpop.permute.xlu0 %3858
  %vm3860 = vcmp.eq.s32.totalorder %v3859, 1
  %v3861 = vsel %vm3860, %v3854, 0.0
  %v3862 = vsel %vm3860, %v3848, 0.0
  %3864 = vrot.lane.b32.xlu0 %v3861, 32
  %v3865 = vpop.permute.xlu0 %3864
  %3867 = vst.msk [vmem:[%s417] sm:$0xff] %vm122, %v3865
  %v3868 = vld [vmem:[%s421] sm:$0xff]
  %v3869 = vld [vmem:[%s423] sm:$0xff]
  %v3870 = vpack.c.bf16 %v3769, %v3769
  %3872 = vrot.lane.b32.xlu0 %v3870, 32
  %v3873 = vpop.permute.xlu0 %3872
  %v3875 = vsel %vm122, %v3873, 0
  %3877 = vmatprep.subr.bf16.mxu0 0
  %3878 = vmatpush1.bf16.msra.mxu0 0
  %3879 = vmatprep.subr.bf16.mxu0 0
  %3880 = vmatpush1.bf16.msra.mxu0 0
  %3881 = vmatprep.subr.bf16.mxu0 0
  %3882 = vmatpush1.bf16.msra.mxu0 0
  %3883 = vmatprep.subr.bf16.mxu0 0
  %3884 = vmatpush1.bf16.msra.mxu0 0
  %3885 = vmatprep.subr.bf16.mxu0 0
  %3886 = vmatpush1.bf16.msra.mxu0 0
  %3887 = vmatprep.subr.bf16.mxu0 0
  %3888 = vmatpush1.bf16.msra.mxu0 0
  %3889 = vmatprep.subr.bf16.mxu0 0
  %3890 = vmatpush1.bf16.msra.mxu0 %v3695
  %3891 = vmatprep.subr.bf16.mxu0 0
  %3892 = vmatpush1.bf16.msra.mxu0 %v3694
  %3893 = vmatprep.subr.bf16.mxu0 0
  %3894 = vmatpush2.bf16.msra.mxu0 0
  %3895 = vmatprep.subr.bf16.mxu0 0
  %3896 = vmatpush2.bf16.msra.mxu0 0
  %3897 = vmatprep.subr.bf16.mxu0 0
  %3898 = vmatpush2.bf16.msra.mxu0 0
  %3899 = vmatprep.subr.bf16.mxu0 0
  %3900 = vmatpush2.bf16.msra.mxu0 0
  %3901 = vmatprep.subr.bf16.mxu0 0
  %3902 = vmatpush2.bf16.msra.mxu0 0
  %3903 = vmatprep.subr.bf16.mxu0 0
  %3904 = vmatpush2.bf16.msra.mxu0 0
  %3905 = vmatprep.subr.bf16.mxu0 0
  %3906 = vmatpush2.bf16.msra.mxu0 0
  %3907 = vmatprep.subr.bf16.mxu0 0
  %3908 = vmatpush2.bf16.msra.mxu0 0
  %3909 = vmatprep.mubr.bf16.mxu0 0
  %3910 = vmatmul.mubr.bf16.gmra.mxu0 %v3875
  %v3911 = vpop.f32.mrf.mxu0
  %v3912 = vadd.f32 0.0, %v3911
  %v3913 = vpop.f32.mrf.mxu0
  %v3914 = vpop.f32.mrf.mxu0
  %v3915 = vpop.f32.mrf.mxu0
  %3916 = vdwg.mxu0
  %v3917 = vadd.f32 %v3868, %v3912
  %v3918 = vxor.u32 %v3917, 2147483648
  %v3919 = vmul.f32 %v3918, 1.442695
  %v3920 = vpow.pop %v3919
  %v3921 = vadd.f32 %v3920, 1.0
  %v3922 = vrcp.pop %v3921
  %v3923 = vmul.f32 1.0, %v3922
  %v3924 = vtanh.pop %v3917
  %v3925 = vmul.f32 %v3923, %v3770
  %3927 = vrot.lane.b32.xlu0 %v3924, 64
  %v3928 = vpop.permute.xlu0 %3927
  %v3930 = vmul.f32 %v3923, %v3928
  %3932 = vrot.lane.b32.xlu0 %v3930, 32
  %v3933 = vpop.permute.xlu0 %3932
  %v3935 = vadd.f32 %v3925, %v3933
  %v3936 = vtanh.pop %v3935
  %3938 = vrot.lane.b32.xlu0 %v3936, 64
  %v3939 = vpop.permute.xlu0 %3938
  %v3941 = vmul.f32 %v3923, %v3939
  %vm3942 = vcmp.gt.f32.partialorder %v3869, 0.0
  %v3943 = vsel %vm3942, 1, 0
  %3944 = vset.pattern.permute.xlu0 0
  %3945 = vperm.xlu0 %3944, %v3943
  %v3946 = vpop.permute.xlu0 %3945
  %vm3947 = vcmp.eq.s32.totalorder %v3946, 1
  %v3948 = vsel %vm3947, %v3941, %v3769
  %v3949 = vsel %vm3947, %v3935, %v3770
  %v3950 = vsel %vm3947, %v3941, 0.0
  %3952 = vrot.lane.b32.xlu0 %v3950, 32
  %v3953 = vpop.permute.xlu0 %3952
  %3955 = vst.msk [vmem:[%s510] sm:$0xff] %vm122, %v3953
  %v3956 = vld [vmem:[%s514 + $0x8] sm:$0xff]
  %v3957 = vld [vmem:[%s516] sm:$0xff]
  %v3958 = vpack.c.bf16 %v3861, %v3861
  %3960 = vrot.lane.b32.xlu0 %v3958, 32
  %v3961 = vpop.permute.xlu0 %3960
  %v3963 = vsel %vm122, %v3961, 0
  %3965 = vmatprep.subr.bf16.mxu0 0
  %3966 = vmatpush1.bf16.msra.mxu0 0
  %3967 = vmatprep.subr.bf16.mxu0 0
  %3968 = vmatpush1.bf16.msra.mxu0 0
  %3969 = vmatprep.subr.bf16.mxu0 0
  %3970 = vmatpush1.bf16.msra.mxu0 0
  %3971 = vmatprep.subr.bf16.mxu0 0
  %3972 = vmatpush1.bf16.msra.mxu0 0
  %3973 = vmatprep.subr.bf16.mxu0 0
  %3974 = vmatpush1.bf16.msra.mxu0 0
  %3975 = vmatprep.subr.bf16.mxu0 0
  %3976 = vmatpush1.bf16.msra.mxu0 0
  %3977 = vmatprep.subr.bf16.mxu0 0
  %3978 = vmatpush1.bf16.msra.mxu0 %v3787
  %3979 = vmatprep.subr.bf16.mxu0 0
  %3980 = vmatpush1.bf16.msra.mxu0 %v3786
  %3981 = vmatprep.subr.bf16.mxu0 0
  %3982 = vmatpush2.bf16.msra.mxu0 0
  %3983 = vmatprep.subr.bf16.mxu0 0
  %3984 = vmatpush2.bf16.msra.mxu0 0
  %3985 = vmatprep.subr.bf16.mxu0 0
  %3986 = vmatpush2.bf16.msra.mxu0 0
  %3987 = vmatprep.subr.bf16.mxu0 0
  %3988 = vmatpush2.bf16.msra.mxu0 0
  %3989 = vmatprep.subr.bf16.mxu0 0
  %3990 = vmatpush2.bf16.msra.mxu0 0
  %3991 = vmatprep.subr.bf16.mxu0 0
  %3992 = vmatpush2.bf16.msra.mxu0 0
  %3993 = vmatprep.subr.bf16.mxu0 0
  %3994 = vmatpush2.bf16.msra.mxu0 0
  %3995 = vmatprep.subr.bf16.mxu0 0
  %3996 = vmatpush2.bf16.msra.mxu0 0
  %3997 = vmatprep.mubr.bf16.mxu0 0
  %3998 = vmatmul.mubr.bf16.gmra.mxu0 %v3963
  %v3999 = vpop.f32.mrf.mxu0
  %v4000 = vadd.f32 0.0, %v3999
  %v4001 = vpop.f32.mrf.mxu0
  %v4002 = vpop.f32.mrf.mxu0
  %v4003 = vpop.f32.mrf.mxu0
  %4004 = vdwg.mxu0
  %v4005 = vadd.f32 %v3956, %v4000
  %v4006 = vxor.u32 %v4005, 2147483648
  %v4007 = vmul.f32 %v4006, 1.442695
  %v4008 = vpow.pop %v4007
  %v4009 = vadd.f32 %v4008, 1.0
  %v4010 = vrcp.pop %v4009
  %v4011 = vmul.f32 1.0, %v4010
  %v4012 = vtanh.pop %v4005
  %v4013 = vmul.f32 %v4011, %v3862
  %4015 = vrot.lane.b32.xlu0 %v4012, 64
  %v4016 = vpop.permute.xlu0 %4015
  %v4018 = vmul.f32 %v4011, %v4016
  %4020 = vrot.lane.b32.xlu0 %v4018, 32
  %v4021 = vpop.permute.xlu0 %4020
  %v4023 = vadd.f32 %v4013, %v4021
  %v4024 = vtanh.pop %v4023
  %4026 = vrot.lane.b32.xlu0 %v4024, 64
  %v4027 = vpop.permute.xlu0 %4026
  %v4029 = vmul.f32 %v4011, %v4027
  %vm4030 = vcmp.gt.f32.partialorder %v3957, 0.0
  %v4031 = vsel %vm4030, 1, 0
  %4032 = vset.pattern.permute.xlu0 0
  %4033 = vperm.xlu0 %4032, %v4031
  %v4034 = vpop.permute.xlu0 %4033
  %vm4035 = vcmp.eq.s32.totalorder %v4034, 1
  %v4036 = vsel %vm4035, %v4029, %v3861
  %v4037 = vsel %vm4035, %v4023, %v3862
  %v4038 = vsel %vm4035, %v4029, 0.0
  %4040 = vrot.lane.b32.xlu0 %v4038, 32
  %v4041 = vpop.permute.xlu0 %4040
  %4043 = vst.msk [vmem:[%s603] sm:$0xff] %vm122, %v4041
  %v4044 = vld [vmem:[%s607] sm:$0xff]
  %v4045 = vld [vmem:[%s609] sm:$0xff]
  %v4046 = vpack.c.bf16 %v3948, %v3948
  %4048 = vrot.lane.b32.xlu0 %v4046, 32
  %v4049 = vpop.permute.xlu0 %4048
  %v4051 = vsel %vm122, %v4049, 0
  %4053 = vmatprep.subr.bf16.mxu0 0
  %4054 = vmatpush1.bf16.msra.mxu0 0
  %4055 = vmatprep.subr.bf16.mxu0 0
  %4056 = vmatpush1.bf16.msra.mxu0 0
  %4057 = vmatprep.subr.bf16.mxu0 0
  %4058 = vmatpush1.bf16.msra.mxu0 0
  %4059 = vmatprep.subr.bf16.mxu0 0
  %4060 = vmatpush1.bf16.msra.mxu0 0
  %4061 = vmatprep.subr.bf16.mxu0 0
  %4062 = vmatpush1.bf16.msra.mxu0 0
  %4063 = vmatprep.subr.bf16.mxu0 0
  %4064 = vmatpush1.bf16.msra.mxu0 0
  %4065 = vmatprep.subr.bf16.mxu0 0
  %4066 = vmatpush1.bf16.msra.mxu0 %v3695
  %4067 = vmatprep.subr.bf16.mxu0 0
  %4068 = vmatpush1.bf16.msra.mxu0 %v3694
  %4069 = vmatprep.subr.bf16.mxu0 0
  %4070 = vmatpush2.bf16.msra.mxu0 0
  %4071 = vmatprep.subr.bf16.mxu0 0
  %4072 = vmatpush2.bf16.msra.mxu0 0
  %4073 = vmatprep.subr.bf16.mxu0 0
  %4074 = vmatpush2.bf16.msra.mxu0 0
  %4075 = vmatprep.subr.bf16.mxu0 0
  %4076 = vmatpush2.bf16.msra.mxu0 0
  %4077 = vmatprep.subr.bf16.mxu0 0
  %4078 = vmatpush2.bf16.msra.mxu0 0
  %4079 = vmatprep.subr.bf16.mxu0 0
  %4080 = vmatpush2.bf16.msra.mxu0 0
  %4081 = vmatprep.subr.bf16.mxu0 0
  %4082 = vmatpush2.bf16.msra.mxu0 0
  %4083 = vmatprep.subr.bf16.mxu0 0
  %4084 = vmatpush2.bf16.msra.mxu0 0
  %4085 = vmatprep.mubr.bf16.mxu0 0
  %4086 = vmatmul.mubr.bf16.gmra.mxu0 %v4051
  %v4087 = vpop.f32.mrf.mxu0
  %v4088 = vadd.f32 0.0, %v4087
  %v4089 = vpop.f32.mrf.mxu0
  %v4090 = vpop.f32.mrf.mxu0
  %v4091 = vpop.f32.mrf.mxu0
  %4092 = vdwg.mxu0
  %v4093 = vadd.f32 %v4044, %v4088
  %v4094 = vxor.u32 %v4093, 2147483648
  %v4095 = vmul.f32 %v4094, 1.442695
  %v4096 = vpow.pop %v4095
  %v4097 = vadd.f32 %v4096, 1.0
  %v4098 = vrcp.pop %v4097
  %v4099 = vmul.f32 1.0, %v4098
  %v4100 = vtanh.pop %v4093
  %v4101 = vmul.f32 %v4099, %v3949
  %4103 = vrot.lane.b32.xlu0 %v4100, 64
  %v4104 = vpop.permute.xlu0 %4103
  %v4106 = vmul.f32 %v4099, %v4104
  %4108 = vrot.lane.b32.xlu0 %v4106, 32
  %v4109 = vpop.permute.xlu0 %4108
  %v4111 = vadd.f32 %v4101, %v4109
  %v4112 = vtanh.pop %v4111
  %4114 = vrot.lane.b32.xlu0 %v4112, 64
  %v4115 = vpop.permute.xlu0 %4114
  %v4117 = vmul.f32 %v4099, %v4115
  %vm4118 = vcmp.gt.f32.partialorder %v4045, 0.0
  %v4119 = vsel %vm4118, 1, 0
  %4120 = vset.pattern.permute.xlu0 0
  %4121 = vperm.xlu0 %4120, %v4119
  %v4122 = vpop.permute.xlu0 %4121
  %vm4123 = vcmp.eq.s32.totalorder %v4122, 1
  %v4124 = vsel %vm4123, %v4117, %v3948
  %v4125 = vsel %vm4123, %v4111, %v3949
  %v4126 = vsel %vm4123, %v4117, 0.0
  %4128 = vrot.lane.b32.xlu0 %v4126, 32
  %v4129 = vpop.permute.xlu0 %4128
  %4131 = vst.msk [vmem:[%s696] sm:$0xff] %vm122, %v4129
  %v4132 = vld [vmem:[%s700 + $0x8] sm:$0xff]
  %v4133 = vld [vmem:[%s702] sm:$0xff]
  %v4134 = vpack.c.bf16 %v4036, %v4036
  %4136 = vrot.lane.b32.xlu0 %v4134, 32
  %v4137 = vpop.permute.xlu0 %4136
  %v4139 = vsel %vm122, %v4137, 0
  %4141 = vmatprep.subr.bf16.mxu0 0
  %4142 = vmatpush1.bf16.msra.mxu0 0
  %4143 = vmatprep.subr.bf16.mxu0 0
  %4144 = vmatpush1.bf16.msra.mxu0 0
  %4145 = vmatprep.subr.bf16.mxu0 0
  %4146 = vmatpush1.bf16.msra.mxu0 0
  %4147 = vmatprep.subr.bf16.mxu0 0
  %4148 = vmatpush1.bf16.msra.mxu0 0
  %4149 = vmatprep.subr.bf16.mxu0 0
  %4150 = vmatpush1.bf16.msra.mxu0 0
  %4151 = vmatprep.subr.bf16.mxu0 0
  %4152 = vmatpush1.bf16.msra.mxu0 0
  %4153 = vmatprep.subr.bf16.mxu0 0
  %4154 = vmatpush1.bf16.msra.mxu0 %v3787
  %4155 = vmatprep.subr.bf16.mxu0 0
  %4156 = vmatpush1.bf16.msra.mxu0 %v3786
  %4157 = vmatprep.subr.bf16.mxu0 0
  %4158 = vmatpush2.bf16.msra.mxu0 0
  %4159 = vmatprep.subr.bf16.mxu0 0
  %4160 = vmatpush2.bf16.msra.mxu0 0
  %4161 = vmatprep.subr.bf16.mxu0 0
  %4162 = vmatpush2.bf16.msra.mxu0 0
  %4163 = vmatprep.subr.bf16.mxu0 0
  %4164 = vmatpush2.bf16.msra.mxu0 0
  %4165 = vmatprep.subr.bf16.mxu0 0
  %4166 = vmatpush2.bf16.msra.mxu0 0
  %4167 = vmatprep.subr.bf16.mxu0 0
  %4168 = vmatpush2.bf16.msra.mxu0 0
  %4169 = vmatprep.subr.bf16.mxu0 0
  %4170 = vmatpush2.bf16.msra.mxu0 0
  %4171 = vmatprep.subr.bf16.mxu0 0
  %4172 = vmatpush2.bf16.msra.mxu0 0
  %4173 = vmatprep.mubr.bf16.mxu0 0
  %4174 = vmatmul.mubr.bf16.gmra.mxu0 %v4139
  %v4175 = vpop.f32.mrf.mxu0
  %v4176 = vadd.f32 0.0, %v4175
  %v4177 = vpop.f32.mrf.mxu0
  %v4178 = vpop.f32.mrf.mxu0
  %v4179 = vpop.f32.mrf.mxu0
  %4180 = vdwg.mxu0
  %v4181 = vadd.f32 %v4132, %v4176
  %v4182 = vxor.u32 %v4181, 2147483648
  %v4183 = vmul.f32 %v4182, 1.442695
  %v4184 = vpow.pop %v4183
  %v4185 = vadd.f32 %v4184, 1.0
  %v4186 = vrcp.pop %v4185
  %v4187 = vmul.f32 1.0, %v4186
  %v4188 = vtanh.pop %v4181
  %v4189 = vmul.f32 %v4187, %v4037
  %4191 = vrot.lane.b32.xlu0 %v4188, 64
  %v4192 = vpop.permute.xlu0 %4191
  %v4194 = vmul.f32 %v4187, %v4192
  %4196 = vrot.lane.b32.xlu0 %v4194, 32
  %v4197 = vpop.permute.xlu0 %4196
  %v4199 = vadd.f32 %v4189, %v4197
  %v4200 = vtanh.pop %v4199
  %4202 = vrot.lane.b32.xlu0 %v4200, 64
  %v4203 = vpop.permute.xlu0 %4202
  %v4205 = vmul.f32 %v4187, %v4203
  %vm4206 = vcmp.gt.f32.partialorder %v4133, 0.0
  %v4207 = vsel %vm4206, 1, 0
  %4208 = vset.pattern.permute.xlu0 0
  %4209 = vperm.xlu0 %4208, %v4207
  %v4210 = vpop.permute.xlu0 %4209
  %vm4211 = vcmp.eq.s32.totalorder %v4210, 1
  %v4212 = vsel %vm4211, %v4205, %v4036
  %v4213 = vsel %vm4211, %v4199, %v4037
  %v4214 = vsel %vm4211, %v4205, 0.0
  %4216 = vrot.lane.b32.xlu0 %v4214, 32
  %v4217 = vpop.permute.xlu0 %4216
  %4219 = vst.msk [vmem:[%s789] sm:$0xff] %vm122, %v4217
  %v4220 = vld [vmem:[%s793] sm:$0xff]
  %v4221 = vld [vmem:[%s795] sm:$0xff]
  %v4222 = vpack.c.bf16 %v4124, %v4124
  %4224 = vrot.lane.b32.xlu0 %v4222, 32
  %v4225 = vpop.permute.xlu0 %4224
  %v4227 = vsel %vm122, %v4225, 0
  %4229 = vmatprep.subr.bf16.mxu0 0
  %4230 = vmatpush1.bf16.msra.mxu0 0
  %4231 = vmatprep.subr.bf16.mxu0 0
  %4232 = vmatpush1.bf16.msra.mxu0 0
  %4233 = vmatprep.subr.bf16.mxu0 0
  %4234 = vmatpush1.bf16.msra.mxu0 0
  %4235 = vmatprep.subr.bf16.mxu0 0
  %4236 = vmatpush1.bf16.msra.mxu0 0
  %4237 = vmatprep.subr.bf16.mxu0 0
  %4238 = vmatpush1.bf16.msra.mxu0 0
  %4239 = vmatprep.subr.bf16.mxu0 0
  %4240 = vmatpush1.bf16.msra.mxu0 0
  %4241 = vmatprep.subr.bf16.mxu0 0
  %4242 = vmatpush1.bf16.msra.mxu0 %v3695
  %4243 = vmatprep.subr.bf16.mxu0 0
  %4244 = vmatpush1.bf16.msra.mxu0 %v3694
  %4245 = vmatprep.subr.bf16.mxu0 0
  %4246 = vmatpush2.bf16.msra.mxu0 0
  %4247 = vmatprep.subr.bf16.mxu0 0
  %4248 = vmatpush2.bf16.msra.mxu0 0
  %4249 = vmatprep.subr.bf16.mxu0 0
  %4250 = vmatpush2.bf16.msra.mxu0 0
  %4251 = vmatprep.subr.bf16.mxu0 0
  %4252 = vmatpush2.bf16.msra.mxu0 0
  %4253 = vmatprep.subr.bf16.mxu0 0
  %4254 = vmatpush2.bf16.msra.mxu0 0
  %4255 = vmatprep.subr.bf16.mxu0 0
  %4256 = vmatpush2.bf16.msra.mxu0 0
  %4257 = vmatprep.subr.bf16.mxu0 0
  %4258 = vmatpush2.bf16.msra.mxu0 0
  %4259 = vmatprep.subr.bf16.mxu0 0
  %4260 = vmatpush2.bf16.msra.mxu0 0
  %4261 = vmatprep.mubr.bf16.mxu0 0
  %4262 = vmatmul.mubr.bf16.gmra.mxu0 %v4227
  %v4263 = vpop.f32.mrf.mxu0
  %v4264 = vadd.f32 0.0, %v4263
  %v4265 = vpop.f32.mrf.mxu0
  %v4266 = vpop.f32.mrf.mxu0
  %v4267 = vpop.f32.mrf.mxu0
  %4268 = vdwg.mxu0
  %v4269 = vadd.f32 %v4220, %v4264
  %v4270 = vxor.u32 %v4269, 2147483648
  %v4271 = vmul.f32 %v4270, 1.442695
  %v4272 = vpow.pop %v4271
  %v4273 = vadd.f32 %v4272, 1.0
  %v4274 = vrcp.pop %v4273
  %v4275 = vmul.f32 1.0, %v4274
  %v4276 = vtanh.pop %v4269
  %v4277 = vmul.f32 %v4275, %v4125
  %4279 = vrot.lane.b32.xlu0 %v4276, 64
  %v4280 = vpop.permute.xlu0 %4279
  %v4282 = vmul.f32 %v4275, %v4280
  %4284 = vrot.lane.b32.xlu0 %v4282, 32
  %v4285 = vpop.permute.xlu0 %4284
  %v4287 = vadd.f32 %v4277, %v4285
  %v4288 = vtanh.pop %v4287
  %4290 = vrot.lane.b32.xlu0 %v4288, 64
  %v4291 = vpop.permute.xlu0 %4290
  %v4293 = vmul.f32 %v4275, %v4291
  %vm4294 = vcmp.gt.f32.partialorder %v4221, 0.0
  %v4295 = vsel %vm4294, 1, 0
  %4296 = vset.pattern.permute.xlu0 0
  %4297 = vperm.xlu0 %4296, %v4295
  %v4298 = vpop.permute.xlu0 %4297
  %vm4299 = vcmp.eq.s32.totalorder %v4298, 1
  %v4300 = vsel %vm4299, %v4293, %v4124
  %v4301 = vsel %vm4299, %v4287, %v4125
  %v4302 = vsel %vm4299, %v4293, 0.0
  %4304 = vrot.lane.b32.xlu0 %v4302, 32
  %v4305 = vpop.permute.xlu0 %4304
  %4307 = vst.msk [vmem:[%s882] sm:$0xff] %vm122, %v4305
  %v4308 = vld [vmem:[%s886 + $0x8] sm:$0xff]
  %v4309 = vld [vmem:[%s888] sm:$0xff]
  %v4310 = vpack.c.bf16 %v4212, %v4212
  %4312 = vrot.lane.b32.xlu0 %v4310, 32
  %v4313 = vpop.permute.xlu0 %4312
  %v4315 = vsel %vm122, %v4313, 0
  %4317 = vmatprep.subr.bf16.mxu0 0
  %4318 = vmatpush1.bf16.msra.mxu0 0
  %4319 = vmatprep.subr.bf16.mxu0 0
  %4320 = vmatpush1.bf16.msra.mxu0 0
  %4321 = vmatprep.subr.bf16.mxu0 0
  %4322 = vmatpush1.bf16.msra.mxu0 0
  %4323 = vmatprep.subr.bf16.mxu0 0
  %4324 = vmatpush1.bf16.msra.mxu0 0
  %4325 = vmatprep.subr.bf16.mxu0 0
  %4326 = vmatpush1.bf16.msra.mxu0 0
  %4327 = vmatprep.subr.bf16.mxu0 0
  %4328 = vmatpush1.bf16.msra.mxu0 0
  %4329 = vmatprep.subr.bf16.mxu0 0
  %4330 = vmatpush1.bf16.msra.mxu0 %v3787
  %4331 = vmatprep.subr.bf16.mxu0 0
  %4332 = vmatpush1.bf16.msra.mxu0 %v3786
  %4333 = vmatprep.subr.bf16.mxu0 0
  %4334 = vmatpush2.bf16.msra.mxu0 0
  %4335 = vmatprep.subr.bf16.mxu0 0
  %4336 = vmatpush2.bf16.msra.mxu0 0
  %4337 = vmatprep.subr.bf16.mxu0 0
  %4338 = vmatpush2.bf16.msra.mxu0 0
  %4339 = vmatprep.subr.bf16.mxu0 0
  %4340 = vmatpush2.bf16.msra.mxu0 0
  %4341 = vmatprep.subr.bf16.mxu0 0
  %4342 = vmatpush2.bf16.msra.mxu0 0
  %4343 = vmatprep.subr.bf16.mxu0 0
  %4344 = vmatpush2.bf16.msra.mxu0 0
  %4345 = vmatprep.subr.bf16.mxu0 0
  %4346 = vmatpush2.bf16.msra.mxu0 0
  %4347 = vmatprep.subr.bf16.mxu0 0
  %4348 = vmatpush2.bf16.msra.mxu0 0
  %4349 = vmatprep.mubr.bf16.mxu0 0
  %4350 = vmatmul.mubr.bf16.gmra.mxu0 %v4315
  %v4351 = vpop.f32.mrf.mxu0
  %v4352 = vadd.f32 0.0, %v4351
  %v4353 = vpop.f32.mrf.mxu0
  %v4354 = vpop.f32.mrf.mxu0
  %v4355 = vpop.f32.mrf.mxu0
  %4356 = vdwg.mxu0
  %v4357 = vadd.f32 %v4308, %v4352
  %v4358 = vxor.u32 %v4357, 2147483648
  %v4359 = vmul.f32 %v4358, 1.442695
  %v4360 = vpow.pop %v4359
  %v4361 = vadd.f32 %v4360, 1.0
  %v4362 = vrcp.pop %v4361
  %v4363 = vmul.f32 1.0, %v4362
  %v4364 = vtanh.pop %v4357
  %v4365 = vmul.f32 %v4363, %v4213
  %4367 = vrot.lane.b32.xlu0 %v4364, 64
  %v4368 = vpop.permute.xlu0 %4367
  %v4370 = vmul.f32 %v4363, %v4368
  %4372 = vrot.lane.b32.xlu0 %v4370, 32
  %v4373 = vpop.permute.xlu0 %4372
  %v4375 = vadd.f32 %v4365, %v4373
  %v4376 = vtanh.pop %v4375
  %4378 = vrot.lane.b32.xlu0 %v4376, 64
  %v4379 = vpop.permute.xlu0 %4378
  %v4381 = vmul.f32 %v4363, %v4379
  %vm4382 = vcmp.gt.f32.partialorder %v4309, 0.0
  %v4383 = vsel %vm4382, 1, 0
  %4384 = vset.pattern.permute.xlu0 0
  %4385 = vperm.xlu0 %4384, %v4383
  %v4386 = vpop.permute.xlu0 %4385
  %vm4387 = vcmp.eq.s32.totalorder %v4386, 1
  %v4388 = vsel %vm4387, %v4381, %v4212
  %v4389 = vsel %vm4387, %v4375, %v4213
  %v4390 = vsel %vm4387, %v4381, 0.0
  %4392 = vrot.lane.b32.xlu0 %v4390, 32
  %v4393 = vpop.permute.xlu0 %4392
  %4395 = vst.msk [vmem:[%s975] sm:$0xff] %vm122, %v4393
  %v4396 = vld [vmem:[%s886] sm:$0xff]
  %v4397 = vld [vmem:[%s888] sm:$0xff]
  %v4398 = vpack.c.bf16 %v4300, %v4300
  %4400 = vrot.lane.b32.xlu0 %v4398, 32
  %v4401 = vpop.permute.xlu0 %4400
  %v4403 = vsel %vm122, %v4401, 0
  %4405 = vmatprep.subr.bf16.mxu0 0
  %4406 = vmatpush1.bf16.msra.mxu0 0
  %4407 = vmatprep.subr.bf16.mxu0 0
  %4408 = vmatpush1.bf16.msra.mxu0 0
  %4409 = vmatprep.subr.bf16.mxu0 0
  %4410 = vmatpush1.bf16.msra.mxu0 0
  %4411 = vmatprep.subr.bf16.mxu0 0
  %4412 = vmatpush1.bf16.msra.mxu0 0
  %4413 = vmatprep.subr.bf16.mxu0 0
  %4414 = vmatpush1.bf16.msra.mxu0 0
  %4415 = vmatprep.subr.bf16.mxu0 0
  %4416 = vmatpush1.bf16.msra.mxu0 0
  %4417 = vmatprep.subr.bf16.mxu0 0
  %4418 = vmatpush1.bf16.msra.mxu0 %v3695
  %4419 = vmatprep.subr.bf16.mxu0 0
  %4420 = vmatpush1.bf16.msra.mxu0 %v3694
  %4421 = vmatprep.subr.bf16.mxu0 0
  %4422 = vmatpush2.bf16.msra.mxu0 0
  %4423 = vmatprep.subr.bf16.mxu0 0
  %4424 = vmatpush2.bf16.msra.mxu0 0
  %4425 = vmatprep.subr.bf16.mxu0 0
  %4426 = vmatpush2.bf16.msra.mxu0 0
  %4427 = vmatprep.subr.bf16.mxu0 0
  %4428 = vmatpush2.bf16.msra.mxu0 0
  %4429 = vmatprep.subr.bf16.mxu0 0
  %4430 = vmatpush2.bf16.msra.mxu0 0
  %4431 = vmatprep.subr.bf16.mxu0 0
  %4432 = vmatpush2.bf16.msra.mxu0 0
  %4433 = vmatprep.subr.bf16.mxu0 0
  %4434 = vmatpush2.bf16.msra.mxu0 0
  %4435 = vmatprep.subr.bf16.mxu0 0
  %4436 = vmatpush2.bf16.msra.mxu0 0
  %4437 = vmatprep.mubr.bf16.mxu0 0
  %4438 = vmatmul.mubr.bf16.gmra.mxu0 %v4403
  %v4439 = vpop.f32.mrf.mxu0
  %v4440 = vadd.f32 0.0, %v4439
  %v4441 = vpop.f32.mrf.mxu0
  %v4442 = vpop.f32.mrf.mxu0
  %v4443 = vpop.f32.mrf.mxu0
  %4444 = vdwg.mxu0
  %v4445 = vadd.f32 %v4396, %v4440
  %v4446 = vxor.u32 %v4445, 2147483648
  %v4447 = vmul.f32 %v4446, 1.442695
  %v4448 = vpow.pop %v4447
  %v4449 = vadd.f32 %v4448, 1.0
  %v4450 = vrcp.pop %v4449
  %v4451 = vmul.f32 1.0, %v4450
  %v4452 = vtanh.pop %v4445
  %v4453 = vmul.f32 %v4451, %v4301
  %4455 = vrot.lane.b32.xlu0 %v4452, 64
  %v4456 = vpop.permute.xlu0 %4455
  %v4458 = vmul.f32 %v4451, %v4456
  %4460 = vrot.lane.b32.xlu0 %v4458, 32
  %v4461 = vpop.permute.xlu0 %4460
  %v4463 = vadd.f32 %v4453, %v4461
  %v4464 = vtanh.pop %v4463
  %4466 = vrot.lane.b32.xlu0 %v4464, 64
  %v4467 = vpop.permute.xlu0 %4466
  %v4469 = vmul.f32 %v4451, %v4467
  %vm4470 = vcmp.gt.f32.partialorder %v4397, 0.0
  %v4471 = vsel %vm4470, 1, 0
  %4472 = vset.pattern.permute.xlu0 0
  %4473 = vperm.xlu0 %4472, %v4471
  %v4474 = vpop.permute.xlu0 %4473
  %vm4475 = vcmp.eq.s32.totalorder %v4474, 1
  %v4476 = vsel %vm4475, %v4469, %v4300
  %v4477 = vsel %vm4475, %v4463, %v4301
  %v4478 = vsel %vm4475, %v4469, 0.0
  %4480 = vrot.lane.b32.xlu0 %v4478, 32
  %v4481 = vpop.permute.xlu0 %4480
  %4483 = vst.msk [vmem:[%s1064] sm:$0xff] %vm122, %v4481
  %v4484 = vld [vmem:[%s793 + $0x8] sm:$0xff]
  %v4485 = vld [vmem:[%s795] sm:$0xff]
  %v4486 = vpack.c.bf16 %v4388, %v4388
  %4488 = vrot.lane.b32.xlu0 %v4486, 32
  %v4489 = vpop.permute.xlu0 %4488
  %v4491 = vsel %vm122, %v4489, 0
  %4493 = vmatprep.subr.bf16.mxu0 0
  %4494 = vmatpush1.bf16.msra.mxu0 0
  %4495 = vmatprep.subr.bf16.mxu0 0
  %4496 = vmatpush1.bf16.msra.mxu0 0
  %4497 = vmatprep.subr.bf16.mxu0 0
  %4498 = vmatpush1.bf16.msra.mxu0 0
  %4499 = vmatprep.subr.bf16.mxu0 0
  %4500 = vmatpush1.bf16.msra.mxu0 0
  %4501 = vmatprep.subr.bf16.mxu0 0
  %4502 = vmatpush1.bf16.msra.mxu0 0
  %4503 = vmatprep.subr.bf16.mxu0 0
  %4504 = vmatpush1.bf16.msra.mxu0 0
  %4505 = vmatprep.subr.bf16.mxu0 0
  %4506 = vmatpush1.bf16.msra.mxu0 %v3787
  %4507 = vmatprep.subr.bf16.mxu0 0
  %4508 = vmatpush1.bf16.msra.mxu0 %v3786
  %4509 = vmatprep.subr.bf16.mxu0 0
  %4510 = vmatpush2.bf16.msra.mxu0 0
  %4511 = vmatprep.subr.bf16.mxu0 0
  %4512 = vmatpush2.bf16.msra.mxu0 0
  %4513 = vmatprep.subr.bf16.mxu0 0
  %4514 = vmatpush2.bf16.msra.mxu0 0
  %4515 = vmatprep.subr.bf16.mxu0 0
  %4516 = vmatpush2.bf16.msra.mxu0 0
  %4517 = vmatprep.subr.bf16.mxu0 0
  %4518 = vmatpush2.bf16.msra.mxu0 0
  %4519 = vmatprep.subr.bf16.mxu0 0
  %4520 = vmatpush2.bf16.msra.mxu0 0
  %4521 = vmatprep.subr.bf16.mxu0 0
  %4522 = vmatpush2.bf16.msra.mxu0 0
  %4523 = vmatprep.subr.bf16.mxu0 0
  %4524 = vmatpush2.bf16.msra.mxu0 0
  %4525 = vmatprep.mubr.bf16.mxu0 0
  %4526 = vmatmul.mubr.bf16.gmra.mxu0 %v4491
  %v4527 = vpop.f32.mrf.mxu0
  %v4528 = vadd.f32 0.0, %v4527
  %v4529 = vpop.f32.mrf.mxu0
  %v4530 = vpop.f32.mrf.mxu0
  %v4531 = vpop.f32.mrf.mxu0
  %4532 = vdwg.mxu0
  %v4533 = vadd.f32 %v4484, %v4528
  %v4534 = vxor.u32 %v4533, 2147483648
  %v4535 = vmul.f32 %v4534, 1.442695
  %v4536 = vpow.pop %v4535
  %v4537 = vadd.f32 %v4536, 1.0
  %v4538 = vrcp.pop %v4537
  %v4539 = vmul.f32 1.0, %v4538
  %v4540 = vtanh.pop %v4533
  %v4541 = vmul.f32 %v4539, %v4389
  %4543 = vrot.lane.b32.xlu0 %v4540, 64
  %v4544 = vpop.permute.xlu0 %4543
  %v4546 = vmul.f32 %v4539, %v4544
  %4548 = vrot.lane.b32.xlu0 %v4546, 32
  %v4549 = vpop.permute.xlu0 %4548
  %v4551 = vadd.f32 %v4541, %v4549
  %v4552 = vtanh.pop %v4551
  %4554 = vrot.lane.b32.xlu0 %v4552, 64
  %v4555 = vpop.permute.xlu0 %4554
  %v4557 = vmul.f32 %v4539, %v4555
  %vm4558 = vcmp.gt.f32.partialorder %v4485, 0.0
  %v4559 = vsel %vm4558, 1, 0
  %4560 = vset.pattern.permute.xlu0 0
  %4561 = vperm.xlu0 %4560, %v4559
  %v4562 = vpop.permute.xlu0 %4561
  %vm4563 = vcmp.eq.s32.totalorder %v4562, 1
  %v4564 = vsel %vm4563, %v4557, %v4388
  %v4565 = vsel %vm4563, %v4551, %v4389
  %v4566 = vsel %vm4563, %v4557, 0.0
  %4568 = vrot.lane.b32.xlu0 %v4566, 32
  %v4569 = vpop.permute.xlu0 %4568
  %4571 = vst.msk [vmem:[%s1153] sm:$0xff] %vm122, %v4569
  %v4572 = vld [vmem:[%s700] sm:$0xff]
  %v4573 = vld [vmem:[%s702] sm:$0xff]
  %v4574 = vpack.c.bf16 %v4476, %v4476
  %4576 = vrot.lane.b32.xlu0 %v4574, 32
  %v4577 = vpop.permute.xlu0 %4576
  %v4579 = vsel %vm122, %v4577, 0
  %4581 = vmatprep.subr.bf16.mxu0 0
  %4582 = vmatpush1.bf16.msra.mxu0 0
  %4583 = vmatprep.subr.bf16.mxu0 0
  %4584 = vmatpush1.bf16.msra.mxu0 0
  %4585 = vmatprep.subr.bf16.mxu0 0
  %4586 = vmatpush1.bf16.msra.mxu0 0
  %4587 = vmatprep.subr.bf16.mxu0 0
  %4588 = vmatpush1.bf16.msra.mxu0 0
  %4589 = vmatprep.subr.bf16.mxu0 0
  %4590 = vmatpush1.bf16.msra.mxu0 0
  %4591 = vmatprep.subr.bf16.mxu0 0
  %4592 = vmatpush1.bf16.msra.mxu0 0
  %4593 = vmatprep.subr.bf16.mxu0 0
  %4594 = vmatpush1.bf16.msra.mxu0 %v3695
  %4595 = vmatprep.subr.bf16.mxu0 0
  %4596 = vmatpush1.bf16.msra.mxu0 %v3694
  %4597 = vmatprep.subr.bf16.mxu0 0
  %4598 = vmatpush2.bf16.msra.mxu0 0
  %4599 = vmatprep.subr.bf16.mxu0 0
  %4600 = vmatpush2.bf16.msra.mxu0 0
  %4601 = vmatprep.subr.bf16.mxu0 0
  %4602 = vmatpush2.bf16.msra.mxu0 0
  %4603 = vmatprep.subr.bf16.mxu0 0
  %4604 = vmatpush2.bf16.msra.mxu0 0
  %4605 = vmatprep.subr.bf16.mxu0 0
  %4606 = vmatpush2.bf16.msra.mxu0 0
  %4607 = vmatprep.subr.bf16.mxu0 0
  %4608 = vmatpush2.bf16.msra.mxu0 0
  %4609 = vmatprep.subr.bf16.mxu0 0
  %4610 = vmatpush2.bf16.msra.mxu0 0
  %4611 = vmatprep.subr.bf16.mxu0 0
  %4612 = vmatpush2.bf16.msra.mxu0 0
  %4613 = vmatprep.mubr.bf16.mxu0 0
  %4614 = vmatmul.mubr.bf16.gmra.mxu0 %v4579
  %v4615 = vpop.f32.mrf.mxu0
  %v4616 = vadd.f32 0.0, %v4615
  %v4617 = vpop.f32.mrf.mxu0
  %v4618 = vpop.f32.mrf.mxu0
  %v4619 = vpop.f32.mrf.mxu0
  %4620 = vdwg.mxu0
  %v4621 = vadd.f32 %v4572, %v4616
  %v4622 = vxor.u32 %v4621, 2147483648
  %v4623 = vmul.f32 %v4622, 1.442695
  %v4624 = vpow.pop %v4623
  %v4625 = vadd.f32 %v4624, 1.0
  %v4626 = vrcp.pop %v4625
  %v4627 = vmul.f32 1.0, %v4626
  %v4628 = vtanh.pop %v4621
  %v4629 = vmul.f32 %v4627, %v4477
  %4631 = vrot.lane.b32.xlu0 %v4628, 64
  %v4632 = vpop.permute.xlu0 %4631
  %v4634 = vmul.f32 %v4627, %v4632
  %4636 = vrot.lane.b32.xlu0 %v4634, 32
  %v4637 = vpop.permute.xlu0 %4636
  %v4639 = vadd.f32 %v4629, %v4637
  %v4640 = vtanh.pop %v4639
  %4642 = vrot.lane.b32.xlu0 %v4640, 64
  %v4643 = vpop.permute.xlu0 %4642
  %v4645 = vmul.f32 %v4627, %v4643
  %vm4646 = vcmp.gt.f32.partialorder %v4573, 0.0
  %v4647 = vsel %vm4646, 1, 0
  %4648 = vset.pattern.permute.xlu0 0
  %4649 = vperm.xlu0 %4648, %v4647
  %v4650 = vpop.permute.xlu0 %4649
  %vm4651 = vcmp.eq.s32.totalorder %v4650, 1
  %v4652 = vsel %vm4651, %v4645, %v4476
  %v4653 = vsel %vm4651, %v4639, %v4477
  %v4654 = vsel %vm4651, %v4645, 0.0
  %4656 = vrot.lane.b32.xlu0 %v4654, 32
  %v4657 = vpop.permute.xlu0 %4656
  %4659 = vst.msk [vmem:[%s1242] sm:$0xff] %vm122, %v4657
  %v4660 = vld [vmem:[%s607 + $0x8] sm:$0xff]
  %v4661 = vld [vmem:[%s609] sm:$0xff]
  %v4662 = vpack.c.bf16 %v4564, %v4564
  %4664 = vrot.lane.b32.xlu0 %v4662, 32
  %v4665 = vpop.permute.xlu0 %4664
  %v4667 = vsel %vm122, %v4665, 0
  %4669 = vmatprep.subr.bf16.mxu0 0
  %4670 = vmatpush1.bf16.msra.mxu0 0
  %4671 = vmatprep.subr.bf16.mxu0 0
  %4672 = vmatpush1.bf16.msra.mxu0 0
  %4673 = vmatprep.subr.bf16.mxu0 0
  %4674 = vmatpush1.bf16.msra.mxu0 0
  %4675 = vmatprep.subr.bf16.mxu0 0
  %4676 = vmatpush1.bf16.msra.mxu0 0
  %4677 = vmatprep.subr.bf16.mxu0 0
  %4678 = vmatpush1.bf16.msra.mxu0 0
  %4679 = vmatprep.subr.bf16.mxu0 0
  %4680 = vmatpush1.bf16.msra.mxu0 0
  %4681 = vmatprep.subr.bf16.mxu0 0
  %4682 = vmatpush1.bf16.msra.mxu0 %v3787
  %4683 = vmatprep.subr.bf16.mxu0 0
  %4684 = vmatpush1.bf16.msra.mxu0 %v3786
  %4685 = vmatprep.subr.bf16.mxu0 0
  %4686 = vmatpush2.bf16.msra.mxu0 0
  %4687 = vmatprep.subr.bf16.mxu0 0
  %4688 = vmatpush2.bf16.msra.mxu0 0
  %4689 = vmatprep.subr.bf16.mxu0 0
  %4690 = vmatpush2.bf16.msra.mxu0 0
  %4691 = vmatprep.subr.bf16.mxu0 0
  %4692 = vmatpush2.bf16.msra.mxu0 0
  %4693 = vmatprep.subr.bf16.mxu0 0
  %4694 = vmatpush2.bf16.msra.mxu0 0
  %4695 = vmatprep.subr.bf16.mxu0 0
  %4696 = vmatpush2.bf16.msra.mxu0 0
  %4697 = vmatprep.subr.bf16.mxu0 0
  %4698 = vmatpush2.bf16.msra.mxu0 0
  %4699 = vmatprep.subr.bf16.mxu0 0
  %4700 = vmatpush2.bf16.msra.mxu0 0
  %4701 = vmatprep.mubr.bf16.mxu0 0
  %4702 = vmatmul.mubr.bf16.gmra.mxu0 %v4667
  %v4703 = vpop.f32.mrf.mxu0
  %v4704 = vadd.f32 0.0, %v4703
  %v4705 = vpop.f32.mrf.mxu0
  %v4706 = vpop.f32.mrf.mxu0
  %v4707 = vpop.f32.mrf.mxu0
  %4708 = vdwg.mxu0
  %v4709 = vadd.f32 %v4660, %v4704
  %v4710 = vxor.u32 %v4709, 2147483648
  %v4711 = vmul.f32 %v4710, 1.442695
  %v4712 = vpow.pop %v4711
  %v4713 = vadd.f32 %v4712, 1.0
  %v4714 = vrcp.pop %v4713
  %v4715 = vmul.f32 1.0, %v4714
  %v4716 = vtanh.pop %v4709
  %v4717 = vmul.f32 %v4715, %v4565
  %4719 = vrot.lane.b32.xlu0 %v4716, 64
  %v4720 = vpop.permute.xlu0 %4719
  %v4722 = vmul.f32 %v4715, %v4720
  %4724 = vrot.lane.b32.xlu0 %v4722, 32
  %v4725 = vpop.permute.xlu0 %4724
  %v4727 = vadd.f32 %v4717, %v4725
  %v4728 = vtanh.pop %v4727
  %4730 = vrot.lane.b32.xlu0 %v4728, 64
  %v4731 = vpop.permute.xlu0 %4730
  %v4733 = vmul.f32 %v4715, %v4731
  %vm4734 = vcmp.gt.f32.partialorder %v4661, 0.0
  %v4735 = vsel %vm4734, 1, 0
  %4736 = vset.pattern.permute.xlu0 0
  %4737 = vperm.xlu0 %4736, %v4735
  %v4738 = vpop.permute.xlu0 %4737
  %vm4739 = vcmp.eq.s32.totalorder %v4738, 1
  %v4740 = vsel %vm4739, %v4733, %v4564
  %v4741 = vsel %vm4739, %v4727, %v4565
  %v4742 = vsel %vm4739, %v4733, 0.0
  %4744 = vrot.lane.b32.xlu0 %v4742, 32
  %v4745 = vpop.permute.xlu0 %4744
  %4747 = vst.msk [vmem:[%s1331] sm:$0xff] %vm122, %v4745
  %v4748 = vld [vmem:[%s514] sm:$0xff]
  %v4749 = vld [vmem:[%s516] sm:$0xff]
  %v4750 = vpack.c.bf16 %v4652, %v4652
  %4752 = vrot.lane.b32.xlu0 %v4750, 32
  %v4753 = vpop.permute.xlu0 %4752
  %v4755 = vsel %vm122, %v4753, 0
  %4757 = vmatprep.subr.bf16.mxu0 0
  %4758 = vmatpush1.bf16.msra.mxu0 0
  %4759 = vmatprep.subr.bf16.mxu0 0
  %4760 = vmatpush1.bf16.msra.mxu0 0
  %4761 = vmatprep.subr.bf16.mxu0 0
  %4762 = vmatpush1.bf16.msra.mxu0 0
  %4763 = vmatprep.subr.bf16.mxu0 0
  %4764 = vmatpush1.bf16.msra.mxu0 0
  %4765 = vmatprep.subr.bf16.mxu0 0
  %4766 = vmatpush1.bf16.msra.mxu0 0
  %4767 = vmatprep.subr.bf16.mxu0 0
  %4768 = vmatpush1.bf16.msra.mxu0 0
  %4769 = vmatprep.subr.bf16.mxu0 0
  %4770 = vmatpush1.bf16.msra.mxu0 %v3695
  %4771 = vmatprep.subr.bf16.mxu0 0
  %4772 = vmatpush1.bf16.msra.mxu0 %v3694
  %4773 = vmatprep.subr.bf16.mxu0 0
  %4774 = vmatpush2.bf16.msra.mxu0 0
  %4775 = vmatprep.subr.bf16.mxu0 0
  %4776 = vmatpush2.bf16.msra.mxu0 0
  %4777 = vmatprep.subr.bf16.mxu0 0
  %4778 = vmatpush2.bf16.msra.mxu0 0
  %4779 = vmatprep.subr.bf16.mxu0 0
  %4780 = vmatpush2.bf16.msra.mxu0 0
  %4781 = vmatprep.subr.bf16.mxu0 0
  %4782 = vmatpush2.bf16.msra.mxu0 0
  %4783 = vmatprep.subr.bf16.mxu0 0
  %4784 = vmatpush2.bf16.msra.mxu0 0
  %4785 = vmatprep.subr.bf16.mxu0 0
  %4786 = vmatpush2.bf16.msra.mxu0 0
  %4787 = vmatprep.subr.bf16.mxu0 0
  %4788 = vmatpush2.bf16.msra.mxu0 0
  %4789 = vmatprep.mubr.bf16.mxu0 0
  %4790 = vmatmul.mubr.bf16.gmra.mxu0 %v4755
  %v4791 = vpop.f32.mrf.mxu0
  %v4792 = vadd.f32 0.0, %v4791
  %v4793 = vpop.f32.mrf.mxu0
  %v4794 = vpop.f32.mrf.mxu0
  %v4795 = vpop.f32.mrf.mxu0
  %4796 = vdwg.mxu0
  %v4797 = vadd.f32 %v4748, %v4792
  %v4798 = vxor.u32 %v4797, 2147483648
  %v4799 = vmul.f32 %v4798, 1.442695
  %v4800 = vpow.pop %v4799
  %v4801 = vadd.f32 %v4800, 1.0
  %v4802 = vrcp.pop %v4801
  %v4803 = vmul.f32 1.0, %v4802
  %v4804 = vtanh.pop %v4797
  %v4805 = vmul.f32 %v4803, %v4653
  %4807 = vrot.lane.b32.xlu0 %v4804, 64
  %v4808 = vpop.permute.xlu0 %4807
  %v4810 = vmul.f32 %v4803, %v4808
  %4812 = vrot.lane.b32.xlu0 %v4810, 32
  %v4813 = vpop.permute.xlu0 %4812
  %v4815 = vadd.f32 %v4805, %v4813
  %v4816 = vtanh.pop %v4815
  %4818 = vrot.lane.b32.xlu0 %v4816, 64
  %v4819 = vpop.permute.xlu0 %4818
  %v4821 = vmul.f32 %v4803, %v4819
  %vm4822 = vcmp.gt.f32.partialorder %v4749, 0.0
  %v4823 = vsel %vm4822, 1, 0
  %4824 = vset.pattern.permute.xlu0 0
  %4825 = vperm.xlu0 %4824, %v4823
  %v4826 = vpop.permute.xlu0 %4825
  %vm4827 = vcmp.eq.s32.totalorder %v4826, 1
  %v4828 = vsel %vm4827, %v4821, %v4652
  %v4829 = vsel %vm4827, %v4815, %v4653
  %v4830 = vsel %vm4827, %v4821, 0.0
  %4832 = vrot.lane.b32.xlu0 %v4830, 32
  %v4833 = vpop.permute.xlu0 %4832
  %4835 = vst.msk [vmem:[%s1420] sm:$0xff] %vm122, %v4833
  %v4836 = vld [vmem:[%s421 + $0x8] sm:$0xff]
  %v4837 = vld [vmem:[%s423] sm:$0xff]
  %v4838 = vpack.c.bf16 %v4740, %v4740
  %4840 = vrot.lane.b32.xlu0 %v4838, 32
  %v4841 = vpop.permute.xlu0 %4840
  %v4843 = vsel %vm122, %v4841, 0
  %4845 = vmatprep.subr.bf16.mxu0 0
  %4846 = vmatpush1.bf16.msra.mxu0 0
  %4847 = vmatprep.subr.bf16.mxu0 0
  %4848 = vmatpush1.bf16.msra.mxu0 0
  %4849 = vmatprep.subr.bf16.mxu0 0
  %4850 = vmatpush1.bf16.msra.mxu0 0
  %4851 = vmatprep.subr.bf16.mxu0 0
  %4852 = vmatpush1.bf16.msra.mxu0 0
  %4853 = vmatprep.subr.bf16.mxu0 0
  %4854 = vmatpush1.bf16.msra.mxu0 0
  %4855 = vmatprep.subr.bf16.mxu0 0
  %4856 = vmatpush1.bf16.msra.mxu0 0
  %4857 = vmatprep.subr.bf16.mxu0 0
  %4858 = vmatpush1.bf16.msra.mxu0 %v3787
  %4859 = vmatprep.subr.bf16.mxu0 0
  %4860 = vmatpush1.bf16.msra.mxu0 %v3786
  %4861 = vmatprep.subr.bf16.mxu0 0
  %4862 = vmatpush2.bf16.msra.mxu0 0
  %4863 = vmatprep.subr.bf16.mxu0 0
  %4864 = vmatpush2.bf16.msra.mxu0 0
  %4865 = vmatprep.subr.bf16.mxu0 0
  %4866 = vmatpush2.bf16.msra.mxu0 0
  %4867 = vmatprep.subr.bf16.mxu0 0
  %4868 = vmatpush2.bf16.msra.mxu0 0
  %4869 = vmatprep.subr.bf16.mxu0 0
  %4870 = vmatpush2.bf16.msra.mxu0 0
  %4871 = vmatprep.subr.bf16.mxu0 0
  %4872 = vmatpush2.bf16.msra.mxu0 0
  %4873 = vmatprep.subr.bf16.mxu0 0
  %4874 = vmatpush2.bf16.msra.mxu0 0
  %4875 = vmatprep.subr.bf16.mxu0 0
  %4876 = vmatpush2.bf16.msra.mxu0 0
  %4877 = vmatprep.mubr.bf16.mxu0 0
  %4878 = vmatmul.mubr.bf16.gmra.mxu0 %v4843
  %v4879 = vpop.f32.mrf.mxu0
  %v4880 = vadd.f32 0.0, %v4879
  %v4881 = vpop.f32.mrf.mxu0
  %v4882 = vpop.f32.mrf.mxu0
  %v4883 = vpop.f32.mrf.mxu0
  %4884 = vdwg.mxu0
  %v4885 = vadd.f32 %v4836, %v4880
  %v4886 = vxor.u32 %v4885, 2147483648
  %v4887 = vmul.f32 %v4886, 1.442695
  %v4888 = vpow.pop %v4887
  %v4889 = vadd.f32 %v4888, 1.0
  %v4890 = vrcp.pop %v4889
  %v4891 = vmul.f32 1.0, %v4890
  %v4892 = vtanh.pop %v4885
  %v4893 = vmul.f32 %v4891, %v4741
  %4895 = vrot.lane.b32.xlu0 %v4892, 64
  %v4896 = vpop.permute.xlu0 %4895
  %v4898 = vmul.f32 %v4891, %v4896
  %4900 = vrot.lane.b32.xlu0 %v4898, 32
  %v4901 = vpop.permute.xlu0 %4900
  %v4903 = vadd.f32 %v4893, %v4901
  %v4904 = vtanh.pop %v4903
  %4906 = vrot.lane.b32.xlu0 %v4904, 64
  %v4907 = vpop.permute.xlu0 %4906
  %v4909 = vmul.f32 %v4891, %v4907
  %vm4910 = vcmp.gt.f32.partialorder %v4837, 0.0
  %v4911 = vsel %vm4910, 1, 0
  %4912 = vset.pattern.permute.xlu0 0
  %4913 = vperm.xlu0 %4912, %v4911
  %v4914 = vpop.permute.xlu0 %4913
  %vm4915 = vcmp.eq.s32.totalorder %v4914, 1
  %v4916 = vsel %vm4915, %v4909, %v4740
  %v4917 = vsel %vm4915, %v4903, %v4741
  %v4918 = vsel %vm4915, %v4909, 0.0
  %4920 = vrot.lane.b32.xlu0 %v4918, 32
  %v4921 = vpop.permute.xlu0 %4920
  %4923 = vst.msk [vmem:[%s1509] sm:$0xff] %vm122, %v4921
  %v4924 = vld [vmem:[%s324] sm:$0xff]
  %v4925 = vld [vmem:[%s326] sm:$0xff]
  %v4926 = vpack.c.bf16 %v4828, %v4828
  %4928 = vrot.lane.b32.xlu0 %v4926, 32
  %v4929 = vpop.permute.xlu0 %4928
  %v4931 = vsel %vm122, %v4929, 0
  %4933 = vmatprep.subr.bf16.mxu0 0
  %4934 = vmatpush1.bf16.msra.mxu0 0
  %4935 = vmatprep.subr.bf16.mxu0 0
  %4936 = vmatpush1.bf16.msra.mxu0 0
  %4937 = vmatprep.subr.bf16.mxu0 0
  %4938 = vmatpush1.bf16.msra.mxu0 0
  %4939 = vmatprep.subr.bf16.mxu0 0
  %4940 = vmatpush1.bf16.msra.mxu0 0
  %4941 = vmatprep.subr.bf16.mxu0 0
  %4942 = vmatpush1.bf16.msra.mxu0 0
  %4943 = vmatprep.subr.bf16.mxu0 0
  %4944 = vmatpush1.bf16.msra.mxu0 0
  %4945 = vmatprep.subr.bf16.mxu0 0
  %4946 = vmatpush1.bf16.msra.mxu0 %v3695
  %4947 = vmatprep.subr.bf16.mxu0 0
  %4948 = vmatpush1.bf16.msra.mxu0 %v3694
  %4949 = vmatprep.subr.bf16.mxu0 0
  %4950 = vmatpush2.bf16.msra.mxu0 0
  %4951 = vmatprep.subr.bf16.mxu0 0
  %4952 = vmatpush2.bf16.msra.mxu0 0
  %4953 = vmatprep.subr.bf16.mxu0 0
  %4954 = vmatpush2.bf16.msra.mxu0 0
  %4955 = vmatprep.subr.bf16.mxu0 0
  %4956 = vmatpush2.bf16.msra.mxu0 0
  %4957 = vmatprep.subr.bf16.mxu0 0
  %4958 = vmatpush2.bf16.msra.mxu0 0
  %4959 = vmatprep.subr.bf16.mxu0 0
  %4960 = vmatpush2.bf16.msra.mxu0 0
  %4961 = vmatprep.subr.bf16.mxu0 0
  %4962 = vmatpush2.bf16.msra.mxu0 0
  %4963 = vmatprep.subr.bf16.mxu0 0
  %4964 = vmatpush2.bf16.msra.mxu0 0
  %4965 = vmatprep.mubr.bf16.mxu0 0
  %4966 = vmatmul.mubr.bf16.gmra.mxu0 %v4931
  %v4967 = vpop.f32.mrf.mxu0
  %v4968 = vadd.f32 0.0, %v4967
  %v4969 = vpop.f32.mrf.mxu0
  %v4970 = vpop.f32.mrf.mxu0
  %v4971 = vpop.f32.mrf.mxu0
  %4972 = vdwg.mxu0
  %v4973 = vadd.f32 %v4924, %v4968
  %v4974 = vxor.u32 %v4973, 2147483648
  %v4975 = vmul.f32 %v4974, 1.442695
  %v4976 = vpow.pop %v4975
  %v4977 = vadd.f32 %v4976, 1.0
  %v4978 = vrcp.pop %v4977
  %v4979 = vmul.f32 1.0, %v4978
  %v4980 = vtanh.pop %v4973
  %v4981 = vmul.f32 %v4979, %v4829
  %4983 = vrot.lane.b32.xlu0 %v4980, 64
  %v4984 = vpop.permute.xlu0 %4983
  %v4986 = vmul.f32 %v4979, %v4984
  %4988 = vrot.lane.b32.xlu0 %v4986, 32
  %v4989 = vpop.permute.xlu0 %4988
  %v4991 = vadd.f32 %v4981, %v4989
  %v4992 = vtanh.pop %v4991
  %4994 = vrot.lane.b32.xlu0 %v4992, 64
  %v4995 = vpop.permute.xlu0 %4994
  %v4997 = vmul.f32 %v4979, %v4995
  %vm4998 = vcmp.gt.f32.partialorder %v4925, 0.0
  %v4999 = vsel %vm4998, 1, 0
  %5000 = vset.pattern.permute.xlu0 0
  %5001 = vperm.xlu0 %5000, %v4999
  %v5002 = vpop.permute.xlu0 %5001
  %vm5003 = vcmp.eq.s32.totalorder %v5002, 1
  %v5004 = vsel %vm5003, %v4997, 0.0
  %5006 = vrot.lane.b32.xlu0 %v5004, 32
  %v5007 = vpop.permute.xlu0 %5006
  %5009 = vst.msk [vmem:[%s1596] sm:$0xff] %vm122, %v5007
  %v5010 = vld [vmem:[%s226 + $0x8] sm:$0xff]
  %v5011 = vld [vmem:[%s1] sm:$0xff]
  %v5012 = vpack.c.bf16 %v4916, %v4916
  %5014 = vrot.lane.b32.xlu0 %v5012, 32
  %v5015 = vpop.permute.xlu0 %5014
  %v5017 = vsel %vm122, %v5015, 0
  %5019 = vmatprep.subr.bf16.mxu0 0
  %5020 = vmatpush1.bf16.msra.mxu0 0
  %5021 = vmatprep.subr.bf16.mxu0 0
  %5022 = vmatpush1.bf16.msra.mxu0 0
  %5023 = vmatprep.subr.bf16.mxu0 0
  %5024 = vmatpush1.bf16.msra.mxu0 0
  %5025 = vmatprep.subr.bf16.mxu0 0
  %5026 = vmatpush1.bf16.msra.mxu0 0
  %5027 = vmatprep.subr.bf16.mxu0 0
  %5028 = vmatpush1.bf16.msra.mxu0 0
  %5029 = vmatprep.subr.bf16.mxu0 0
  %5030 = vmatpush1.bf16.msra.mxu0 0
  %5031 = vmatprep.subr.bf16.mxu0 0
  %5032 = vmatpush1.bf16.msra.mxu0 %v3787
  %5033 = vmatprep.subr.bf16.mxu0 0
  %5034 = vmatpush1.bf16.msra.mxu0 %v3786
  %5035 = vmatprep.subr.bf16.mxu0 0
  %5036 = vmatpush2.bf16.msra.mxu0 0
  %5037 = vmatprep.subr.bf16.mxu0 0
  %5038 = vmatpush2.bf16.msra.mxu0 0
  %5039 = vmatprep.subr.bf16.mxu0 0
  %5040 = vmatpush2.bf16.msra.mxu0 0
  %5041 = vmatprep.subr.bf16.mxu0 0
  %5042 = vmatpush2.bf16.msra.mxu0 0
  %5043 = vmatprep.subr.bf16.mxu0 0
  %5044 = vmatpush2.bf16.msra.mxu0 0
  %5045 = vmatprep.subr.bf16.mxu0 0
  %5046 = vmatpush2.bf16.msra.mxu0 0
  %5047 = vmatprep.subr.bf16.mxu0 0
  %5048 = vmatpush2.bf16.msra.mxu0 0
  %5049 = vmatprep.subr.bf16.mxu0 0
  %5050 = vmatpush2.bf16.msra.mxu0 0
  %5051 = vmatprep.mubr.bf16.mxu0 0
  %5052 = vmatmul.mubr.bf16.gmra.mxu0 %v5017
  %v5053 = vpop.f32.mrf.mxu0
  %v5054 = vadd.f32 0.0, %v5053
  %v5055 = vpop.f32.mrf.mxu0
  %v5056 = vpop.f32.mrf.mxu0
  %v5057 = vpop.f32.mrf.mxu0
  %5058 = vdwg.mxu0
  %v5059 = vadd.f32 %v5010, %v5054
  %v5060 = vxor.u32 %v5059, 2147483648
  %v5061 = vmul.f32 %v5060, 1.442695
  %v5062 = vpow.pop %v5061
  %v5063 = vadd.f32 %v5062, 1.0
  %v5064 = vrcp.pop %v5063
  %v5065 = vmul.f32 1.0, %v5064
  %v5066 = vtanh.pop %v5059
  %v5067 = vmul.f32 %v5065, %v4917
  %5069 = vrot.lane.b32.xlu0 %v5066, 64
  %v5070 = vpop.permute.xlu0 %5069
  %v5072 = vmul.f32 %v5065, %v5070
  %5074 = vrot.lane.b32.xlu0 %v5072, 32
  %v5075 = vpop.permute.xlu0 %5074
  %v5077 = vadd.f32 %v5067, %v5075
  %v5078 = vtanh.pop %v5077
  %5080 = vrot.lane.b32.xlu0 %v5078, 64
  %v5081 = vpop.permute.xlu0 %5080
  %v5083 = vmul.f32 %v5065, %v5081
  %vm5084 = vcmp.gt.f32.partialorder %v5011, 0.0
  %v5085 = vsel %vm5084, 1, 0
  %5086 = vset.pattern.permute.xlu0 0
  %5087 = vperm.xlu0 %5086, %v5085
  %v5088 = vpop.permute.xlu0 %5087
  %vm5089 = vcmp.eq.s32.totalorder %v5088, 1
  %v5090 = vsel %vm5089, %v5083, 0.0
  %5092 = vrot.lane.b32.xlu0 %v5090, 32
  %v5093 = vpop.permute.xlu0 %5092
  %5095 = vst.msk [vmem:[%s15] sm:$0xff] %vm122, %v5093
  // Predicated region
  $region58: #{lstm_encoder_forward.1} parent=0 // pred_check
    _
  $region59: #{lstm_encoder_forward.1} parent=0 // pred_check_branch
    %5097 = sbr.rel (0) target = $region61
  $region60: #{lstm_encoder_forward.1} parent=0 // pred_region
    _
  $region61: #{lstm_encoder_forward.1} parent=0 // pred_fallthru
    _
  // Predicated region
  $region62: #{lstm_encoder_forward.1} parent=0 // pred_check
    _
  $region63: #{lstm_encoder_forward.1} parent=0 // pred_check_branch
    %5099 = sbr.rel (0) target = $region65
  $region64: #{lstm_encoder_forward.1} parent=0 // pred_region
    _
  $region65: #{lstm_encoder_forward.1} parent=0 // pred_fallthru
    _
  // Predicated region
  $region66: #{lstm_encoder_forward.1} parent=0 // pred_check
    _
  $region67: #{lstm_encoder_forward.1} parent=0 // pred_check_branch
    %5101 = sbr.rel (0) target = $region69
  $region68: #{lstm_encoder_forward.1} parent=0 // pred_region
    _
  $region69: #{lstm_encoder_forward.1} parent=0 // pred_fallthru
    _
  // Predicated region
  $region70: #{lstm_encoder_forward.1} parent=0 // pred_check
    _
  $region71: #{lstm_encoder_forward.1} parent=0 // pred_check_branch
    %5103 = sbr.rel (0) target = $region73
  $region72: #{lstm_encoder_forward.1} parent=0 // pred_region
    _
  $region73: #{lstm_encoder_forward.1} parent=0 // pred_fallthru
    _

</llo_original>
